<compile_context>
chip_gen: v7x
topology: tpu7x:2x2x1
jax: 0.10.0
libtpu: 0.0.40
codegen_flags: <defaults>
</compile_context>

<pallas_src>
import jax
import jax.numpy as jnp
from jax.experimental import pallas as pl
from jax.experimental.pallas import tpu as pltpu


# ---------------------------------------------------------------------------
# Kernel 1: conv1-as-matmul  relu(patches @ W + b)
# ---------------------------------------------------------------------------
def _conv_matmul_relu_kernel(a_ref, w_ref, b_ref, o_ref):
    acc = jnp.dot(a_ref[...], w_ref[...], preferred_element_type=jnp.float32)
    o_ref[...] = jnp.maximum(acc + b_ref[...], 0.0)


def conv_matmul_relu(patches, w_mat, bias, *, tile_m=1024):
    # patches: [M, K]  w_mat: [K, OC]  bias: [OC]  ->  relu(patches @ w_mat + b)
    M, K = patches.shape
    OC = w_mat.shape[1]
    grid_m = pl.cdiv(M, tile_m)          # partial last block is masked by Pallas
    return pl.pallas_call(
        _conv_matmul_relu_kernel,
        out_shape=jax.ShapeDtypeStruct((M, OC), jnp.float32),
        grid=(grid_m,),
        in_specs=[
            pl.BlockSpec((tile_m, K), lambda i: (i, 0)),   # K = full dim (363)
            pl.BlockSpec((K, OC), lambda i: (0, 0)),       # whole weight resident
            pl.BlockSpec((1, OC), lambda i: (0, 0)),
        ],
        out_specs=pl.BlockSpec((tile_m, OC), lambda i: (i, 0)),
        compiler_params=pltpu.CompilerParams(
            dimension_semantics=("parallel",)),
    )(patches, w_mat, bias.reshape(1, OC))


# ---------------------------------------------------------------------------
# Kernel 2: 3x3 maxpool, stride 2.
#   Separable max: dense 3-tap max along W (unit-stride sublane slices), then
#   3-tap max at stride 2 along H folded in-kernel via leading-dim regrouping.
#   Output is [N, 27, 53, 96]; the W stride-2 subsample is applied by the
#   caller (fused into the following NCHW transpose).
# ---------------------------------------------------------------------------
def _maxpool3x3_s2_rows_kernel(x_ref, o_ref):
    x = x_ref[0]                       # [H, W, C]  (H leading, W sublane, C lane)
    H, W, C = x.shape
    OH = (H - 3) // 2 + 1              # 27 (requires odd H; H = 2*OH + 1)
    WD = W - 2                         # 53 dense W outputs
    # W direction: dense 3-tap running max (unit-stride slices only).
    mw = jnp.maximum(jnp.maximum(x[:, 0:WD, :], x[:, 1:WD + 1, :]),
                     x[:, 2:WD + 2, :])                      # [H, WD, C]
    # H direction: stride-2 3-tap max using leading-dim-only reshape/indexing.
    pairs = mw[0:2 * OH].reshape(OH, 2, WD, C)
    ev = pairs[:, 0]                   # rows 0, 2, ..., 2*OH-2
    od = pairs[:, 1]                   # rows 1, 3, ..., 2*OH-1
    body = jnp.maximum(jnp.maximum(ev[0:OH - 1], od[0:OH - 1]), ev[1:OH])
    last = jnp.maximum(jnp.maximum(ev[OH - 1:OH], od[OH - 1:OH]),
                       mw[2 * OH:2 * OH + 1])
    o_ref[0, 0:OH - 1] = body
    o_ref[0, OH - 1:OH] = last


def maxpool_3x3_s2_fold_h(x_nhwc):
    # x_nhwc: [N, H, W, C] -> [N, (H-3)//2+1, W-2, C]   (W still dense)
    N, H, W, C = x_nhwc.shape
    OH = (H - 3) // 2 + 1
    WD = W - 2
    # TODO(synk): on v7x give this grid >2 steps (H-row tiles with halo) so both
    # TensorCores get pipelined work; with N=2 each core runs a single step.
    return pl.pallas_call(
        _maxpool3x3_s2_rows_kernel,
        out_shape=jax.ShapeDtypeStruct((N, OH, WD, C), x_nhwc.dtype),
        grid=(N,),
        in_specs=[pl.BlockSpec((1, H, W, C), lambda n: (n, 0, 0, 0))],
        out_specs=pl.BlockSpec((1, OH, WD, C), lambda n: (n, 0, 0, 0)),
        compiler_params=pltpu.CompilerParams(
            dimension_semantics=("parallel",)),
    )(x_nhwc)


# ---------------------------------------------------------------------------
# Kernel 3: fc3 (5 outputs) as VPU broadcast-multiply + K-reduction.
#   Weight kept in PyTorch [num_classes, K] layout (no 5->128 lane padding),
#   K folded to [sub, lane] so VMEM sublanes are dense.  Single grid step;
#   whole working set (~4 MB) sits in VMEM.
# ---------------------------------------------------------------------------
def _fc_small_kernel(x_ref, w_ref, b_ref, o_ref):
    x = x_ref[...]                                     # [M, sub, lane]
    for n in range(w_ref.shape[0]):                    # num_classes (5), unrolled
        wn = w_ref[n:n + 1]                            # [1, sub, lane]
        s = jnp.sum(jnp.sum(x * wn, axis=2), axis=1, keepdims=True)   # [M, 1]
        o_ref[:, n:n + 1] = s + b_ref[:, n:n + 1]


def fc_small(x, w, b, *, sub=8):
    # x: [M, K]  w: [NC, K] (PyTorch layout)  b: [NC]  ->  x @ w.T + b
    M, K = x.shape
    NC = w.shape[0]
    assert K % sub == 0
    lane = K // sub
    x3 = x.reshape(M, sub, lane)
    w3 = w.reshape(NC, sub, lane)
    return pl.pallas_call(
        _fc_small_kernel,
        out_shape=jax.ShapeDtypeStruct((M, NC), jnp.float32),
        grid=(1,),
        in_specs=[
            pl.BlockSpec((M, sub, lane), lambda i: (0, 0, 0)),
            pl.BlockSpec((NC, sub, lane), lambda i: (0, 0, 0)),
            pl.BlockSpec((1, NC), lambda i: (0, 0)),
        ],
        out_specs=pl.BlockSpec((M, NC), lambda i: (0, 0)),
    )(x3, w3, b.reshape(1, NC))


# ---------------------------------------------------------------------------
# Glue: im2col (no large transpose -- only the 0.6 MB input is transposed)
# ---------------------------------------------------------------------------
def _im2col_nhwc(x_nchw, kh, kw, stride):
    N, C, H, W = x_nchw.shape
    OH = (H - kh) // stride + 1
    OW = (W - kw) // stride + 1
    x = jnp.transpose(x_nchw, (0, 2, 3, 1))            # [N, H, W, C]  (small)
    cols = []
    for i in range(kh):
        for j in range(kw):
            cols.append(
                x[:, i:i + stride * (OH - 1) + 1:stride,
                     j:j + stride * (OW - 1) + 1:stride, :]
                .reshape(N * OH * OW, C))
    # column order = (kh, kw, c)
    patches = jnp.concatenate(cols, axis=-1)           # [N*OH*OW, kh*kw*C]
    return patches, OH, OW


# ---------------------------------------------------------------------------
# Full forward pass (matches AlexNet_Extreme.forward)
# ---------------------------------------------------------------------------
@jax.jit
def alexnet_extreme_forward(x, params):
    w1, b1 = params["conv1_w"], params["conv1_b"]      # [96,3,11,11], [96]
    w3, b3 = params["fc3_w"], params["fc3_b"]          # [5,69984],   [5]
    N = x.shape[0]
    OC = w1.shape[0]

    # conv1 + relu
    patches, OH, OW = _im2col_nhwc(x, 11, 11, 4)       # [N*55*55, 363]
    w_mat = jnp.transpose(w1, (2, 3, 1, 0)).reshape(-1, OC)   # [363, 96] (kh,kw,c)
    conv = conv_matmul_relu(patches, w_mat, b1)        # [N*55*55, 96]
    conv = conv.reshape(N, OH, OW, OC)                 # NHWC [N,55,55,96]

    # maxpool 3x3 stride 2 (H folded in-kernel; W stride-2 fused into the
    # NCHW-flatten transpose below)
    pooled_rows = maxpool_3x3_s2_fold_h(conv)          # [N, 27, 53, 96]
    pooled = pooled_rows[:, :, ::2, :]                 # [N, 27, 27, 96]

    # flatten in torch NCHW order, then fc3
    feat = jnp.transpose(pooled, (0, 3, 1, 2)).reshape(N, -1)   # [N, 69984]
    return fc_small(feat, w3, b3)                      # [N, 5]


if __name__ == "__main__":
    key = jax.random.PRNGKey(0)
    kx, k1, k2, k3, k4 = jax.random.split(key, 5)

    # fc3 in_features = 69984 = 96*27*27 -> conv out 55x55 -> input 227x227.
    x = jax.random.normal(kx, (2, 3, 227, 227), dtype=jnp.float32)

    params = {
        "conv1_w": jax.random.normal(k1, (96, 3, 11, 11), jnp.float32) * 0.05,
        "conv1_b": jax.random.normal(k2, (96,), jnp.float32) * 0.05,
        "fc3_w": jax.random.normal(k3, (5, 69984), jnp.float32) * 0.01,
        "fc3_b": jax.random.normal(k4, (5,), jnp.float32) * 0.01,
    }

    out = jax.block_until_ready(alexnet_extreme_forward(x, params))
    assert out.shape == (2, 5), out.shape
    assert out.dtype == jnp.float32
    print("KERNEL_OK")
</pallas_src>

<mosaic_0001>
module attributes {stable_mosaic.version = 11 : i64} {
  func.func @_conv_matmul_relu_kernel(%arg0: i32, %arg1: memref<1024x363xf32, #tpu.memory_space<vmem>>, %arg2: memref<363x96xf32, #tpu.memory_space<vmem>>, %arg3: memref<1x96xf32, #tpu.memory_space<vmem>>, %arg4: memref<1024x96xf32, #tpu.memory_space<vmem>>) attributes {dimension_semantics = [#tpu.dimension_semantics<parallel>], iteration_bounds = array<i64: 6>, scalar_prefetch = 0 : i64, scratch_operands = 0 : i64, tpu.core_type = #tpu.core_type<tc>, window_params = [{transform_indices = @transform_0, window_bounds = array<i64: 1024, 363>}, {pipeline_mode = #tpu.pipeline_mode<synchronous>, transform_indices = @transform_1, window_bounds = array<i64: 363, 96>}, {pipeline_mode = #tpu.pipeline_mode<synchronous>, transform_indices = @transform_2, window_bounds = array<i64: 1, 96>}, {transform_indices = @transform_3, window_bounds = array<i64: 1024, 96>}]} {
    %c0 = arith.constant 0 : index
    %c0_0 = arith.constant 0 : index
    %0 = vector.load %arg1[%c0, %c0_0] : memref<1024x363xf32, #tpu.memory_space<vmem>>, vector<1024x363xf32>
    %c0_1 = arith.constant 0 : index
    %c0_2 = arith.constant 0 : index
    %1 = vector.load %arg2[%c0_1, %c0_2] : memref<363x96xf32, #tpu.memory_space<vmem>>, vector<363x96xf32>
    %cst = arith.constant dense<0.000000e+00> : vector<1024x96xf32>
    %2 = tpu.matmul %0, %1, %cst {dimension_numbers = #tpu.dot_dimension_numbers<[1], [0], [0], [1], [0, 0, 1, 1], [], []>} : vector<1024x363xf32>, vector<363x96xf32>, vector<1024x96xf32> -> vector<1024x96xf32>
    %c0_3 = arith.constant 0 : index
    %c0_4 = arith.constant 0 : index
    %3 = vector.load %arg3[%c0_3, %c0_4] : memref<1x96xf32, #tpu.memory_space<vmem>>, vector<1x96xf32>
    %4 = vector.broadcast %3 : vector<1x96xf32> to vector<1024x96xf32>
    %5 = arith.addf %2, %4 : vector<1024x96xf32>
    %cst_5 = arith.constant 0.000000e+00 : f32
    %6 = vector.broadcast %cst_5 : f32 to vector<1024x96xf32>
    %7 = arith.maximumf %5, %6 : vector<1024x96xf32>
    %c0_6 = arith.constant 0 : index
    %c0_7 = arith.constant 0 : index
    %8 = vector.load %arg4[%c0_6, %c0_7] : memref<1024x96xf32, #tpu.memory_space<vmem>>, vector<1024x96xf32>
    tpu.vector_store %arg4[%c0_6, %c0_7], %7 {strides = array<i32>} : memref<1024x96xf32, #tpu.memory_space<vmem>>, vector<1024x96xf32>,
    return
  }
  func.func @transform_0(%arg0: i32) -> (i32, i32) {
    %c0_i32 = arith.constant 0 : i32
    %c0_i32_0 = arith.constant 0 : i32
    return %arg0, %c0_i32 : i32, i32
  }
  func.func @transform_1(%arg0: i32) -> (i32, i32) {
    %c0_i32 = arith.constant 0 : i32
    %c0_i32_0 = arith.constant 0 : i32
    %c0_i32_1 = arith.constant 0 : i32
    return %c0_i32, %c0_i32_0 : i32, i32
  }
  func.func @transform_2(%arg0: i32) -> (i32, i32) {
    %c0_i32 = arith.constant 0 : i32
    %c0_i32_0 = arith.constant 0 : i32
    %c0_i32_1 = arith.constant 0 : i32
    return %c0_i32, %c0_i32_0 : i32, i32
  }
  func.func @transform_3(%arg0: i32) -> (i32, i32) {
    %c0_i32 = arith.constant 0 : i32
    %c0_i32_0 = arith.constant 0 : i32
    return %arg0, %c0_i32 : i32, i32
  }
}

module attributes {stable_mosaic.version = 11 : i64} {
  func.func @_maxpool3x3_s2_rows_kernel(%arg0: i32, %arg1: memref<1x55x55x96xf32, #tpu.memory_space<vmem>>, %arg2: memref<1x27x53x96xf32, #tpu.memory_space<vmem>>) attributes {dimension_semantics = [#tpu.dimension_semantics<parallel>], iteration_bounds = array<i64: 2>, scalar_prefetch = 0 : i64, scratch_operands = 0 : i64, tpu.core_type = #tpu.core_type<tc>, window_params = [{transform_indices = @transform_0, window_bounds = array<i64: 1, 55, 55, 96>}, {transform_indices = @transform_1, window_bounds = array<i64: 1, 27, 53, 96>}]} {
    %c0 = arith.constant 0 : index
    %c0_0 = arith.constant 0 : index
    %c0_1 = arith.constant 0 : index
    %c0_2 = arith.constant 0 : index
    %0 = vector.load %arg1[%c0, %c0_0, %c0_1, %c0_2] : memref<1x55x55x96xf32, #tpu.memory_space<vmem>>, vector<1x55x55x96xf32>
    %1 = vector.shape_cast %0 : vector<1x55x55x96xf32> to vector<55x55x96xf32>
    %2 = vector.extract_strided_slice %1 {offsets = [0, 0, 0], sizes = [55, 53, 96], strides = [1, 1, 1]} : vector<55x55x96xf32> to vector<55x53x96xf32>
    %3 = vector.extract_strided_slice %1 {offsets = [0, 1, 0], sizes = [55, 53, 96], strides = [1, 1, 1]} : vector<55x55x96xf32> to vector<55x53x96xf32>
    %4 = arith.maximumf %2, %3 : vector<55x53x96xf32>
    %5 = vector.extract_strided_slice %1 {offsets = [0, 2, 0], sizes = [55, 53, 96], strides = [1, 1, 1]} : vector<55x55x96xf32> to vector<55x53x96xf32>
    %6 = arith.maximumf %4, %5 : vector<55x53x96xf32>
    %7 = vector.extract_strided_slice %6 {offsets = [0, 0, 0], sizes = [54, 53, 96], strides = [1, 1, 1]} : vector<55x53x96xf32> to vector<54x53x96xf32>
    %8 = vector.shape_cast %7 : vector<54x53x96xf32> to vector<27x2x53x96xf32>
    %9 = vector.extract_strided_slice %8 {offsets = [0, 0, 0, 0], sizes = [27, 1, 53, 96], strides = [1, 1, 1, 1]} : vector<27x2x53x96xf32> to vector<27x1x53x96xf32>
    %10 = vector.shape_cast %9 : vector<27x1x53x96xf32> to vector<27x53x96xf32>
    %11 = vector.extract_strided_slice %8 {offsets = [0, 1, 0, 0], sizes = [27, 1, 53, 96], strides = [1, 1, 1, 1]} : vector<27x2x53x96xf32> to vector<27x1x53x96xf32>
    %12 = vector.shape_cast %11 : vector<27x1x53x96xf32> to vector<27x53x96xf32>
    %13 = vector.extract_strided_slice %10 {offsets = [0, 0, 0], sizes = [26, 53, 96], strides = [1, 1, 1]} : vector<27x53x96xf32> to vector<26x53x96xf32>
    %14 = vector.extract_strided_slice %12 {offsets = [0, 0, 0], sizes = [26, 53, 96], strides = [1, 1, 1]} : vector<27x53x96xf32> to vector<26x53x96xf32>
    %15 = arith.maximumf %13, %14 : vector<26x53x96xf32>
    %16 = vector.extract_strided_slice %10 {offsets = [1, 0, 0], sizes = [26, 53, 96], strides = [1, 1, 1]} : vector<27x53x96xf32> to vector<26x53x96xf32>
    %17 = arith.maximumf %15, %16 : vector<26x53x96xf32>
    %18 = vector.extract_strided_slice %10 {offsets = [26, 0, 0], sizes = [1, 53, 96], strides = [1, 1, 1]} : vector<27x53x96xf32> to vector<1x53x96xf32>
    %19 = vector.extract_strided_slice %12 {offsets = [26, 0, 0], sizes = [1, 53, 96], strides = [1, 1, 1]} : vector<27x53x96xf32> to vector<1x53x96xf32>
    %20 = arith.maximumf %18, %19 : vector<1x53x96xf32>
    %21 = vector.extract_strided_slice %6 {offsets = [54, 0, 0], sizes = [1, 53, 96], strides = [1, 1, 1]} : vector<55x53x96xf32> to vector<1x53x96xf32>
    %22 = arith.maximumf %20, %21 : vector<1x53x96xf32>
    %c0_3 = arith.constant 0 : index
    %c0_4 = arith.constant 0 : index
    %c0_5 = arith.constant 0 : index
    %c0_6 = arith.constant 0 : index
    %23 = vector.load %arg2[%c0_3, %c0_4, %c0_5, %c0_6] : memref<1x27x53x96xf32, #tpu.memory_space<vmem>>, vector<1x26x53x96xf32>
    %24 = vector.shape_cast %23 : vector<1x26x53x96xf32> to vector<26x53x96xf32>
    %25 = vector.shape_cast %17 : vector<26x53x96xf32> to vector<1x26x53x96xf32>
    tpu.vector_store %arg2[%c0_3, %c0_4, %c0_5, %c0_6], %25 {strides = array<i32>} : memref<1x27x53x96xf32, #tpu.memory_space<vmem>>, vector<1x26x53x96xf32>,
    %c0_7 = arith.constant 0 : index
    %c26 = arith.constant 26 : index
    %c0_8 = arith.constant 0 : index
    %c0_9 = arith.constant 0 : index
    %26 = vector.load %arg2[%c0_7, %c26, %c0_8, %c0_9] : memref<1x27x53x96xf32, #tpu.memory_space<vmem>>, vector<1x1x53x96xf32>
    %27 = vector.shape_cast %26 : vector<1x1x53x96xf32> to vector<1x53x96xf32>
    %28 = vector.shape_cast %22 : vector<1x53x96xf32> to vector<1x1x53x96xf32>
    tpu.vector_store %arg2[%c0_7, %c26, %c0_8, %c0_9], %28 {strides = array<i32>} : memref<1x27x53x96xf32, #tpu.memory_space<vmem>>, vector<1x1x53x96xf32>,
    return
  }
  func.func @transform_0(%arg0: i32) -> (i32, i32, i32, i32) {
    %c0_i32 = arith.constant 0 : i32
    %c0_i32_0 = arith.constant 0 : i32
    %c0_i32_1 = arith.constant 0 : i32
    %c0_i32_2 = arith.constant 0 : i32
    return %arg0, %c0_i32, %c0_i32_0, %c0_i32_1 : i32, i32, i32, i32
  }
  func.func @transform_1(%arg0: i32) -> (i32, i32, i32, i32) {
    %c0_i32 = arith.constant 0 : i32
    %c0_i32_0 = arith.constant 0 : i32
    %c0_i32_1 = arith.constant 0 : i32
    %c0_i32_2 = arith.constant 0 : i32
    return %arg0, %c0_i32, %c0_i32_0, %c0_i32_1 : i32, i32, i32, i32
  }
}

module attributes {stable_mosaic.version = 11 : i64} {
  func.func @_fc_small_kernel(%arg0: i32, %arg1: memref<2x8x8748xf32, #tpu.memory_space<vmem>>, %arg2: memref<5x8x8748xf32, #tpu.memory_space<vmem>>, %arg3: memref<1x5xf32, #tpu.memory_space<vmem>>, %arg4: memref<2x5xf32, #tpu.memory_space<vmem>>) attributes {dimension_semantics = [#tpu.dimension_semantics<arbitrary>], iteration_bounds = array<i64: 1>, scalar_prefetch = 0 : i64, scratch_operands = 0 : i64, tpu.core_type = #tpu.core_type<tc>, window_params = [{pipeline_mode = #tpu.pipeline_mode<synchronous>, transform_indices = @transform_0, window_bounds = array<i64: 2, 8, 8748>}, {pipeline_mode = #tpu.pipeline_mode<synchronous>, transform_indices = @transform_1, window_bounds = array<i64: 5, 8, 8748>}, {pipeline_mode = #tpu.pipeline_mode<synchronous>, transform_indices = @transform_2, window_bounds = array<i64: 1, 5>}, {pipeline_mode = #tpu.pipeline_mode<synchronous>, transform_indices = @transform_3, window_bounds = array<i64: 2, 5>}]} {
    %c0 = arith.constant 0 : index
    %c0_0 = arith.constant 0 : index
    %c0_1 = arith.constant 0 : index
    %0 = vector.load %arg1[%c0, %c0_0, %c0_1] : memref<2x8x8748xf32, #tpu.memory_space<vmem>>, vector<2x8x8748xf32>
    %c0_2 = arith.constant 0 : index
    %c0_3 = arith.constant 0 : index
    %c0_4 = arith.constant 0 : index
    %1 = vector.load %arg2[%c0_2, %c0_3, %c0_4] : memref<5x8x8748xf32, #tpu.memory_space<vmem>>, vector<1x8x8748xf32>
    %2 = vector.broadcast %1 : vector<1x8x8748xf32> to vector<2x8x8748xf32>
    %3 = arith.mulf %0, %2 : vector<2x8x8748xf32>
    %cst = arith.constant dense<0.000000e+00> : vector<2x8xf32>
    %4 = vector.multi_reduction <add>, %3, %cst [2] : vector<2x8x8748xf32> to vector<2x8xf32>
    %cst_5 = arith.constant dense<0.000000e+00> : vector<2xf32>
    %5 = vector.multi_reduction <add>, %4, %cst_5 [1] : vector<2x8xf32> to vector<2xf32>
    %6 = vector.shape_cast %5 : vector<2xf32> to vector<2x1xf32>
    %c0_6 = arith.constant 0 : index
    %c0_7 = arith.constant 0 : index
    %7 = vector.load %arg3[%c0_6, %c0_7] : memref<1x5xf32, #tpu.memory_space<vmem>>, vector<1x1xf32>
    %8 = vector.broadcast %7 : vector<1x1xf32> to vector<2x1xf32>
    %9 = arith.addf %6, %8 : vector<2x1xf32>
    %c0_8 = arith.constant 0 : index
    %c0_9 = arith.constant 0 : index
    %10 = vector.load %arg4[%c0_8, %c0_9] : memref<2x5xf32, #tpu.memory_space<vmem>>, vector<2x1xf32>
    tpu.vector_store %arg4[%c0_8, %c0_9], %9 {strides = array<i32>} : memref<2x5xf32, #tpu.memory_space<vmem>>, vector<2x1xf32>,
    %c1 = arith.constant 1 : index
    %c0_10 = arith.constant 0 : index
    %c0_11 = arith.constant 0 : index
    %11 = vector.load %arg2[%c1, %c0_10, %c0_11] : memref<5x8x8748xf32, #tpu.memory_space<vmem>>, vector<1x8x8748xf32>
    %12 = vector.broadcast %11 : vector<1x8x8748xf32> to vector<2x8x8748xf32>
    %13 = arith.mulf %0, %12 : vector<2x8x8748xf32>
    %cst_12 = arith.constant dense<0.000000e+00> : vector<2x8xf32>
    %14 = vector.multi_reduction <add>, %13, %cst_12 [2] : vector<2x8x8748xf32> to vector<2x8xf32>
    %cst_13 = arith.constant dense<0.000000e+00> : vector<2xf32>
    %15 = vector.multi_reduction <add>, %14, %cst_13 [1] : vector<2x8xf32> to vector<2xf32>
    %16 = vector.shape_cast %15 : vector<2xf32> to vector<2x1xf32>
    %c0_14 = arith.constant 0 : index
    %c1_15 = arith.constant 1 : index
    %17 = vector.load %arg3[%c0_14, %c1_15] : memref<1x5xf32, #tpu.memory_space<vmem>>, vector<1x1xf32>
    %18 = vector.broadcast %17 : vector<1x1xf32> to vector<2x1xf32>
    %19 = arith.addf %16, %18 : vector<2x1xf32>
    %c0_16 = arith.constant 0 : index
    %c1_17 = arith.constant 1 : index
    %20 = vector.load %arg4[%c0_16, %c1_17] : memref<2x5xf32, #tpu.memory_space<vmem>>, vector<2x1xf32>
    tpu.vector_store %arg4[%c0_16, %c1_17], %19 {strides = array<i32>} : memref<2x5xf32, #tpu.memory_space<vmem>>, vector<2x1xf32>,
    %c2 = arith.constant 2 : index
    %c0_18 = arith.constant 0 : index
    %c0_19 = arith.constant 0 : index
    %21 = vector.load %arg2[%c2, %c0_18, %c0_19] : memref<5x8x8748xf32, #tpu.memory_space<vmem>>, vector<1x8x8748xf32>
    %22 = vector.broadcast %21 : vector<1x8x8748xf32> to vector<2x8x8748xf32>
    %23 = arith.mulf %0, %22 : vector<2x8x8748xf32>
    %cst_20 = arith.constant dense<0.000000e+00> : vector<2x8xf32>
    %24 = vector.multi_reduction <add>, %23, %cst_20 [2] : vector<2x8x8748xf32> to vector<2x8xf32>
    %cst_21 = arith.constant dense<0.000000e+00> : vector<2xf32>
    %25 = vector.multi_reduction <add>, %24, %cst_21 [1] : vector<2x8xf32> to vector<2xf32>
    %26 = vector.shape_cast %25 : vector<2xf32> to vector<2x1xf32>
    %c0_22 = arith.constant 0 : index
    %c2_23 = arith.constant 2 : index
    %27 = vector.load %arg3[%c0_22, %c2_23] : memref<1x5xf32, #tpu.memory_space<vmem>>, vector<1x1xf32>
    %28 = vector.broadcast %27 : vector<1x1xf32> to vector<2x1xf32>
    %29 = arith.addf %26, %28 : vector<2x1xf32>
    %c0_24 = arith.constant 0 : index
    %c2_25 = arith.constant 2 : index
    %30 = vector.load %arg4[%c0_24, %c2_25] : memref<2x5xf32, #tpu.memory_space<vmem>>, vector<2x1xf32>
    tpu.vector_store %arg4[%c0_24, %c2_25], %29 {strides = array<i32>} : memref<2x5xf32, #tpu.memory_space<vmem>>, vector<2x1xf32>,
    %c3 = arith.constant 3 : index
    %c0_26 = arith.constant 0 : index
    %c0_27 = arith.constant 0 : index
    %31 = vector.load %arg2[%c3, %c0_26, %c0_27] : memref<5x8x8748xf32, #tpu.memory_space<vmem>>, vector<1x8x8748xf32>
    %32 = vector.broadcast %31 : vector<1x8x8748xf32> to vector<2x8x8748xf32>
    %33 = arith.mulf %0, %32 : vector<2x8x8748xf32>
    %cst_28 = arith.constant dense<0.000000e+00> : vector<2x8xf32>
    %34 = vector.multi_reduction <add>, %33, %cst_28 [2] : vector<2x8x8748xf32> to vector<2x8xf32>
    %cst_29 = arith.constant dense<0.000000e+00> : vector<2xf32>
    %35 = vector.multi_reduction <add>, %34, %cst_29 [1] : vector<2x8xf32> to vector<2xf32>
    %36 = vector.shape_cast %35 : vector<2xf32> to vector<2x1xf32>
    %c0_30 = arith.constant 0 : index
    %c3_31 = arith.constant 3 : index
    %37 = vector.load %arg3[%c0_30, %c3_31] : memref<1x5xf32, #tpu.memory_space<vmem>>, vector<1x1xf32>
    %38 = vector.broadcast %37 : vector<1x1xf32> to vector<2x1xf32>
    %39 = arith.addf %36, %38 : vector<2x1xf32>
    %c0_32 = arith.constant 0 : index
    %c3_33 = arith.constant 3 : index
    %40 = vector.load %arg4[%c0_32, %c3_33] : memref<2x5xf32, #tpu.memory_space<vmem>>, vector<2x1xf32>
    tpu.vector_store %arg4[%c0_32, %c3_33], %39 {strides = array<i32>} : memref<2x5xf32, #tpu.memory_space<vmem>>, vector<2x1xf32>,
    %c4 = arith.constant 4 : index
    %c0_34 = arith.constant 0 : index
    %c0_35 = arith.constant 0 : index
    %41 = vector.load %arg2[%c4, %c0_34, %c0_35] : memref<5x8x8748xf32, #tpu.memory_space<vmem>>, vector<1x8x8748xf32>
    %42 = vector.broadcast %41 : vector<1x8x8748xf32> to vector<2x8x8748xf32>
    %43 = arith.mulf %0, %42 : vector<2x8x8748xf32>
    %cst_36 = arith.constant dense<0.000000e+00> : vector<2x8xf32>
    %44 = vector.multi_reduction <add>, %43, %cst_36 [2] : vector<2x8x8748xf32> to vector<2x8xf32>
    %cst_37 = arith.constant dense<0.000000e+00> : vector<2xf32>
    %45 = vector.multi_reduction <add>, %44, %cst_37 [1] : vector<2x8xf32> to vector<2xf32>
    %46 = vector.shape_cast %45 : vector<2xf32> to vector<2x1xf32>
    %c0_38 = arith.constant 0 : index
    %c4_39 = arith.constant 4 : index
    %47 = vector.load %arg3[%c0_38, %c4_39] : memref<1x5xf32, #tpu.memory_space<vmem>>, vector<1x1xf32>
    %48 = vector.broadcast %47 : vector<1x1xf32> to vector<2x1xf32>
    %49 = arith.addf %46, %48 : vector<2x1xf32>
    %c0_40 = arith.constant 0 : index
    %c4_41 = arith.constant 4 : index
    %50 = vector.load %arg4[%c0_40, %c4_41] : memref<2x5xf32, #tpu.memory_space<vmem>>, vector<2x1xf32>
    tpu.vector_store %arg4[%c0_40, %c4_41], %49 {strides = array<i32>} : memref<2x5xf32, #tpu.memory_space<vmem>>, vector<2x1xf32>,
    return
  }
  func.func @transform_0(%arg0: i32) -> (i32, i32, i32) {
    %c0_i32 = arith.constant 0 : i32
    %c0_i32_0 = arith.constant 0 : i32
    %c0_i32_1 = arith.constant 0 : i32
    %c0_i32_2 = arith.constant 0 : i32
    return %c0_i32, %c0_i32_0, %c0_i32_1 : i32, i32, i32
  }
  func.func @transform_1(%arg0: i32) -> (i32, i32, i32) {
    %c0_i32 = arith.constant 0 : i32
    %c0_i32_0 = arith.constant 0 : i32
    %c0_i32_1 = arith.constant 0 : i32
    %c0_i32_2 = arith.constant 0 : i32
    return %c0_i32, %c0_i32_0, %c0_i32_1 : i32, i32, i32
  }
  func.func @transform_2(%arg0: i32) -> (i32, i32) {
    %c0_i32 = arith.constant 0 : i32
    %c0_i32_0 = arith.constant 0 : i32
    %c0_i32_1 = arith.constant 0 : i32
    return %c0_i32, %c0_i32_0 : i32, i32
  }
  func.func @transform_3(%arg0: i32) -> (i32, i32) {
    %c0_i32 = arith.constant 0 : i32
    %c0_i32_0 = arith.constant 0 : i32
    %c0_i32_1 = arith.constant 0 : i32
    return %c0_i32, %c0_i32_0 : i32, i32
  }
}

</mosaic_0001>

<llo_original>
// kernel: alexnet_extreme_forward.3
$region0: #{alexnet_extreme_forward.3}
  #allocation0 [shape = 'u32[]', space=smem, size = 0x4, offset = 0x4, fixed_abs, tag = 'smem constant byte address 0x4 - core index']
  #allocation1 [shape = 'u32[144,128]{1,0:T(1,128)}', space=vmem, size = 0x12000, scoped, tag = 'internal scratch']
  %s0 = inlined_call_operand.vmem [shape: f32[6050,363], index: 0, kind: input, shape index: {}]
  %s1 = inlined_call_operand.vmem [shape: f32[363,96], index: 1, kind: input, shape index: {}]
  %s2 = inlined_call_operand.vmem [shape: f32[1,96], index: 2, kind: input, shape index: {}]
  %s3 = inlined_call_operand.vmem [shape: f32[6050,96], index: 3, kind: output, shape index: {}]
  %s4 = sld [smem:[#allocation0]]
  $region93: #{alexnet_extreme_forward.3} parent=0
    _
  %s6 = ssub.s32 1, %s4
  %s7 = scalar_select 0, %s6, %s4
  $region1: #{alexnet_extreme_forward.3} parent=0
    #allocation2 [shape = 'u8[1048576]{0}', space=vmem, size = 0x100000, scoped, tag = 'output window, operand 0']
    loop: start=0, step=1, limit=8
    $region2: #{alexnet_extreme_forward.3} parent=1 // loop_pre_header
      _
    $region3: #{alexnet_extreme_forward.3} parent=1 // loop_header
      %s9 = sphi 0, %s13
      %p10 = scmp.ge.s32.totalorder %s9, 8
      %s19 = sphi 0, %s21
      %s22 = sphi 0, %s19
      %s23 = sphi 0, %s22
      %s39 = sphi 0, %s23
      %s43 = sphi 0, %s43
      %s45 = sphi 0, %s43
      %s46 = sphi 0, %s45
      %s60 = sphi 0, %s46
      %s64 = sphi 0, %s64
      %s66 = sphi 0, %s64
      %s67 = sphi 0, %s66
      %s81 = sphi 0, %s67
      %s87 = sphi 0, %s89
      %s90 = sphi 0, %s87
      %s91 = sphi 0, %s90
      %s107 = sphi 0, %s91
    $region4: #{alexnet_extreme_forward.3} parent=1 // loop_header_branch
      %12 = sbr.rel (%p10) target = $region8
    $region5: #{alexnet_extreme_forward.3} parent=1 // loop_body
      %s14 = ssub.s32 %s9, 1
      %s15 = ssub.s32 %s9, 2
      %s16 = sadd.s32 %s9, 1
      %s17 = ssub.s32 %s9, %s16
      %p18 = scmp.eq.s32.totalorder %s17, 0
      %s20 = sadd.s32 %s19, 1
      %s21 = scalar_select %p18, %s19, %s20
      %p24 = pneg %p18
      %p25 = scmp.eq.s32.totalorder %s9, 5
      %p26 = por %p24, %p25
      %p27 = scmp.ne.s32.totalorder %s19, %s22
      %p28 = scmp.eq.s32.totalorder %s9, 0
      %p29 = por %p27, %p28
      %p30 = scmp.ne.s32.totalorder %s19, %s22
      %p31 = scmp.eq.s32.totalorder %s14, 5
      %p32 = por %p30, %p31
      %p33 = scmp.ne.s32.totalorder %s22, %s23
      %p34 = scmp.eq.s32.totalorder %s14, 0
      %p35 = por %p33, %p34
      %p36 = scmp.ne.s32.totalorder %s22, %s23
      %p37 = scmp.eq.s32.totalorder %s15, 5
      %p38 = por %p36, %p37
      %p40 = scmp.ne.s32.totalorder %s23, %s39
      %p41 = scmp.eq.s32.totalorder %s15, 0
      %p42 = por %p40, %p41
      %s44 = sadd.s32 %s43, 1
      %p47 = scmp.eq.s32.totalorder %s9, 5
      %p48 = scmp.ne.s32.totalorder %s43, %s45
      %p49 = scmp.eq.s32.totalorder %s9, 0
      %p50 = por %p48, %p49
      %p51 = scmp.ne.s32.totalorder %s43, %s45
      %p52 = scmp.eq.s32.totalorder %s14, 5
      %p53 = por %p51, %p52
      %p54 = scmp.ne.s32.totalorder %s45, %s46
      %p55 = scmp.eq.s32.totalorder %s14, 0
      %p56 = por %p54, %p55
      %p57 = scmp.ne.s32.totalorder %s45, %s46
      %p58 = scmp.eq.s32.totalorder %s15, 5
      %p59 = por %p57, %p58
      %p61 = scmp.ne.s32.totalorder %s46, %s60
      %p62 = scmp.eq.s32.totalorder %s15, 0
      %p63 = por %p61, %p62
      %s65 = sadd.s32 %s64, 1
      %p68 = scmp.eq.s32.totalorder %s9, 5
      %p69 = scmp.ne.s32.totalorder %s64, %s66
      %p70 = scmp.eq.s32.totalorder %s9, 0
      %p71 = por %p69, %p70
      %p72 = scmp.ne.s32.totalorder %s64, %s66
      %p73 = scmp.eq.s32.totalorder %s14, 5
      %p74 = por %p72, %p73
      %p75 = scmp.ne.s32.totalorder %s66, %s67
      %p76 = scmp.eq.s32.totalorder %s14, 0
      %p77 = por %p75, %p76
      %p78 = scmp.ne.s32.totalorder %s66, %s67
      %p79 = scmp.eq.s32.totalorder %s15, 5
      %p80 = por %p78, %p79
      %p82 = scmp.ne.s32.totalorder %s67, %s81
      %p83 = scmp.eq.s32.totalorder %s15, 0
      %p84 = por %p82, %p83
      %s85 = ssub.s32 %s9, %s16
      %p86 = scmp.eq.s32.totalorder %s85, 0
      %s88 = sadd.s32 %s87, 1
      %s89 = scalar_select %p86, %s87, %s88
      %p92 = pneg %p86
      %p93 = scmp.eq.s32.totalorder %s9, 5
      %p94 = por %p92, %p93
      %p95 = scmp.ne.s32.totalorder %s87, %s90
      %p96 = scmp.eq.s32.totalorder %s9, 0
      %p97 = por %p95, %p96
      %p98 = scmp.ne.s32.totalorder %s87, %s90
      %p99 = scmp.eq.s32.totalorder %s14, 5
      %p100 = por %p98, %p99
      %p101 = scmp.ne.s32.totalorder %s90, %s91
      %p102 = scmp.eq.s32.totalorder %s14, 0
      %p103 = por %p101, %p102
      %p104 = scmp.ne.s32.totalorder %s90, %s91
      %p105 = scmp.eq.s32.totalorder %s15, 5
      %p106 = por %p104, %p105
      %p108 = scmp.ne.s32.totalorder %s91, %s107
      %p109 = scmp.eq.s32.totalorder %s15, 0
      %p110 = por %p108, %p109
      %p111 = scmp.le.s32.totalorder 1, %s9
      %p112 = scmp.lt.s32.totalorder %s9, 7
      %p113 = pnand %p111, %p112
      %p114 = pneg %p113
      // Predicated region
      $region9: #{alexnet_extreme_forward.3} parent=5 // pred_check
        _
      $region10: #{alexnet_extreme_forward.3} parent=5 // pred_check_branch
        %116 = sbr.rel (%p113) target = $region12
      $region11: #{alexnet_extreme_forward.3} parent=5 // pred_region
        %s117 = ssub.s32 %s9, 1
        // Predicated region
        $region13: #{alexnet_extreme_forward.3} parent=11 // pred_check
          %p118 = pneg %p56
        $region14: #{alexnet_extreme_forward.3} parent=11 // pred_check_branch
          %120 = sbr.rel (%p118) target = $region16
        $region15: #{alexnet_extreme_forward.3} parent=11 // pred_region
          _
        $region16: #{alexnet_extreme_forward.3} parent=11 // pred_fallthru
          _
        // Predicated region
        $region17: #{alexnet_extreme_forward.3} parent=11 // pred_check
          %p121 = pneg %p77
        $region18: #{alexnet_extreme_forward.3} parent=11 // pred_check_branch
          %123 = sbr.rel (%p121) target = $region20
        $region19: #{alexnet_extreme_forward.3} parent=11 // pred_region
          _
        $region20: #{alexnet_extreme_forward.3} parent=11 // pred_fallthru
          _
      $region12: #{alexnet_extreme_forward.3} parent=5 // pred_fallthru
        _
      %p124 = scmp.lt.s32.totalorder %s9, 6
      // Predicated region
      $region21: #{alexnet_extreme_forward.3} parent=5 // pred_check
        %p125 = pneg %p124
      $region22: #{alexnet_extreme_forward.3} parent=5 // pred_check_branch
        %127 = sbr.rel (%p125) target = $region24
      $region23: #{alexnet_extreme_forward.3} parent=5 // pred_region
        // Predicated region
        $region25: #{alexnet_extreme_forward.3} parent=23 // pred_check
          %p128 = pneg %p29
        $region26: #{alexnet_extreme_forward.3} parent=23 // pred_check_branch
          %130 = sbr.rel (%p128) target = $region28
        $region27: #{alexnet_extreme_forward.3} parent=23 // pred_region
          %s131 = smul.u32 128, %s9
          %s132 = ssub.s32 757, %s131
          %p133 = scmp.lt.s32.totalorder %s132, 128
          %s134 = scalar_select %p133, %s132, 128
          %s135 = smul.u32 128, %s134
          %s136 = smul.u32 %s135, 3
          %p137 = scmp.lt.s32.totalorder %s131, 756
          %s138 = scalar_select %p137, %s131, 756
          %s139 = smul.addr %s138, 3
          %s140 = smul.addr %s139, 8
          %s141 = scalar_lea.vmem %s0, %s140
          %s142 = smul.u32 128, %s9
          %s143 = ssub.s32 757, %s142
          %p144 = scmp.lt.s32.totalorder %s143, 128
          %s145 = scalar_select %p144, %s143, 128
          %s146 = smul.u32 128, %s145
          %s147 = smul.u32 %s146, 3
        $region28: #{alexnet_extreme_forward.3} parent=23 // pred_fallthru
          _
      $region24: #{alexnet_extreme_forward.3} parent=5 // pred_fallthru
        _
      %p148 = scmp.le.s32.totalorder 1, %s9
      %p149 = scmp.lt.s32.totalorder %s9, 7
      %p150 = pnand %p148, %p149
      %p151 = pneg %p150
      // Predicated region
      $region29: #{alexnet_extreme_forward.3} parent=5 // pred_check
        _
      $region30: #{alexnet_extreme_forward.3} parent=5 // pred_check_branch
        %153 = sbr.rel (%p150) target = $region32
      $region31: #{alexnet_extreme_forward.3} parent=5 // pred_region
        %s154 = ssub.s32 %s9, 1
        %s155 = smul.u32 128, %s14
        %s156 = ssub.s32 757, %s155
        %p157 = scmp.lt.s32.totalorder %s156, 128
        %s158 = scalar_select %p157, %s156, 128
        %s159 = smul.u32 128, %s158
        %s160 = smul.u32 %s159, 3
        %p161 = scmp.lt.s32.totalorder %s155, 756
        %s162 = scalar_select %p161, %s155, 756
        %s163 = smul.addr %s162, 3
        %s164 = smul.addr %s163, 8
        %s165 = scalar_lea.vmem %s0, %s164
        %p166 = pneg %p35
        %p167 = pneg %p32
        %p168 = pneg %p56
        %p169 = pneg %p53
        %p170 = pneg %p77
        %p171 = pneg %p74
        %p172 = pneg %p103
        %p173 = pneg %p100
        %s174 = sand.u32 %s90, 1
        %s175 = sand.u32 %s90, 1
        %s176 = smul.addr %s175, 1024
        %s177 = scalar_lea.vmem [#allocation2], %s176
        %s178 = smul.u32 128, %s14
        %s179 = ssub.s32 757, %s178
        %p180 = scmp.lt.s32.totalorder %s179, 128
        %s181 = scalar_select %p180, %s179, 128
        %s182 = smul.u32 128, %s181
        %s183 = smul.u32 %s182, 3
        %p184 = scmp.lt.s32.totalorder %s178, 756
        %s185 = scalar_select %p184, %s178, 756
        %s186 = smul.addr %s185, 3
        %s187 = smul.addr %s186, 8
        %s188 = scalar_lea.vmem %s0, %s187
        %s189 = smul.u32 128, %s14
        %s190 = ssub.s32 757, %s189
        %p191 = scmp.lt.s32.totalorder %s190, 128
        %s192 = scalar_select %p191, %s190, 128
        %s193 = smul.u32 128, %s192
        %s194 = smul.u32 %s193, 3
        %s195 = smul.u32 128, %s14
        %s196 = ssub.s32 757, %s195
        %p197 = scmp.lt.s32.totalorder %s196, 128
        %s198 = scalar_select %p197, %s196, 128
        %s199 = smul.u32 128, %s198
        %v200 = vld [vmem:[%s188] sm:$0xff]
        %v201 = vld [vmem:[%s188 + $0x8] sm:$0xff]
        %v202 = vld [vmem:[%s188 + $0x10] sm:$0xff]
        %v203 = vld [vmem:[%s188 + $0x18] sm:$0xff]
        %v204 = vld [vmem:[%s188 + $0x20] sm:$0xff]
        %v205 = vld [vmem:[%s188 + $0x28] sm:$0xff]
        %v206 = vld [vmem:[%s188 + $0x30] sm:$0xff]
        %v207 = vld [vmem:[%s188 + $0x38] sm:$0xff]
        %v208 = vld [vmem:[%s188 + $0x40] sm:$0xff]
        %v209 = vld [vmem:[%s188 + $0x48] sm:$0xff]
        %v210 = vld [vmem:[%s188 + $0x50] sm:$0xff]
        %v211 = vld [vmem:[%s188 + $0x58] sm:$0xff]
        %v212 = vld [vmem:[%s188 + $0x60] sm:$0xff]
        %v213 = vld [vmem:[%s188 + $0x68] sm:$0xff]
        %v214 = vld [vmem:[%s188 + $0x70] sm:$0xff]
        %v215 = vld [vmem:[%s188 + $0x78] sm:$0xff]
        %v216 = vld [vmem:[%s188 + $0x80] sm:$0xff]
        %v217 = vld [vmem:[%s188 + $0x88] sm:$0xff]
        %v218 = vld [vmem:[%s188 + $0x90] sm:$0xff]
        %v219 = vld [vmem:[%s188 + $0x98] sm:$0xff]
        %v220 = vld [vmem:[%s188 + $0xa0] sm:$0xff]
        %v221 = vld [vmem:[%s188 + $0xa8] sm:$0xff]
        %v222 = vld [vmem:[%s188 + $0xb0] sm:$0xff]
        %v223 = vld [vmem:[%s188 + $0xb8] sm:$0xff]
        %v224 = vld [vmem:[%s188 + $0xc0] sm:$0xff]
        %v225 = vld [vmem:[%s188 + $0xc8] sm:$0xff]
        %v226 = vld [vmem:[%s188 + $0xd0] sm:$0xff]
        %v227 = vld [vmem:[%s188 + $0xd8] sm:$0xff]
        %v228 = vld [vmem:[%s188 + $0xe0] sm:$0xff]
        %v229 = vld [vmem:[%s188 + $0xe8] sm:$0xff]
        %v230 = vld [vmem:[%s188 + $0xf0] sm:$0xff]
        %v231 = vld [vmem:[%s188 + $0xf8] sm:$0xff]
        %v232 = vld [vmem:[%s188 + $0x100] sm:$0xff]
        %v233 = vld [vmem:[%s188 + $0x108] sm:$0xff]
        %v234 = vld [vmem:[%s188 + $0x110] sm:$0xff]
        %v235 = vld [vmem:[%s188 + $0x118] sm:$0xff]
        %v236 = vld [vmem:[%s188 + $0x120] sm:$0xff]
        %v237 = vld [vmem:[%s188 + $0x128] sm:$0xff]
        %v238 = vld [vmem:[%s188 + $0x130] sm:$0xff]
        %v239 = vld [vmem:[%s188 + $0x138] sm:$0xff]
        %v240 = vld [vmem:[%s188 + $0x140] sm:$0xff]
        %v241 = vld [vmem:[%s188 + $0x148] sm:$0xff]
        %v242 = vld [vmem:[%s188 + $0x150] sm:$0xff]
        %v243 = vld [vmem:[%s188 + $0x158] sm:$0xff]
        %v244 = vld [vmem:[%s188 + $0x160] sm:$0xff]
        %v245 = vld [vmem:[%s188 + $0x168] sm:$0xff]
        %v246 = vld [vmem:[%s188 + $0x170] sm:$0xff]
        %v247 = vld [vmem:[%s188 + $0x178] sm:$0xff]
        %v248 = vld [vmem:[%s188 + $0x180] sm:$0xff]
        %v249 = vld [vmem:[%s188 + $0x188] sm:$0xff]
        %v250 = vld [vmem:[%s188 + $0x190] sm:$0xff]
        %v251 = vld [vmem:[%s188 + $0x198] sm:$0xff]
        %v252 = vld [vmem:[%s188 + $0x1a0] sm:$0xff]
        %v253 = vld [vmem:[%s188 + $0x1a8] sm:$0xff]
        %v254 = vld [vmem:[%s188 + $0x1b0] sm:$0xff]
        %v255 = vld [vmem:[%s188 + $0x1b8] sm:$0xff]
        %v256 = vld [vmem:[%s188 + $0x1c0] sm:$0xff]
        %v257 = vld [vmem:[%s188 + $0x1c8] sm:$0xff]
        %v258 = vld [vmem:[%s188 + $0x1d0] sm:$0xff]
        %v259 = vld [vmem:[%s188 + $0x1d8] sm:$0xff]
        %v260 = vld [vmem:[%s188 + $0x1e0] sm:$0xff]
        %v261 = vld [vmem:[%s188 + $0x1e8] sm:$0xff]
        %v262 = vld [vmem:[%s188 + $0x1f0] sm:$0xff]
        %v263 = vld [vmem:[%s188 + $0x1f8] sm:$0xff]
        %v264 = vld [vmem:[%s188 + $0x200] sm:$0xff]
        %v265 = vld [vmem:[%s188 + $0x208] sm:$0xff]
        %v266 = vld [vmem:[%s188 + $0x210] sm:$0xff]
        %v267 = vld [vmem:[%s188 + $0x218] sm:$0xff]
        %v268 = vld [vmem:[%s188 + $0x220] sm:$0xff]
        %v269 = vld [vmem:[%s188 + $0x228] sm:$0xff]
        %v270 = vld [vmem:[%s188 + $0x230] sm:$0xff]
        %v271 = vld [vmem:[%s188 + $0x238] sm:$0xff]
        %v272 = vld [vmem:[%s188 + $0x240] sm:$0xff]
        %v273 = vld [vmem:[%s188 + $0x248] sm:$0xff]
        %v274 = vld [vmem:[%s188 + $0x250] sm:$0xff]
        %v275 = vld [vmem:[%s188 + $0x258] sm:$0xff]
        %v276 = vld [vmem:[%s188 + $0x260] sm:$0xff]
        %v277 = vld [vmem:[%s188 + $0x268] sm:$0xff]
        %v278 = vld [vmem:[%s188 + $0x270] sm:$0xff]
        %v279 = vld [vmem:[%s188 + $0x278] sm:$0xff]
        %v280 = vld [vmem:[%s188 + $0x280] sm:$0xff]
        %v281 = vld [vmem:[%s188 + $0x288] sm:$0xff]
        %v282 = vld [vmem:[%s188 + $0x290] sm:$0xff]
        %v283 = vld [vmem:[%s188 + $0x298] sm:$0xff]
        %v284 = vld [vmem:[%s188 + $0x2a0] sm:$0xff]
        %v285 = vld [vmem:[%s188 + $0x2a8] sm:$0xff]
        %v286 = vld [vmem:[%s188 + $0x2b0] sm:$0xff]
        %v287 = vld [vmem:[%s188 + $0x2b8] sm:$0xff]
        %v288 = vld [vmem:[%s188 + $0x2c0] sm:$0xff]
        %v289 = vld [vmem:[%s188 + $0x2c8] sm:$0xff]
        %v290 = vld [vmem:[%s188 + $0x2d0] sm:$0xff]
        %v291 = vld [vmem:[%s188 + $0x2d8] sm:$0xff]
        %v292 = vld [vmem:[%s188 + $0x2e0] sm:$0xff]
        %v293 = vld [vmem:[%s188 + $0x2e8] sm:$0xff]
        %v294 = vld [vmem:[%s188 + $0x2f0] sm:$0xff]
        %v295 = vld [vmem:[%s188 + $0x2f8] sm:$0xff]
        %v296 = vld [vmem:[%s188 + $0x300] sm:$0xff]
        %v297 = vld [vmem:[%s188 + $0x308] sm:$0xff]
        %v298 = vld [vmem:[%s188 + $0x310] sm:$0xff]
        %v299 = vld [vmem:[%s188 + $0x318] sm:$0xff]
        %v300 = vld [vmem:[%s188 + $0x320] sm:$0xff]
        %v301 = vld [vmem:[%s188 + $0x328] sm:$0xff]
        %v302 = vld [vmem:[%s188 + $0x330] sm:$0xff]
        %v303 = vld [vmem:[%s188 + $0x338] sm:$0xff]
        %v304 = vld [vmem:[%s188 + $0x340] sm:$0xff]
        %v305 = vld [vmem:[%s188 + $0x348] sm:$0xff]
        %v306 = vld [vmem:[%s188 + $0x350] sm:$0xff]
        %v307 = vld [vmem:[%s188 + $0x358] sm:$0xff]
        %v308 = vld [vmem:[%s188 + $0x360] sm:$0xff]
        %v309 = vld [vmem:[%s188 + $0x368] sm:$0xff]
        %v310 = vld [vmem:[%s188 + $0x370] sm:$0xff]
        %v311 = vld [vmem:[%s188 + $0x378] sm:$0xff]
        %v312 = vld [vmem:[%s188 + $0x380] sm:$0xff]
        %v313 = vld [vmem:[%s188 + $0x388] sm:$0xff]
        %v314 = vld [vmem:[%s188 + $0x390] sm:$0xff]
        %v315 = vld [vmem:[%s188 + $0x398] sm:$0xff]
        %v316 = vld [vmem:[%s188 + $0x3a0] sm:$0xff]
        %v317 = vld [vmem:[%s188 + $0x3a8] sm:$0xff]
        %v318 = vld [vmem:[%s188 + $0x3b0] sm:$0xff]
        %v319 = vld [vmem:[%s188 + $0x3b8] sm:$0xff]
        %v320 = vld [vmem:[%s188 + $0x3c0] sm:$0xff]
        %v321 = vld [vmem:[%s188 + $0x3c8] sm:$0xff]
        %v322 = vld [vmem:[%s188 + $0x3d0] sm:$0xff]
        %v323 = vld [vmem:[%s188 + $0x3d8] sm:$0xff]
        %v324 = vld [vmem:[%s188 + $0x3e0] sm:$0xff]
        %v325 = vld [vmem:[%s188 + $0x3e8] sm:$0xff]
        %v326 = vld [vmem:[%s188 + $0x3f0] sm:$0xff]
        %v327 = vld [vmem:[%s188 + $0x3f8] sm:$0xff]
        %v328 = vld [vmem:[%s188 + $0x400] sm:$0xff]
        %v329 = vld [vmem:[%s188 + $0x408] sm:$0xff]
        %v330 = vld [vmem:[%s188 + $0x410] sm:$0xff]
        %v331 = vld [vmem:[%s188 + $0x418] sm:$0xff]
        %v332 = vld [vmem:[%s188 + $0x420] sm:$0xff]
        %v333 = vld [vmem:[%s188 + $0x428] sm:$0xff]
        %v334 = vld [vmem:[%s188 + $0x430] sm:$0xff]
        %v335 = vld [vmem:[%s188 + $0x438] sm:$0xff]
        %v336 = vld [vmem:[%s188 + $0x440] sm:$0xff]
        %v337 = vld [vmem:[%s188 + $0x448] sm:$0xff]
        %v338 = vld [vmem:[%s188 + $0x450] sm:$0xff]
        %v339 = vld [vmem:[%s188 + $0x458] sm:$0xff]
        %v340 = vld [vmem:[%s188 + $0x460] sm:$0xff]
        %v341 = vld [vmem:[%s188 + $0x468] sm:$0xff]
        %v342 = vld [vmem:[%s188 + $0x470] sm:$0xff]
        %v343 = vld [vmem:[%s188 + $0x478] sm:$0xff]
        %v344 = vld [vmem:[%s188 + $0x480] sm:$0xff]
        %v345 = vld [vmem:[%s188 + $0x488] sm:$0xff]
        %v346 = vld [vmem:[%s188 + $0x490] sm:$0xff]
        %v347 = vld [vmem:[%s188 + $0x498] sm:$0xff]
        %v348 = vld [vmem:[%s188 + $0x4a0] sm:$0xff]
        %v349 = vld [vmem:[%s188 + $0x4a8] sm:$0xff]
        %v350 = vld [vmem:[%s188 + $0x4b0] sm:$0xff]
        %v351 = vld [vmem:[%s188 + $0x4b8] sm:$0xff]
        %v352 = vld [vmem:[%s188 + $0x4c0] sm:$0xff]
        %v353 = vld [vmem:[%s188 + $0x4c8] sm:$0xff]
        %v354 = vld [vmem:[%s188 + $0x4d0] sm:$0xff]
        %v355 = vld [vmem:[%s188 + $0x4d8] sm:$0xff]
        %v356 = vld [vmem:[%s188 + $0x4e0] sm:$0xff]
        %v357 = vld [vmem:[%s188 + $0x4e8] sm:$0xff]
        %v358 = vld [vmem:[%s188 + $0x4f0] sm:$0xff]
        %v359 = vld [vmem:[%s188 + $0x4f8] sm:$0xff]
        %v360 = vld [vmem:[%s188 + $0x500] sm:$0xff]
        %v361 = vld [vmem:[%s188 + $0x508] sm:$0xff]
        %v362 = vld [vmem:[%s188 + $0x510] sm:$0xff]
        %v363 = vld [vmem:[%s188 + $0x518] sm:$0xff]
        %v364 = vld [vmem:[%s188 + $0x520] sm:$0xff]
        %v365 = vld [vmem:[%s188 + $0x528] sm:$0xff]
        %v366 = vld [vmem:[%s188 + $0x530] sm:$0xff]
        %v367 = vld [vmem:[%s188 + $0x538] sm:$0xff]
        %v368 = vld [vmem:[%s188 + $0x540] sm:$0xff]
        %v369 = vld [vmem:[%s188 + $0x548] sm:$0xff]
        %v370 = vld [vmem:[%s188 + $0x550] sm:$0xff]
        %v371 = vld [vmem:[%s188 + $0x558] sm:$0xff]
        %v372 = vld [vmem:[%s188 + $0x560] sm:$0xff]
        %v373 = vld [vmem:[%s188 + $0x568] sm:$0xff]
        %v374 = vld [vmem:[%s188 + $0x570] sm:$0xff]
        %v375 = vld [vmem:[%s188 + $0x578] sm:$0xff]
        %v376 = vld [vmem:[%s188 + $0x580] sm:$0xff]
        %v377 = vld [vmem:[%s188 + $0x588] sm:$0xff]
        %v378 = vld [vmem:[%s188 + $0x590] sm:$0xff]
        %v379 = vld [vmem:[%s188 + $0x598] sm:$0xff]
        %v380 = vld [vmem:[%s188 + $0x5a0] sm:$0xff]
        %v381 = vld [vmem:[%s188 + $0x5a8] sm:$0xff]
        %v382 = vld [vmem:[%s188 + $0x5b0] sm:$0xff]
        %v383 = vld [vmem:[%s188 + $0x5b8] sm:$0xff]
        %v384 = vld [vmem:[%s188 + $0x5c0] sm:$0xff]
        %v385 = vld [vmem:[%s188 + $0x5c8] sm:$0xff]
        %v386 = vld [vmem:[%s188 + $0x5d0] sm:$0xff]
        %v387 = vld [vmem:[%s188 + $0x5d8] sm:$0xff]
        %v388 = vld [vmem:[%s188 + $0x5e0] sm:$0xff]
        %v389 = vld [vmem:[%s188 + $0x5e8] sm:$0xff]
        %v390 = vld [vmem:[%s188 + $0x5f0] sm:$0xff]
        %v391 = vld [vmem:[%s188 + $0x5f8] sm:$0xff]
        %v392 = vld [vmem:[%s188 + $0x600] sm:$0xff]
        %v393 = vld [vmem:[%s188 + $0x608] sm:$0xff]
        %v394 = vld [vmem:[%s188 + $0x610] sm:$0xff]
        %v395 = vld [vmem:[%s188 + $0x618] sm:$0xff]
        %v396 = vld [vmem:[%s188 + $0x620] sm:$0xff]
        %v397 = vld [vmem:[%s188 + $0x628] sm:$0xff]
        %v398 = vld [vmem:[%s188 + $0x630] sm:$0xff]
        %v399 = vld [vmem:[%s188 + $0x638] sm:$0xff]
        %v400 = vld [vmem:[%s188 + $0x640] sm:$0xff]
        %v401 = vld [vmem:[%s188 + $0x648] sm:$0xff]
        %v402 = vld [vmem:[%s188 + $0x650] sm:$0xff]
        %v403 = vld [vmem:[%s188 + $0x658] sm:$0xff]
        %v404 = vld [vmem:[%s188 + $0x660] sm:$0xff]
        %v405 = vld [vmem:[%s188 + $0x668] sm:$0xff]
        %v406 = vld [vmem:[%s188 + $0x670] sm:$0xff]
        %v407 = vld [vmem:[%s188 + $0x678] sm:$0xff]
        %v408 = vld [vmem:[%s188 + $0x680] sm:$0xff]
        %v409 = vld [vmem:[%s188 + $0x688] sm:$0xff]
        %v410 = vld [vmem:[%s188 + $0x690] sm:$0xff]
        %v411 = vld [vmem:[%s188 + $0x698] sm:$0xff]
        %v412 = vld [vmem:[%s188 + $0x6a0] sm:$0xff]
        %v413 = vld [vmem:[%s188 + $0x6a8] sm:$0xff]
        %v414 = vld [vmem:[%s188 + $0x6b0] sm:$0xff]
        %v415 = vld [vmem:[%s188 + $0x6b8] sm:$0xff]
        %v416 = vld [vmem:[%s188 + $0x6c0] sm:$0xff]
        %v417 = vld [vmem:[%s188 + $0x6c8] sm:$0xff]
        %v418 = vld [vmem:[%s188 + $0x6d0] sm:$0xff]
        %v419 = vld [vmem:[%s188 + $0x6d8] sm:$0xff]
        %v420 = vld [vmem:[%s188 + $0x6e0] sm:$0xff]
        %v421 = vld [vmem:[%s188 + $0x6e8] sm:$0xff]
        %v422 = vld [vmem:[%s188 + $0x6f0] sm:$0xff]
        %v423 = vld [vmem:[%s188 + $0x6f8] sm:$0xff]
        %v424 = vld [vmem:[%s188 + $0x700] sm:$0xff]
        %v425 = vld [vmem:[%s188 + $0x708] sm:$0xff]
        %v426 = vld [vmem:[%s188 + $0x710] sm:$0xff]
        %v427 = vld [vmem:[%s188 + $0x718] sm:$0xff]
        %v428 = vld [vmem:[%s188 + $0x720] sm:$0xff]
        %v429 = vld [vmem:[%s188 + $0x728] sm:$0xff]
        %v430 = vld [vmem:[%s188 + $0x730] sm:$0xff]
        %v431 = vld [vmem:[%s188 + $0x738] sm:$0xff]
        %v432 = vld [vmem:[%s188 + $0x740] sm:$0xff]
        %v433 = vld [vmem:[%s188 + $0x748] sm:$0xff]
        %v434 = vld [vmem:[%s188 + $0x750] sm:$0xff]
        %v435 = vld [vmem:[%s188 + $0x758] sm:$0xff]
        %v436 = vld [vmem:[%s188 + $0x760] sm:$0xff]
        %v437 = vld [vmem:[%s188 + $0x768] sm:$0xff]
        %v438 = vld [vmem:[%s188 + $0x770] sm:$0xff]
        %v439 = vld [vmem:[%s188 + $0x778] sm:$0xff]
        %v440 = vld [vmem:[%s188 + $0x780] sm:$0xff]
        %v441 = vld [vmem:[%s188 + $0x788] sm:$0xff]
        %v442 = vld [vmem:[%s188 + $0x790] sm:$0xff]
        %v443 = vld [vmem:[%s188 + $0x798] sm:$0xff]
        %v444 = vld [vmem:[%s188 + $0x7a0] sm:$0xff]
        %v445 = vld [vmem:[%s188 + $0x7a8] sm:$0xff]
        %v446 = vld [vmem:[%s188 + $0x7b0] sm:$0xff]
        %v447 = vld [vmem:[%s188 + $0x7b8] sm:$0xff]
        %v448 = vld [vmem:[%s188 + $0x7c0] sm:$0xff]
        %v449 = vld [vmem:[%s188 + $0x7c8] sm:$0xff]
        %v450 = vld [vmem:[%s188 + $0x7d0] sm:$0xff]
        %v451 = vld [vmem:[%s188 + $0x7d8] sm:$0xff]
        %v452 = vld [vmem:[%s188 + $0x7e0] sm:$0xff]
        %v453 = vld [vmem:[%s188 + $0x7e8] sm:$0xff]
        %v454 = vld [vmem:[%s188 + $0x7f0] sm:$0xff]
        %v455 = vld [vmem:[%s188 + $0x7f8] sm:$0xff]
        %v456 = vld [vmem:[%s188 + $0x800] sm:$0xff]
        %v457 = vld [vmem:[%s188 + $0x808] sm:$0xff]
        %v458 = vld [vmem:[%s188 + $0x810] sm:$0xff]
        %v459 = vld [vmem:[%s188 + $0x818] sm:$0xff]
        %v460 = vld [vmem:[%s188 + $0x820] sm:$0xff]
        %v461 = vld [vmem:[%s188 + $0x828] sm:$0xff]
        %v462 = vld [vmem:[%s188 + $0x830] sm:$0xff]
        %v463 = vld [vmem:[%s188 + $0x838] sm:$0xff]
        %v464 = vld [vmem:[%s188 + $0x840] sm:$0xff]
        %v465 = vld [vmem:[%s188 + $0x848] sm:$0xff]
        %v466 = vld [vmem:[%s188 + $0x850] sm:$0xff]
        %v467 = vld [vmem:[%s188 + $0x858] sm:$0xff]
        %v468 = vld [vmem:[%s188 + $0x860] sm:$0xff]
        %v469 = vld [vmem:[%s188 + $0x868] sm:$0xff]
        %v470 = vld [vmem:[%s188 + $0x870] sm:$0xff]
        %v471 = vld [vmem:[%s188 + $0x878] sm:$0xff]
        %v472 = vld [vmem:[%s188 + $0x880] sm:$0xff]
        %v473 = vld [vmem:[%s188 + $0x888] sm:$0xff]
        %v474 = vld [vmem:[%s188 + $0x890] sm:$0xff]
        %v475 = vld [vmem:[%s188 + $0x898] sm:$0xff]
        %v476 = vld [vmem:[%s188 + $0x8a0] sm:$0xff]
        %v477 = vld [vmem:[%s188 + $0x8a8] sm:$0xff]
        %v478 = vld [vmem:[%s188 + $0x8b0] sm:$0xff]
        %v479 = vld [vmem:[%s188 + $0x8b8] sm:$0xff]
        %v480 = vld [vmem:[%s188 + $0x8c0] sm:$0xff]
        %v481 = vld [vmem:[%s188 + $0x8c8] sm:$0xff]
        %v482 = vld [vmem:[%s188 + $0x8d0] sm:$0xff]
        %v483 = vld [vmem:[%s188 + $0x8d8] sm:$0xff]
        %v484 = vld [vmem:[%s188 + $0x8e0] sm:$0xff]
        %v485 = vld [vmem:[%s188 + $0x8e8] sm:$0xff]
        %v486 = vld [vmem:[%s188 + $0x8f0] sm:$0xff]
        %v487 = vld [vmem:[%s188 + $0x8f8] sm:$0xff]
        %v488 = vld [vmem:[%s188 + $0x900] sm:$0xff]
        %v489 = vld [vmem:[%s188 + $0x908] sm:$0xff]
        %v490 = vld [vmem:[%s188 + $0x910] sm:$0xff]
        %v491 = vld [vmem:[%s188 + $0x918] sm:$0xff]
        %v492 = vld [vmem:[%s188 + $0x920] sm:$0xff]
        %v493 = vld [vmem:[%s188 + $0x928] sm:$0xff]
        %v494 = vld [vmem:[%s188 + $0x930] sm:$0xff]
        %v495 = vld [vmem:[%s188 + $0x938] sm:$0xff]
        %v496 = vld [vmem:[%s188 + $0x940] sm:$0xff]
        %v497 = vld [vmem:[%s188 + $0x948] sm:$0xff]
        %v498 = vld [vmem:[%s188 + $0x950] sm:$0xff]
        %v499 = vld [vmem:[%s188 + $0x958] sm:$0xff]
        %v500 = vld [vmem:[%s188 + $0x960] sm:$0xff]
        %v501 = vld [vmem:[%s188 + $0x968] sm:$0xff]
        %v502 = vld [vmem:[%s188 + $0x970] sm:$0xff]
        %v503 = vld [vmem:[%s188 + $0x978] sm:$0xff]
        %v504 = vld [vmem:[%s188 + $0x980] sm:$0xff]
        %v505 = vld [vmem:[%s188 + $0x988] sm:$0xff]
        %v506 = vld [vmem:[%s188 + $0x990] sm:$0xff]
        %v507 = vld [vmem:[%s188 + $0x998] sm:$0xff]
        %v508 = vld [vmem:[%s188 + $0x9a0] sm:$0xff]
        %v509 = vld [vmem:[%s188 + $0x9a8] sm:$0xff]
        %v510 = vld [vmem:[%s188 + $0x9b0] sm:$0xff]
        %v511 = vld [vmem:[%s188 + $0x9b8] sm:$0xff]
        %v512 = vld [vmem:[%s188 + $0x9c0] sm:$0xff]
        %v513 = vld [vmem:[%s188 + $0x9c8] sm:$0xff]
        %v514 = vld [vmem:[%s188 + $0x9d0] sm:$0xff]
        %v515 = vld [vmem:[%s188 + $0x9d8] sm:$0xff]
        %v516 = vld [vmem:[%s188 + $0x9e0] sm:$0xff]
        %v517 = vld [vmem:[%s188 + $0x9e8] sm:$0xff]
        %v518 = vld [vmem:[%s188 + $0x9f0] sm:$0xff]
        %v519 = vld [vmem:[%s188 + $0x9f8] sm:$0xff]
        %v520 = vld [vmem:[%s188 + $0xa00] sm:$0xff]
        %v521 = vld [vmem:[%s188 + $0xa08] sm:$0xff]
        %v522 = vld [vmem:[%s188 + $0xa10] sm:$0xff]
        %v523 = vld [vmem:[%s188 + $0xa18] sm:$0xff]
        %v524 = vld [vmem:[%s188 + $0xa20] sm:$0xff]
        %v525 = vld [vmem:[%s188 + $0xa28] sm:$0xff]
        %v526 = vld [vmem:[%s188 + $0xa30] sm:$0xff]
        %v527 = vld [vmem:[%s188 + $0xa38] sm:$0xff]
        %v528 = vld [vmem:[%s188 + $0xa40] sm:$0xff]
        %v529 = vld [vmem:[%s188 + $0xa48] sm:$0xff]
        %v530 = vld [vmem:[%s188 + $0xa50] sm:$0xff]
        %v531 = vld [vmem:[%s188 + $0xa58] sm:$0xff]
        %v532 = vld [vmem:[%s188 + $0xa60] sm:$0xff]
        %v533 = vld [vmem:[%s188 + $0xa68] sm:$0xff]
        %v534 = vld [vmem:[%s188 + $0xa70] sm:$0xff]
        %v535 = vld [vmem:[%s188 + $0xa78] sm:$0xff]
        %v536 = vld [vmem:[%s188 + $0xa80] sm:$0xff]
        %v537 = vld [vmem:[%s188 + $0xa88] sm:$0xff]
        %v538 = vld [vmem:[%s188 + $0xa90] sm:$0xff]
        %v539 = vld [vmem:[%s188 + $0xa98] sm:$0xff]
        %v540 = vld [vmem:[%s188 + $0xaa0] sm:$0xff]
        %v541 = vld [vmem:[%s188 + $0xaa8] sm:$0xff]
        %v542 = vld [vmem:[%s188 + $0xab0] sm:$0xff]
        %v543 = vld [vmem:[%s188 + $0xab8] sm:$0xff]
        %v544 = vld [vmem:[%s188 + $0xac0] sm:$0xff]
        %v545 = vld [vmem:[%s188 + $0xac8] sm:$0xff]
        %v546 = vld [vmem:[%s188 + $0xad0] sm:$0xff]
        %v547 = vld [vmem:[%s188 + $0xad8] sm:$0xff]
        %v548 = vld [vmem:[%s188 + $0xae0] sm:$0xff]
        %v549 = vld [vmem:[%s188 + $0xae8] sm:$0xff]
        %v550 = vld [vmem:[%s188 + $0xaf0] sm:$0xff]
        %v551 = vld [vmem:[%s188 + $0xaf8] sm:$0xff]
        %v552 = vld [vmem:[%s188 + $0xb00] sm:$0xff]
        %v553 = vld [vmem:[%s188 + $0xb08] sm:$0xff]
        %v554 = vld [vmem:[%s188 + $0xb10] sm:$0xff]
        %v555 = vld [vmem:[%s188 + $0xb18] sm:$0xff]
        %v556 = vld [vmem:[%s188 + $0xb20] sm:$0xff]
        %v557 = vld [vmem:[%s188 + $0xb28] sm:$0xff]
        %v558 = vld [vmem:[%s188 + $0xb30] sm:$0xff]
        %v559 = vld [vmem:[%s188 + $0xb38] sm:$0xff]
        %v560 = vld [vmem:[%s188 + $0xb40] sm:$0xff]
        %v561 = vld [vmem:[%s188 + $0xb48] sm:$0xff]
        %v562 = vld [vmem:[%s188 + $0xb50] sm:$0xff]
        %v563 = vld [vmem:[%s188 + $0xb58] sm:$0xff]
        %v564 = vld [vmem:[%s188 + $0xb60] sm:$0xff]
        %v565 = vld [vmem:[%s188 + $0xb68] sm:$0xff]
        %v566 = vld [vmem:[%s188 + $0xb70] sm:$0xff]
        %v567 = vld [vmem:[%s188 + $0xb78] sm:$0xff]
        %v568 = vld [vmem:[%s188 + $0xb80] sm:$0xff]
        %v569 = vld [vmem:[%s188 + $0xb88] sm:$0xff]
        %v570 = vld [vmem:[%s188 + $0xb90] sm:$0xff]
        %v571 = vld [vmem:[%s188 + $0xb98] sm:$0xff]
        %v572 = vld [vmem:[%s188 + $0xba0] sm:$0xff]
        %v573 = vld [vmem:[%s188 + $0xba8] sm:$0xff]
        %v574 = vld [vmem:[%s188 + $0xbb0] sm:$0xff]
        %v575 = vld [vmem:[%s188 + $0xbb8] sm:$0xff]
        %v576 = vld [vmem:[%s188 + $0xbc0] sm:$0xff]
        %v577 = vld [vmem:[%s188 + $0xbc8] sm:$0xff]
        %v578 = vld [vmem:[%s188 + $0xbd0] sm:$0xff]
        %v579 = vld [vmem:[%s188 + $0xbd8] sm:$0xff]
        %v580 = vld [vmem:[%s188 + $0xbe0] sm:$0xff]
        %v581 = vld [vmem:[%s188 + $0xbe8] sm:$0xff]
        %v582 = vld [vmem:[%s188 + $0xbf0] sm:$0xff]
        %v583 = vld [vmem:[%s188 + $0xbf8] sm:$0xff]
        %v584 = vld [vmem:[%s1] sm:$0xff]
        %v585 = vld [vmem:[%s1 + $0x8] sm:$0xff]
        %v586 = vld [vmem:[%s1 + $0x10] sm:$0xff]
        %v587 = vld [vmem:[%s1 + $0x18] sm:$0xff]
        %v588 = vld [vmem:[%s1 + $0x20] sm:$0xff]
        %v589 = vld [vmem:[%s1 + $0x28] sm:$0xff]
        %v590 = vld [vmem:[%s1 + $0x30] sm:$0xff]
        %v591 = vld [vmem:[%s1 + $0x38] sm:$0xff]
        %v592 = vld [vmem:[%s1 + $0x40] sm:$0xff]
        %v593 = vld [vmem:[%s1 + $0x48] sm:$0xff]
        %v594 = vld [vmem:[%s1 + $0x50] sm:$0xff]
        %v595 = vld [vmem:[%s1 + $0x58] sm:$0xff]
        %v596 = vld [vmem:[%s1 + $0x60] sm:$0xff]
        %v597 = vld [vmem:[%s1 + $0x68] sm:$0xff]
        %v598 = vld [vmem:[%s1 + $0x70] sm:$0xff]
        %v599 = vld [vmem:[%s1 + $0x78] sm:$0xff]
        %v600 = vld [vmem:[%s1 + $0x80] sm:$0xff]
        %v601 = vld [vmem:[%s1 + $0x88] sm:$0xff]
        %v602 = vld [vmem:[%s1 + $0x90] sm:$0xff]
        %v603 = vld [vmem:[%s1 + $0x98] sm:$0xff]
        %v604 = vld [vmem:[%s1 + $0xa0] sm:$0xff]
        %v605 = vld [vmem:[%s1 + $0xa8] sm:$0xff]
        %v606 = vld [vmem:[%s1 + $0xb0] sm:$0xff]
        %v607 = vld [vmem:[%s1 + $0xb8] sm:$0xff]
        %v608 = vld [vmem:[%s1 + $0xc0] sm:$0xff]
        %v609 = vld [vmem:[%s1 + $0xc8] sm:$0xff]
        %v610 = vld [vmem:[%s1 + $0xd0] sm:$0xff]
        %v611 = vld [vmem:[%s1 + $0xd8] sm:$0xff]
        %v612 = vld [vmem:[%s1 + $0xe0] sm:$0xff]
        %v613 = vld [vmem:[%s1 + $0xe8] sm:$0xff]
        %v614 = vld [vmem:[%s1 + $0xf0] sm:$0xff]
        %v615 = vld [vmem:[%s1 + $0xf8] sm:$0xff]
        %v616 = vld [vmem:[%s1 + $0x100] sm:$0xff]
        %v617 = vld [vmem:[%s1 + $0x108] sm:$0xff]
        %v618 = vld [vmem:[%s1 + $0x110] sm:$0xff]
        %v619 = vld [vmem:[%s1 + $0x118] sm:$0xff]
        %v620 = vld [vmem:[%s1 + $0x120] sm:$0xff]
        %v621 = vld [vmem:[%s1 + $0x128] sm:$0xff]
        %v622 = vld [vmem:[%s1 + $0x130] sm:$0xff]
        %v623 = vld [vmem:[%s1 + $0x138] sm:$0xff]
        %v624 = vld [vmem:[%s1 + $0x140] sm:$0xff]
        %v625 = vld [vmem:[%s1 + $0x148] sm:$0xff]
        %v626 = vld [vmem:[%s1 + $0x150] sm:$0xff]
        %v627 = vld [vmem:[%s1 + $0x158] sm:$0xff]
        %v628 = vld [vmem:[%s1 + $0x160] sm:$0xff]
        %v629 = vld [vmem:[%s1 + $0x168] sm:$0x7]
        %v630 = vld [vmem:[%s2] sm:$0x1]
        %v632 = vlaneseq
        %v633 = vshrl.u32 %v632, 7
        %v634 = vsub.s32 0, %v633
        %v635 = vrot.slane %v630, %v634
        %vm637 = vcmask 875520
        %v639 = vsel %vm637, %v202, 0
        %v642 = vsel %vm637, %v205, 0
        %v645 = vsel %vm637, %v208, 0
        %v648 = vsel %vm637, %v211, 0
        %v651 = vsel %vm637, %v214, 0
        %v654 = vsel %vm637, %v217, 0
        %v657 = vsel %vm637, %v220, 0
        %v660 = vsel %vm637, %v223, 0
        %v663 = vsel %vm637, %v226, 0
        %v666 = vsel %vm637, %v229, 0
        %v669 = vsel %vm637, %v232, 0
        %v672 = vsel %vm637, %v235, 0
        %v675 = vsel %vm637, %v238, 0
        %v678 = vsel %vm637, %v241, 0
        %v681 = vsel %vm637, %v244, 0
        %v684 = vsel %vm637, %v247, 0
        %v687 = vsel %vm637, %v250, 0
        %v690 = vsel %vm637, %v253, 0
        %v693 = vsel %vm637, %v256, 0
        %v696 = vsel %vm637, %v259, 0
        %v699 = vsel %vm637, %v262, 0
        %v702 = vsel %vm637, %v265, 0
        %v705 = vsel %vm637, %v268, 0
        %v708 = vsel %vm637, %v271, 0
        %v711 = vsel %vm637, %v274, 0
        %v714 = vsel %vm637, %v277, 0
        %v717 = vsel %vm637, %v280, 0
        %v720 = vsel %vm637, %v283, 0
        %v723 = vsel %vm637, %v286, 0
        %v726 = vsel %vm637, %v289, 0
        %v729 = vsel %vm637, %v292, 0
        %v732 = vsel %vm637, %v295, 0
        %v735 = vsel %vm637, %v298, 0
        %v738 = vsel %vm637, %v301, 0
        %v741 = vsel %vm637, %v304, 0
        %v744 = vsel %vm637, %v307, 0
        %v747 = vsel %vm637, %v310, 0
        %v750 = vsel %vm637, %v313, 0
        %v753 = vsel %vm637, %v316, 0
        %v756 = vsel %vm637, %v319, 0
        %v759 = vsel %vm637, %v322, 0
        %v762 = vsel %vm637, %v325, 0
        %v765 = vsel %vm637, %v328, 0
        %v768 = vsel %vm637, %v331, 0
        %v771 = vsel %vm637, %v334, 0
        %v774 = vsel %vm637, %v337, 0
        %v777 = vsel %vm637, %v340, 0
        %v780 = vsel %vm637, %v343, 0
        %v783 = vsel %vm637, %v346, 0
        %v786 = vsel %vm637, %v349, 0
        %v789 = vsel %vm637, %v352, 0
        %v792 = vsel %vm637, %v355, 0
        %v795 = vsel %vm637, %v358, 0
        %v798 = vsel %vm637, %v361, 0
        %v801 = vsel %vm637, %v364, 0
        %v804 = vsel %vm637, %v367, 0
        %v807 = vsel %vm637, %v370, 0
        %v810 = vsel %vm637, %v373, 0
        %v813 = vsel %vm637, %v376, 0
        %v816 = vsel %vm637, %v379, 0
        %v819 = vsel %vm637, %v382, 0
        %v822 = vsel %vm637, %v385, 0
        %v825 = vsel %vm637, %v388, 0
        %v828 = vsel %vm637, %v391, 0
        %v831 = vsel %vm637, %v394, 0
        %v834 = vsel %vm637, %v397, 0
        %v837 = vsel %vm637, %v400, 0
        %v840 = vsel %vm637, %v403, 0
        %v843 = vsel %vm637, %v406, 0
        %v846 = vsel %vm637, %v409, 0
        %v849 = vsel %vm637, %v412, 0
        %v852 = vsel %vm637, %v415, 0
        %v855 = vsel %vm637, %v418, 0
        %v858 = vsel %vm637, %v421, 0
        %v861 = vsel %vm637, %v424, 0
        %v864 = vsel %vm637, %v427, 0
        %v867 = vsel %vm637, %v430, 0
        %v870 = vsel %vm637, %v433, 0
        %v873 = vsel %vm637, %v436, 0
        %v876 = vsel %vm637, %v439, 0
        %v879 = vsel %vm637, %v442, 0
        %v882 = vsel %vm637, %v445, 0
        %v885 = vsel %vm637, %v448, 0
        %v888 = vsel %vm637, %v451, 0
        %v891 = vsel %vm637, %v454, 0
        %v894 = vsel %vm637, %v457, 0
        %v897 = vsel %vm637, %v460, 0
        %v900 = vsel %vm637, %v463, 0
        %v903 = vsel %vm637, %v466, 0
        %v906 = vsel %vm637, %v469, 0
        %v909 = vsel %vm637, %v472, 0
        %v912 = vsel %vm637, %v475, 0
        %v915 = vsel %vm637, %v478, 0
        %v918 = vsel %vm637, %v481, 0
        %v921 = vsel %vm637, %v484, 0
        %v924 = vsel %vm637, %v487, 0
        %v927 = vsel %vm637, %v490, 0
        %v930 = vsel %vm637, %v493, 0
        %v933 = vsel %vm637, %v496, 0
        %v936 = vsel %vm637, %v499, 0
        %v939 = vsel %vm637, %v502, 0
        %v942 = vsel %vm637, %v505, 0
        %v945 = vsel %vm637, %v508, 0
        %v948 = vsel %vm637, %v511, 0
        %v951 = vsel %vm637, %v514, 0
        %v954 = vsel %vm637, %v517, 0
        %v957 = vsel %vm637, %v520, 0
        %v960 = vsel %vm637, %v523, 0
        %v963 = vsel %vm637, %v526, 0
        %v966 = vsel %vm637, %v529, 0
        %v969 = vsel %vm637, %v532, 0
        %v972 = vsel %vm637, %v535, 0
        %v975 = vsel %vm637, %v538, 0
        %v978 = vsel %vm637, %v541, 0
        %v981 = vsel %vm637, %v544, 0
        %v984 = vsel %vm637, %v547, 0
        %v987 = vsel %vm637, %v550, 0
        %v990 = vsel %vm637, %v553, 0
        %v993 = vsel %vm637, %v556, 0
        %v996 = vsel %vm637, %v559, 0
        %v999 = vsel %vm637, %v562, 0
        %v1002 = vsel %vm637, %v565, 0
        %v1005 = vsel %vm637, %v568, 0
        %v1008 = vsel %vm637, %v571, 0
        %v1011 = vsel %vm637, %v574, 0
        %v1014 = vsel %vm637, %v577, 0
        %v1017 = vsel %vm637, %v580, 0
        %v1020 = vsel %vm637, %v583, 0
        %vm1022 = vcmask 1042432
        %v1024 = vsel %vm1022, %v629, 0
        %1026 = vmatprep.subr.mxu0 0.0
        %1027 = vmatpush1.msra.mxu0 %v584
        %1028 = vmatprep.subr.mxu0 0.0
        %1029 = vmatpush1.msra.mxu0 %v585
        %1030 = vmatprep.subr.mxu0 0.0
        %1031 = vmatpush1.msra.mxu0 %v586
        %1032 = vmatprep.subr.mxu0 0.0
        %1033 = vmatpush1.msra.mxu0 %v587
        %1034 = vmatprep.subr.mxu0 0.0
        %1035 = vmatpush1.msra.mxu0 %v588
        %1036 = vmatprep.subr.mxu0 0.0
        %1037 = vmatpush1.msra.mxu0 %v589
        %1038 = vmatprep.subr.mxu0 0.0
        %1039 = vmatpush1.msra.mxu0 %v590
        %1040 = vmatprep.subr.mxu0 0.0
        %1041 = vmatpush1.msra.mxu0 %v591
        %1042 = vmatprep.subr.mxu0 0.0
        %1043 = vmatpush1.msra.mxu0 %v592
        %1044 = vmatprep.subr.mxu0 0.0
        %1045 = vmatpush1.msra.mxu0 %v593
        %1046 = vmatprep.subr.mxu0 0.0
        %1047 = vmatpush1.msra.mxu0 %v594
        %1048 = vmatprep.subr.mxu0 0.0
        %1049 = vmatpush1.msra.mxu0 %v595
        %1050 = vmatprep.subr.mxu0 0.0
        %1051 = vmatpush1.msra.mxu0 %v596
        %1052 = vmatprep.subr.mxu0 0.0
        %1053 = vmatpush1.msra.mxu0 %v597
        %1054 = vmatprep.subr.mxu0 0.0
        %1055 = vmatpush1.msra.mxu0 %v598
        %1056 = vmatprep.subr.mxu0 0.0
        %1057 = vmatpush1.msra.mxu0 %v599
        %1058 = vmatprep.subr.mxu0 0.0
        %1059 = vmatpush1.msra.mxu0 %v600
        %1060 = vmatprep.subr.mxu0 0.0
        %1061 = vmatpush1.msra.mxu0 %v601
        %1062 = vmatprep.subr.mxu0 0.0
        %1063 = vmatpush1.msra.mxu0 %v602
        %1064 = vmatprep.subr.mxu0 0.0
        %1065 = vmatpush1.msra.mxu0 %v603
        %1066 = vmatprep.subr.mxu0 0.0
        %1067 = vmatpush1.msra.mxu0 %v604
        %1068 = vmatprep.subr.mxu0 0.0
        %1069 = vmatpush1.msra.mxu0 %v605
        %1070 = vmatprep.subr.mxu0 0.0
        %1071 = vmatpush1.msra.mxu0 %v606
        %1072 = vmatprep.subr.mxu0 0.0
        %1073 = vmatpush1.msra.mxu0 %v607
        %1074 = vmatprep.subr.mxu0 0.0
        %1075 = vmatpush1.msra.mxu0 %v608
        %1076 = vmatprep.subr.mxu0 0.0
        %1077 = vmatpush1.msra.mxu0 %v609
        %1078 = vmatprep.subr.mxu0 0.0
        %1079 = vmatpush1.msra.mxu0 %v610
        %1080 = vmatprep.subr.mxu0 0.0
        %1081 = vmatpush1.msra.mxu0 %v611
        %1082 = vmatprep.subr.mxu0 0.0
        %1083 = vmatpush1.msra.mxu0 %v612
        %1084 = vmatprep.subr.mxu0 0.0
        %1085 = vmatpush1.msra.mxu0 %v613
        %1086 = vmatprep.subr.mxu0 0.0
        %1087 = vmatpush1.msra.mxu0 %v614
        %1088 = vmatprep.subr.mxu0 0.0
        %1089 = vmatpush1.msra.mxu0 %v615
        %1090 = vmatprep.mubr.f32.mxu0 %v201
        %1091 = vmatmul.mubr.f32.gmra.mrb[0].mxu0 %v200
        %v1092 = vpop.f32.mrb[0].mxu0
        %v1093 = vadd.f32 %v635, %v1092
        %v1094 = vpop.f32.mrb[0].mxu0
        %1095 = vmatprep.mubr.f32.mxu0 %v204
        %1096 = vmatmul.mubr.f32.gmra.mrb[0].mxu0 %v203
        %v1097 = vpop.f32.mrb[0].mxu0
        %v1098 = vadd.f32 %v635, %v1097
        %v1099 = vpop.f32.mrb[0].mxu0
        %1100 = vmatprep.mubr.f32.mxu0 %v207
        %1101 = vmatmul.mubr.f32.gmra.mrb[0].mxu0 %v206
        %v1102 = vpop.f32.mrb[0].mxu0
        %v1103 = vadd.f32 %v635, %v1102
        %v1104 = vpop.f32.mrb[0].mxu0
        %1105 = vmatprep.mubr.f32.mxu0 %v210
        %1106 = vmatmul.mubr.f32.gmra.mrb[0].mxu0 %v209
        %v1107 = vpop.f32.mrb[0].mxu0
        %v1108 = vadd.f32 %v635, %v1107
        %v1109 = vpop.f32.mrb[0].mxu0
        %1110 = vmatprep.mubr.f32.mxu0 %v213
        %1111 = vmatmul.mubr.f32.gmra.mrb[0].mxu0 %v212
        %v1112 = vpop.f32.mrb[0].mxu0
        %v1113 = vadd.f32 %v635, %v1112
        %v1114 = vpop.f32.mrb[0].mxu0
        %1115 = vmatprep.mubr.f32.mxu0 %v216
        %1116 = vmatmul.mubr.f32.gmra.mrb[0].mxu0 %v215
        %v1117 = vpop.f32.mrb[0].mxu0
        %v1118 = vadd.f32 %v635, %v1117
        %v1119 = vpop.f32.mrb[0].mxu0
        %1120 = vmatprep.mubr.f32.mxu0 %v219
        %1121 = vmatmul.mubr.f32.gmra.mrb[0].mxu0 %v218
        %v1122 = vpop.f32.mrb[0].mxu0
        %v1123 = vadd.f32 %v635, %v1122
        %v1124 = vpop.f32.mrb[0].mxu0
        %1125 = vmatprep.mubr.f32.mxu0 %v222
        %1126 = vmatmul.mubr.f32.gmra.mrb[0].mxu0 %v221
        %v1127 = vpop.f32.mrb[0].mxu0
        %v1128 = vadd.f32 %v635, %v1127
        %v1129 = vpop.f32.mrb[0].mxu0
        %1130 = vmatprep.mubr.f32.mxu0 %v225
        %1131 = vmatmul.mubr.f32.gmra.mrb[0].mxu0 %v224
        %v1132 = vpop.f32.mrb[0].mxu0
        %v1133 = vadd.f32 %v635, %v1132
        %v1134 = vpop.f32.mrb[0].mxu0
        %1135 = vmatprep.mubr.f32.mxu0 %v228
        %1136 = vmatmul.mubr.f32.gmra.mrb[0].mxu0 %v227
        %v1137 = vpop.f32.mrb[0].mxu0
        %v1138 = vadd.f32 %v635, %v1137
        %v1139 = vpop.f32.mrb[0].mxu0
        %1140 = vmatprep.mubr.f32.mxu0 %v231
        %1141 = vmatmul.mubr.f32.gmra.mrb[0].mxu0 %v230
        %v1142 = vpop.f32.mrb[0].mxu0
        %v1143 = vadd.f32 %v635, %v1142
        %v1144 = vpop.f32.mrb[0].mxu0
        %1145 = vmatprep.mubr.f32.mxu0 %v234
        %1146 = vmatmul.mubr.f32.gmra.mrb[0].mxu0 %v233
        %v1147 = vpop.f32.mrb[0].mxu0
        %v1148 = vadd.f32 %v635, %v1147
        %v1149 = vpop.f32.mrb[0].mxu0
        %1150 = vmatprep.mubr.f32.mxu0 %v237
        %1151 = vmatmul.mubr.f32.gmra.mrb[0].mxu0 %v236
        %v1152 = vpop.f32.mrb[0].mxu0
        %v1153 = vadd.f32 %v635, %v1152
        %v1154 = vpop.f32.mrb[0].mxu0
        %1155 = vmatprep.mubr.f32.mxu0 %v240
        %1156 = vmatmul.mubr.f32.gmra.mrb[0].mxu0 %v239
        %v1157 = vpop.f32.mrb[0].mxu0
        %v1158 = vadd.f32 %v635, %v1157
        %v1159 = vpop.f32.mrb[0].mxu0
        %1160 = vmatprep.mubr.f32.mxu0 %v243
        %1161 = vmatmul.mubr.f32.gmra.mrb[0].mxu0 %v242
        %v1162 = vpop.f32.mrb[0].mxu0
        %v1163 = vadd.f32 %v635, %v1162
        %v1164 = vpop.f32.mrb[0].mxu0
        %1165 = vmatprep.mubr.f32.mxu0 %v246
        %1166 = vmatmul.mubr.f32.gmra.mrb[0].mxu0 %v245
        %v1167 = vpop.f32.mrb[0].mxu0
        %v1168 = vadd.f32 %v635, %v1167
        %v1169 = vpop.f32.mrb[0].mxu0
        %1170 = vmatprep.mubr.f32.mxu0 %v249
        %1171 = vmatmul.mubr.f32.gmra.mrb[0].mxu0 %v248
        %v1172 = vpop.f32.mrb[0].mxu0
        %v1173 = vadd.f32 %v635, %v1172
        %v1174 = vpop.f32.mrb[0].mxu0
        %1175 = vmatprep.mubr.f32.mxu0 %v252
        %1176 = vmatmul.mubr.f32.gmra.mrb[0].mxu0 %v251
        %v1177 = vpop.f32.mrb[0].mxu0
        %v1178 = vadd.f32 %v635, %v1177
        %v1179 = vpop.f32.mrb[0].mxu0
        %1180 = vmatprep.mubr.f32.mxu0 %v255
        %1181 = vmatmul.mubr.f32.gmra.mrb[0].mxu0 %v254
        %v1182 = vpop.f32.mrb[0].mxu0
        %v1183 = vadd.f32 %v635, %v1182
        %v1184 = vpop.f32.mrb[0].mxu0
        %1185 = vmatprep.mubr.f32.mxu0 %v258
        %1186 = vmatmul.mubr.f32.gmra.mrb[0].mxu0 %v257
        %v1187 = vpop.f32.mrb[0].mxu0
        %v1188 = vadd.f32 %v635, %v1187
        %v1189 = vpop.f32.mrb[0].mxu0
        %1190 = vmatprep.mubr.f32.mxu0 %v261
        %1191 = vmatmul.mubr.f32.gmra.mrb[0].mxu0 %v260
        %v1192 = vpop.f32.mrb[0].mxu0
        %v1193 = vadd.f32 %v635, %v1192
        %v1194 = vpop.f32.mrb[0].mxu0
        %1195 = vmatprep.mubr.f32.mxu0 %v264
        %1196 = vmatmul.mubr.f32.gmra.mrb[0].mxu0 %v263
        %v1197 = vpop.f32.mrb[0].mxu0
        %v1198 = vadd.f32 %v635, %v1197
        %v1199 = vpop.f32.mrb[0].mxu0
        %1200 = vmatprep.mubr.f32.mxu0 %v267
        %1201 = vmatmul.mubr.f32.gmra.mrb[0].mxu0 %v266
        %v1202 = vpop.f32.mrb[0].mxu0
        %v1203 = vadd.f32 %v635, %v1202
        %v1204 = vpop.f32.mrb[0].mxu0
        %1205 = vmatprep.mubr.f32.mxu0 %v270
        %1206 = vmatmul.mubr.f32.gmra.mrb[0].mxu0 %v269
        %v1207 = vpop.f32.mrb[0].mxu0
        %v1208 = vadd.f32 %v635, %v1207
        %v1209 = vpop.f32.mrb[0].mxu0
        %1210 = vmatprep.mubr.f32.mxu0 %v273
        %1211 = vmatmul.mubr.f32.gmra.mrb[0].mxu0 %v272
        %v1212 = vpop.f32.mrb[0].mxu0
        %v1213 = vadd.f32 %v635, %v1212
        %v1214 = vpop.f32.mrb[0].mxu0
        %1215 = vmatprep.mubr.f32.mxu0 %v276
        %1216 = vmatmul.mubr.f32.gmra.mrb[0].mxu0 %v275
        %v1217 = vpop.f32.mrb[0].mxu0
        %v1218 = vadd.f32 %v635, %v1217
        %v1219 = vpop.f32.mrb[0].mxu0
        %1220 = vmatprep.mubr.f32.mxu0 %v279
        %1221 = vmatmul.mubr.f32.gmra.mrb[0].mxu0 %v278
        %v1222 = vpop.f32.mrb[0].mxu0
        %v1223 = vadd.f32 %v635, %v1222
        %v1224 = vpop.f32.mrb[0].mxu0
        %1225 = vmatprep.mubr.f32.mxu0 %v282
        %1226 = vmatmul.mubr.f32.gmra.mrb[0].mxu0 %v281
        %v1227 = vpop.f32.mrb[0].mxu0
        %v1228 = vadd.f32 %v635, %v1227
        %v1229 = vpop.f32.mrb[0].mxu0
        %1230 = vmatprep.mubr.f32.mxu0 %v285
        %1231 = vmatmul.mubr.f32.gmra.mrb[0].mxu0 %v284
        %v1232 = vpop.f32.mrb[0].mxu0
        %v1233 = vadd.f32 %v635, %v1232
        %v1234 = vpop.f32.mrb[0].mxu0
        %1235 = vmatprep.mubr.f32.mxu0 %v288
        %1236 = vmatmul.mubr.f32.gmra.mrb[0].mxu0 %v287
        %v1237 = vpop.f32.mrb[0].mxu0
        %v1238 = vadd.f32 %v635, %v1237
        %v1239 = vpop.f32.mrb[0].mxu0
        %1240 = vmatprep.mubr.f32.mxu0 %v291
        %1241 = vmatmul.mubr.f32.gmra.mrb[0].mxu0 %v290
        %v1242 = vpop.f32.mrb[0].mxu0
        %v1243 = vadd.f32 %v635, %v1242
        %v1244 = vpop.f32.mrb[0].mxu0
        %1245 = vmatprep.mubr.f32.mxu0 %v294
        %1246 = vmatmul.mubr.f32.gmra.mrb[0].mxu0 %v293
        %v1247 = vpop.f32.mrb[0].mxu0
        %v1248 = vadd.f32 %v635, %v1247
        %v1249 = vpop.f32.mrb[0].mxu0
        %1250 = vmatprep.mubr.f32.mxu0 %v297
        %1251 = vmatmul.mubr.f32.gmra.mrb[0].mxu0 %v296
        %v1252 = vpop.f32.mrb[0].mxu0
        %v1253 = vadd.f32 %v635, %v1252
        %v1254 = vpop.f32.mrb[0].mxu0
        %1255 = vmatprep.mubr.f32.mxu0 %v300
        %1256 = vmatmul.mubr.f32.gmra.mrb[0].mxu0 %v299
        %v1257 = vpop.f32.mrb[0].mxu0
        %v1258 = vadd.f32 %v635, %v1257
        %v1259 = vpop.f32.mrb[0].mxu0
        %1260 = vmatprep.mubr.f32.mxu0 %v303
        %1261 = vmatmul.mubr.f32.gmra.mrb[0].mxu0 %v302
        %v1262 = vpop.f32.mrb[0].mxu0
        %v1263 = vadd.f32 %v635, %v1262
        %v1264 = vpop.f32.mrb[0].mxu0
        %1265 = vmatprep.mubr.f32.mxu0 %v306
        %1266 = vmatmul.mubr.f32.gmra.mrb[0].mxu0 %v305
        %v1267 = vpop.f32.mrb[0].mxu0
        %v1268 = vadd.f32 %v635, %v1267
        %v1269 = vpop.f32.mrb[0].mxu0
        %1270 = vmatprep.mubr.f32.mxu0 %v309
        %1271 = vmatmul.mubr.f32.gmra.mrb[0].mxu0 %v308
        %v1272 = vpop.f32.mrb[0].mxu0
        %v1273 = vadd.f32 %v635, %v1272
        %v1274 = vpop.f32.mrb[0].mxu0
        %1275 = vmatprep.mubr.f32.mxu0 %v312
        %1276 = vmatmul.mubr.f32.gmra.mrb[0].mxu0 %v311
        %v1277 = vpop.f32.mrb[0].mxu0
        %v1278 = vadd.f32 %v635, %v1277
        %v1279 = vpop.f32.mrb[0].mxu0
        %1280 = vmatprep.mubr.f32.mxu0 %v315
        %1281 = vmatmul.mubr.f32.gmra.mrb[0].mxu0 %v314
        %v1282 = vpop.f32.mrb[0].mxu0
        %v1283 = vadd.f32 %v635, %v1282
        %v1284 = vpop.f32.mrb[0].mxu0
        %1285 = vmatprep.mubr.f32.mxu0 %v318
        %1286 = vmatmul.mubr.f32.gmra.mrb[0].mxu0 %v317
        %v1287 = vpop.f32.mrb[0].mxu0
        %v1288 = vadd.f32 %v635, %v1287
        %v1289 = vpop.f32.mrb[0].mxu0
        %1290 = vmatprep.mubr.f32.mxu0 %v321
        %1291 = vmatmul.mubr.f32.gmra.mrb[0].mxu0 %v320
        %v1292 = vpop.f32.mrb[0].mxu0
        %v1293 = vadd.f32 %v635, %v1292
        %v1294 = vpop.f32.mrb[0].mxu0
        %1295 = vmatprep.mubr.f32.mxu0 %v324
        %1296 = vmatmul.mubr.f32.gmra.mrb[0].mxu0 %v323
        %v1297 = vpop.f32.mrb[0].mxu0
        %v1298 = vadd.f32 %v635, %v1297
        %v1299 = vpop.f32.mrb[0].mxu0
        %1300 = vmatprep.mubr.f32.mxu0 %v327
        %1301 = vmatmul.mubr.f32.gmra.mrb[0].mxu0 %v326
        %v1302 = vpop.f32.mrb[0].mxu0
        %v1303 = vadd.f32 %v635, %v1302
        %v1304 = vpop.f32.mrb[0].mxu0
        %1305 = vmatprep.mubr.f32.mxu0 %v330
        %1306 = vmatmul.mubr.f32.gmra.mrb[0].mxu0 %v329
        %v1307 = vpop.f32.mrb[0].mxu0
        %v1308 = vadd.f32 %v635, %v1307
        %v1309 = vpop.f32.mrb[0].mxu0
        %1310 = vmatprep.mubr.f32.mxu0 %v333
        %1311 = vmatmul.mubr.f32.gmra.mrb[0].mxu0 %v332
        %v1312 = vpop.f32.mrb[0].mxu0
        %v1313 = vadd.f32 %v635, %v1312
        %v1314 = vpop.f32.mrb[0].mxu0
        %1315 = vmatprep.mubr.f32.mxu0 %v336
        %1316 = vmatmul.mubr.f32.gmra.mrb[0].mxu0 %v335
        %v1317 = vpop.f32.mrb[0].mxu0
        %v1318 = vadd.f32 %v635, %v1317
        %v1319 = vpop.f32.mrb[0].mxu0
        %1320 = vmatprep.mubr.f32.mxu0 %v339
        %1321 = vmatmul.mubr.f32.gmra.mrb[0].mxu0 %v338
        %v1322 = vpop.f32.mrb[0].mxu0
        %v1323 = vadd.f32 %v635, %v1322
        %v1324 = vpop.f32.mrb[0].mxu0
        %1325 = vmatprep.mubr.f32.mxu0 %v342
        %1326 = vmatmul.mubr.f32.gmra.mrb[0].mxu0 %v341
        %v1327 = vpop.f32.mrb[0].mxu0
        %v1328 = vadd.f32 %v635, %v1327
        %v1329 = vpop.f32.mrb[0].mxu0
        %1330 = vmatprep.mubr.f32.mxu0 %v345
        %1331 = vmatmul.mubr.f32.gmra.mrb[0].mxu0 %v344
        %v1332 = vpop.f32.mrb[0].mxu0
        %v1333 = vadd.f32 %v635, %v1332
        %v1334 = vpop.f32.mrb[0].mxu0
        %1335 = vmatprep.mubr.f32.mxu0 %v348
        %1336 = vmatmul.mubr.f32.gmra.mrb[0].mxu0 %v347
        %v1337 = vpop.f32.mrb[0].mxu0
        %v1338 = vadd.f32 %v635, %v1337
        %v1339 = vpop.f32.mrb[0].mxu0
        %1340 = vmatprep.mubr.f32.mxu0 %v351
        %1341 = vmatmul.mubr.f32.gmra.mrb[0].mxu0 %v350
        %v1342 = vpop.f32.mrb[0].mxu0
        %v1343 = vadd.f32 %v635, %v1342
        %v1344 = vpop.f32.mrb[0].mxu0
        %1345 = vmatprep.mubr.f32.mxu0 %v354
        %1346 = vmatmul.mubr.f32.gmra.mrb[0].mxu0 %v353
        %v1347 = vpop.f32.mrb[0].mxu0
        %v1348 = vadd.f32 %v635, %v1347
        %v1349 = vpop.f32.mrb[0].mxu0
        %1350 = vmatprep.mubr.f32.mxu0 %v357
        %1351 = vmatmul.mubr.f32.gmra.mrb[0].mxu0 %v356
        %v1352 = vpop.f32.mrb[0].mxu0
        %v1353 = vadd.f32 %v635, %v1352
        %v1354 = vpop.f32.mrb[0].mxu0
        %1355 = vmatprep.mubr.f32.mxu0 %v360
        %1356 = vmatmul.mubr.f32.gmra.mrb[0].mxu0 %v359
        %v1357 = vpop.f32.mrb[0].mxu0
        %v1358 = vadd.f32 %v635, %v1357
        %v1359 = vpop.f32.mrb[0].mxu0
        %1360 = vmatprep.mubr.f32.mxu0 %v363
        %1361 = vmatmul.mubr.f32.gmra.mrb[0].mxu0 %v362
        %v1362 = vpop.f32.mrb[0].mxu0
        %v1363 = vadd.f32 %v635, %v1362
        %v1364 = vpop.f32.mrb[0].mxu0
        %1365 = vmatprep.mubr.f32.mxu0 %v366
        %1366 = vmatmul.mubr.f32.gmra.mrb[0].mxu0 %v365
        %v1367 = vpop.f32.mrb[0].mxu0
        %v1368 = vadd.f32 %v635, %v1367
        %v1369 = vpop.f32.mrb[0].mxu0
        %1370 = vmatprep.mubr.f32.mxu0 %v369
        %1371 = vmatmul.mubr.f32.gmra.mrb[0].mxu0 %v368
        %v1372 = vpop.f32.mrb[0].mxu0
        %v1373 = vadd.f32 %v635, %v1372
        %v1374 = vpop.f32.mrb[0].mxu0
        %1375 = vmatprep.mubr.f32.mxu0 %v372
        %1376 = vmatmul.mubr.f32.gmra.mrb[0].mxu0 %v371
        %v1377 = vpop.f32.mrb[0].mxu0
        %v1378 = vadd.f32 %v635, %v1377
        %v1379 = vpop.f32.mrb[0].mxu0
        %1380 = vmatprep.mubr.f32.mxu0 %v375
        %1381 = vmatmul.mubr.f32.gmra.mrb[0].mxu0 %v374
        %v1382 = vpop.f32.mrb[0].mxu0
        %v1383 = vadd.f32 %v635, %v1382
        %v1384 = vpop.f32.mrb[0].mxu0
        %1385 = vmatprep.mubr.f32.mxu0 %v378
        %1386 = vmatmul.mubr.f32.gmra.mrb[0].mxu0 %v377
        %v1387 = vpop.f32.mrb[0].mxu0
        %v1388 = vadd.f32 %v635, %v1387
        %v1389 = vpop.f32.mrb[0].mxu0
        %1390 = vmatprep.mubr.f32.mxu0 %v381
        %1391 = vmatmul.mubr.f32.gmra.mrb[0].mxu0 %v380
        %v1392 = vpop.f32.mrb[0].mxu0
        %v1393 = vadd.f32 %v635, %v1392
        %v1394 = vpop.f32.mrb[0].mxu0
        %1395 = vmatprep.mubr.f32.mxu0 %v384
        %1396 = vmatmul.mubr.f32.gmra.mrb[0].mxu0 %v383
        %v1397 = vpop.f32.mrb[0].mxu0
        %v1398 = vadd.f32 %v635, %v1397
        %v1399 = vpop.f32.mrb[0].mxu0
        %1400 = vmatprep.mubr.f32.mxu0 %v387
        %1401 = vmatmul.mubr.f32.gmra.mrb[0].mxu0 %v386
        %v1402 = vpop.f32.mrb[0].mxu0
        %v1403 = vadd.f32 %v635, %v1402
        %v1404 = vpop.f32.mrb[0].mxu0
        %1405 = vmatprep.mubr.f32.mxu0 %v390
        %1406 = vmatmul.mubr.f32.gmra.mrb[0].mxu0 %v389
        %v1407 = vpop.f32.mrb[0].mxu0
        %v1408 = vadd.f32 %v635, %v1407
        %v1409 = vpop.f32.mrb[0].mxu0
        %1410 = vmatprep.mubr.f32.mxu0 %v393
        %1411 = vmatmul.mubr.f32.gmra.mrb[0].mxu0 %v392
        %v1412 = vpop.f32.mrb[0].mxu0
        %v1413 = vadd.f32 %v635, %v1412
        %v1414 = vpop.f32.mrb[0].mxu0
        %1415 = vmatprep.mubr.f32.mxu0 %v396
        %1416 = vmatmul.mubr.f32.gmra.mrb[0].mxu0 %v395
        %v1417 = vpop.f32.mrb[0].mxu0
        %v1418 = vadd.f32 %v635, %v1417
        %v1419 = vpop.f32.mrb[0].mxu0
        %1420 = vmatprep.mubr.f32.mxu0 %v399
        %1421 = vmatmul.mubr.f32.gmra.mrb[0].mxu0 %v398
        %v1422 = vpop.f32.mrb[0].mxu0
        %v1423 = vadd.f32 %v635, %v1422
        %v1424 = vpop.f32.mrb[0].mxu0
        %1425 = vmatprep.mubr.f32.mxu0 %v402
        %1426 = vmatmul.mubr.f32.gmra.mrb[0].mxu0 %v401
        %v1427 = vpop.f32.mrb[0].mxu0
        %v1428 = vadd.f32 %v635, %v1427
        %v1429 = vpop.f32.mrb[0].mxu0
        %1430 = vmatprep.mubr.f32.mxu0 %v405
        %1431 = vmatmul.mubr.f32.gmra.mrb[0].mxu0 %v404
        %v1432 = vpop.f32.mrb[0].mxu0
        %v1433 = vadd.f32 %v635, %v1432
        %v1434 = vpop.f32.mrb[0].mxu0
        %1435 = vmatprep.mubr.f32.mxu0 %v408
        %1436 = vmatmul.mubr.f32.gmra.mrb[0].mxu0 %v407
        %v1437 = vpop.f32.mrb[0].mxu0
        %v1438 = vadd.f32 %v635, %v1437
        %v1439 = vpop.f32.mrb[0].mxu0
        %1440 = vmatprep.mubr.f32.mxu0 %v411
        %1441 = vmatmul.mubr.f32.gmra.mrb[0].mxu0 %v410
        %v1442 = vpop.f32.mrb[0].mxu0
        %v1443 = vadd.f32 %v635, %v1442
        %v1444 = vpop.f32.mrb[0].mxu0
        %1445 = vmatprep.mubr.f32.mxu0 %v414
        %1446 = vmatmul.mubr.f32.gmra.mrb[0].mxu0 %v413
        %v1447 = vpop.f32.mrb[0].mxu0
        %v1448 = vadd.f32 %v635, %v1447
        %v1449 = vpop.f32.mrb[0].mxu0
        %1450 = vmatprep.mubr.f32.mxu0 %v417
        %1451 = vmatmul.mubr.f32.gmra.mrb[0].mxu0 %v416
        %v1452 = vpop.f32.mrb[0].mxu0
        %v1453 = vadd.f32 %v635, %v1452
        %v1454 = vpop.f32.mrb[0].mxu0
        %1455 = vmatprep.mubr.f32.mxu0 %v420
        %1456 = vmatmul.mubr.f32.gmra.mrb[0].mxu0 %v419
        %v1457 = vpop.f32.mrb[0].mxu0
        %v1458 = vadd.f32 %v635, %v1457
        %v1459 = vpop.f32.mrb[0].mxu0
        %1460 = vmatprep.mubr.f32.mxu0 %v423
        %1461 = vmatmul.mubr.f32.gmra.mrb[0].mxu0 %v422
        %v1462 = vpop.f32.mrb[0].mxu0
        %v1463 = vadd.f32 %v635, %v1462
        %v1464 = vpop.f32.mrb[0].mxu0
        %1465 = vmatprep.mubr.f32.mxu0 %v426
        %1466 = vmatmul.mubr.f32.gmra.mrb[0].mxu0 %v425
        %v1467 = vpop.f32.mrb[0].mxu0
        %v1468 = vadd.f32 %v635, %v1467
        %v1469 = vpop.f32.mrb[0].mxu0
        %1470 = vmatprep.mubr.f32.mxu0 %v429
        %1471 = vmatmul.mubr.f32.gmra.mrb[0].mxu0 %v428
        %v1472 = vpop.f32.mrb[0].mxu0
        %v1473 = vadd.f32 %v635, %v1472
        %v1474 = vpop.f32.mrb[0].mxu0
        %1475 = vmatprep.mubr.f32.mxu0 %v432
        %1476 = vmatmul.mubr.f32.gmra.mrb[0].mxu0 %v431
        %v1477 = vpop.f32.mrb[0].mxu0
        %v1478 = vadd.f32 %v635, %v1477
        %v1479 = vpop.f32.mrb[0].mxu0
        %1480 = vmatprep.mubr.f32.mxu0 %v435
        %1481 = vmatmul.mubr.f32.gmra.mrb[0].mxu0 %v434
        %v1482 = vpop.f32.mrb[0].mxu0
        %v1483 = vadd.f32 %v635, %v1482
        %v1484 = vpop.f32.mrb[0].mxu0
        %1485 = vmatprep.mubr.f32.mxu0 %v438
        %1486 = vmatmul.mubr.f32.gmra.mrb[0].mxu0 %v437
        %v1487 = vpop.f32.mrb[0].mxu0
        %v1488 = vadd.f32 %v635, %v1487
        %v1489 = vpop.f32.mrb[0].mxu0
        %1490 = vmatprep.mubr.f32.mxu0 %v441
        %1491 = vmatmul.mubr.f32.gmra.mrb[0].mxu0 %v440
        %v1492 = vpop.f32.mrb[0].mxu0
        %v1493 = vadd.f32 %v635, %v1492
        %v1494 = vpop.f32.mrb[0].mxu0
        %1495 = vmatprep.mubr.f32.mxu0 %v444
        %1496 = vmatmul.mubr.f32.gmra.mrb[0].mxu0 %v443
        %v1497 = vpop.f32.mrb[0].mxu0
        %v1498 = vadd.f32 %v635, %v1497
        %v1499 = vpop.f32.mrb[0].mxu0
        %1500 = vmatprep.mubr.f32.mxu0 %v447
        %1501 = vmatmul.mubr.f32.gmra.mrb[0].mxu0 %v446
        %v1502 = vpop.f32.mrb[0].mxu0
        %v1503 = vadd.f32 %v635, %v1502
        %v1504 = vpop.f32.mrb[0].mxu0
        %1505 = vmatprep.mubr.f32.mxu0 %v450
        %1506 = vmatmul.mubr.f32.gmra.mrb[0].mxu0 %v449
        %v1507 = vpop.f32.mrb[0].mxu0
        %v1508 = vadd.f32 %v635, %v1507
        %v1509 = vpop.f32.mrb[0].mxu0
        %1510 = vmatprep.mubr.f32.mxu0 %v453
        %1511 = vmatmul.mubr.f32.gmra.mrb[0].mxu0 %v452
        %v1512 = vpop.f32.mrb[0].mxu0
        %v1513 = vadd.f32 %v635, %v1512
        %v1514 = vpop.f32.mrb[0].mxu0
        %1515 = vmatprep.mubr.f32.mxu0 %v456
        %1516 = vmatmul.mubr.f32.gmra.mrb[0].mxu0 %v455
        %v1517 = vpop.f32.mrb[0].mxu0
        %v1518 = vadd.f32 %v635, %v1517
        %v1519 = vpop.f32.mrb[0].mxu0
        %1520 = vmatprep.mubr.f32.mxu0 %v459
        %1521 = vmatmul.mubr.f32.gmra.mrb[0].mxu0 %v458
        %v1522 = vpop.f32.mrb[0].mxu0
        %v1523 = vadd.f32 %v635, %v1522
        %v1524 = vpop.f32.mrb[0].mxu0
        %1525 = vmatprep.mubr.f32.mxu0 %v462
        %1526 = vmatmul.mubr.f32.gmra.mrb[0].mxu0 %v461
        %v1527 = vpop.f32.mrb[0].mxu0
        %v1528 = vadd.f32 %v635, %v1527
        %v1529 = vpop.f32.mrb[0].mxu0
        %1530 = vmatprep.mubr.f32.mxu0 %v465
        %1531 = vmatmul.mubr.f32.gmra.mrb[0].mxu0 %v464
        %v1532 = vpop.f32.mrb[0].mxu0
        %v1533 = vadd.f32 %v635, %v1532
        %v1534 = vpop.f32.mrb[0].mxu0
        %1535 = vmatprep.mubr.f32.mxu0 %v468
        %1536 = vmatmul.mubr.f32.gmra.mrb[0].mxu0 %v467
        %v1537 = vpop.f32.mrb[0].mxu0
        %v1538 = vadd.f32 %v635, %v1537
        %v1539 = vpop.f32.mrb[0].mxu0
        %1540 = vmatprep.mubr.f32.mxu0 %v471
        %1541 = vmatmul.mubr.f32.gmra.mrb[0].mxu0 %v470
        %v1542 = vpop.f32.mrb[0].mxu0
        %v1543 = vadd.f32 %v635, %v1542
        %v1544 = vpop.f32.mrb[0].mxu0
        %1545 = vmatprep.mubr.f32.mxu0 %v474
        %1546 = vmatmul.mubr.f32.gmra.mrb[0].mxu0 %v473
        %v1547 = vpop.f32.mrb[0].mxu0
        %v1548 = vadd.f32 %v635, %v1547
        %v1549 = vpop.f32.mrb[0].mxu0
        %1550 = vmatprep.mubr.f32.mxu0 %v477
        %1551 = vmatmul.mubr.f32.gmra.mrb[0].mxu0 %v476
        %v1552 = vpop.f32.mrb[0].mxu0
        %v1553 = vadd.f32 %v635, %v1552
        %v1554 = vpop.f32.mrb[0].mxu0
        %1555 = vmatprep.mubr.f32.mxu0 %v480
        %1556 = vmatmul.mubr.f32.gmra.mrb[0].mxu0 %v479
        %v1557 = vpop.f32.mrb[0].mxu0
        %v1558 = vadd.f32 %v635, %v1557
        %v1559 = vpop.f32.mrb[0].mxu0
        %1560 = vmatprep.mubr.f32.mxu0 %v483
        %1561 = vmatmul.mubr.f32.gmra.mrb[0].mxu0 %v482
        %v1562 = vpop.f32.mrb[0].mxu0
        %v1563 = vadd.f32 %v635, %v1562
        %v1564 = vpop.f32.mrb[0].mxu0
        %1565 = vmatprep.mubr.f32.mxu0 %v486
        %1566 = vmatmul.mubr.f32.gmra.mrb[0].mxu0 %v485
        %v1567 = vpop.f32.mrb[0].mxu0
        %v1568 = vadd.f32 %v635, %v1567
        %v1569 = vpop.f32.mrb[0].mxu0
        %1570 = vmatprep.mubr.f32.mxu0 %v489
        %1571 = vmatmul.mubr.f32.gmra.mrb[0].mxu0 %v488
        %v1572 = vpop.f32.mrb[0].mxu0
        %v1573 = vadd.f32 %v635, %v1572
        %v1574 = vpop.f32.mrb[0].mxu0
        %1575 = vmatprep.mubr.f32.mxu0 %v492
        %1576 = vmatmul.mubr.f32.gmra.mrb[0].mxu0 %v491
        %v1577 = vpop.f32.mrb[0].mxu0
        %v1578 = vadd.f32 %v635, %v1577
        %v1579 = vpop.f32.mrb[0].mxu0
        %1580 = vmatprep.mubr.f32.mxu0 %v495
        %1581 = vmatmul.mubr.f32.gmra.mrb[0].mxu0 %v494
        %v1582 = vpop.f32.mrb[0].mxu0
        %v1583 = vadd.f32 %v635, %v1582
        %v1584 = vpop.f32.mrb[0].mxu0
        %1585 = vmatprep.mubr.f32.mxu0 %v498
        %1586 = vmatmul.mubr.f32.gmra.mrb[0].mxu0 %v497
        %v1587 = vpop.f32.mrb[0].mxu0
        %v1588 = vadd.f32 %v635, %v1587
        %v1589 = vpop.f32.mrb[0].mxu0
        %1590 = vmatprep.mubr.f32.mxu0 %v501
        %1591 = vmatmul.mubr.f32.gmra.mrb[0].mxu0 %v500
        %v1592 = vpop.f32.mrb[0].mxu0
        %v1593 = vadd.f32 %v635, %v1592
        %v1594 = vpop.f32.mrb[0].mxu0
        %1595 = vmatprep.mubr.f32.mxu0 %v504
        %1596 = vmatmul.mubr.f32.gmra.mrb[0].mxu0 %v503
        %v1597 = vpop.f32.mrb[0].mxu0
        %v1598 = vadd.f32 %v635, %v1597
        %v1599 = vpop.f32.mrb[0].mxu0
        %1600 = vmatprep.mubr.f32.mxu0 %v507
        %1601 = vmatmul.mubr.f32.gmra.mrb[0].mxu0 %v506
        %v1602 = vpop.f32.mrb[0].mxu0
        %v1603 = vadd.f32 %v635, %v1602
        %v1604 = vpop.f32.mrb[0].mxu0
        %1605 = vmatprep.mubr.f32.mxu0 %v510
        %1606 = vmatmul.mubr.f32.gmra.mrb[0].mxu0 %v509
        %v1607 = vpop.f32.mrb[0].mxu0
        %v1608 = vadd.f32 %v635, %v1607
        %v1609 = vpop.f32.mrb[0].mxu0
        %1610 = vmatprep.mubr.f32.mxu0 %v513
        %1611 = vmatmul.mubr.f32.gmra.mrb[0].mxu0 %v512
        %v1612 = vpop.f32.mrb[0].mxu0
        %v1613 = vadd.f32 %v635, %v1612
        %v1614 = vpop.f32.mrb[0].mxu0
        %1615 = vmatprep.mubr.f32.mxu0 %v516
        %1616 = vmatmul.mubr.f32.gmra.mrb[0].mxu0 %v515
        %v1617 = vpop.f32.mrb[0].mxu0
        %v1618 = vadd.f32 %v635, %v1617
        %v1619 = vpop.f32.mrb[0].mxu0
        %1620 = vmatprep.mubr.f32.mxu0 %v519
        %1621 = vmatmul.mubr.f32.gmra.mrb[0].mxu0 %v518
        %v1622 = vpop.f32.mrb[0].mxu0
        %v1623 = vadd.f32 %v635, %v1622
        %v1624 = vpop.f32.mrb[0].mxu0
        %1625 = vmatprep.mubr.f32.mxu0 %v522
        %1626 = vmatmul.mubr.f32.gmra.mrb[0].mxu0 %v521
        %v1627 = vpop.f32.mrb[0].mxu0
        %v1628 = vadd.f32 %v635, %v1627
        %v1629 = vpop.f32.mrb[0].mxu0
        %1630 = vmatprep.mubr.f32.mxu0 %v525
        %1631 = vmatmul.mubr.f32.gmra.mrb[0].mxu0 %v524
        %v1632 = vpop.f32.mrb[0].mxu0
        %v1633 = vadd.f32 %v635, %v1632
        %v1634 = vpop.f32.mrb[0].mxu0
        %1635 = vmatprep.mubr.f32.mxu0 %v528
        %1636 = vmatmul.mubr.f32.gmra.mrb[0].mxu0 %v527
        %v1637 = vpop.f32.mrb[0].mxu0
        %v1638 = vadd.f32 %v635, %v1637
        %v1639 = vpop.f32.mrb[0].mxu0
        %1640 = vmatprep.mubr.f32.mxu0 %v531
        %1641 = vmatmul.mubr.f32.gmra.mrb[0].mxu0 %v530
        %v1642 = vpop.f32.mrb[0].mxu0
        %v1643 = vadd.f32 %v635, %v1642
        %v1644 = vpop.f32.mrb[0].mxu0
        %1645 = vmatprep.mubr.f32.mxu0 %v534
        %1646 = vmatmul.mubr.f32.gmra.mrb[0].mxu0 %v533
        %v1647 = vpop.f32.mrb[0].mxu0
        %v1648 = vadd.f32 %v635, %v1647
        %v1649 = vpop.f32.mrb[0].mxu0
        %1650 = vmatprep.mubr.f32.mxu0 %v537
        %1651 = vmatmul.mubr.f32.gmra.mrb[0].mxu0 %v536
        %v1652 = vpop.f32.mrb[0].mxu0
        %v1653 = vadd.f32 %v635, %v1652
        %v1654 = vpop.f32.mrb[0].mxu0
        %1655 = vmatprep.mubr.f32.mxu0 %v540
        %1656 = vmatmul.mubr.f32.gmra.mrb[0].mxu0 %v539
        %v1657 = vpop.f32.mrb[0].mxu0
        %v1658 = vadd.f32 %v635, %v1657
        %v1659 = vpop.f32.mrb[0].mxu0
        %1660 = vmatprep.mubr.f32.mxu0 %v543
        %1661 = vmatmul.mubr.f32.gmra.mrb[0].mxu0 %v542
        %v1662 = vpop.f32.mrb[0].mxu0
        %v1663 = vadd.f32 %v635, %v1662
        %v1664 = vpop.f32.mrb[0].mxu0
        %1665 = vmatprep.mubr.f32.mxu0 %v546
        %1666 = vmatmul.mubr.f32.gmra.mrb[0].mxu0 %v545
        %v1667 = vpop.f32.mrb[0].mxu0
        %v1668 = vadd.f32 %v635, %v1667
        %v1669 = vpop.f32.mrb[0].mxu0
        %1670 = vmatprep.mubr.f32.mxu0 %v549
        %1671 = vmatmul.mubr.f32.gmra.mrb[0].mxu0 %v548
        %v1672 = vpop.f32.mrb[0].mxu0
        %v1673 = vadd.f32 %v635, %v1672
        %v1674 = vpop.f32.mrb[0].mxu0
        %1675 = vmatprep.mubr.f32.mxu0 %v552
        %1676 = vmatmul.mubr.f32.gmra.mrb[0].mxu0 %v551
        %v1677 = vpop.f32.mrb[0].mxu0
        %v1678 = vadd.f32 %v635, %v1677
        %v1679 = vpop.f32.mrb[0].mxu0
        %1680 = vmatprep.mubr.f32.mxu0 %v555
        %1681 = vmatmul.mubr.f32.gmra.mrb[0].mxu0 %v554
        %v1682 = vpop.f32.mrb[0].mxu0
        %v1683 = vadd.f32 %v635, %v1682
        %v1684 = vpop.f32.mrb[0].mxu0
        %1685 = vmatprep.mubr.f32.mxu0 %v558
        %1686 = vmatmul.mubr.f32.gmra.mrb[0].mxu0 %v557
        %v1687 = vpop.f32.mrb[0].mxu0
        %v1688 = vadd.f32 %v635, %v1687
        %v1689 = vpop.f32.mrb[0].mxu0
        %1690 = vmatprep.mubr.f32.mxu0 %v561
        %1691 = vmatmul.mubr.f32.gmra.mrb[0].mxu0 %v560
        %v1692 = vpop.f32.mrb[0].mxu0
        %v1693 = vadd.f32 %v635, %v1692
        %v1694 = vpop.f32.mrb[0].mxu0
        %1695 = vmatprep.mubr.f32.mxu0 %v564
        %1696 = vmatmul.mubr.f32.gmra.mrb[0].mxu0 %v563
        %v1697 = vpop.f32.mrb[0].mxu0
        %v1698 = vadd.f32 %v635, %v1697
        %v1699 = vpop.f32.mrb[0].mxu0
        %1700 = vmatprep.mubr.f32.mxu0 %v567
        %1701 = vmatmul.mubr.f32.gmra.mrb[0].mxu0 %v566
        %v1702 = vpop.f32.mrb[0].mxu0
        %v1703 = vadd.f32 %v635, %v1702
        %v1704 = vpop.f32.mrb[0].mxu0
        %1705 = vmatprep.mubr.f32.mxu0 %v570
        %1706 = vmatmul.mubr.f32.gmra.mrb[0].mxu0 %v569
        %v1707 = vpop.f32.mrb[0].mxu0
        %v1708 = vadd.f32 %v635, %v1707
        %v1709 = vpop.f32.mrb[0].mxu0
        %1710 = vmatprep.mubr.f32.mxu0 %v573
        %1711 = vmatmul.mubr.f32.gmra.mrb[0].mxu0 %v572
        %v1712 = vpop.f32.mrb[0].mxu0
        %v1713 = vadd.f32 %v635, %v1712
        %v1714 = vpop.f32.mrb[0].mxu0
        %1715 = vmatprep.mubr.f32.mxu0 %v576
        %1716 = vmatmul.mubr.f32.gmra.mrb[0].mxu0 %v575
        %v1717 = vpop.f32.mrb[0].mxu0
        %v1718 = vadd.f32 %v635, %v1717
        %v1719 = vpop.f32.mrb[0].mxu0
        %1720 = vmatprep.mubr.f32.mxu0 %v579
        %1721 = vmatmul.mubr.f32.gmra.mrb[0].mxu0 %v578
        %v1722 = vpop.f32.mrb[0].mxu0
        %v1723 = vadd.f32 %v635, %v1722
        %v1724 = vpop.f32.mrb[0].mxu0
        %1725 = vmatprep.mubr.f32.mxu0 %v582
        %1726 = vmatmul.mubr.f32.gmra.mrb[0].mxu0 %v581
        %v1727 = vpop.f32.mrb[0].mxu0
        %v1728 = vadd.f32 %v635, %v1727
        %v1729 = vpop.f32.mrb[0].mxu0
        %1730 = vdwg.mxu0
        %1731 = vmatprep.subr.mxu0 0.0
        %1732 = vmatpush1.msra.mxu0 %v616
        %1733 = vmatprep.subr.mxu0 0.0
        %1734 = vmatpush1.msra.mxu0 %v617
        %1735 = vmatprep.subr.mxu0 0.0
        %1736 = vmatpush1.msra.mxu0 %v618
        %1737 = vmatprep.subr.mxu0 0.0
        %1738 = vmatpush1.msra.mxu0 %v619
        %1739 = vmatprep.subr.mxu0 0.0
        %1740 = vmatpush1.msra.mxu0 %v620
        %1741 = vmatprep.subr.mxu0 0.0
        %1742 = vmatpush1.msra.mxu0 %v621
        %1743 = vmatprep.subr.mxu0 0.0
        %1744 = vmatpush1.msra.mxu0 %v622
        %1745 = vmatprep.subr.mxu0 0.0
        %1746 = vmatpush1.msra.mxu0 %v623
        %1747 = vmatprep.subr.mxu0 0.0
        %1748 = vmatpush1.msra.mxu0 %v624
        %1749 = vmatprep.subr.mxu0 0.0
        %1750 = vmatpush1.msra.mxu0 %v625
        %1751 = vmatprep.subr.mxu0 0.0
        %1752 = vmatpush1.msra.mxu0 %v626
        %1753 = vmatprep.subr.mxu0 0.0
        %1754 = vmatpush1.msra.mxu0 %v627
        %1755 = vmatprep.subr.mxu0 0.0
        %1756 = vmatpush1.msra.mxu0 %v628
        %1757 = vmatprep.subr.mxu0 0.0
        %1758 = vmatpush1.msra.mxu0 %v1024
        %1759 = vmatprep.subr.mxu0 0.0
        %1760 = vmatpush1.msra.mxu0 0.0
        %1761 = vmatprep.subr.mxu0 0.0
        %1762 = vmatpush1.msra.mxu0 0.0
        %1763 = vmatprep.subr.mxu0 0.0
        %1764 = vmatpush1.msra.mxu0 0.0
        %1765 = vmatprep.subr.mxu0 0.0
        %1766 = vmatpush1.msra.mxu0 0.0
        %1767 = vmatprep.subr.mxu0 0.0
        %1768 = vmatpush1.msra.mxu0 0.0
        %1769 = vmatprep.subr.mxu0 0.0
        %1770 = vmatpush1.msra.mxu0 0.0
        %1771 = vmatprep.subr.mxu0 0.0
        %1772 = vmatpush1.msra.mxu0 0.0
        %1773 = vmatprep.subr.mxu0 0.0
        %1774 = vmatpush1.msra.mxu0 0.0
        %1775 = vmatprep.subr.mxu0 0.0
        %1776 = vmatpush1.msra.mxu0 0.0
        %1777 = vmatprep.subr.mxu0 0.0
        %1778 = vmatpush1.msra.mxu0 0.0
        %1779 = vmatprep.subr.mxu0 0.0
        %1780 = vmatpush1.msra.mxu0 0.0
        %1781 = vmatprep.subr.mxu0 0.0
        %1782 = vmatpush1.msra.mxu0 0.0
        %1783 = vmatprep.subr.mxu0 0.0
        %1784 = vmatpush1.msra.mxu0 0.0
        %1785 = vmatprep.subr.mxu0 0.0
        %1786 = vmatpush1.msra.mxu0 0.0
        %1787 = vmatprep.subr.mxu0 0.0
        %1788 = vmatpush1.msra.mxu0 0.0
        %1789 = vmatprep.subr.mxu0 0.0
        %1790 = vmatpush1.msra.mxu0 0.0
        %1791 = vmatprep.subr.mxu0 0.0
        %1792 = vmatpush1.msra.mxu0 0.0
        %1793 = vmatprep.subr.mxu0 0.0
        %1794 = vmatpush1.msra.mxu0 0.0
        %1795 = vmatprep.mubr.f32.mxu0 0.0
        %1796 = vmatmul.mubr.f32.gmra.mrb[0].mxu0 %v639
        %v1797 = vpop.f32.mrb[0].mxu0
        %v1798 = vadd.f32 %v1093, %v1797
        %v1799 = vpop.f32.mrb[0].mxu0
        %1800 = vmatprep.mubr.f32.mxu0 0.0
        %1801 = vmatmul.mubr.f32.gmra.mrb[0].mxu0 %v642
        %v1802 = vpop.f32.mrb[0].mxu0
        %v1803 = vadd.f32 %v1098, %v1802
        %v1804 = vpop.f32.mrb[0].mxu0
        %1805 = vmatprep.mubr.f32.mxu0 0.0
        %1806 = vmatmul.mubr.f32.gmra.mrb[0].mxu0 %v645
        %v1807 = vpop.f32.mrb[0].mxu0
        %v1808 = vadd.f32 %v1103, %v1807
        %v1809 = vpop.f32.mrb[0].mxu0
        %1810 = vmatprep.mubr.f32.mxu0 0.0
        %1811 = vmatmul.mubr.f32.gmra.mrb[0].mxu0 %v648
        %v1812 = vpop.f32.mrb[0].mxu0
        %v1813 = vadd.f32 %v1108, %v1812
        %v1814 = vpop.f32.mrb[0].mxu0
        %1815 = vmatprep.mubr.f32.mxu0 0.0
        %1816 = vmatmul.mubr.f32.gmra.mrb[0].mxu0 %v651
        %v1817 = vpop.f32.mrb[0].mxu0
        %v1818 = vadd.f32 %v1113, %v1817
        %v1819 = vpop.f32.mrb[0].mxu0
        %1820 = vmatprep.mubr.f32.mxu0 0.0
        %1821 = vmatmul.mubr.f32.gmra.mrb[0].mxu0 %v654
        %v1822 = vpop.f32.mrb[0].mxu0
        %v1823 = vadd.f32 %v1118, %v1822
        %v1824 = vpop.f32.mrb[0].mxu0
        %1825 = vmatprep.mubr.f32.mxu0 0.0
        %1826 = vmatmul.mubr.f32.gmra.mrb[0].mxu0 %v657
        %v1827 = vpop.f32.mrb[0].mxu0
        %v1828 = vadd.f32 %v1123, %v1827
        %v1829 = vpop.f32.mrb[0].mxu0
        %1830 = vmatprep.mubr.f32.mxu0 0.0
        %1831 = vmatmul.mubr.f32.gmra.mrb[0].mxu0 %v660
        %v1832 = vpop.f32.mrb[0].mxu0
        %v1833 = vadd.f32 %v1128, %v1832
        %v1834 = vpop.f32.mrb[0].mxu0
        %1835 = vmatprep.mubr.f32.mxu0 0.0
        %1836 = vmatmul.mubr.f32.gmra.mrb[0].mxu0 %v663
        %v1837 = vpop.f32.mrb[0].mxu0
        %v1838 = vadd.f32 %v1133, %v1837
        %v1839 = vpop.f32.mrb[0].mxu0
        %1840 = vmatprep.mubr.f32.mxu0 0.0
        %1841 = vmatmul.mubr.f32.gmra.mrb[0].mxu0 %v666
        %v1842 = vpop.f32.mrb[0].mxu0
        %v1843 = vadd.f32 %v1138, %v1842
        %v1844 = vpop.f32.mrb[0].mxu0
        %1845 = vmatprep.mubr.f32.mxu0 0.0
        %1846 = vmatmul.mubr.f32.gmra.mrb[0].mxu0 %v669
        %v1847 = vpop.f32.mrb[0].mxu0
        %v1848 = vadd.f32 %v1143, %v1847
        %v1849 = vpop.f32.mrb[0].mxu0
        %1850 = vmatprep.mubr.f32.mxu0 0.0
        %1851 = vmatmul.mubr.f32.gmra.mrb[0].mxu0 %v672
        %v1852 = vpop.f32.mrb[0].mxu0
        %v1853 = vadd.f32 %v1148, %v1852
        %v1854 = vpop.f32.mrb[0].mxu0
        %1855 = vmatprep.mubr.f32.mxu0 0.0
        %1856 = vmatmul.mubr.f32.gmra.mrb[0].mxu0 %v675
        %v1857 = vpop.f32.mrb[0].mxu0
        %v1858 = vadd.f32 %v1153, %v1857
        %v1859 = vpop.f32.mrb[0].mxu0
        %1860 = vmatprep.mubr.f32.mxu0 0.0
        %1861 = vmatmul.mubr.f32.gmra.mrb[0].mxu0 %v678
        %v1862 = vpop.f32.mrb[0].mxu0
        %v1863 = vadd.f32 %v1158, %v1862
        %v1864 = vpop.f32.mrb[0].mxu0
        %1865 = vmatprep.mubr.f32.mxu0 0.0
        %1866 = vmatmul.mubr.f32.gmra.mrb[0].mxu0 %v681
        %v1867 = vpop.f32.mrb[0].mxu0
        %v1868 = vadd.f32 %v1163, %v1867
        %v1869 = vpop.f32.mrb[0].mxu0
        %1870 = vmatprep.mubr.f32.mxu0 0.0
        %1871 = vmatmul.mubr.f32.gmra.mrb[0].mxu0 %v684
        %v1872 = vpop.f32.mrb[0].mxu0
        %v1873 = vadd.f32 %v1168, %v1872
        %v1874 = vpop.f32.mrb[0].mxu0
        %1875 = vmatprep.mubr.f32.mxu0 0.0
        %1876 = vmatmul.mubr.f32.gmra.mrb[0].mxu0 %v687
        %v1877 = vpop.f32.mrb[0].mxu0
        %v1878 = vadd.f32 %v1173, %v1877
        %v1879 = vpop.f32.mrb[0].mxu0
        %1880 = vmatprep.mubr.f32.mxu0 0.0
        %1881 = vmatmul.mubr.f32.gmra.mrb[0].mxu0 %v690
        %v1882 = vpop.f32.mrb[0].mxu0
        %v1883 = vadd.f32 %v1178, %v1882
        %v1884 = vpop.f32.mrb[0].mxu0
        %1885 = vmatprep.mubr.f32.mxu0 0.0
        %1886 = vmatmul.mubr.f32.gmra.mrb[0].mxu0 %v693
        %v1887 = vpop.f32.mrb[0].mxu0
        %v1888 = vadd.f32 %v1183, %v1887
        %v1889 = vpop.f32.mrb[0].mxu0
        %1890 = vmatprep.mubr.f32.mxu0 0.0
        %1891 = vmatmul.mubr.f32.gmra.mrb[0].mxu0 %v696
        %v1892 = vpop.f32.mrb[0].mxu0
        %v1893 = vadd.f32 %v1188, %v1892
        %v1894 = vpop.f32.mrb[0].mxu0
        %1895 = vmatprep.mubr.f32.mxu0 0.0
        %1896 = vmatmul.mubr.f32.gmra.mrb[0].mxu0 %v699
        %v1897 = vpop.f32.mrb[0].mxu0
        %v1898 = vadd.f32 %v1193, %v1897
        %v1899 = vpop.f32.mrb[0].mxu0
        %1900 = vmatprep.mubr.f32.mxu0 0.0
        %1901 = vmatmul.mubr.f32.gmra.mrb[0].mxu0 %v702
        %v1902 = vpop.f32.mrb[0].mxu0
        %v1903 = vadd.f32 %v1198, %v1902
        %v1904 = vpop.f32.mrb[0].mxu0
        %1905 = vmatprep.mubr.f32.mxu0 0.0
        %1906 = vmatmul.mubr.f32.gmra.mrb[0].mxu0 %v705
        %v1907 = vpop.f32.mrb[0].mxu0
        %v1908 = vadd.f32 %v1203, %v1907
        %v1909 = vpop.f32.mrb[0].mxu0
        %1910 = vmatprep.mubr.f32.mxu0 0.0
        %1911 = vmatmul.mubr.f32.gmra.mrb[0].mxu0 %v708
        %v1912 = vpop.f32.mrb[0].mxu0
        %v1913 = vadd.f32 %v1208, %v1912
        %v1914 = vpop.f32.mrb[0].mxu0
        %1915 = vmatprep.mubr.f32.mxu0 0.0
        %1916 = vmatmul.mubr.f32.gmra.mrb[0].mxu0 %v711
        %v1917 = vpop.f32.mrb[0].mxu0
        %v1918 = vadd.f32 %v1213, %v1917
        %v1919 = vpop.f32.mrb[0].mxu0
        %1920 = vmatprep.mubr.f32.mxu0 0.0
        %1921 = vmatmul.mubr.f32.gmra.mrb[0].mxu0 %v714
        %v1922 = vpop.f32.mrb[0].mxu0
        %v1923 = vadd.f32 %v1218, %v1922
        %v1924 = vpop.f32.mrb[0].mxu0
        %1925 = vmatprep.mubr.f32.mxu0 0.0
        %1926 = vmatmul.mubr.f32.gmra.mrb[0].mxu0 %v717
        %v1927 = vpop.f32.mrb[0].mxu0
        %v1928 = vadd.f32 %v1223, %v1927
        %v1929 = vpop.f32.mrb[0].mxu0
        %1930 = vmatprep.mubr.f32.mxu0 0.0
        %1931 = vmatmul.mubr.f32.gmra.mrb[0].mxu0 %v720
        %v1932 = vpop.f32.mrb[0].mxu0
        %v1933 = vadd.f32 %v1228, %v1932
        %v1934 = vpop.f32.mrb[0].mxu0
        %1935 = vmatprep.mubr.f32.mxu0 0.0
        %1936 = vmatmul.mubr.f32.gmra.mrb[0].mxu0 %v723
        %v1937 = vpop.f32.mrb[0].mxu0
        %v1938 = vadd.f32 %v1233, %v1937
        %v1939 = vpop.f32.mrb[0].mxu0
        %1940 = vmatprep.mubr.f32.mxu0 0.0
        %1941 = vmatmul.mubr.f32.gmra.mrb[0].mxu0 %v726
        %v1942 = vpop.f32.mrb[0].mxu0
        %v1943 = vadd.f32 %v1238, %v1942
        %v1944 = vpop.f32.mrb[0].mxu0
        %1945 = vmatprep.mubr.f32.mxu0 0.0
        %1946 = vmatmul.mubr.f32.gmra.mrb[0].mxu0 %v729
        %v1947 = vpop.f32.mrb[0].mxu0
        %v1948 = vadd.f32 %v1243, %v1947
        %v1949 = vpop.f32.mrb[0].mxu0
        %1950 = vmatprep.mubr.f32.mxu0 0.0
        %1951 = vmatmul.mubr.f32.gmra.mrb[0].mxu0 %v732
        %v1952 = vpop.f32.mrb[0].mxu0
        %v1953 = vadd.f32 %v1248, %v1952
        %v1954 = vpop.f32.mrb[0].mxu0
        %1955 = vmatprep.mubr.f32.mxu0 0.0
        %1956 = vmatmul.mubr.f32.gmra.mrb[0].mxu0 %v735
        %v1957 = vpop.f32.mrb[0].mxu0
        %v1958 = vadd.f32 %v1253, %v1957
        %v1959 = vpop.f32.mrb[0].mxu0
        %1960 = vmatprep.mubr.f32.mxu0 0.0
        %1961 = vmatmul.mubr.f32.gmra.mrb[0].mxu0 %v738
        %v1962 = vpop.f32.mrb[0].mxu0
        %v1963 = vadd.f32 %v1258, %v1962
        %v1964 = vpop.f32.mrb[0].mxu0
        %1965 = vmatprep.mubr.f32.mxu0 0.0
        %1966 = vmatmul.mubr.f32.gmra.mrb[0].mxu0 %v741
        %v1967 = vpop.f32.mrb[0].mxu0
        %v1968 = vadd.f32 %v1263, %v1967
        %v1969 = vpop.f32.mrb[0].mxu0
        %1970 = vmatprep.mubr.f32.mxu0 0.0
        %1971 = vmatmul.mubr.f32.gmra.mrb[0].mxu0 %v744
        %v1972 = vpop.f32.mrb[0].mxu0
        %v1973 = vadd.f32 %v1268, %v1972
        %v1974 = vpop.f32.mrb[0].mxu0
        %1975 = vmatprep.mubr.f32.mxu0 0.0
        %1976 = vmatmul.mubr.f32.gmra.mrb[0].mxu0 %v747
        %v1977 = vpop.f32.mrb[0].mxu0
        %v1978 = vadd.f32 %v1273, %v1977
        %v1979 = vpop.f32.mrb[0].mxu0
        %1980 = vmatprep.mubr.f32.mxu0 0.0
        %1981 = vmatmul.mubr.f32.gmra.mrb[0].mxu0 %v750
        %v1982 = vpop.f32.mrb[0].mxu0
        %v1983 = vadd.f32 %v1278, %v1982
        %v1984 = vpop.f32.mrb[0].mxu0
        %1985 = vmatprep.mubr.f32.mxu0 0.0
        %1986 = vmatmul.mubr.f32.gmra.mrb[0].mxu0 %v753
        %v1987 = vpop.f32.mrb[0].mxu0
        %v1988 = vadd.f32 %v1283, %v1987
        %v1989 = vpop.f32.mrb[0].mxu0
        %1990 = vmatprep.mubr.f32.mxu0 0.0
        %1991 = vmatmul.mubr.f32.gmra.mrb[0].mxu0 %v756
        %v1992 = vpop.f32.mrb[0].mxu0
        %v1993 = vadd.f32 %v1288, %v1992
        %v1994 = vpop.f32.mrb[0].mxu0
        %1995 = vmatprep.mubr.f32.mxu0 0.0
        %1996 = vmatmul.mubr.f32.gmra.mrb[0].mxu0 %v759
        %v1997 = vpop.f32.mrb[0].mxu0
        %v1998 = vadd.f32 %v1293, %v1997
        %v1999 = vpop.f32.mrb[0].mxu0
        %2000 = vmatprep.mubr.f32.mxu0 0.0
        %2001 = vmatmul.mubr.f32.gmra.mrb[0].mxu0 %v762
        %v2002 = vpop.f32.mrb[0].mxu0
        %v2003 = vadd.f32 %v1298, %v2002
        %v2004 = vpop.f32.mrb[0].mxu0
        %2005 = vmatprep.mubr.f32.mxu0 0.0
        %2006 = vmatmul.mubr.f32.gmra.mrb[0].mxu0 %v765
        %v2007 = vpop.f32.mrb[0].mxu0
        %v2008 = vadd.f32 %v1303, %v2007
        %v2009 = vpop.f32.mrb[0].mxu0
        %2010 = vmatprep.mubr.f32.mxu0 0.0
        %2011 = vmatmul.mubr.f32.gmra.mrb[0].mxu0 %v768
        %v2012 = vpop.f32.mrb[0].mxu0
        %v2013 = vadd.f32 %v1308, %v2012
        %v2014 = vpop.f32.mrb[0].mxu0
        %2015 = vmatprep.mubr.f32.mxu0 0.0
        %2016 = vmatmul.mubr.f32.gmra.mrb[0].mxu0 %v771
        %v2017 = vpop.f32.mrb[0].mxu0
        %v2018 = vadd.f32 %v1313, %v2017
        %v2019 = vpop.f32.mrb[0].mxu0
        %2020 = vmatprep.mubr.f32.mxu0 0.0
        %2021 = vmatmul.mubr.f32.gmra.mrb[0].mxu0 %v774
        %v2022 = vpop.f32.mrb[0].mxu0
        %v2023 = vadd.f32 %v1318, %v2022
        %v2024 = vpop.f32.mrb[0].mxu0
        %2025 = vmatprep.mubr.f32.mxu0 0.0
        %2026 = vmatmul.mubr.f32.gmra.mrb[0].mxu0 %v777
        %v2027 = vpop.f32.mrb[0].mxu0
        %v2028 = vadd.f32 %v1323, %v2027
        %v2029 = vpop.f32.mrb[0].mxu0
        %2030 = vmatprep.mubr.f32.mxu0 0.0
        %2031 = vmatmul.mubr.f32.gmra.mrb[0].mxu0 %v780
        %v2032 = vpop.f32.mrb[0].mxu0
        %v2033 = vadd.f32 %v1328, %v2032
        %v2034 = vpop.f32.mrb[0].mxu0
        %2035 = vmatprep.mubr.f32.mxu0 0.0
        %2036 = vmatmul.mubr.f32.gmra.mrb[0].mxu0 %v783
        %v2037 = vpop.f32.mrb[0].mxu0
        %v2038 = vadd.f32 %v1333, %v2037
        %v2039 = vpop.f32.mrb[0].mxu0
        %2040 = vmatprep.mubr.f32.mxu0 0.0
        %2041 = vmatmul.mubr.f32.gmra.mrb[0].mxu0 %v786
        %v2042 = vpop.f32.mrb[0].mxu0
        %v2043 = vadd.f32 %v1338, %v2042
        %v2044 = vpop.f32.mrb[0].mxu0
        %2045 = vmatprep.mubr.f32.mxu0 0.0
        %2046 = vmatmul.mubr.f32.gmra.mrb[0].mxu0 %v789
        %v2047 = vpop.f32.mrb[0].mxu0
        %v2048 = vadd.f32 %v1343, %v2047
        %v2049 = vpop.f32.mrb[0].mxu0
        %2050 = vmatprep.mubr.f32.mxu0 0.0
        %2051 = vmatmul.mubr.f32.gmra.mrb[0].mxu0 %v792
        %v2052 = vpop.f32.mrb[0].mxu0
        %v2053 = vadd.f32 %v1348, %v2052
        %v2054 = vpop.f32.mrb[0].mxu0
        %2055 = vmatprep.mubr.f32.mxu0 0.0
        %2056 = vmatmul.mubr.f32.gmra.mrb[0].mxu0 %v795
        %v2057 = vpop.f32.mrb[0].mxu0
        %v2058 = vadd.f32 %v1353, %v2057
        %v2059 = vpop.f32.mrb[0].mxu0
        %2060 = vmatprep.mubr.f32.mxu0 0.0
        %2061 = vmatmul.mubr.f32.gmra.mrb[0].mxu0 %v798
        %v2062 = vpop.f32.mrb[0].mxu0
        %v2063 = vadd.f32 %v1358, %v2062
        %v2064 = vpop.f32.mrb[0].mxu0
        %2065 = vmatprep.mubr.f32.mxu0 0.0
        %2066 = vmatmul.mubr.f32.gmra.mrb[0].mxu0 %v801
        %v2067 = vpop.f32.mrb[0].mxu0
        %v2068 = vadd.f32 %v1363, %v2067
        %v2069 = vpop.f32.mrb[0].mxu0
        %2070 = vmatprep.mubr.f32.mxu0 0.0
        %2071 = vmatmul.mubr.f32.gmra.mrb[0].mxu0 %v804
        %v2072 = vpop.f32.mrb[0].mxu0
        %v2073 = vadd.f32 %v1368, %v2072
        %v2074 = vpop.f32.mrb[0].mxu0
        %2075 = vmatprep.mubr.f32.mxu0 0.0
        %2076 = vmatmul.mubr.f32.gmra.mrb[0].mxu0 %v807
        %v2077 = vpop.f32.mrb[0].mxu0
        %v2078 = vadd.f32 %v1373, %v2077
        %v2079 = vpop.f32.mrb[0].mxu0
        %2080 = vmatprep.mubr.f32.mxu0 0.0
        %2081 = vmatmul.mubr.f32.gmra.mrb[0].mxu0 %v810
        %v2082 = vpop.f32.mrb[0].mxu0
        %v2083 = vadd.f32 %v1378, %v2082
        %v2084 = vpop.f32.mrb[0].mxu0
        %2085 = vmatprep.mubr.f32.mxu0 0.0
        %2086 = vmatmul.mubr.f32.gmra.mrb[0].mxu0 %v813
        %v2087 = vpop.f32.mrb[0].mxu0
        %v2088 = vadd.f32 %v1383, %v2087
        %v2089 = vpop.f32.mrb[0].mxu0
        %2090 = vmatprep.mubr.f32.mxu0 0.0
        %2091 = vmatmul.mubr.f32.gmra.mrb[0].mxu0 %v816
        %v2092 = vpop.f32.mrb[0].mxu0
        %v2093 = vadd.f32 %v1388, %v2092
        %v2094 = vpop.f32.mrb[0].mxu0
        %2095 = vmatprep.mubr.f32.mxu0 0.0
        %2096 = vmatmul.mubr.f32.gmra.mrb[0].mxu0 %v819
        %v2097 = vpop.f32.mrb[0].mxu0
        %v2098 = vadd.f32 %v1393, %v2097
        %v2099 = vpop.f32.mrb[0].mxu0
        %2100 = vmatprep.mubr.f32.mxu0 0.0
        %2101 = vmatmul.mubr.f32.gmra.mrb[0].mxu0 %v822
        %v2102 = vpop.f32.mrb[0].mxu0
        %v2103 = vadd.f32 %v1398, %v2102
        %v2104 = vpop.f32.mrb[0].mxu0
        %2105 = vmatprep.mubr.f32.mxu0 0.0
        %2106 = vmatmul.mubr.f32.gmra.mrb[0].mxu0 %v825
        %v2107 = vpop.f32.mrb[0].mxu0
        %v2108 = vadd.f32 %v1403, %v2107
        %v2109 = vpop.f32.mrb[0].mxu0
        %2110 = vmatprep.mubr.f32.mxu0 0.0
        %2111 = vmatmul.mubr.f32.gmra.mrb[0].mxu0 %v828
        %v2112 = vpop.f32.mrb[0].mxu0
        %v2113 = vadd.f32 %v1408, %v2112
        %v2114 = vpop.f32.mrb[0].mxu0
        %2115 = vmatprep.mubr.f32.mxu0 0.0
        %2116 = vmatmul.mubr.f32.gmra.mrb[0].mxu0 %v831
        %v2117 = vpop.f32.mrb[0].mxu0
        %v2118 = vadd.f32 %v1413, %v2117
        %v2119 = vpop.f32.mrb[0].mxu0
        %2120 = vmatprep.mubr.f32.mxu0 0.0
        %2121 = vmatmul.mubr.f32.gmra.mrb[0].mxu0 %v834
        %v2122 = vpop.f32.mrb[0].mxu0
        %v2123 = vadd.f32 %v1418, %v2122
        %v2124 = vpop.f32.mrb[0].mxu0
        %2125 = vmatprep.mubr.f32.mxu0 0.0
        %2126 = vmatmul.mubr.f32.gmra.mrb[0].mxu0 %v837
        %v2127 = vpop.f32.mrb[0].mxu0
        %v2128 = vadd.f32 %v1423, %v2127
        %v2129 = vpop.f32.mrb[0].mxu0
        %2130 = vmatprep.mubr.f32.mxu0 0.0
        %2131 = vmatmul.mubr.f32.gmra.mrb[0].mxu0 %v840
        %v2132 = vpop.f32.mrb[0].mxu0
        %v2133 = vadd.f32 %v1428, %v2132
        %v2134 = vpop.f32.mrb[0].mxu0
        %2135 = vmatprep.mubr.f32.mxu0 0.0
        %2136 = vmatmul.mubr.f32.gmra.mrb[0].mxu0 %v843
        %v2137 = vpop.f32.mrb[0].mxu0
        %v2138 = vadd.f32 %v1433, %v2137
        %v2139 = vpop.f32.mrb[0].mxu0
        %2140 = vmatprep.mubr.f32.mxu0 0.0
        %2141 = vmatmul.mubr.f32.gmra.mrb[0].mxu0 %v846
        %v2142 = vpop.f32.mrb[0].mxu0
        %v2143 = vadd.f32 %v1438, %v2142
        %v2144 = vpop.f32.mrb[0].mxu0
        %2145 = vmatprep.mubr.f32.mxu0 0.0
        %2146 = vmatmul.mubr.f32.gmra.mrb[0].mxu0 %v849
        %v2147 = vpop.f32.mrb[0].mxu0
        %v2148 = vadd.f32 %v1443, %v2147
        %v2149 = vpop.f32.mrb[0].mxu0
        %2150 = vmatprep.mubr.f32.mxu0 0.0
        %2151 = vmatmul.mubr.f32.gmra.mrb[0].mxu0 %v852
        %v2152 = vpop.f32.mrb[0].mxu0
        %v2153 = vadd.f32 %v1448, %v2152
        %v2154 = vpop.f32.mrb[0].mxu0
        %2155 = vmatprep.mubr.f32.mxu0 0.0
        %2156 = vmatmul.mubr.f32.gmra.mrb[0].mxu0 %v855
        %v2157 = vpop.f32.mrb[0].mxu0
        %v2158 = vadd.f32 %v1453, %v2157
        %v2159 = vpop.f32.mrb[0].mxu0
        %2160 = vmatprep.mubr.f32.mxu0 0.0
        %2161 = vmatmul.mubr.f32.gmra.mrb[0].mxu0 %v858
        %v2162 = vpop.f32.mrb[0].mxu0
        %v2163 = vadd.f32 %v1458, %v2162
        %v2164 = vpop.f32.mrb[0].mxu0
        %2165 = vmatprep.mubr.f32.mxu0 0.0
        %2166 = vmatmul.mubr.f32.gmra.mrb[0].mxu0 %v861
        %v2167 = vpop.f32.mrb[0].mxu0
        %v2168 = vadd.f32 %v1463, %v2167
        %v2169 = vpop.f32.mrb[0].mxu0
        %2170 = vmatprep.mubr.f32.mxu0 0.0
        %2171 = vmatmul.mubr.f32.gmra.mrb[0].mxu0 %v864
        %v2172 = vpop.f32.mrb[0].mxu0
        %v2173 = vadd.f32 %v1468, %v2172
        %v2174 = vpop.f32.mrb[0].mxu0
        %2175 = vmatprep.mubr.f32.mxu0 0.0
        %2176 = vmatmul.mubr.f32.gmra.mrb[0].mxu0 %v867
        %v2177 = vpop.f32.mrb[0].mxu0
        %v2178 = vadd.f32 %v1473, %v2177
        %v2179 = vpop.f32.mrb[0].mxu0
        %2180 = vmatprep.mubr.f32.mxu0 0.0
        %2181 = vmatmul.mubr.f32.gmra.mrb[0].mxu0 %v870
        %v2182 = vpop.f32.mrb[0].mxu0
        %v2183 = vadd.f32 %v1478, %v2182
        %v2184 = vpop.f32.mrb[0].mxu0
        %2185 = vmatprep.mubr.f32.mxu0 0.0
        %2186 = vmatmul.mubr.f32.gmra.mrb[0].mxu0 %v873
        %v2187 = vpop.f32.mrb[0].mxu0
        %v2188 = vadd.f32 %v1483, %v2187
        %v2189 = vpop.f32.mrb[0].mxu0
        %2190 = vmatprep.mubr.f32.mxu0 0.0
        %2191 = vmatmul.mubr.f32.gmra.mrb[0].mxu0 %v876
        %v2192 = vpop.f32.mrb[0].mxu0
        %v2193 = vadd.f32 %v1488, %v2192
        %v2194 = vpop.f32.mrb[0].mxu0
        %2195 = vmatprep.mubr.f32.mxu0 0.0
        %2196 = vmatmul.mubr.f32.gmra.mrb[0].mxu0 %v879
        %v2197 = vpop.f32.mrb[0].mxu0
        %v2198 = vadd.f32 %v1493, %v2197
        %v2199 = vpop.f32.mrb[0].mxu0
        %2200 = vmatprep.mubr.f32.mxu0 0.0
        %2201 = vmatmul.mubr.f32.gmra.mrb[0].mxu0 %v882
        %v2202 = vpop.f32.mrb[0].mxu0
        %v2203 = vadd.f32 %v1498, %v2202
        %v2204 = vpop.f32.mrb[0].mxu0
        %2205 = vmatprep.mubr.f32.mxu0 0.0
        %2206 = vmatmul.mubr.f32.gmra.mrb[0].mxu0 %v885
        %v2207 = vpop.f32.mrb[0].mxu0
        %v2208 = vadd.f32 %v1503, %v2207
        %v2209 = vpop.f32.mrb[0].mxu0
        %2210 = vmatprep.mubr.f32.mxu0 0.0
        %2211 = vmatmul.mubr.f32.gmra.mrb[0].mxu0 %v888
        %v2212 = vpop.f32.mrb[0].mxu0
        %v2213 = vadd.f32 %v1508, %v2212
        %v2214 = vpop.f32.mrb[0].mxu0
        %2215 = vmatprep.mubr.f32.mxu0 0.0
        %2216 = vmatmul.mubr.f32.gmra.mrb[0].mxu0 %v891
        %v2217 = vpop.f32.mrb[0].mxu0
        %v2218 = vadd.f32 %v1513, %v2217
        %v2219 = vpop.f32.mrb[0].mxu0
        %2220 = vmatprep.mubr.f32.mxu0 0.0
        %2221 = vmatmul.mubr.f32.gmra.mrb[0].mxu0 %v894
        %v2222 = vpop.f32.mrb[0].mxu0
        %v2223 = vadd.f32 %v1518, %v2222
        %v2224 = vpop.f32.mrb[0].mxu0
        %2225 = vmatprep.mubr.f32.mxu0 0.0
        %2226 = vmatmul.mubr.f32.gmra.mrb[0].mxu0 %v897
        %v2227 = vpop.f32.mrb[0].mxu0
        %v2228 = vadd.f32 %v1523, %v2227
        %v2229 = vpop.f32.mrb[0].mxu0
        %2230 = vmatprep.mubr.f32.mxu0 0.0
        %2231 = vmatmul.mubr.f32.gmra.mrb[0].mxu0 %v900
        %v2232 = vpop.f32.mrb[0].mxu0
        %v2233 = vadd.f32 %v1528, %v2232
        %v2234 = vpop.f32.mrb[0].mxu0
        %2235 = vmatprep.mubr.f32.mxu0 0.0
        %2236 = vmatmul.mubr.f32.gmra.mrb[0].mxu0 %v903
        %v2237 = vpop.f32.mrb[0].mxu0
        %v2238 = vadd.f32 %v1533, %v2237
        %v2239 = vpop.f32.mrb[0].mxu0
        %2240 = vmatprep.mubr.f32.mxu0 0.0
        %2241 = vmatmul.mubr.f32.gmra.mrb[0].mxu0 %v906
        %v2242 = vpop.f32.mrb[0].mxu0
        %v2243 = vadd.f32 %v1538, %v2242
        %v2244 = vpop.f32.mrb[0].mxu0
        %2245 = vmatprep.mubr.f32.mxu0 0.0
        %2246 = vmatmul.mubr.f32.gmra.mrb[0].mxu0 %v909
        %v2247 = vpop.f32.mrb[0].mxu0
        %v2248 = vadd.f32 %v1543, %v2247
        %v2249 = vpop.f32.mrb[0].mxu0
        %2250 = vmatprep.mubr.f32.mxu0 0.0
        %2251 = vmatmul.mubr.f32.gmra.mrb[0].mxu0 %v912
        %v2252 = vpop.f32.mrb[0].mxu0
        %v2253 = vadd.f32 %v1548, %v2252
        %v2254 = vpop.f32.mrb[0].mxu0
        %2255 = vmatprep.mubr.f32.mxu0 0.0
        %2256 = vmatmul.mubr.f32.gmra.mrb[0].mxu0 %v915
        %v2257 = vpop.f32.mrb[0].mxu0
        %v2258 = vadd.f32 %v1553, %v2257
        %v2259 = vpop.f32.mrb[0].mxu0
        %2260 = vmatprep.mubr.f32.mxu0 0.0
        %2261 = vmatmul.mubr.f32.gmra.mrb[0].mxu0 %v918
        %v2262 = vpop.f32.mrb[0].mxu0
        %v2263 = vadd.f32 %v1558, %v2262
        %v2264 = vpop.f32.mrb[0].mxu0
        %2265 = vmatprep.mubr.f32.mxu0 0.0
        %2266 = vmatmul.mubr.f32.gmra.mrb[0].mxu0 %v921
        %v2267 = vpop.f32.mrb[0].mxu0
        %v2268 = vadd.f32 %v1563, %v2267
        %v2269 = vpop.f32.mrb[0].mxu0
        %2270 = vmatprep.mubr.f32.mxu0 0.0
        %2271 = vmatmul.mubr.f32.gmra.mrb[0].mxu0 %v924
        %v2272 = vpop.f32.mrb[0].mxu0
        %v2273 = vadd.f32 %v1568, %v2272
        %v2274 = vpop.f32.mrb[0].mxu0
        %2275 = vmatprep.mubr.f32.mxu0 0.0
        %2276 = vmatmul.mubr.f32.gmra.mrb[0].mxu0 %v927
        %v2277 = vpop.f32.mrb[0].mxu0
        %v2278 = vadd.f32 %v1573, %v2277
        %v2279 = vpop.f32.mrb[0].mxu0
        %2280 = vmatprep.mubr.f32.mxu0 0.0
        %2281 = vmatmul.mubr.f32.gmra.mrb[0].mxu0 %v930
        %v2282 = vpop.f32.mrb[0].mxu0
        %v2283 = vadd.f32 %v1578, %v2282
        %v2284 = vpop.f32.mrb[0].mxu0
        %2285 = vmatprep.mubr.f32.mxu0 0.0
        %2286 = vmatmul.mubr.f32.gmra.mrb[0].mxu0 %v933
        %v2287 = vpop.f32.mrb[0].mxu0
        %v2288 = vadd.f32 %v1583, %v2287
        %v2289 = vpop.f32.mrb[0].mxu0
        %2290 = vmatprep.mubr.f32.mxu0 0.0
        %2291 = vmatmul.mubr.f32.gmra.mrb[0].mxu0 %v936
        %v2292 = vpop.f32.mrb[0].mxu0
        %v2293 = vadd.f32 %v1588, %v2292
        %v2294 = vpop.f32.mrb[0].mxu0
        %2295 = vmatprep.mubr.f32.mxu0 0.0
        %2296 = vmatmul.mubr.f32.gmra.mrb[0].mxu0 %v939
        %v2297 = vpop.f32.mrb[0].mxu0
        %v2298 = vadd.f32 %v1593, %v2297
        %v2299 = vpop.f32.mrb[0].mxu0
        %2300 = vmatprep.mubr.f32.mxu0 0.0
        %2301 = vmatmul.mubr.f32.gmra.mrb[0].mxu0 %v942
        %v2302 = vpop.f32.mrb[0].mxu0
        %v2303 = vadd.f32 %v1598, %v2302
        %v2304 = vpop.f32.mrb[0].mxu0
        %2305 = vmatprep.mubr.f32.mxu0 0.0
        %2306 = vmatmul.mubr.f32.gmra.mrb[0].mxu0 %v945
        %v2307 = vpop.f32.mrb[0].mxu0
        %v2308 = vadd.f32 %v1603, %v2307
        %v2309 = vpop.f32.mrb[0].mxu0
        %2310 = vmatprep.mubr.f32.mxu0 0.0
        %2311 = vmatmul.mubr.f32.gmra.mrb[0].mxu0 %v948
        %v2312 = vpop.f32.mrb[0].mxu0
        %v2313 = vadd.f32 %v1608, %v2312
        %v2314 = vpop.f32.mrb[0].mxu0
        %2315 = vmatprep.mubr.f32.mxu0 0.0
        %2316 = vmatmul.mubr.f32.gmra.mrb[0].mxu0 %v951
        %v2317 = vpop.f32.mrb[0].mxu0
        %v2318 = vadd.f32 %v1613, %v2317
        %v2319 = vpop.f32.mrb[0].mxu0
        %2320 = vmatprep.mubr.f32.mxu0 0.0
        %2321 = vmatmul.mubr.f32.gmra.mrb[0].mxu0 %v954
        %v2322 = vpop.f32.mrb[0].mxu0
        %v2323 = vadd.f32 %v1618, %v2322
        %v2324 = vpop.f32.mrb[0].mxu0
        %2325 = vmatprep.mubr.f32.mxu0 0.0
        %2326 = vmatmul.mubr.f32.gmra.mrb[0].mxu0 %v957
        %v2327 = vpop.f32.mrb[0].mxu0
        %v2328 = vadd.f32 %v1623, %v2327
        %v2329 = vpop.f32.mrb[0].mxu0
        %2330 = vmatprep.mubr.f32.mxu0 0.0
        %2331 = vmatmul.mubr.f32.gmra.mrb[0].mxu0 %v960
        %v2332 = vpop.f32.mrb[0].mxu0
        %v2333 = vadd.f32 %v1628, %v2332
        %v2334 = vpop.f32.mrb[0].mxu0
        %2335 = vmatprep.mubr.f32.mxu0 0.0
        %2336 = vmatmul.mubr.f32.gmra.mrb[0].mxu0 %v963
        %v2337 = vpop.f32.mrb[0].mxu0
        %v2338 = vadd.f32 %v1633, %v2337
        %v2339 = vpop.f32.mrb[0].mxu0
        %2340 = vmatprep.mubr.f32.mxu0 0.0
        %2341 = vmatmul.mubr.f32.gmra.mrb[0].mxu0 %v966
        %v2342 = vpop.f32.mrb[0].mxu0
        %v2343 = vadd.f32 %v1638, %v2342
        %v2344 = vpop.f32.mrb[0].mxu0
        %2345 = vmatprep.mubr.f32.mxu0 0.0
        %2346 = vmatmul.mubr.f32.gmra.mrb[0].mxu0 %v969
        %v2347 = vpop.f32.mrb[0].mxu0
        %v2348 = vadd.f32 %v1643, %v2347
        %v2349 = vpop.f32.mrb[0].mxu0
        %2350 = vmatprep.mubr.f32.mxu0 0.0
        %2351 = vmatmul.mubr.f32.gmra.mrb[0].mxu0 %v972
        %v2352 = vpop.f32.mrb[0].mxu0
        %v2353 = vadd.f32 %v1648, %v2352
        %v2354 = vpop.f32.mrb[0].mxu0
        %2355 = vmatprep.mubr.f32.mxu0 0.0
        %2356 = vmatmul.mubr.f32.gmra.mrb[0].mxu0 %v975
        %v2357 = vpop.f32.mrb[0].mxu0
        %v2358 = vadd.f32 %v1653, %v2357
        %v2359 = vpop.f32.mrb[0].mxu0
        %2360 = vmatprep.mubr.f32.mxu0 0.0
        %2361 = vmatmul.mubr.f32.gmra.mrb[0].mxu0 %v978
        %v2362 = vpop.f32.mrb[0].mxu0
        %v2363 = vadd.f32 %v1658, %v2362
        %v2364 = vpop.f32.mrb[0].mxu0
        %2365 = vmatprep.mubr.f32.mxu0 0.0
        %2366 = vmatmul.mubr.f32.gmra.mrb[0].mxu0 %v981
        %v2367 = vpop.f32.mrb[0].mxu0
        %v2368 = vadd.f32 %v1663, %v2367
        %v2369 = vpop.f32.mrb[0].mxu0
        %2370 = vmatprep.mubr.f32.mxu0 0.0
        %2371 = vmatmul.mubr.f32.gmra.mrb[0].mxu0 %v984
        %v2372 = vpop.f32.mrb[0].mxu0
        %v2373 = vadd.f32 %v1668, %v2372
        %v2374 = vpop.f32.mrb[0].mxu0
        %2375 = vmatprep.mubr.f32.mxu0 0.0
        %2376 = vmatmul.mubr.f32.gmra.mrb[0].mxu0 %v987
        %v2377 = vpop.f32.mrb[0].mxu0
        %v2378 = vadd.f32 %v1673, %v2377
        %v2379 = vpop.f32.mrb[0].mxu0
        %2380 = vmatprep.mubr.f32.mxu0 0.0
        %2381 = vmatmul.mubr.f32.gmra.mrb[0].mxu0 %v990
        %v2382 = vpop.f32.mrb[0].mxu0
        %v2383 = vadd.f32 %v1678, %v2382
        %v2384 = vpop.f32.mrb[0].mxu0
        %2385 = vmatprep.mubr.f32.mxu0 0.0
        %2386 = vmatmul.mubr.f32.gmra.mrb[0].mxu0 %v993
        %v2387 = vpop.f32.mrb[0].mxu0
        %v2388 = vadd.f32 %v1683, %v2387
        %v2389 = vpop.f32.mrb[0].mxu0
        %2390 = vmatprep.mubr.f32.mxu0 0.0
        %2391 = vmatmul.mubr.f32.gmra.mrb[0].mxu0 %v996
        %v2392 = vpop.f32.mrb[0].mxu0
        %v2393 = vadd.f32 %v1688, %v2392
        %v2394 = vpop.f32.mrb[0].mxu0
        %2395 = vmatprep.mubr.f32.mxu0 0.0
        %2396 = vmatmul.mubr.f32.gmra.mrb[0].mxu0 %v999
        %v2397 = vpop.f32.mrb[0].mxu0
        %v2398 = vadd.f32 %v1693, %v2397
        %v2399 = vpop.f32.mrb[0].mxu0
        %2400 = vmatprep.mubr.f32.mxu0 0.0
        %2401 = vmatmul.mubr.f32.gmra.mrb[0].mxu0 %v1002
        %v2402 = vpop.f32.mrb[0].mxu0
        %v2403 = vadd.f32 %v1698, %v2402
        %v2404 = vpop.f32.mrb[0].mxu0
        %2405 = vmatprep.mubr.f32.mxu0 0.0
        %2406 = vmatmul.mubr.f32.gmra.mrb[0].mxu0 %v1005
        %v2407 = vpop.f32.mrb[0].mxu0
        %v2408 = vadd.f32 %v1703, %v2407
        %v2409 = vpop.f32.mrb[0].mxu0
        %2410 = vmatprep.mubr.f32.mxu0 0.0
        %2411 = vmatmul.mubr.f32.gmra.mrb[0].mxu0 %v1008
        %v2412 = vpop.f32.mrb[0].mxu0
        %v2413 = vadd.f32 %v1708, %v2412
        %v2414 = vpop.f32.mrb[0].mxu0
        %2415 = vmatprep.mubr.f32.mxu0 0.0
        %2416 = vmatmul.mubr.f32.gmra.mrb[0].mxu0 %v1011
        %v2417 = vpop.f32.mrb[0].mxu0
        %v2418 = vadd.f32 %v1713, %v2417
        %v2419 = vpop.f32.mrb[0].mxu0
        %2420 = vmatprep.mubr.f32.mxu0 0.0
        %2421 = vmatmul.mubr.f32.gmra.mrb[0].mxu0 %v1014
        %v2422 = vpop.f32.mrb[0].mxu0
        %v2423 = vadd.f32 %v1718, %v2422
        %v2424 = vpop.f32.mrb[0].mxu0
        %2425 = vmatprep.mubr.f32.mxu0 0.0
        %2426 = vmatmul.mubr.f32.gmra.mrb[0].mxu0 %v1017
        %v2427 = vpop.f32.mrb[0].mxu0
        %v2428 = vadd.f32 %v1723, %v2427
        %v2429 = vpop.f32.mrb[0].mxu0
        %2430 = vmatprep.mubr.f32.mxu0 0.0
        %2431 = vmatmul.mubr.f32.gmra.mrb[0].mxu0 %v1020
        %v2432 = vpop.f32.mrb[0].mxu0
        %v2433 = vadd.f32 %v1728, %v2432
        %v2434 = vpop.f32.mrb[0].mxu0
        %2435 = vdwg.mxu0
        %v2436 = vmax.f32 %v1798, 0.0
        %v2437 = vmax.f32 %v1803, 0.0
        %v2438 = vmax.f32 %v1808, 0.0
        %v2439 = vmax.f32 %v1813, 0.0
        %v2440 = vmax.f32 %v1818, 0.0
        %v2441 = vmax.f32 %v1823, 0.0
        %v2442 = vmax.f32 %v1828, 0.0
        %v2443 = vmax.f32 %v1833, 0.0
        %v2444 = vmax.f32 %v1838, 0.0
        %v2445 = vmax.f32 %v1843, 0.0
        %v2446 = vmax.f32 %v1848, 0.0
        %v2447 = vmax.f32 %v1853, 0.0
        %v2448 = vmax.f32 %v1858, 0.0
        %v2449 = vmax.f32 %v1863, 0.0
        %v2450 = vmax.f32 %v1868, 0.0
        %v2451 = vmax.f32 %v1873, 0.0
        %v2452 = vmax.f32 %v1878, 0.0
        %v2453 = vmax.f32 %v1883, 0.0
        %v2454 = vmax.f32 %v1888, 0.0
        %v2455 = vmax.f32 %v1893, 0.0
        %v2456 = vmax.f32 %v1898, 0.0
        %v2457 = vmax.f32 %v1903, 0.0
        %v2458 = vmax.f32 %v1908, 0.0
        %v2459 = vmax.f32 %v1913, 0.0
        %v2460 = vmax.f32 %v1918, 0.0
        %v2461 = vmax.f32 %v1923, 0.0
        %v2462 = vmax.f32 %v1928, 0.0
        %v2463 = vmax.f32 %v1933, 0.0
        %v2464 = vmax.f32 %v1938, 0.0
        %v2465 = vmax.f32 %v1943, 0.0
        %v2466 = vmax.f32 %v1948, 0.0
        %v2467 = vmax.f32 %v1953, 0.0
        %v2468 = vmax.f32 %v1958, 0.0
        %v2469 = vmax.f32 %v1963, 0.0
        %v2470 = vmax.f32 %v1968, 0.0
        %v2471 = vmax.f32 %v1973, 0.0
        %v2472 = vmax.f32 %v1978, 0.0
        %v2473 = vmax.f32 %v1983, 0.0
        %v2474 = vmax.f32 %v1988, 0.0
        %v2475 = vmax.f32 %v1993, 0.0
        %v2476 = vmax.f32 %v1998, 0.0
        %v2477 = vmax.f32 %v2003, 0.0
        %v2478 = vmax.f32 %v2008, 0.0
        %v2479 = vmax.f32 %v2013, 0.0
        %v2480 = vmax.f32 %v2018, 0.0
        %v2481 = vmax.f32 %v2023, 0.0
        %v2482 = vmax.f32 %v2028, 0.0
        %v2483 = vmax.f32 %v2033, 0.0
        %v2484 = vmax.f32 %v2038, 0.0
        %v2485 = vmax.f32 %v2043, 0.0
        %v2486 = vmax.f32 %v2048, 0.0
        %v2487 = vmax.f32 %v2053, 0.0
        %v2488 = vmax.f32 %v2058, 0.0
        %v2489 = vmax.f32 %v2063, 0.0
        %v2490 = vmax.f32 %v2068, 0.0
        %v2491 = vmax.f32 %v2073, 0.0
        %v2492 = vmax.f32 %v2078, 0.0
        %v2493 = vmax.f32 %v2083, 0.0
        %v2494 = vmax.f32 %v2088, 0.0
        %v2495 = vmax.f32 %v2093, 0.0
        %v2496 = vmax.f32 %v2098, 0.0
        %v2497 = vmax.f32 %v2103, 0.0
        %v2498 = vmax.f32 %v2108, 0.0
        %v2499 = vmax.f32 %v2113, 0.0
        %v2500 = vmax.f32 %v2118, 0.0
        %v2501 = vmax.f32 %v2123, 0.0
        %v2502 = vmax.f32 %v2128, 0.0
        %v2503 = vmax.f32 %v2133, 0.0
        %v2504 = vmax.f32 %v2138, 0.0
        %v2505 = vmax.f32 %v2143, 0.0
        %v2506 = vmax.f32 %v2148, 0.0
        %v2507 = vmax.f32 %v2153, 0.0
        %v2508 = vmax.f32 %v2158, 0.0
        %v2509 = vmax.f32 %v2163, 0.0
        %v2510 = vmax.f32 %v2168, 0.0
        %v2511 = vmax.f32 %v2173, 0.0
        %v2512 = vmax.f32 %v2178, 0.0
        %v2513 = vmax.f32 %v2183, 0.0
        %v2514 = vmax.f32 %v2188, 0.0
        %v2515 = vmax.f32 %v2193, 0.0
        %v2516 = vmax.f32 %v2198, 0.0
        %v2517 = vmax.f32 %v2203, 0.0
        %v2518 = vmax.f32 %v2208, 0.0
        %v2519 = vmax.f32 %v2213, 0.0
        %v2520 = vmax.f32 %v2218, 0.0
        %v2521 = vmax.f32 %v2223, 0.0
        %v2522 = vmax.f32 %v2228, 0.0
        %v2523 = vmax.f32 %v2233, 0.0
        %v2524 = vmax.f32 %v2238, 0.0
        %v2525 = vmax.f32 %v2243, 0.0
        %v2526 = vmax.f32 %v2248, 0.0
        %v2527 = vmax.f32 %v2253, 0.0
        %v2528 = vmax.f32 %v2258, 0.0
        %v2529 = vmax.f32 %v2263, 0.0
        %v2530 = vmax.f32 %v2268, 0.0
        %v2531 = vmax.f32 %v2273, 0.0
        %v2532 = vmax.f32 %v2278, 0.0
        %v2533 = vmax.f32 %v2283, 0.0
        %v2534 = vmax.f32 %v2288, 0.0
        %v2535 = vmax.f32 %v2293, 0.0
        %v2536 = vmax.f32 %v2298, 0.0
        %v2537 = vmax.f32 %v2303, 0.0
        %v2538 = vmax.f32 %v2308, 0.0
        %v2539 = vmax.f32 %v2313, 0.0
        %v2540 = vmax.f32 %v2318, 0.0
        %v2541 = vmax.f32 %v2323, 0.0
        %v2542 = vmax.f32 %v2328, 0.0
        %v2543 = vmax.f32 %v2333, 0.0
        %v2544 = vmax.f32 %v2338, 0.0
        %v2545 = vmax.f32 %v2343, 0.0
        %v2546 = vmax.f32 %v2348, 0.0
        %v2547 = vmax.f32 %v2353, 0.0
        %v2548 = vmax.f32 %v2358, 0.0
        %v2549 = vmax.f32 %v2363, 0.0
        %v2550 = vmax.f32 %v2368, 0.0
        %v2551 = vmax.f32 %v2373, 0.0
        %v2552 = vmax.f32 %v2378, 0.0
        %v2553 = vmax.f32 %v2383, 0.0
        %v2554 = vmax.f32 %v2388, 0.0
        %v2555 = vmax.f32 %v2393, 0.0
        %v2556 = vmax.f32 %v2398, 0.0
        %v2557 = vmax.f32 %v2403, 0.0
        %v2558 = vmax.f32 %v2408, 0.0
        %v2559 = vmax.f32 %v2413, 0.0
        %v2560 = vmax.f32 %v2418, 0.0
        %v2561 = vmax.f32 %v2423, 0.0
        %v2562 = vmax.f32 %v2428, 0.0
        %v2563 = vmax.f32 %v2433, 0.0
        %vm2564 = vcmask 785408
        %2565 = vst.msk [vmem:[%s177] sm:$0xff] %vm2564, %v2436
        %2566 = vst.msk [vmem:[%s177 + $0x8] sm:$0xff] %vm2564, %v2437
        %2567 = vst.msk [vmem:[%s177 + $0x10] sm:$0xff] %vm2564, %v2438
        %2568 = vst.msk [vmem:[%s177 + $0x18] sm:$0xff] %vm2564, %v2439
        %2569 = vst.msk [vmem:[%s177 + $0x20] sm:$0xff] %vm2564, %v2440
        %2570 = vst.msk [vmem:[%s177 + $0x28] sm:$0xff] %vm2564, %v2441
        %2571 = vst.msk [vmem:[%s177 + $0x30] sm:$0xff] %vm2564, %v2442
        %2572 = vst.msk [vmem:[%s177 + $0x38] sm:$0xff] %vm2564, %v2443
        %2573 = vst.msk [vmem:[%s177 + $0x40] sm:$0xff] %vm2564, %v2444
        %2574 = vst.msk [vmem:[%s177 + $0x48] sm:$0xff] %vm2564, %v2445
        %2575 = vst.msk [vmem:[%s177 + $0x50] sm:$0xff] %vm2564, %v2446
        %2576 = vst.msk [vmem:[%s177 + $0x58] sm:$0xff] %vm2564, %v2447
        %2577 = vst.msk [vmem:[%s177 + $0x60] sm:$0xff] %vm2564, %v2448
        %2578 = vst.msk [vmem:[%s177 + $0x68] sm:$0xff] %vm2564, %v2449
        %2579 = vst.msk [vmem:[%s177 + $0x70] sm:$0xff] %vm2564, %v2450
        %2580 = vst.msk [vmem:[%s177 + $0x78] sm:$0xff] %vm2564, %v2451
        %2581 = vst.msk [vmem:[%s177 + $0x80] sm:$0xff] %vm2564, %v2452
        %2582 = vst.msk [vmem:[%s177 + $0x88] sm:$0xff] %vm2564, %v2453
        %2583 = vst.msk [vmem:[%s177 + $0x90] sm:$0xff] %vm2564, %v2454
        %2584 = vst.msk [vmem:[%s177 + $0x98] sm:$0xff] %vm2564, %v2455
        %2585 = vst.msk [vmem:[%s177 + $0xa0] sm:$0xff] %vm2564, %v2456
        %2586 = vst.msk [vmem:[%s177 + $0xa8] sm:$0xff] %vm2564, %v2457
        %2587 = vst.msk [vmem:[%s177 + $0xb0] sm:$0xff] %vm2564, %v2458
        %2588 = vst.msk [vmem:[%s177 + $0xb8] sm:$0xff] %vm2564, %v2459
        %2589 = vst.msk [vmem:[%s177 + $0xc0] sm:$0xff] %vm2564, %v2460
        %2590 = vst.msk [vmem:[%s177 + $0xc8] sm:$0xff] %vm2564, %v2461
        %2591 = vst.msk [vmem:[%s177 + $0xd0] sm:$0xff] %vm2564, %v2462
        %2592 = vst.msk [vmem:[%s177 + $0xd8] sm:$0xff] %vm2564, %v2463
        %2593 = vst.msk [vmem:[%s177 + $0xe0] sm:$0xff] %vm2564, %v2464
        %2594 = vst.msk [vmem:[%s177 + $0xe8] sm:$0xff] %vm2564, %v2465
        %2595 = vst.msk [vmem:[%s177 + $0xf0] sm:$0xff] %vm2564, %v2466
        %2596 = vst.msk [vmem:[%s177 + $0xf8] sm:$0xff] %vm2564, %v2467
        %2597 = vst.msk [vmem:[%s177 + $0x100] sm:$0xff] %vm2564, %v2468
        %2598 = vst.msk [vmem:[%s177 + $0x108] sm:$0xff] %vm2564, %v2469
        %2599 = vst.msk [vmem:[%s177 + $0x110] sm:$0xff] %vm2564, %v2470
        %2600 = vst.msk [vmem:[%s177 + $0x118] sm:$0xff] %vm2564, %v2471
        %2601 = vst.msk [vmem:[%s177 + $0x120] sm:$0xff] %vm2564, %v2472
        %2602 = vst.msk [vmem:[%s177 + $0x128] sm:$0xff] %vm2564, %v2473
        %2603 = vst.msk [vmem:[%s177 + $0x130] sm:$0xff] %vm2564, %v2474
        %2604 = vst.msk [vmem:[%s177 + $0x138] sm:$0xff] %vm2564, %v2475
        %2605 = vst.msk [vmem:[%s177 + $0x140] sm:$0xff] %vm2564, %v2476
        %2606 = vst.msk [vmem:[%s177 + $0x148] sm:$0xff] %vm2564, %v2477
        %2607 = vst.msk [vmem:[%s177 + $0x150] sm:$0xff] %vm2564, %v2478
        %2608 = vst.msk [vmem:[%s177 + $0x158] sm:$0xff] %vm2564, %v2479
        %2609 = vst.msk [vmem:[%s177 + $0x160] sm:$0xff] %vm2564, %v2480
        %2610 = vst.msk [vmem:[%s177 + $0x168] sm:$0xff] %vm2564, %v2481
        %2611 = vst.msk [vmem:[%s177 + $0x170] sm:$0xff] %vm2564, %v2482
        %2612 = vst.msk [vmem:[%s177 + $0x178] sm:$0xff] %vm2564, %v2483
        %2613 = vst.msk [vmem:[%s177 + $0x180] sm:$0xff] %vm2564, %v2484
        %2614 = vst.msk [vmem:[%s177 + $0x188] sm:$0xff] %vm2564, %v2485
        %2615 = vst.msk [vmem:[%s177 + $0x190] sm:$0xff] %vm2564, %v2486
        %2616 = vst.msk [vmem:[%s177 + $0x198] sm:$0xff] %vm2564, %v2487
        %2617 = vst.msk [vmem:[%s177 + $0x1a0] sm:$0xff] %vm2564, %v2488
        %2618 = vst.msk [vmem:[%s177 + $0x1a8] sm:$0xff] %vm2564, %v2489
        %2619 = vst.msk [vmem:[%s177 + $0x1b0] sm:$0xff] %vm2564, %v2490
        %2620 = vst.msk [vmem:[%s177 + $0x1b8] sm:$0xff] %vm2564, %v2491
        %2621 = vst.msk [vmem:[%s177 + $0x1c0] sm:$0xff] %vm2564, %v2492
        %2622 = vst.msk [vmem:[%s177 + $0x1c8] sm:$0xff] %vm2564, %v2493
        %2623 = vst.msk [vmem:[%s177 + $0x1d0] sm:$0xff] %vm2564, %v2494
        %2624 = vst.msk [vmem:[%s177 + $0x1d8] sm:$0xff] %vm2564, %v2495
        %2625 = vst.msk [vmem:[%s177 + $0x1e0] sm:$0xff] %vm2564, %v2496
        %2626 = vst.msk [vmem:[%s177 + $0x1e8] sm:$0xff] %vm2564, %v2497
        %2627 = vst.msk [vmem:[%s177 + $0x1f0] sm:$0xff] %vm2564, %v2498
        %2628 = vst.msk [vmem:[%s177 + $0x1f8] sm:$0xff] %vm2564, %v2499
        %2629 = vst.msk [vmem:[%s177 + $0x200] sm:$0xff] %vm2564, %v2500
        %2630 = vst.msk [vmem:[%s177 + $0x208] sm:$0xff] %vm2564, %v2501
        %2631 = vst.msk [vmem:[%s177 + $0x210] sm:$0xff] %vm2564, %v2502
        %2632 = vst.msk [vmem:[%s177 + $0x218] sm:$0xff] %vm2564, %v2503
        %2633 = vst.msk [vmem:[%s177 + $0x220] sm:$0xff] %vm2564, %v2504
        %2634 = vst.msk [vmem:[%s177 + $0x228] sm:$0xff] %vm2564, %v2505
        %2635 = vst.msk [vmem:[%s177 + $0x230] sm:$0xff] %vm2564, %v2506
        %2636 = vst.msk [vmem:[%s177 + $0x238] sm:$0xff] %vm2564, %v2507
        %2637 = vst.msk [vmem:[%s177 + $0x240] sm:$0xff] %vm2564, %v2508
        %2638 = vst.msk [vmem:[%s177 + $0x248] sm:$0xff] %vm2564, %v2509
        %2639 = vst.msk [vmem:[%s177 + $0x250] sm:$0xff] %vm2564, %v2510
        %2640 = vst.msk [vmem:[%s177 + $0x258] sm:$0xff] %vm2564, %v2511
        %2641 = vst.msk [vmem:[%s177 + $0x260] sm:$0xff] %vm2564, %v2512
        %2642 = vst.msk [vmem:[%s177 + $0x268] sm:$0xff] %vm2564, %v2513
        %2643 = vst.msk [vmem:[%s177 + $0x270] sm:$0xff] %vm2564, %v2514
        %2644 = vst.msk [vmem:[%s177 + $0x278] sm:$0xff] %vm2564, %v2515
        %2645 = vst.msk [vmem:[%s177 + $0x280] sm:$0xff] %vm2564, %v2516
        %2646 = vst.msk [vmem:[%s177 + $0x288] sm:$0xff] %vm2564, %v2517
        %2647 = vst.msk [vmem:[%s177 + $0x290] sm:$0xff] %vm2564, %v2518
        %2648 = vst.msk [vmem:[%s177 + $0x298] sm:$0xff] %vm2564, %v2519
        %2649 = vst.msk [vmem:[%s177 + $0x2a0] sm:$0xff] %vm2564, %v2520
        %2650 = vst.msk [vmem:[%s177 + $0x2a8] sm:$0xff] %vm2564, %v2521
        %2651 = vst.msk [vmem:[%s177 + $0x2b0] sm:$0xff] %vm2564, %v2522
        %2652 = vst.msk [vmem:[%s177 + $0x2b8] sm:$0xff] %vm2564, %v2523
        %2653 = vst.msk [vmem:[%s177 + $0x2c0] sm:$0xff] %vm2564, %v2524
        %2654 = vst.msk [vmem:[%s177 + $0x2c8] sm:$0xff] %vm2564, %v2525
        %2655 = vst.msk [vmem:[%s177 + $0x2d0] sm:$0xff] %vm2564, %v2526
        %2656 = vst.msk [vmem:[%s177 + $0x2d8] sm:$0xff] %vm2564, %v2527
        %2657 = vst.msk [vmem:[%s177 + $0x2e0] sm:$0xff] %vm2564, %v2528
        %2658 = vst.msk [vmem:[%s177 + $0x2e8] sm:$0xff] %vm2564, %v2529
        %2659 = vst.msk [vmem:[%s177 + $0x2f0] sm:$0xff] %vm2564, %v2530
        %2660 = vst.msk [vmem:[%s177 + $0x2f8] sm:$0xff] %vm2564, %v2531
        %2661 = vst.msk [vmem:[%s177 + $0x300] sm:$0xff] %vm2564, %v2532
        %2662 = vst.msk [vmem:[%s177 + $0x308] sm:$0xff] %vm2564, %v2533
        %2663 = vst.msk [vmem:[%s177 + $0x310] sm:$0xff] %vm2564, %v2534
        %2664 = vst.msk [vmem:[%s177 + $0x318] sm:$0xff] %vm2564, %v2535
        %2665 = vst.msk [vmem:[%s177 + $0x320] sm:$0xff] %vm2564, %v2536
        %2666 = vst.msk [vmem:[%s177 + $0x328] sm:$0xff] %vm2564, %v2537
        %2667 = vst.msk [vmem:[%s177 + $0x330] sm:$0xff] %vm2564, %v2538
        %2668 = vst.msk [vmem:[%s177 + $0x338] sm:$0xff] %vm2564, %v2539
        %2669 = vst.msk [vmem:[%s177 + $0x340] sm:$0xff] %vm2564, %v2540
        %2670 = vst.msk [vmem:[%s177 + $0x348] sm:$0xff] %vm2564, %v2541
        %2671 = vst.msk [vmem:[%s177 + $0x350] sm:$0xff] %vm2564, %v2542
        %2672 = vst.msk [vmem:[%s177 + $0x358] sm:$0xff] %vm2564, %v2543
        %2673 = vst.msk [vmem:[%s177 + $0x360] sm:$0xff] %vm2564, %v2544
        %2674 = vst.msk [vmem:[%s177 + $0x368] sm:$0xff] %vm2564, %v2545
        %2675 = vst.msk [vmem:[%s177 + $0x370] sm:$0xff] %vm2564, %v2546
        %2676 = vst.msk [vmem:[%s177 + $0x378] sm:$0xff] %vm2564, %v2547
        %2677 = vst.msk [vmem:[%s177 + $0x380] sm:$0xff] %vm2564, %v2548
        %2678 = vst.msk [vmem:[%s177 + $0x388] sm:$0xff] %vm2564, %v2549
        %2679 = vst.msk [vmem:[%s177 + $0x390] sm:$0xff] %vm2564, %v2550
        %2680 = vst.msk [vmem:[%s177 + $0x398] sm:$0xff] %vm2564, %v2551
        %2681 = vst.msk [vmem:[%s177 + $0x3a0] sm:$0xff] %vm2564, %v2552
        %2682 = vst.msk [vmem:[%s177 + $0x3a8] sm:$0xff] %vm2564, %v2553
        %2683 = vst.msk [vmem:[%s177 + $0x3b0] sm:$0xff] %vm2564, %v2554
        %2684 = vst.msk [vmem:[%s177 + $0x3b8] sm:$0xff] %vm2564, %v2555
        %2685 = vst.msk [vmem:[%s177 + $0x3c0] sm:$0xff] %vm2564, %v2556
        %2686 = vst.msk [vmem:[%s177 + $0x3c8] sm:$0xff] %vm2564, %v2557
        %2687 = vst.msk [vmem:[%s177 + $0x3d0] sm:$0xff] %vm2564, %v2558
        %2688 = vst.msk [vmem:[%s177 + $0x3d8] sm:$0xff] %vm2564, %v2559
        %2689 = vst.msk [vmem:[%s177 + $0x3e0] sm:$0xff] %vm2564, %v2560
        %2690 = vst.msk [vmem:[%s177 + $0x3e8] sm:$0xff] %vm2564, %v2561
        %2691 = vst.msk [vmem:[%s177 + $0x3f0] sm:$0xff] %vm2564, %v2562
        %2692 = vst.msk [vmem:[%s177 + $0x3f8] sm:$0xff] %vm2564, %v2563
        %s2693 = sand.u32 %s90, 1
        %s2694 = sand.u32 %s90, 1
        %s2695 = smul.addr %s2694, 1024
        %s2696 = scalar_lea.vmem [#allocation2], %s2695
        // Predicated region
        $region33: #{alexnet_extreme_forward.3} parent=31 // pred_check
          %p2697 = pneg %p100
        $region34: #{alexnet_extreme_forward.3} parent=31 // pred_check_branch
          %2699 = sbr.rel (%p2697) target = $region36
        $region35: #{alexnet_extreme_forward.3} parent=31 // pred_region
          %s2700 = smul.u32 128, %s14
          %s2701 = ssub.s32 757, %s2700
          %p2702 = scmp.lt.s32.totalorder %s2701, 128
          %s2703 = scalar_select %p2702, %s2701, 128
          %s2704 = smul.u32 128, %s2703
          %p2705 = scmp.ne.s32.totalorder 0, %s2704
          %s2706 = smul.addr %s2700, 8
          %s2707 = scalar_lea.vmem %s3, %s2706
          // Predicated region
          $region37: #{alexnet_extreme_forward.3} parent=35 // pred_check
            %p2708 = pneg %p2705
          $region38: #{alexnet_extreme_forward.3} parent=35 // pred_check_branch
            %2710 = sbr.rel (%p2708) target = $region40
          $region39: #{alexnet_extreme_forward.3} parent=35 // pred_region
            // Predicated region
            $region41: #{alexnet_extreme_forward.3} parent=39 // pred_check
              _
            $region42: #{alexnet_extreme_forward.3} parent=39 // pred_check_branch
              %2712 = sbr.rel (0) target = $region44
            $region43: #{alexnet_extreme_forward.3} parent=39 // pred_region
              // Predicated region
              $region63: #{alexnet_extreme_forward.3} parent=43 // pred_check
                _
              $region64: #{alexnet_extreme_forward.3} parent=43 // pred_check_branch
                %2887 = sbr.rel (0) target = $region66
              $region65: #{alexnet_extreme_forward.3} parent=43 // pred_region
                %s2888 = sshrl.u32 %s2703, 6
                // While loop
                $region67: #{alexnet_extreme_forward.3} parent=65 // loop_pre_header
                  _
                $region68: #{alexnet_extreme_forward.3} parent=65 // loop_header
                  %s2890 = sphi 0, %s2892
                  %p2891 = scmp.ge.s32.totalorder %s2890, %s2888
                  %s2895 = sphi 0, %s3028
                  %s2896 = sphi %s2696, %s3031
                  %s2897 = sphi %s2707, %s3032
                $region69: #{alexnet_extreme_forward.3} parent=65 // loop_header_branch
                  %2894 = sbr.rel (%p2891) target = $region73
                $region70: #{alexnet_extreme_forward.3} parent=65 // loop_body
                  %v2898 = vld [vmem:[%s2896] sm:$0xff]
                  %2899 = vst [vmem:[%s2897] sm:$0xff] %v2898
                  %v2900 = vld [vmem:[%s2896 + $0x8] sm:$0xff]
                  %2901 = vst [vmem:[%s2897 + $0x8] sm:$0xff] %v2900
                  %v2902 = vld [vmem:[%s2896 + $0x10] sm:$0xff]
                  %2903 = vst [vmem:[%s2897 + $0x10] sm:$0xff] %v2902
                  %v2904 = vld [vmem:[%s2896 + $0x18] sm:$0xff]
                  %2905 = vst [vmem:[%s2897 + $0x18] sm:$0xff] %v2904
                  %v2906 = vld [vmem:[%s2896 + $0x20] sm:$0xff]
                  %2907 = vst [vmem:[%s2897 + $0x20] sm:$0xff] %v2906
                  %v2908 = vld [vmem:[%s2896 + $0x28] sm:$0xff]
                  %2909 = vst [vmem:[%s2897 + $0x28] sm:$0xff] %v2908
                  %v2910 = vld [vmem:[%s2896 + $0x30] sm:$0xff]
                  %2911 = vst [vmem:[%s2897 + $0x30] sm:$0xff] %v2910
                  %v2912 = vld [vmem:[%s2896 + $0x38] sm:$0xff]
                  %2913 = vst [vmem:[%s2897 + $0x38] sm:$0xff] %v2912
                  %v2914 = vld [vmem:[%s2896 + $0x40] sm:$0xff]
                  %2915 = vst [vmem:[%s2897 + $0x40] sm:$0xff] %v2914
                  %v2916 = vld [vmem:[%s2896 + $0x48] sm:$0xff]
                  %2917 = vst [vmem:[%s2897 + $0x48] sm:$0xff] %v2916
                  %v2918 = vld [vmem:[%s2896 + $0x50] sm:$0xff]
                  %2919 = vst [vmem:[%s2897 + $0x50] sm:$0xff] %v2918
                  %v2920 = vld [vmem:[%s2896 + $0x58] sm:$0xff]
                  %2921 = vst [vmem:[%s2897 + $0x58] sm:$0xff] %v2920
                  %v2922 = vld [vmem:[%s2896 + $0x60] sm:$0xff]
                  %2923 = vst [vmem:[%s2897 + $0x60] sm:$0xff] %v2922
                  %v2924 = vld [vmem:[%s2896 + $0x68] sm:$0xff]
                  %2925 = vst [vmem:[%s2897 + $0x68] sm:$0xff] %v2924
                  %v2926 = vld [vmem:[%s2896 + $0x70] sm:$0xff]
                  %2927 = vst [vmem:[%s2897 + $0x70] sm:$0xff] %v2926
                  %v2928 = vld [vmem:[%s2896 + $0x78] sm:$0xff]
                  %2929 = vst [vmem:[%s2897 + $0x78] sm:$0xff] %v2928
                  %v2930 = vld [vmem:[%s2896 + $0x80] sm:$0xff]
                  %2931 = vst [vmem:[%s2897 + $0x80] sm:$0xff] %v2930
                  %v2932 = vld [vmem:[%s2896 + $0x88] sm:$0xff]
                  %2933 = vst [vmem:[%s2897 + $0x88] sm:$0xff] %v2932
                  %v2934 = vld [vmem:[%s2896 + $0x90] sm:$0xff]
                  %2935 = vst [vmem:[%s2897 + $0x90] sm:$0xff] %v2934
                  %v2936 = vld [vmem:[%s2896 + $0x98] sm:$0xff]
                  %2937 = vst [vmem:[%s2897 + $0x98] sm:$0xff] %v2936
                  %v2938 = vld [vmem:[%s2896 + $0xa0] sm:$0xff]
                  %2939 = vst [vmem:[%s2897 + $0xa0] sm:$0xff] %v2938
                  %v2940 = vld [vmem:[%s2896 + $0xa8] sm:$0xff]
                  %2941 = vst [vmem:[%s2897 + $0xa8] sm:$0xff] %v2940
                  %v2942 = vld [vmem:[%s2896 + $0xb0] sm:$0xff]
                  %2943 = vst [vmem:[%s2897 + $0xb0] sm:$0xff] %v2942
                  %v2944 = vld [vmem:[%s2896 + $0xb8] sm:$0xff]
                  %2945 = vst [vmem:[%s2897 + $0xb8] sm:$0xff] %v2944
                  %v2946 = vld [vmem:[%s2896 + $0xc0] sm:$0xff]
                  %2947 = vst [vmem:[%s2897 + $0xc0] sm:$0xff] %v2946
                  %v2948 = vld [vmem:[%s2896 + $0xc8] sm:$0xff]
                  %2949 = vst [vmem:[%s2897 + $0xc8] sm:$0xff] %v2948
                  %v2950 = vld [vmem:[%s2896 + $0xd0] sm:$0xff]
                  %2951 = vst [vmem:[%s2897 + $0xd0] sm:$0xff] %v2950
                  %v2952 = vld [vmem:[%s2896 + $0xd8] sm:$0xff]
                  %2953 = vst [vmem:[%s2897 + $0xd8] sm:$0xff] %v2952
                  %v2954 = vld [vmem:[%s2896 + $0xe0] sm:$0xff]
                  %2955 = vst [vmem:[%s2897 + $0xe0] sm:$0xff] %v2954
                  %v2956 = vld [vmem:[%s2896 + $0xe8] sm:$0xff]
                  %2957 = vst [vmem:[%s2897 + $0xe8] sm:$0xff] %v2956
                  %v2958 = vld [vmem:[%s2896 + $0xf0] sm:$0xff]
                  %2959 = vst [vmem:[%s2897 + $0xf0] sm:$0xff] %v2958
                  %v2960 = vld [vmem:[%s2896 + $0xf8] sm:$0xff]
                  %2961 = vst [vmem:[%s2897 + $0xf8] sm:$0xff] %v2960
                  %v2962 = vld [vmem:[%s2896 + $0x100] sm:$0xff]
                  %2963 = vst [vmem:[%s2897 + $0x100] sm:$0xff] %v2962
                  %v2964 = vld [vmem:[%s2896 + $0x108] sm:$0xff]
                  %2965 = vst [vmem:[%s2897 + $0x108] sm:$0xff] %v2964
                  %v2966 = vld [vmem:[%s2896 + $0x110] sm:$0xff]
                  %2967 = vst [vmem:[%s2897 + $0x110] sm:$0xff] %v2966
                  %v2968 = vld [vmem:[%s2896 + $0x118] sm:$0xff]
                  %2969 = vst [vmem:[%s2897 + $0x118] sm:$0xff] %v2968
                  %v2970 = vld [vmem:[%s2896 + $0x120] sm:$0xff]
                  %2971 = vst [vmem:[%s2897 + $0x120] sm:$0xff] %v2970
                  %v2972 = vld [vmem:[%s2896 + $0x128] sm:$0xff]
                  %2973 = vst [vmem:[%s2897 + $0x128] sm:$0xff] %v2972
                  %v2974 = vld [vmem:[%s2896 + $0x130] sm:$0xff]
                  %2975 = vst [vmem:[%s2897 + $0x130] sm:$0xff] %v2974
                  %v2976 = vld [vmem:[%s2896 + $0x138] sm:$0xff]
                  %2977 = vst [vmem:[%s2897 + $0x138] sm:$0xff] %v2976
                  %v2978 = vld [vmem:[%s2896 + $0x140] sm:$0xff]
                  %2979 = vst [vmem:[%s2897 + $0x140] sm:$0xff] %v2978
                  %v2980 = vld [vmem:[%s2896 + $0x148] sm:$0xff]
                  %2981 = vst [vmem:[%s2897 + $0x148] sm:$0xff] %v2980
                  %v2982 = vld [vmem:[%s2896 + $0x150] sm:$0xff]
                  %2983 = vst [vmem:[%s2897 + $0x150] sm:$0xff] %v2982
                  %v2984 = vld [vmem:[%s2896 + $0x158] sm:$0xff]
                  %2985 = vst [vmem:[%s2897 + $0x158] sm:$0xff] %v2984
                  %v2986 = vld [vmem:[%s2896 + $0x160] sm:$0xff]
                  %2987 = vst [vmem:[%s2897 + $0x160] sm:$0xff] %v2986
                  %v2988 = vld [vmem:[%s2896 + $0x168] sm:$0xff]
                  %2989 = vst [vmem:[%s2897 + $0x168] sm:$0xff] %v2988
                  %v2990 = vld [vmem:[%s2896 + $0x170] sm:$0xff]
                  %2991 = vst [vmem:[%s2897 + $0x170] sm:$0xff] %v2990
                  %v2992 = vld [vmem:[%s2896 + $0x178] sm:$0xff]
                  %2993 = vst [vmem:[%s2897 + $0x178] sm:$0xff] %v2992
                  %v2994 = vld [vmem:[%s2896 + $0x180] sm:$0xff]
                  %2995 = vst [vmem:[%s2897 + $0x180] sm:$0xff] %v2994
                  %v2996 = vld [vmem:[%s2896 + $0x188] sm:$0xff]
                  %2997 = vst [vmem:[%s2897 + $0x188] sm:$0xff] %v2996
                  %v2998 = vld [vmem:[%s2896 + $0x190] sm:$0xff]
                  %2999 = vst [vmem:[%s2897 + $0x190] sm:$0xff] %v2998
                  %v3000 = vld [vmem:[%s2896 + $0x198] sm:$0xff]
                  %3001 = vst [vmem:[%s2897 + $0x198] sm:$0xff] %v3000
                  %v3002 = vld [vmem:[%s2896 + $0x1a0] sm:$0xff]
                  %3003 = vst [vmem:[%s2897 + $0x1a0] sm:$0xff] %v3002
                  %v3004 = vld [vmem:[%s2896 + $0x1a8] sm:$0xff]
                  %3005 = vst [vmem:[%s2897 + $0x1a8] sm:$0xff] %v3004
                  %v3006 = vld [vmem:[%s2896 + $0x1b0] sm:$0xff]
                  %3007 = vst [vmem:[%s2897 + $0x1b0] sm:$0xff] %v3006
                  %v3008 = vld [vmem:[%s2896 + $0x1b8] sm:$0xff]
                  %3009 = vst [vmem:[%s2897 + $0x1b8] sm:$0xff] %v3008
                  %v3010 = vld [vmem:[%s2896 + $0x1c0] sm:$0xff]
                  %3011 = vst [vmem:[%s2897 + $0x1c0] sm:$0xff] %v3010
                  %v3012 = vld [vmem:[%s2896 + $0x1c8] sm:$0xff]
                  %3013 = vst [vmem:[%s2897 + $0x1c8] sm:$0xff] %v3012
                  %v3014 = vld [vmem:[%s2896 + $0x1d0] sm:$0xff]
                  %3015 = vst [vmem:[%s2897 + $0x1d0] sm:$0xff] %v3014
                  %v3016 = vld [vmem:[%s2896 + $0x1d8] sm:$0xff]
                  %3017 = vst [vmem:[%s2897 + $0x1d8] sm:$0xff] %v3016
                  %v3018 = vld [vmem:[%s2896 + $0x1e0] sm:$0xff]
                  %3019 = vst [vmem:[%s2897 + $0x1e0] sm:$0xff] %v3018
                  %v3020 = vld [vmem:[%s2896 + $0x1e8] sm:$0xff]
                  %3021 = vst [vmem:[%s2897 + $0x1e8] sm:$0xff] %v3020
                  %v3022 = vld [vmem:[%s2896 + $0x1f0] sm:$0xff]
                  %3023 = vst [vmem:[%s2897 + $0x1f0] sm:$0xff] %v3022
                  %v3024 = vld [vmem:[%s2896 + $0x1f8] sm:$0xff]
                  %3025 = vst [vmem:[%s2897 + $0x1f8] sm:$0xff] %v3024
                  %s3026 = sadd.s32 1, %s2895
                  %p3027 = scmp.ge.s32.totalorder %s3026, %s2888
                  %s3028 = scalar_select %p3027, 0, %s3026
                  %s3029 = smul.u32 %s3028, 512
                  %s3030 = smul.u32 %s3028, 512
                  %s3031 = scalar_lea.vmem %s2696, %s3029 [#allocation2]
                  %s3032 = scalar_lea.vmem %s2707, %s3030
                $region71: #{alexnet_extreme_forward.3} parent=65 // loop_footer
                  %s2892 = sadd.s32 %s2890, 1
                $region72: #{alexnet_extreme_forward.3} parent=65 // loop_footer_branch
                  %2889 = sbr.rel target = $region68
                $region73: #{alexnet_extreme_forward.3} parent=65 // loop_exit
                  _
                %s3033 = sshrl.u32 %s2703, 6
                %s3034 = sand.u32 %s2703, 63
                %s3035 = smul.u32 %s3033, 64
                %s3036 = smul.u32 8, %s3035
                %s3037 = scalar_lea.vmem %s2696, %s3036 [#allocation2]
                %s3038 = smul.u32 8, %s3035
                %s3039 = scalar_lea.vmem %s2707, %s3038
                // While loop
                $region74: #{alexnet_extreme_forward.3} parent=65 // loop_pre_header
                  _
                $region75: #{alexnet_extreme_forward.3} parent=65 // loop_header
                  %s3041 = sphi 0, %s3043
                  %p3042 = scmp.ge.s32.totalorder %s3041, %s3034
                  %s3046 = sphi 0, %s3053
                  %s3047 = sphi %s3037, %s3056
                  %s3048 = sphi %s3039, %s3057
                $region76: #{alexnet_extreme_forward.3} parent=65 // loop_header_branch
                  %3045 = sbr.rel (%p3042) target = $region80
                $region77: #{alexnet_extreme_forward.3} parent=65 // loop_body
                  %v3049 = vld [vmem:[%s3047] sm:$0xff]
                  %3050 = vst [vmem:[%s3048] sm:$0xff] %v3049
                  %s3051 = sadd.s32 1, %s3046
                  %p3052 = scmp.ge.s32.totalorder %s3051, %s3034
                  %s3053 = scalar_select %p3052, 0, %s3051
                  %s3054 = smul.u32 %s3053, 8
                  %s3055 = smul.u32 %s3053, 8
                  %s3056 = scalar_lea.vmem %s3037, %s3054 [#allocation2]
                  %s3057 = scalar_lea.vmem %s3039, %s3055
                $region78: #{alexnet_extreme_forward.3} parent=65 // loop_footer
                  %s3043 = sadd.s32 %s3041, 1
                $region79: #{alexnet_extreme_forward.3} parent=65 // loop_footer_branch
                  %3040 = sbr.rel target = $region75
                $region80: #{alexnet_extreme_forward.3} parent=65 // loop_exit
                  _
              $region66: #{alexnet_extreme_forward.3} parent=43 // pred_fallthru
                _
              // Predicated region
              $region81: #{alexnet_extreme_forward.3} parent=43 // pred_check
                _
              $region82: #{alexnet_extreme_forward.3} parent=43 // pred_check_branch
                %3059 = sbr.rel target = $region84
              $region83: #{alexnet_extreme_forward.3} parent=43 // pred_region
                _
              $region84: #{alexnet_extreme_forward.3} parent=43 // pred_fallthru
                _
            $region44: #{alexnet_extreme_forward.3} parent=39 // pred_fallthru
              _
            // Predicated region
            $region45: #{alexnet_extreme_forward.3} parent=39 // pred_check
              _
            $region46: #{alexnet_extreme_forward.3} parent=39 // pred_check_branch
              %2714 = sbr.rel target = $region48
            $region47: #{alexnet_extreme_forward.3} parent=39 // pred_region
              %s2716 = sshrl.u32 %s2703, 6
              // While loop
              $region49: #{alexnet_extreme_forward.3} parent=47 // loop_pre_header
                _
              $region50: #{alexnet_extreme_forward.3} parent=47 // loop_header
                %s2718 = sphi 0, %s2720
                %p2719 = scmp.ge.s32.totalorder %s2718, %s2716
                %s2723 = sphi 0, %s2856
                %s2724 = sphi %s2696, %s2859
                %s2725 = sphi %s2707, %s2860
              $region51: #{alexnet_extreme_forward.3} parent=47 // loop_header_branch
                %2722 = sbr.rel (%p2719) target = $region55
              $region52: #{alexnet_extreme_forward.3} parent=47 // loop_body
                %v2726 = vld [vmem:[%s2724] sm:$0xff]
                %2727 = vst [vmem:[%s2725] sm:$0xff] %v2726
                %v2728 = vld [vmem:[%s2724 + $0x8] sm:$0xff]
                %2729 = vst [vmem:[%s2725 + $0x8] sm:$0xff] %v2728
                %v2730 = vld [vmem:[%s2724 + $0x10] sm:$0xff]
                %2731 = vst [vmem:[%s2725 + $0x10] sm:$0xff] %v2730
                %v2732 = vld [vmem:[%s2724 + $0x18] sm:$0xff]
                %2733 = vst [vmem:[%s2725 + $0x18] sm:$0xff] %v2732
                %v2734 = vld [vmem:[%s2724 + $0x20] sm:$0xff]
                %2735 = vst [vmem:[%s2725 + $0x20] sm:$0xff] %v2734
                %v2736 = vld [vmem:[%s2724 + $0x28] sm:$0xff]
                %2737 = vst [vmem:[%s2725 + $0x28] sm:$0xff] %v2736
                %v2738 = vld [vmem:[%s2724 + $0x30] sm:$0xff]
                %2739 = vst [vmem:[%s2725 + $0x30] sm:$0xff] %v2738
                %v2740 = vld [vmem:[%s2724 + $0x38] sm:$0xff]
                %2741 = vst [vmem:[%s2725 + $0x38] sm:$0xff] %v2740
                %v2742 = vld [vmem:[%s2724 + $0x40] sm:$0xff]
                %2743 = vst [vmem:[%s2725 + $0x40] sm:$0xff] %v2742
                %v2744 = vld [vmem:[%s2724 + $0x48] sm:$0xff]
                %2745 = vst [vmem:[%s2725 + $0x48] sm:$0xff] %v2744
                %v2746 = vld [vmem:[%s2724 + $0x50] sm:$0xff]
                %2747 = vst [vmem:[%s2725 + $0x50] sm:$0xff] %v2746
                %v2748 = vld [vmem:[%s2724 + $0x58] sm:$0xff]
                %2749 = vst [vmem:[%s2725 + $0x58] sm:$0xff] %v2748
                %v2750 = vld [vmem:[%s2724 + $0x60] sm:$0xff]
                %2751 = vst [vmem:[%s2725 + $0x60] sm:$0xff] %v2750
                %v2752 = vld [vmem:[%s2724 + $0x68] sm:$0xff]
                %2753 = vst [vmem:[%s2725 + $0x68] sm:$0xff] %v2752
                %v2754 = vld [vmem:[%s2724 + $0x70] sm:$0xff]
                %2755 = vst [vmem:[%s2725 + $0x70] sm:$0xff] %v2754
                %v2756 = vld [vmem:[%s2724 + $0x78] sm:$0xff]
                %2757 = vst [vmem:[%s2725 + $0x78] sm:$0xff] %v2756
                %v2758 = vld [vmem:[%s2724 + $0x80] sm:$0xff]
                %2759 = vst [vmem:[%s2725 + $0x80] sm:$0xff] %v2758
                %v2760 = vld [vmem:[%s2724 + $0x88] sm:$0xff]
                %2761 = vst [vmem:[%s2725 + $0x88] sm:$0xff] %v2760
                %v2762 = vld [vmem:[%s2724 + $0x90] sm:$0xff]
                %2763 = vst [vmem:[%s2725 + $0x90] sm:$0xff] %v2762
                %v2764 = vld [vmem:[%s2724 + $0x98] sm:$0xff]
                %2765 = vst [vmem:[%s2725 + $0x98] sm:$0xff] %v2764
                %v2766 = vld [vmem:[%s2724 + $0xa0] sm:$0xff]
                %2767 = vst [vmem:[%s2725 + $0xa0] sm:$0xff] %v2766
                %v2768 = vld [vmem:[%s2724 + $0xa8] sm:$0xff]
                %2769 = vst [vmem:[%s2725 + $0xa8] sm:$0xff] %v2768
                %v2770 = vld [vmem:[%s2724 + $0xb0] sm:$0xff]
                %2771 = vst [vmem:[%s2725 + $0xb0] sm:$0xff] %v2770
                %v2772 = vld [vmem:[%s2724 + $0xb8] sm:$0xff]
                %2773 = vst [vmem:[%s2725 + $0xb8] sm:$0xff] %v2772
                %v2774 = vld [vmem:[%s2724 + $0xc0] sm:$0xff]
                %2775 = vst [vmem:[%s2725 + $0xc0] sm:$0xff] %v2774
                %v2776 = vld [vmem:[%s2724 + $0xc8] sm:$0xff]
                %2777 = vst [vmem:[%s2725 + $0xc8] sm:$0xff] %v2776
                %v2778 = vld [vmem:[%s2724 + $0xd0] sm:$0xff]
                %2779 = vst [vmem:[%s2725 + $0xd0] sm:$0xff] %v2778
                %v2780 = vld [vmem:[%s2724 + $0xd8] sm:$0xff]
                %2781 = vst [vmem:[%s2725 + $0xd8] sm:$0xff] %v2780
                %v2782 = vld [vmem:[%s2724 + $0xe0] sm:$0xff]
                %2783 = vst [vmem:[%s2725 + $0xe0] sm:$0xff] %v2782
                %v2784 = vld [vmem:[%s2724 + $0xe8] sm:$0xff]
                %2785 = vst [vmem:[%s2725 + $0xe8] sm:$0xff] %v2784
                %v2786 = vld [vmem:[%s2724 + $0xf0] sm:$0xff]
                %2787 = vst [vmem:[%s2725 + $0xf0] sm:$0xff] %v2786
                %v2788 = vld [vmem:[%s2724 + $0xf8] sm:$0xff]
                %2789 = vst [vmem:[%s2725 + $0xf8] sm:$0xff] %v2788
                %v2790 = vld [vmem:[%s2724 + $0x100] sm:$0xff]
                %2791 = vst [vmem:[%s2725 + $0x100] sm:$0xff] %v2790
                %v2792 = vld [vmem:[%s2724 + $0x108] sm:$0xff]
                %2793 = vst [vmem:[%s2725 + $0x108] sm:$0xff] %v2792
                %v2794 = vld [vmem:[%s2724 + $0x110] sm:$0xff]
                %2795 = vst [vmem:[%s2725 + $0x110] sm:$0xff] %v2794
                %v2796 = vld [vmem:[%s2724 + $0x118] sm:$0xff]
                %2797 = vst [vmem:[%s2725 + $0x118] sm:$0xff] %v2796
                %v2798 = vld [vmem:[%s2724 + $0x120] sm:$0xff]
                %2799 = vst [vmem:[%s2725 + $0x120] sm:$0xff] %v2798
                %v2800 = vld [vmem:[%s2724 + $0x128] sm:$0xff]
                %2801 = vst [vmem:[%s2725 + $0x128] sm:$0xff] %v2800
                %v2802 = vld [vmem:[%s2724 + $0x130] sm:$0xff]
                %2803 = vst [vmem:[%s2725 + $0x130] sm:$0xff] %v2802
                %v2804 = vld [vmem:[%s2724 + $0x138] sm:$0xff]
                %2805 = vst [vmem:[%s2725 + $0x138] sm:$0xff] %v2804
                %v2806 = vld [vmem:[%s2724 + $0x140] sm:$0xff]
                %2807 = vst [vmem:[%s2725 + $0x140] sm:$0xff] %v2806
                %v2808 = vld [vmem:[%s2724 + $0x148] sm:$0xff]
                %2809 = vst [vmem:[%s2725 + $0x148] sm:$0xff] %v2808
                %v2810 = vld [vmem:[%s2724 + $0x150] sm:$0xff]
                %2811 = vst [vmem:[%s2725 + $0x150] sm:$0xff] %v2810
                %v2812 = vld [vmem:[%s2724 + $0x158] sm:$0xff]
                %2813 = vst [vmem:[%s2725 + $0x158] sm:$0xff] %v2812
                %v2814 = vld [vmem:[%s2724 + $0x160] sm:$0xff]
                %2815 = vst [vmem:[%s2725 + $0x160] sm:$0xff] %v2814
                %v2816 = vld [vmem:[%s2724 + $0x168] sm:$0xff]
                %2817 = vst [vmem:[%s2725 + $0x168] sm:$0xff] %v2816
                %v2818 = vld [vmem:[%s2724 + $0x170] sm:$0xff]
                %2819 = vst [vmem:[%s2725 + $0x170] sm:$0xff] %v2818
                %v2820 = vld [vmem:[%s2724 + $0x178] sm:$0xff]
                %2821 = vst [vmem:[%s2725 + $0x178] sm:$0xff] %v2820
                %v2822 = vld [vmem:[%s2724 + $0x180] sm:$0xff]
                %2823 = vst [vmem:[%s2725 + $0x180] sm:$0xff] %v2822
                %v2824 = vld [vmem:[%s2724 + $0x188] sm:$0xff]
                %2825 = vst [vmem:[%s2725 + $0x188] sm:$0xff] %v2824
                %v2826 = vld [vmem:[%s2724 + $0x190] sm:$0xff]
                %2827 = vst [vmem:[%s2725 + $0x190] sm:$0xff] %v2826
                %v2828 = vld [vmem:[%s2724 + $0x198] sm:$0xff]
                %2829 = vst [vmem:[%s2725 + $0x198] sm:$0xff] %v2828
                %v2830 = vld [vmem:[%s2724 + $0x1a0] sm:$0xff]
                %2831 = vst [vmem:[%s2725 + $0x1a0] sm:$0xff] %v2830
                %v2832 = vld [vmem:[%s2724 + $0x1a8] sm:$0xff]
                %2833 = vst [vmem:[%s2725 + $0x1a8] sm:$0xff] %v2832
                %v2834 = vld [vmem:[%s2724 + $0x1b0] sm:$0xff]
                %2835 = vst [vmem:[%s2725 + $0x1b0] sm:$0xff] %v2834
                %v2836 = vld [vmem:[%s2724 + $0x1b8] sm:$0xff]
                %2837 = vst [vmem:[%s2725 + $0x1b8] sm:$0xff] %v2836
                %v2838 = vld [vmem:[%s2724 + $0x1c0] sm:$0xff]
                %2839 = vst [vmem:[%s2725 + $0x1c0] sm:$0xff] %v2838
                %v2840 = vld [vmem:[%s2724 + $0x1c8] sm:$0xff]
                %2841 = vst [vmem:[%s2725 + $0x1c8] sm:$0xff] %v2840
                %v2842 = vld [vmem:[%s2724 + $0x1d0] sm:$0xff]
                %2843 = vst [vmem:[%s2725 + $0x1d0] sm:$0xff] %v2842
                %v2844 = vld [vmem:[%s2724 + $0x1d8] sm:$0xff]
                %2845 = vst [vmem:[%s2725 + $0x1d8] sm:$0xff] %v2844
                %v2846 = vld [vmem:[%s2724 + $0x1e0] sm:$0xff]
                %2847 = vst [vmem:[%s2725 + $0x1e0] sm:$0xff] %v2846
                %v2848 = vld [vmem:[%s2724 + $0x1e8] sm:$0xff]
                %2849 = vst [vmem:[%s2725 + $0x1e8] sm:$0xff] %v2848
                %v2850 = vld [vmem:[%s2724 + $0x1f0] sm:$0xff]
                %2851 = vst [vmem:[%s2725 + $0x1f0] sm:$0xff] %v2850
                %v2852 = vld [vmem:[%s2724 + $0x1f8] sm:$0xff]
                %2853 = vst [vmem:[%s2725 + $0x1f8] sm:$0xff] %v2852
                %s2854 = sadd.s32 1, %s2723
                %p2855 = scmp.ge.s32.totalorder %s2854, %s2716
                %s2856 = scalar_select %p2855, 0, %s2854
                %s2857 = smul.u32 %s2856, 512
                %s2858 = smul.u32 %s2856, 512
                %s2859 = scalar_lea.vmem %s2696, %s2857 [#allocation2]
                %s2860 = scalar_lea.vmem %s2707, %s2858
              $region53: #{alexnet_extreme_forward.3} parent=47 // loop_footer
                %s2720 = sadd.s32 %s2718, 1
              $region54: #{alexnet_extreme_forward.3} parent=47 // loop_footer_branch
                %2717 = sbr.rel target = $region50
              $region55: #{alexnet_extreme_forward.3} parent=47 // loop_exit
                _
              %s2861 = sshrl.u32 %s2703, 6
              %s2862 = sand.u32 %s2703, 63
              %s2863 = smul.u32 %s2861, 64
              %s2864 = smul.u32 8, %s2863
              %s2865 = scalar_lea.vmem %s2696, %s2864 [#allocation2]
              %s2866 = smul.u32 8, %s2863
              %s2867 = scalar_lea.vmem %s2707, %s2866
              // While loop
              $region56: #{alexnet_extreme_forward.3} parent=47 // loop_pre_header
                _
              $region57: #{alexnet_extreme_forward.3} parent=47 // loop_header
                %s2869 = sphi 0, %s2871
                %p2870 = scmp.ge.s32.totalorder %s2869, %s2862
                %s2874 = sphi 0, %s2881
                %s2875 = sphi %s2865, %s2884
                %s2876 = sphi %s2867, %s2885
              $region58: #{alexnet_extreme_forward.3} parent=47 // loop_header_branch
                %2873 = sbr.rel (%p2870) target = $region62
              $region59: #{alexnet_extreme_forward.3} parent=47 // loop_body
                %v2877 = vld [vmem:[%s2875] sm:$0xff]
                %2878 = vst [vmem:[%s2876] sm:$0xff] %v2877
                %s2879 = sadd.s32 1, %s2874
                %p2880 = scmp.ge.s32.totalorder %s2879, %s2862
                %s2881 = scalar_select %p2880, 0, %s2879
                %s2882 = smul.u32 %s2881, 8
                %s2883 = smul.u32 %s2881, 8
                %s2884 = scalar_lea.vmem %s2865, %s2882 [#allocation2]
                %s2885 = scalar_lea.vmem %s2867, %s2883
              $region60: #{alexnet_extreme_forward.3} parent=47 // loop_footer
                %s2871 = sadd.s32 %s2869, 1
              $region61: #{alexnet_extreme_forward.3} parent=47 // loop_footer_branch
                %2868 = sbr.rel target = $region57
              $region62: #{alexnet_extreme_forward.3} parent=47 // loop_exit
                _
            $region48: #{alexnet_extreme_forward.3} parent=39 // pred_fallthru
              _
          $region40: #{alexnet_extreme_forward.3} parent=35 // pred_fallthru
            _
          %3060 = vnop
        $region36: #{alexnet_extreme_forward.3} parent=31 // pred_fallthru
          _
      $region32: #{alexnet_extreme_forward.3} parent=5 // pred_fallthru
        _
      %p3061 = scmp.le.s32.totalorder 2, %s9
      // Predicated region
      $region85: #{alexnet_extreme_forward.3} parent=5 // pred_check
        %p3062 = pneg %p3061
      $region86: #{alexnet_extreme_forward.3} parent=5 // pred_check_branch
        %3064 = sbr.rel (%p3062) target = $region88
      $region87: #{alexnet_extreme_forward.3} parent=5 // pred_region
        %s3065 = ssub.s32 %s9, 2
        // Predicated region
        $region89: #{alexnet_extreme_forward.3} parent=87 // pred_check
          %p3066 = pneg %p106
        $region90: #{alexnet_extreme_forward.3} parent=87 // pred_check_branch
          %3068 = sbr.rel (%p3066) target = $region92
        $region91: #{alexnet_extreme_forward.3} parent=87 // pred_region
          %s3069 = sand.u32 %s91, 1
          %s3070 = sand.u32 %s91, 1
          %s3071 = smul.addr %s3070, 1024
          %s3072 = scalar_lea.vmem [#allocation2], %s3071
        $region92: #{alexnet_extreme_forward.3} parent=87 // pred_fallthru
          _
      $region88: #{alexnet_extreme_forward.3} parent=5 // pred_fallthru
        _
    $region6: #{alexnet_extreme_forward.3} parent=1 // loop_footer
      %s13 = sadd.s32 1, %s9
    $region7: #{alexnet_extreme_forward.3} parent=1 // loop_footer_branch
      %8 = sbr.rel target = $region3
    $region8: #{alexnet_extreme_forward.3} parent=1 // loop_exit
      _

// kernel: alexnet_extreme_forward.4
$region0: #{alexnet_extreme_forward.4}
  #allocation0 [shape = 'u32[]', space=smem, size = 0x4, offset = 0x4, fixed_abs, tag = 'smem constant byte address 0x4 - core index']
  #allocation1 [shape = 'u32[144,128]{1,0:T(1,128)}', space=vmem, size = 0x12000, scoped, tag = 'internal scratch']
  %s0 = inlined_call_operand.vmem [shape: f32[2,55,55,96], index: 0, kind: input, shape index: {}]
  %s1 = inlined_call_operand.vmem [shape: f32[2,27,53,96], index: 1, kind: output, shape index: {}]
  %s2 = sld [smem:[#allocation0]]
  $region37: #{alexnet_extreme_forward.4} parent=0
    _
  %s4 = ssub.s32 1, %s2
  %s5 = scalar_select 0, %s4, %s2
  loop: start=0, step=1, limit=4
  $region2: #{alexnet_extreme_forward.4} parent=0 // loop_pre_header
    _
  $region3: #{alexnet_extreme_forward.4} parent=0 // loop_header
    %s7 = sphi 0, %s11
    %p8 = scmp.ge.s32.totalorder %s7, 4
    %s17 = sphi 0, %s19
    %s20 = sphi 0, %s17
    %s21 = sphi 0, %s20
    %s37 = sphi 0, %s21
    %s43 = sphi 0, %s45
    %s46 = sphi 0, %s43
    %s47 = sphi 0, %s46
    %s63 = sphi 0, %s47
  $region4: #{alexnet_extreme_forward.4} parent=0 // loop_header_branch
    %10 = sbr.rel (%p8) target = $region8
  $region5: #{alexnet_extreme_forward.4} parent=0 // loop_body
    %s12 = ssub.s32 %s7, 1
    %s13 = ssub.s32 %s7, 2
    %s14 = sadd.s32 %s7, 1
    %s15 = ssub.s32 %s7, %s14
    %p16 = scmp.eq.s32.totalorder %s15, 0
    %s18 = sadd.s32 %s17, 1
    %s19 = scalar_select %p16, %s17, %s18
    %p22 = pneg %p16
    %p23 = scmp.eq.s32.totalorder %s7, 1
    %p24 = por %p22, %p23
    %p25 = scmp.ne.s32.totalorder %s17, %s20
    %p26 = scmp.eq.s32.totalorder %s7, 0
    %p27 = por %p25, %p26
    %p28 = scmp.ne.s32.totalorder %s17, %s20
    %p29 = scmp.eq.s32.totalorder %s12, 1
    %p30 = por %p28, %p29
    %p31 = scmp.ne.s32.totalorder %s20, %s21
    %p32 = scmp.eq.s32.totalorder %s12, 0
    %p33 = por %p31, %p32
    %p34 = scmp.ne.s32.totalorder %s20, %s21
    %p35 = scmp.eq.s32.totalorder %s13, 1
    %p36 = por %p34, %p35
    %p38 = scmp.ne.s32.totalorder %s21, %s37
    %p39 = scmp.eq.s32.totalorder %s13, 0
    %p40 = por %p38, %p39
    %s41 = ssub.s32 %s7, %s14
    %p42 = scmp.eq.s32.totalorder %s41, 0
    %s44 = sadd.s32 %s43, 1
    %s45 = scalar_select %p42, %s43, %s44
    %p48 = pneg %p42
    %p49 = scmp.eq.s32.totalorder %s7, 1
    %p50 = por %p48, %p49
    %p51 = scmp.ne.s32.totalorder %s43, %s46
    %p52 = scmp.eq.s32.totalorder %s7, 0
    %p53 = por %p51, %p52
    %p54 = scmp.ne.s32.totalorder %s43, %s46
    %p55 = scmp.eq.s32.totalorder %s12, 1
    %p56 = por %p54, %p55
    %p57 = scmp.ne.s32.totalorder %s46, %s47
    %p58 = scmp.eq.s32.totalorder %s12, 0
    %p59 = por %p57, %p58
    %p60 = scmp.ne.s32.totalorder %s46, %s47
    %p61 = scmp.eq.s32.totalorder %s13, 1
    %p62 = por %p60, %p61
    %p64 = scmp.ne.s32.totalorder %s47, %s63
    %p65 = scmp.eq.s32.totalorder %s13, 0
    %p66 = por %p64, %p65
    %p67 = scmp.le.s32.totalorder 1, %s7
    %p68 = scmp.lt.s32.totalorder %s7, 3
    %p69 = pnand %p67, %p68
    %p70 = pneg %p69
    // Predicated region
    $region9: #{alexnet_extreme_forward.4} parent=5 // pred_check
      _
    $region10: #{alexnet_extreme_forward.4} parent=5 // pred_check_branch
      %72 = sbr.rel (%p69) target = $region12
    $region11: #{alexnet_extreme_forward.4} parent=5 // pred_region
      %s73 = ssub.s32 %s7, 1
    $region12: #{alexnet_extreme_forward.4} parent=5 // pred_fallthru
      _
    %p74 = scmp.lt.s32.totalorder %s7, 2
    // Predicated region
    $region13: #{alexnet_extreme_forward.4} parent=5 // pred_check
      %p75 = pneg %p74
    $region14: #{alexnet_extreme_forward.4} parent=5 // pred_check_branch
      %77 = sbr.rel (%p75) target = $region16
    $region15: #{alexnet_extreme_forward.4} parent=5 // pred_region
      // Predicated region
      $region17: #{alexnet_extreme_forward.4} parent=15 // pred_check
        %p78 = pneg %p27
      $region18: #{alexnet_extreme_forward.4} parent=15 // pred_check_branch
        %80 = sbr.rel (%p78) target = $region20
      $region19: #{alexnet_extreme_forward.4} parent=15 // pred_region
        %p81 = scmp.lt.s32.totalorder %s7, 1
        %s82 = scalar_select %p81, %s7, 1
        %s83 = smul.addr %s82, 385
        %s84 = smul.addr %s83, 8
        %s85 = scalar_lea.vmem %s0, %s84
      $region20: #{alexnet_extreme_forward.4} parent=15 // pred_fallthru
        _
    $region16: #{alexnet_extreme_forward.4} parent=5 // pred_fallthru
      _
    %p86 = scmp.le.s32.totalorder 1, %s7
    %p87 = scmp.lt.s32.totalorder %s7, 3
    %p88 = pnand %p86, %p87
    %p89 = pneg %p88
    // Predicated region
    $region21: #{alexnet_extreme_forward.4} parent=5 // pred_check
      _
    $region22: #{alexnet_extreme_forward.4} parent=5 // pred_check_branch
      %91 = sbr.rel (%p88) target = $region24
    $region23: #{alexnet_extreme_forward.4} parent=5 // pred_region
      %s92 = ssub.s32 %s7, 1
      %p93 = scmp.lt.s32.totalorder %s12, 1
      %s94 = scalar_select %p93, %s12, 1
      %s95 = smul.addr %s94, 385
      %s96 = smul.addr %s95, 8
      %s97 = scalar_lea.vmem %s0, %s96
      %p98 = pneg %p33
      %p99 = pneg %p30
      %p100 = pneg %p59
      %p101 = pneg %p56
      %p102 = scmp.lt.s32.totalorder %s12, 1
      %s103 = scalar_select %p102, %s12, 1
      %s104 = smul.addr %s103, 189
      %s105 = smul.addr %s104, 8
      %s106 = scalar_lea.vmem %s1, %s105
      %p107 = scmp.lt.s32.totalorder %s12, 1
      %s108 = scalar_select %p107, %s12, 1
      %s109 = smul.addr %s108, 385
      %s110 = smul.addr %s109, 8
      %s111 = scalar_lea.vmem %s0, %s110
      %p112 = scmp.lt.s32.totalorder %s12, 1
      %s113 = scalar_select %p112, %s12, 1
      %s114 = smul.addr %s113, 189
      %s115 = smul.addr %s114, 8
      %s116 = scalar_lea.vmem %s1, %s115
      %v117 = vld [vmem:[%s111] sm:$0xff]
      %v118 = vld [vmem:[%s111 + $0x8] sm:$0xff]
      %v119 = vld [vmem:[%s111 + $0x10] sm:$0xff]
      %v120 = vld [vmem:[%s111 + $0x18] sm:$0xff]
      %v121 = vld [vmem:[%s111 + $0x20] sm:$0xff]
      %v122 = vld [vmem:[%s111 + $0x28] sm:$0xff]
      %v123 = vld [vmem:[%s111 + $0x30] sm:$0x7f]
      %v124 = vld [vmem:[%s111 + $0x38] sm:$0xff]
      %v125 = vld [vmem:[%s111 + $0x40] sm:$0xff]
      %v126 = vld [vmem:[%s111 + $0x48] sm:$0xff]
      %v127 = vld [vmem:[%s111 + $0x50] sm:$0xff]
      %v128 = vld [vmem:[%s111 + $0x58] sm:$0xff]
      %v129 = vld [vmem:[%s111 + $0x60] sm:$0xff]
      %v130 = vld [vmem:[%s111 + $0x68] sm:$0x7f]
      %v131 = vld [vmem:[%s111 + $0x70] sm:$0xff]
      %v132 = vld [vmem:[%s111 + $0x78] sm:$0xff]
      %v133 = vld [vmem:[%s111 + $0x80] sm:$0xff]
      %v134 = vld [vmem:[%s111 + $0x88] sm:$0xff]
      %v135 = vld [vmem:[%s111 + $0x90] sm:$0xff]
      %v136 = vld [vmem:[%s111 + $0x98] sm:$0xff]
      %v137 = vld [vmem:[%s111 + $0xa0] sm:$0x7f]
      %v138 = vld [vmem:[%s111 + $0xa8] sm:$0xff]
      %v139 = vld [vmem:[%s111 + $0xb0] sm:$0xff]
      %v140 = vld [vmem:[%s111 + $0xb8] sm:$0xff]
      %v141 = vld [vmem:[%s111 + $0xc0] sm:$0xff]
      %v142 = vld [vmem:[%s111 + $0xc8] sm:$0xff]
      %v143 = vld [vmem:[%s111 + $0xd0] sm:$0xff]
      %v144 = vld [vmem:[%s111 + $0xd8] sm:$0x7f]
      %v145 = vld [vmem:[%s111 + $0xe0] sm:$0xff]
      %v146 = vld [vmem:[%s111 + $0xe8] sm:$0xff]
      %v147 = vld [vmem:[%s111 + $0xf0] sm:$0xff]
      %v148 = vld [vmem:[%s111 + $0xf8] sm:$0xff]
      %v149 = vld [vmem:[%s111 + $0x100] sm:$0xff]
      %v150 = vld [vmem:[%s111 + $0x108] sm:$0xff]
      %v151 = vld [vmem:[%s111 + $0x110] sm:$0x7f]
      %v152 = vld [vmem:[%s111 + $0x118] sm:$0xff]
      %v153 = vld [vmem:[%s111 + $0x120] sm:$0xff]
      %v154 = vld [vmem:[%s111 + $0x128] sm:$0xff]
      %v155 = vld [vmem:[%s111 + $0x130] sm:$0xff]
      %v156 = vld [vmem:[%s111 + $0x138] sm:$0xff]
      %v157 = vld [vmem:[%s111 + $0x140] sm:$0xff]
      %v158 = vld [vmem:[%s111 + $0x148] sm:$0x7f]
      %v159 = vld [vmem:[%s111 + $0x150] sm:$0xff]
      %v160 = vld [vmem:[%s111 + $0x158] sm:$0xff]
      %v161 = vld [vmem:[%s111 + $0x160] sm:$0xff]
      %v162 = vld [vmem:[%s111 + $0x168] sm:$0xff]
      %v163 = vld [vmem:[%s111 + $0x170] sm:$0xff]
      %v164 = vld [vmem:[%s111 + $0x178] sm:$0xff]
      %v165 = vld [vmem:[%s111 + $0x180] sm:$0x7f]
      %v166 = vld [vmem:[%s111 + $0x188] sm:$0xff]
      %v167 = vld [vmem:[%s111 + $0x190] sm:$0xff]
      %v168 = vld [vmem:[%s111 + $0x198] sm:$0xff]
      %v169 = vld [vmem:[%s111 + $0x1a0] sm:$0xff]
      %v170 = vld [vmem:[%s111 + $0x1a8] sm:$0xff]
      %v171 = vld [vmem:[%s111 + $0x1b0] sm:$0xff]
      %v172 = vld [vmem:[%s111 + $0x1b8] sm:$0x7f]
      %v173 = vld [vmem:[%s111 + $0x1c0] sm:$0xff]
      %v174 = vld [vmem:[%s111 + $0x1c8] sm:$0xff]
      %v175 = vld [vmem:[%s111 + $0x1d0] sm:$0xff]
      %v176 = vld [vmem:[%s111 + $0x1d8] sm:$0xff]
      %v177 = vld [vmem:[%s111 + $0x1e0] sm:$0xff]
      %v178 = vld [vmem:[%s111 + $0x1e8] sm:$0xff]
      %v179 = vld [vmem:[%s111 + $0x1f0] sm:$0x7f]
      %v180 = vld [vmem:[%s111 + $0x1f8] sm:$0xff]
      %v181 = vld [vmem:[%s111 + $0x200] sm:$0xff]
      %v182 = vld [vmem:[%s111 + $0x208] sm:$0xff]
      %v183 = vld [vmem:[%s111 + $0x210] sm:$0xff]
      %v184 = vld [vmem:[%s111 + $0x218] sm:$0xff]
      %v185 = vld [vmem:[%s111 + $0x220] sm:$0xff]
      %v186 = vld [vmem:[%s111 + $0x228] sm:$0x7f]
      %v187 = vld [vmem:[%s111 + $0x230] sm:$0xff]
      %v188 = vld [vmem:[%s111 + $0x238] sm:$0xff]
      %v189 = vld [vmem:[%s111 + $0x240] sm:$0xff]
      %v190 = vld [vmem:[%s111 + $0x248] sm:$0xff]
      %v191 = vld [vmem:[%s111 + $0x250] sm:$0xff]
      %v192 = vld [vmem:[%s111 + $0x258] sm:$0xff]
      %v193 = vld [vmem:[%s111 + $0x260] sm:$0x7f]
      %v194 = vld [vmem:[%s111 + $0x268] sm:$0xff]
      %v195 = vld [vmem:[%s111 + $0x270] sm:$0xff]
      %v196 = vld [vmem:[%s111 + $0x278] sm:$0xff]
      %v197 = vld [vmem:[%s111 + $0x280] sm:$0xff]
      %v198 = vld [vmem:[%s111 + $0x288] sm:$0xff]
      %v199 = vld [vmem:[%s111 + $0x290] sm:$0xff]
      %v200 = vld [vmem:[%s111 + $0x298] sm:$0x7f]
      %v201 = vld [vmem:[%s111 + $0x2a0] sm:$0xff]
      %v202 = vld [vmem:[%s111 + $0x2a8] sm:$0xff]
      %v203 = vld [vmem:[%s111 + $0x2b0] sm:$0xff]
      %v204 = vld [vmem:[%s111 + $0x2b8] sm:$0xff]
      %v205 = vld [vmem:[%s111 + $0x2c0] sm:$0xff]
      %v206 = vld [vmem:[%s111 + $0x2c8] sm:$0xff]
      %v207 = vld [vmem:[%s111 + $0x2d0] sm:$0x7f]
      %v208 = vld [vmem:[%s111 + $0x2d8] sm:$0xff]
      %v209 = vld [vmem:[%s111 + $0x2e0] sm:$0xff]
      %v210 = vld [vmem:[%s111 + $0x2e8] sm:$0xff]
      %v211 = vld [vmem:[%s111 + $0x2f0] sm:$0xff]
      %v212 = vld [vmem:[%s111 + $0x2f8] sm:$0xff]
      %v213 = vld [vmem:[%s111 + $0x300] sm:$0xff]
      %v214 = vld [vmem:[%s111 + $0x308] sm:$0x7f]
      %v215 = vld [vmem:[%s111 + $0x310] sm:$0xff]
      %v216 = vld [vmem:[%s111 + $0x318] sm:$0xff]
      %v217 = vld [vmem:[%s111 + $0x320] sm:$0xff]
      %v218 = vld [vmem:[%s111 + $0x328] sm:$0xff]
      %v219 = vld [vmem:[%s111 + $0x330] sm:$0xff]
      %v220 = vld [vmem:[%s111 + $0x338] sm:$0xff]
      %v221 = vld [vmem:[%s111 + $0x340] sm:$0x7f]
      %v222 = vld [vmem:[%s111 + $0x348] sm:$0xff]
      %v223 = vld [vmem:[%s111 + $0x350] sm:$0xff]
      %v224 = vld [vmem:[%s111 + $0x358] sm:$0xff]
      %v225 = vld [vmem:[%s111 + $0x360] sm:$0xff]
      %v226 = vld [vmem:[%s111 + $0x368] sm:$0xff]
      %v227 = vld [vmem:[%s111 + $0x370] sm:$0xff]
      %v228 = vld [vmem:[%s111 + $0x378] sm:$0x7f]
      %v229 = vld [vmem:[%s111 + $0x380] sm:$0xff]
      %v230 = vld [vmem:[%s111 + $0x388] sm:$0xff]
      %v231 = vld [vmem:[%s111 + $0x390] sm:$0xff]
      %v232 = vld [vmem:[%s111 + $0x398] sm:$0xff]
      %v233 = vld [vmem:[%s111 + $0x3a0] sm:$0xff]
      %v234 = vld [vmem:[%s111 + $0x3a8] sm:$0xff]
      %v235 = vld [vmem:[%s111 + $0x3b0] sm:$0x7f]
      %v236 = vld [vmem:[%s111 + $0x3b8] sm:$0xff]
      %v237 = vld [vmem:[%s111 + $0x3c0] sm:$0xff]
      %v238 = vld [vmem:[%s111 + $0x3c8] sm:$0xff]
      %v239 = vld [vmem:[%s111 + $0x3d0] sm:$0xff]
      %v240 = vld [vmem:[%s111 + $0x3d8] sm:$0xff]
      %v241 = vld [vmem:[%s111 + $0x3e0] sm:$0xff]
      %v242 = vld [vmem:[%s111 + $0x3e8] sm:$0x7f]
      %v243 = vld [vmem:[%s111 + $0x3f0] sm:$0xff]
      %v244 = vld [vmem:[%s111 + $0x3f8] sm:$0xff]
      %v245 = vld [vmem:[%s111 + $0x400] sm:$0xff]
      %v246 = vld [vmem:[%s111 + $0x408] sm:$0xff]
      %v247 = vld [vmem:[%s111 + $0x410] sm:$0xff]
      %v248 = vld [vmem:[%s111 + $0x418] sm:$0xff]
      %v249 = vld [vmem:[%s111 + $0x420] sm:$0x7f]
      %v250 = vld [vmem:[%s111 + $0x428] sm:$0xff]
      %v251 = vld [vmem:[%s111 + $0x430] sm:$0xff]
      %v252 = vld [vmem:[%s111 + $0x438] sm:$0xff]
      %v253 = vld [vmem:[%s111 + $0x440] sm:$0xff]
      %v254 = vld [vmem:[%s111 + $0x448] sm:$0xff]
      %v255 = vld [vmem:[%s111 + $0x450] sm:$0xff]
      %v256 = vld [vmem:[%s111 + $0x458] sm:$0x7f]
      %v257 = vld [vmem:[%s111 + $0x460] sm:$0xff]
      %v258 = vld [vmem:[%s111 + $0x468] sm:$0xff]
      %v259 = vld [vmem:[%s111 + $0x470] sm:$0xff]
      %v260 = vld [vmem:[%s111 + $0x478] sm:$0xff]
      %v261 = vld [vmem:[%s111 + $0x480] sm:$0xff]
      %v262 = vld [vmem:[%s111 + $0x488] sm:$0xff]
      %v263 = vld [vmem:[%s111 + $0x490] sm:$0x7f]
      %v264 = vld [vmem:[%s111 + $0x498] sm:$0xff]
      %v265 = vld [vmem:[%s111 + $0x4a0] sm:$0xff]
      %v266 = vld [vmem:[%s111 + $0x4a8] sm:$0xff]
      %v267 = vld [vmem:[%s111 + $0x4b0] sm:$0xff]
      %v268 = vld [vmem:[%s111 + $0x4b8] sm:$0xff]
      %v269 = vld [vmem:[%s111 + $0x4c0] sm:$0xff]
      %v270 = vld [vmem:[%s111 + $0x4c8] sm:$0x7f]
      %v271 = vld [vmem:[%s111 + $0x4d0] sm:$0xff]
      %v272 = vld [vmem:[%s111 + $0x4d8] sm:$0xff]
      %v273 = vld [vmem:[%s111 + $0x4e0] sm:$0xff]
      %v274 = vld [vmem:[%s111 + $0x4e8] sm:$0xff]
      %v275 = vld [vmem:[%s111 + $0x4f0] sm:$0xff]
      %v276 = vld [vmem:[%s111 + $0x4f8] sm:$0xff]
      %v277 = vld [vmem:[%s111 + $0x500] sm:$0x7f]
      %v278 = vld [vmem:[%s111 + $0x508] sm:$0xff]
      %v279 = vld [vmem:[%s111 + $0x510] sm:$0xff]
      %v280 = vld [vmem:[%s111 + $0x518] sm:$0xff]
      %v281 = vld [vmem:[%s111 + $0x520] sm:$0xff]
      %v282 = vld [vmem:[%s111 + $0x528] sm:$0xff]
      %v283 = vld [vmem:[%s111 + $0x530] sm:$0xff]
      %v284 = vld [vmem:[%s111 + $0x538] sm:$0x7f]
      %v285 = vld [vmem:[%s111 + $0x540] sm:$0xff]
      %v286 = vld [vmem:[%s111 + $0x548] sm:$0xff]
      %v287 = vld [vmem:[%s111 + $0x550] sm:$0xff]
      %v288 = vld [vmem:[%s111 + $0x558] sm:$0xff]
      %v289 = vld [vmem:[%s111 + $0x560] sm:$0xff]
      %v290 = vld [vmem:[%s111 + $0x568] sm:$0xff]
      %v291 = vld [vmem:[%s111 + $0x570] sm:$0x7f]
      %v292 = vld [vmem:[%s111 + $0x578] sm:$0xff]
      %v293 = vld [vmem:[%s111 + $0x580] sm:$0xff]
      %v294 = vld [vmem:[%s111 + $0x588] sm:$0xff]
      %v295 = vld [vmem:[%s111 + $0x590] sm:$0xff]
      %v296 = vld [vmem:[%s111 + $0x598] sm:$0xff]
      %v297 = vld [vmem:[%s111 + $0x5a0] sm:$0xff]
      %v298 = vld [vmem:[%s111 + $0x5a8] sm:$0x7f]
      %v299 = vld [vmem:[%s111 + $0x5b0] sm:$0xff]
      %v300 = vld [vmem:[%s111 + $0x5b8] sm:$0xff]
      %v301 = vld [vmem:[%s111 + $0x5c0] sm:$0xff]
      %v302 = vld [vmem:[%s111 + $0x5c8] sm:$0xff]
      %v303 = vld [vmem:[%s111 + $0x5d0] sm:$0xff]
      %v304 = vld [vmem:[%s111 + $0x5d8] sm:$0xff]
      %v305 = vld [vmem:[%s111 + $0x5e0] sm:$0x7f]
      %v306 = vld [vmem:[%s111 + $0x5e8] sm:$0xff]
      %v307 = vld [vmem:[%s111 + $0x5f0] sm:$0xff]
      %v308 = vld [vmem:[%s111 + $0x5f8] sm:$0xff]
      %v309 = vld [vmem:[%s111 + $0x600] sm:$0xff]
      %v310 = vld [vmem:[%s111 + $0x608] sm:$0xff]
      %v311 = vld [vmem:[%s111 + $0x610] sm:$0xff]
      %v312 = vld [vmem:[%s111 + $0x618] sm:$0x7f]
      %v313 = vld [vmem:[%s111 + $0x620] sm:$0xff]
      %v314 = vld [vmem:[%s111 + $0x628] sm:$0xff]
      %v315 = vld [vmem:[%s111 + $0x630] sm:$0xff]
      %v316 = vld [vmem:[%s111 + $0x638] sm:$0xff]
      %v317 = vld [vmem:[%s111 + $0x640] sm:$0xff]
      %v318 = vld [vmem:[%s111 + $0x648] sm:$0xff]
      %v319 = vld [vmem:[%s111 + $0x650] sm:$0x7f]
      %v320 = vld [vmem:[%s111 + $0x658] sm:$0xff]
      %v321 = vld [vmem:[%s111 + $0x660] sm:$0xff]
      %v322 = vld [vmem:[%s111 + $0x668] sm:$0xff]
      %v323 = vld [vmem:[%s111 + $0x670] sm:$0xff]
      %v324 = vld [vmem:[%s111 + $0x678] sm:$0xff]
      %v325 = vld [vmem:[%s111 + $0x680] sm:$0xff]
      %v326 = vld [vmem:[%s111 + $0x688] sm:$0x7f]
      %v327 = vld [vmem:[%s111 + $0x690] sm:$0xff]
      %v328 = vld [vmem:[%s111 + $0x698] sm:$0xff]
      %v329 = vld [vmem:[%s111 + $0x6a0] sm:$0xff]
      %v330 = vld [vmem:[%s111 + $0x6a8] sm:$0xff]
      %v331 = vld [vmem:[%s111 + $0x6b0] sm:$0xff]
      %v332 = vld [vmem:[%s111 + $0x6b8] sm:$0xff]
      %v333 = vld [vmem:[%s111 + $0x6c0] sm:$0x7f]
      %v334 = vld [vmem:[%s111 + $0x6c8] sm:$0xff]
      %v335 = vld [vmem:[%s111 + $0x6d0] sm:$0xff]
      %v336 = vld [vmem:[%s111 + $0x6d8] sm:$0xff]
      %v337 = vld [vmem:[%s111 + $0x6e0] sm:$0xff]
      %v338 = vld [vmem:[%s111 + $0x6e8] sm:$0xff]
      %v339 = vld [vmem:[%s111 + $0x6f0] sm:$0xff]
      %v340 = vld [vmem:[%s111 + $0x6f8] sm:$0x7f]
      %v341 = vld [vmem:[%s111 + $0x700] sm:$0xff]
      %v342 = vld [vmem:[%s111 + $0x708] sm:$0xff]
      %v343 = vld [vmem:[%s111 + $0x710] sm:$0xff]
      %v344 = vld [vmem:[%s111 + $0x718] sm:$0xff]
      %v345 = vld [vmem:[%s111 + $0x720] sm:$0xff]
      %v346 = vld [vmem:[%s111 + $0x728] sm:$0xff]
      %v347 = vld [vmem:[%s111 + $0x730] sm:$0x7f]
      %v348 = vld [vmem:[%s111 + $0x738] sm:$0xff]
      %v349 = vld [vmem:[%s111 + $0x740] sm:$0xff]
      %v350 = vld [vmem:[%s111 + $0x748] sm:$0xff]
      %v351 = vld [vmem:[%s111 + $0x750] sm:$0xff]
      %v352 = vld [vmem:[%s111 + $0x758] sm:$0xff]
      %v353 = vld [vmem:[%s111 + $0x760] sm:$0xff]
      %v354 = vld [vmem:[%s111 + $0x768] sm:$0x7f]
      %v355 = vld [vmem:[%s111 + $0x770] sm:$0xff]
      %v356 = vld [vmem:[%s111 + $0x778] sm:$0xff]
      %v357 = vld [vmem:[%s111 + $0x780] sm:$0xff]
      %v358 = vld [vmem:[%s111 + $0x788] sm:$0xff]
      %v359 = vld [vmem:[%s111 + $0x790] sm:$0xff]
      %v360 = vld [vmem:[%s111 + $0x798] sm:$0xff]
      %v361 = vld [vmem:[%s111 + $0x7a0] sm:$0x7f]
      %v362 = vld [vmem:[%s111 + $0x7a8] sm:$0xff]
      %v363 = vld [vmem:[%s111 + $0x7b0] sm:$0xff]
      %v364 = vld [vmem:[%s111 + $0x7b8] sm:$0xff]
      %v365 = vld [vmem:[%s111 + $0x7c0] sm:$0xff]
      %v366 = vld [vmem:[%s111 + $0x7c8] sm:$0xff]
      %v367 = vld [vmem:[%s111 + $0x7d0] sm:$0xff]
      %v368 = vld [vmem:[%s111 + $0x7d8] sm:$0x7f]
      %v369 = vld [vmem:[%s111 + $0x7e0] sm:$0xff]
      %v370 = vld [vmem:[%s111 + $0x7e8] sm:$0xff]
      %v371 = vld [vmem:[%s111 + $0x7f0] sm:$0xff]
      %v372 = vld [vmem:[%s111 + $0x7f8] sm:$0xff]
      %v373 = vld [vmem:[%s111 + $0x800] sm:$0xff]
      %v374 = vld [vmem:[%s111 + $0x808] sm:$0xff]
      %v375 = vld [vmem:[%s111 + $0x810] sm:$0x7f]
      %v376 = vld [vmem:[%s111 + $0x818] sm:$0xff]
      %v377 = vld [vmem:[%s111 + $0x820] sm:$0xff]
      %v378 = vld [vmem:[%s111 + $0x828] sm:$0xff]
      %v379 = vld [vmem:[%s111 + $0x830] sm:$0xff]
      %v380 = vld [vmem:[%s111 + $0x838] sm:$0xff]
      %v381 = vld [vmem:[%s111 + $0x840] sm:$0xff]
      %v382 = vld [vmem:[%s111 + $0x848] sm:$0x7f]
      %v383 = vld [vmem:[%s111 + $0x850] sm:$0xff]
      %v384 = vld [vmem:[%s111 + $0x858] sm:$0xff]
      %v385 = vld [vmem:[%s111 + $0x860] sm:$0xff]
      %v386 = vld [vmem:[%s111 + $0x868] sm:$0xff]
      %v387 = vld [vmem:[%s111 + $0x870] sm:$0xff]
      %v388 = vld [vmem:[%s111 + $0x878] sm:$0xff]
      %v389 = vld [vmem:[%s111 + $0x880] sm:$0x7f]
      %v390 = vld [vmem:[%s111 + $0x888] sm:$0xff]
      %v391 = vld [vmem:[%s111 + $0x890] sm:$0xff]
      %v392 = vld [vmem:[%s111 + $0x898] sm:$0xff]
      %v393 = vld [vmem:[%s111 + $0x8a0] sm:$0xff]
      %v394 = vld [vmem:[%s111 + $0x8a8] sm:$0xff]
      %v395 = vld [vmem:[%s111 + $0x8b0] sm:$0xff]
      %v396 = vld [vmem:[%s111 + $0x8b8] sm:$0x7f]
      %v397 = vld [vmem:[%s111 + $0x8c0] sm:$0xff]
      %v398 = vld [vmem:[%s111 + $0x8c8] sm:$0xff]
      %v399 = vld [vmem:[%s111 + $0x8d0] sm:$0xff]
      %v400 = vld [vmem:[%s111 + $0x8d8] sm:$0xff]
      %v401 = vld [vmem:[%s111 + $0x8e0] sm:$0xff]
      %v402 = vld [vmem:[%s111 + $0x8e8] sm:$0xff]
      %v403 = vld [vmem:[%s111 + $0x8f0] sm:$0x7f]
      %v404 = vld [vmem:[%s111 + $0x8f8] sm:$0xff]
      %v405 = vld [vmem:[%s111 + $0x900] sm:$0xff]
      %v406 = vld [vmem:[%s111 + $0x908] sm:$0xff]
      %v407 = vld [vmem:[%s111 + $0x910] sm:$0xff]
      %v408 = vld [vmem:[%s111 + $0x918] sm:$0xff]
      %v409 = vld [vmem:[%s111 + $0x920] sm:$0xff]
      %v410 = vld [vmem:[%s111 + $0x928] sm:$0x7f]
      %v411 = vld [vmem:[%s111 + $0x930] sm:$0xff]
      %v412 = vld [vmem:[%s111 + $0x938] sm:$0xff]
      %v413 = vld [vmem:[%s111 + $0x940] sm:$0xff]
      %v414 = vld [vmem:[%s111 + $0x948] sm:$0xff]
      %v415 = vld [vmem:[%s111 + $0x950] sm:$0xff]
      %v416 = vld [vmem:[%s111 + $0x958] sm:$0xff]
      %v417 = vld [vmem:[%s111 + $0x960] sm:$0x7f]
      %v418 = vld [vmem:[%s111 + $0x968] sm:$0xff]
      %v419 = vld [vmem:[%s111 + $0x970] sm:$0xff]
      %v420 = vld [vmem:[%s111 + $0x978] sm:$0xff]
      %v421 = vld [vmem:[%s111 + $0x980] sm:$0xff]
      %v422 = vld [vmem:[%s111 + $0x988] sm:$0xff]
      %v423 = vld [vmem:[%s111 + $0x990] sm:$0xff]
      %v424 = vld [vmem:[%s111 + $0x998] sm:$0x7f]
      %v425 = vld [vmem:[%s111 + $0x9a0] sm:$0xff]
      %v426 = vld [vmem:[%s111 + $0x9a8] sm:$0xff]
      %v427 = vld [vmem:[%s111 + $0x9b0] sm:$0xff]
      %v428 = vld [vmem:[%s111 + $0x9b8] sm:$0xff]
      %v429 = vld [vmem:[%s111 + $0x9c0] sm:$0xff]
      %v430 = vld [vmem:[%s111 + $0x9c8] sm:$0xff]
      %v431 = vld [vmem:[%s111 + $0x9d0] sm:$0x7f]
      %v432 = vld [vmem:[%s111 + $0x9d8] sm:$0xff]
      %v433 = vld [vmem:[%s111 + $0x9e0] sm:$0xff]
      %v434 = vld [vmem:[%s111 + $0x9e8] sm:$0xff]
      %v435 = vld [vmem:[%s111 + $0x9f0] sm:$0xff]
      %v436 = vld [vmem:[%s111 + $0x9f8] sm:$0xff]
      %v437 = vld [vmem:[%s111 + $0xa00] sm:$0xff]
      %v438 = vld [vmem:[%s111 + $0xa08] sm:$0x7f]
      %v439 = vld [vmem:[%s111 + $0xa10] sm:$0xff]
      %v440 = vld [vmem:[%s111 + $0xa18] sm:$0xff]
      %v441 = vld [vmem:[%s111 + $0xa20] sm:$0xff]
      %v442 = vld [vmem:[%s111 + $0xa28] sm:$0xff]
      %v443 = vld [vmem:[%s111 + $0xa30] sm:$0xff]
      %v444 = vld [vmem:[%s111 + $0xa38] sm:$0xff]
      %v445 = vld [vmem:[%s111 + $0xa40] sm:$0x7f]
      %v446 = vld [vmem:[%s111 + $0xa48] sm:$0xff]
      %v447 = vld [vmem:[%s111 + $0xa50] sm:$0xff]
      %v448 = vld [vmem:[%s111 + $0xa58] sm:$0xff]
      %v449 = vld [vmem:[%s111 + $0xa60] sm:$0xff]
      %v450 = vld [vmem:[%s111 + $0xa68] sm:$0xff]
      %v451 = vld [vmem:[%s111 + $0xa70] sm:$0xff]
      %v452 = vld [vmem:[%s111 + $0xa78] sm:$0x7f]
      %v453 = vld [vmem:[%s111 + $0xa80] sm:$0xff]
      %v454 = vld [vmem:[%s111 + $0xa88] sm:$0xff]
      %v455 = vld [vmem:[%s111 + $0xa90] sm:$0xff]
      %v456 = vld [vmem:[%s111 + $0xa98] sm:$0xff]
      %v457 = vld [vmem:[%s111 + $0xaa0] sm:$0xff]
      %v458 = vld [vmem:[%s111 + $0xaa8] sm:$0xff]
      %v459 = vld [vmem:[%s111 + $0xab0] sm:$0x7f]
      %v460 = vld [vmem:[%s111 + $0xab8] sm:$0xff]
      %v461 = vld [vmem:[%s111 + $0xac0] sm:$0xff]
      %v462 = vld [vmem:[%s111 + $0xac8] sm:$0xff]
      %v463 = vld [vmem:[%s111 + $0xad0] sm:$0xff]
      %v464 = vld [vmem:[%s111 + $0xad8] sm:$0xff]
      %v465 = vld [vmem:[%s111 + $0xae0] sm:$0xff]
      %v466 = vld [vmem:[%s111 + $0xae8] sm:$0x7f]
      %v467 = vld [vmem:[%s111 + $0xaf0] sm:$0xff]
      %v468 = vld [vmem:[%s111 + $0xaf8] sm:$0xff]
      %v469 = vld [vmem:[%s111 + $0xb00] sm:$0xff]
      %v470 = vld [vmem:[%s111 + $0xb08] sm:$0xff]
      %v471 = vld [vmem:[%s111 + $0xb10] sm:$0xff]
      %v472 = vld [vmem:[%s111 + $0xb18] sm:$0xff]
      %v473 = vld [vmem:[%s111 + $0xb20] sm:$0x7f]
      %v474 = vld [vmem:[%s111 + $0xb28] sm:$0xff]
      %v475 = vld [vmem:[%s111 + $0xb30] sm:$0xff]
      %v476 = vld [vmem:[%s111 + $0xb38] sm:$0xff]
      %v477 = vld [vmem:[%s111 + $0xb40] sm:$0xff]
      %v478 = vld [vmem:[%s111 + $0xb48] sm:$0xff]
      %v479 = vld [vmem:[%s111 + $0xb50] sm:$0xff]
      %v480 = vld [vmem:[%s111 + $0xb58] sm:$0x7f]
      %v481 = vld [vmem:[%s111 + $0xb60] sm:$0xff]
      %v482 = vld [vmem:[%s111 + $0xb68] sm:$0xff]
      %v483 = vld [vmem:[%s111 + $0xb70] sm:$0xff]
      %v484 = vld [vmem:[%s111 + $0xb78] sm:$0xff]
      %v485 = vld [vmem:[%s111 + $0xb80] sm:$0xff]
      %v486 = vld [vmem:[%s111 + $0xb88] sm:$0xff]
      %v487 = vld [vmem:[%s111 + $0xb90] sm:$0x7f]
      %v488 = vld [vmem:[%s111 + $0xb98] sm:$0xff]
      %v489 = vld [vmem:[%s111 + $0xba0] sm:$0xff]
      %v490 = vld [vmem:[%s111 + $0xba8] sm:$0xff]
      %v491 = vld [vmem:[%s111 + $0xbb0] sm:$0xff]
      %v492 = vld [vmem:[%s111 + $0xbb8] sm:$0xff]
      %v493 = vld [vmem:[%s111 + $0xbc0] sm:$0xff]
      %v494 = vld [vmem:[%s111 + $0xbc8] sm:$0x7f]
      %v495 = vld [vmem:[%s111 + $0xbd0] sm:$0xff]
      %v496 = vld [vmem:[%s111 + $0xbd8] sm:$0xff]
      %v497 = vld [vmem:[%s111 + $0xbe0] sm:$0xff]
      %v498 = vld [vmem:[%s111 + $0xbe8] sm:$0xff]
      %v499 = vld [vmem:[%s111 + $0xbf0] sm:$0xff]
      %v500 = vld [vmem:[%s111 + $0xbf8] sm:$0xff]
      %v501 = vld [vmem:[%s111 + $0xc00] sm:$0x7f]
      %vm887 = vcmask 1046528
      %v888 = vrot.slane %v117, 1
      %v889 = vrot.slane %v118, 1
      %v890 = vsel %vm887, %v888, %v889
      %v891 = vrot.slane %v119, 1
      %v892 = vsel %vm887, %v889, %v891
      %v893 = vrot.slane %v120, 1
      %v894 = vsel %vm887, %v891, %v893
      %v895 = vrot.slane %v121, 1
      %v896 = vsel %vm887, %v893, %v895
      %v897 = vrot.slane %v122, 1
      %v898 = vsel %vm887, %v895, %v897
      %v899 = vrot.slane %v123, 1
      %v900 = vsel %vm887, %v897, %v899
      %v901 = vrot.slane %v124, 1
      %v902 = vrot.slane %v125, 1
      %v903 = vsel %vm887, %v901, %v902
      %v904 = vrot.slane %v126, 1
      %v905 = vsel %vm887, %v902, %v904
      %v906 = vrot.slane %v127, 1
      %v907 = vsel %vm887, %v904, %v906
      %v908 = vrot.slane %v128, 1
      %v909 = vsel %vm887, %v906, %v908
      %v910 = vrot.slane %v129, 1
      %v911 = vsel %vm887, %v908, %v910
      %v912 = vrot.slane %v130, 1
      %v913 = vsel %vm887, %v910, %v912
      %v914 = vrot.slane %v131, 1
      %v915 = vrot.slane %v132, 1
      %v916 = vsel %vm887, %v914, %v915
      %v917 = vrot.slane %v133, 1
      %v918 = vsel %vm887, %v915, %v917
      %v919 = vrot.slane %v134, 1
      %v920 = vsel %vm887, %v917, %v919
      %v921 = vrot.slane %v135, 1
      %v922 = vsel %vm887, %v919, %v921
      %v923 = vrot.slane %v136, 1
      %v924 = vsel %vm887, %v921, %v923
      %v925 = vrot.slane %v137, 1
      %v926 = vsel %vm887, %v923, %v925
      %v927 = vrot.slane %v138, 1
      %v928 = vrot.slane %v139, 1
      %v929 = vsel %vm887, %v927, %v928
      %v930 = vrot.slane %v140, 1
      %v931 = vsel %vm887, %v928, %v930
      %v932 = vrot.slane %v141, 1
      %v933 = vsel %vm887, %v930, %v932
      %v934 = vrot.slane %v142, 1
      %v935 = vsel %vm887, %v932, %v934
      %v936 = vrot.slane %v143, 1
      %v937 = vsel %vm887, %v934, %v936
      %v938 = vrot.slane %v144, 1
      %v939 = vsel %vm887, %v936, %v938
      %v940 = vrot.slane %v145, 1
      %v941 = vrot.slane %v146, 1
      %v942 = vsel %vm887, %v940, %v941
      %v943 = vrot.slane %v147, 1
      %v944 = vsel %vm887, %v941, %v943
      %v945 = vrot.slane %v148, 1
      %v946 = vsel %vm887, %v943, %v945
      %v947 = vrot.slane %v149, 1
      %v948 = vsel %vm887, %v945, %v947
      %v949 = vrot.slane %v150, 1
      %v950 = vsel %vm887, %v947, %v949
      %v951 = vrot.slane %v151, 1
      %v952 = vsel %vm887, %v949, %v951
      %v953 = vrot.slane %v152, 1
      %v954 = vrot.slane %v153, 1
      %v955 = vsel %vm887, %v953, %v954
      %v956 = vrot.slane %v154, 1
      %v957 = vsel %vm887, %v954, %v956
      %v958 = vrot.slane %v155, 1
      %v959 = vsel %vm887, %v956, %v958
      %v960 = vrot.slane %v156, 1
      %v961 = vsel %vm887, %v958, %v960
      %v962 = vrot.slane %v157, 1
      %v963 = vsel %vm887, %v960, %v962
      %v964 = vrot.slane %v158, 1
      %v965 = vsel %vm887, %v962, %v964
      %v966 = vrot.slane %v159, 1
      %v967 = vrot.slane %v160, 1
      %v968 = vsel %vm887, %v966, %v967
      %v969 = vrot.slane %v161, 1
      %v970 = vsel %vm887, %v967, %v969
      %v971 = vrot.slane %v162, 1
      %v972 = vsel %vm887, %v969, %v971
      %v973 = vrot.slane %v163, 1
      %v974 = vsel %vm887, %v971, %v973
      %v975 = vrot.slane %v164, 1
      %v976 = vsel %vm887, %v973, %v975
      %v977 = vrot.slane %v165, 1
      %v978 = vsel %vm887, %v975, %v977
      %v979 = vrot.slane %v166, 1
      %v980 = vrot.slane %v167, 1
      %v981 = vsel %vm887, %v979, %v980
      %v982 = vrot.slane %v168, 1
      %v983 = vsel %vm887, %v980, %v982
      %v984 = vrot.slane %v169, 1
      %v985 = vsel %vm887, %v982, %v984
      %v986 = vrot.slane %v170, 1
      %v987 = vsel %vm887, %v984, %v986
      %v988 = vrot.slane %v171, 1
      %v989 = vsel %vm887, %v986, %v988
      %v990 = vrot.slane %v172, 1
      %v991 = vsel %vm887, %v988, %v990
      %v992 = vrot.slane %v173, 1
      %v993 = vrot.slane %v174, 1
      %v994 = vsel %vm887, %v992, %v993
      %v995 = vrot.slane %v175, 1
      %v996 = vsel %vm887, %v993, %v995
      %v997 = vrot.slane %v176, 1
      %v998 = vsel %vm887, %v995, %v997
      %v999 = vrot.slane %v177, 1
      %v1000 = vsel %vm887, %v997, %v999
      %v1001 = vrot.slane %v178, 1
      %v1002 = vsel %vm887, %v999, %v1001
      %v1003 = vrot.slane %v179, 1
      %v1004 = vsel %vm887, %v1001, %v1003
      %v1005 = vrot.slane %v180, 1
      %v1006 = vrot.slane %v181, 1
      %v1007 = vsel %vm887, %v1005, %v1006
      %v1008 = vrot.slane %v182, 1
      %v1009 = vsel %vm887, %v1006, %v1008
      %v1010 = vrot.slane %v183, 1
      %v1011 = vsel %vm887, %v1008, %v1010
      %v1012 = vrot.slane %v184, 1
      %v1013 = vsel %vm887, %v1010, %v1012
      %v1014 = vrot.slane %v185, 1
      %v1015 = vsel %vm887, %v1012, %v1014
      %v1016 = vrot.slane %v186, 1
      %v1017 = vsel %vm887, %v1014, %v1016
      %v1018 = vrot.slane %v187, 1
      %v1019 = vrot.slane %v188, 1
      %v1020 = vsel %vm887, %v1018, %v1019
      %v1021 = vrot.slane %v189, 1
      %v1022 = vsel %vm887, %v1019, %v1021
      %v1023 = vrot.slane %v190, 1
      %v1024 = vsel %vm887, %v1021, %v1023
      %v1025 = vrot.slane %v191, 1
      %v1026 = vsel %vm887, %v1023, %v1025
      %v1027 = vrot.slane %v192, 1
      %v1028 = vsel %vm887, %v1025, %v1027
      %v1029 = vrot.slane %v193, 1
      %v1030 = vsel %vm887, %v1027, %v1029
      %v1031 = vrot.slane %v194, 1
      %v1032 = vrot.slane %v195, 1
      %v1033 = vsel %vm887, %v1031, %v1032
      %v1034 = vrot.slane %v196, 1
      %v1035 = vsel %vm887, %v1032, %v1034
      %v1036 = vrot.slane %v197, 1
      %v1037 = vsel %vm887, %v1034, %v1036
      %v1038 = vrot.slane %v198, 1
      %v1039 = vsel %vm887, %v1036, %v1038
      %v1040 = vrot.slane %v199, 1
      %v1041 = vsel %vm887, %v1038, %v1040
      %v1042 = vrot.slane %v200, 1
      %v1043 = vsel %vm887, %v1040, %v1042
      %v1044 = vrot.slane %v201, 1
      %v1045 = vrot.slane %v202, 1
      %v1046 = vsel %vm887, %v1044, %v1045
      %v1047 = vrot.slane %v203, 1
      %v1048 = vsel %vm887, %v1045, %v1047
      %v1049 = vrot.slane %v204, 1
      %v1050 = vsel %vm887, %v1047, %v1049
      %v1051 = vrot.slane %v205, 1
      %v1052 = vsel %vm887, %v1049, %v1051
      %v1053 = vrot.slane %v206, 1
      %v1054 = vsel %vm887, %v1051, %v1053
      %v1055 = vrot.slane %v207, 1
      %v1056 = vsel %vm887, %v1053, %v1055
      %v1057 = vrot.slane %v208, 1
      %v1058 = vrot.slane %v209, 1
      %v1059 = vsel %vm887, %v1057, %v1058
      %v1060 = vrot.slane %v210, 1
      %v1061 = vsel %vm887, %v1058, %v1060
      %v1062 = vrot.slane %v211, 1
      %v1063 = vsel %vm887, %v1060, %v1062
      %v1064 = vrot.slane %v212, 1
      %v1065 = vsel %vm887, %v1062, %v1064
      %v1066 = vrot.slane %v213, 1
      %v1067 = vsel %vm887, %v1064, %v1066
      %v1068 = vrot.slane %v214, 1
      %v1069 = vsel %vm887, %v1066, %v1068
      %v1070 = vrot.slane %v215, 1
      %v1071 = vrot.slane %v216, 1
      %v1072 = vsel %vm887, %v1070, %v1071
      %v1073 = vrot.slane %v217, 1
      %v1074 = vsel %vm887, %v1071, %v1073
      %v1075 = vrot.slane %v218, 1
      %v1076 = vsel %vm887, %v1073, %v1075
      %v1077 = vrot.slane %v219, 1
      %v1078 = vsel %vm887, %v1075, %v1077
      %v1079 = vrot.slane %v220, 1
      %v1080 = vsel %vm887, %v1077, %v1079
      %v1081 = vrot.slane %v221, 1
      %v1082 = vsel %vm887, %v1079, %v1081
      %v1083 = vrot.slane %v222, 1
      %v1084 = vrot.slane %v223, 1
      %v1085 = vsel %vm887, %v1083, %v1084
      %v1086 = vrot.slane %v224, 1
      %v1087 = vsel %vm887, %v1084, %v1086
      %v1088 = vrot.slane %v225, 1
      %v1089 = vsel %vm887, %v1086, %v1088
      %v1090 = vrot.slane %v226, 1
      %v1091 = vsel %vm887, %v1088, %v1090
      %v1092 = vrot.slane %v227, 1
      %v1093 = vsel %vm887, %v1090, %v1092
      %v1094 = vrot.slane %v228, 1
      %v1095 = vsel %vm887, %v1092, %v1094
      %v1096 = vrot.slane %v229, 1
      %v1097 = vrot.slane %v230, 1
      %v1098 = vsel %vm887, %v1096, %v1097
      %v1099 = vrot.slane %v231, 1
      %v1100 = vsel %vm887, %v1097, %v1099
      %v1101 = vrot.slane %v232, 1
      %v1102 = vsel %vm887, %v1099, %v1101
      %v1103 = vrot.slane %v233, 1
      %v1104 = vsel %vm887, %v1101, %v1103
      %v1105 = vrot.slane %v234, 1
      %v1106 = vsel %vm887, %v1103, %v1105
      %v1107 = vrot.slane %v235, 1
      %v1108 = vsel %vm887, %v1105, %v1107
      %v1109 = vrot.slane %v236, 1
      %v1110 = vrot.slane %v237, 1
      %v1111 = vsel %vm887, %v1109, %v1110
      %v1112 = vrot.slane %v238, 1
      %v1113 = vsel %vm887, %v1110, %v1112
      %v1114 = vrot.slane %v239, 1
      %v1115 = vsel %vm887, %v1112, %v1114
      %v1116 = vrot.slane %v240, 1
      %v1117 = vsel %vm887, %v1114, %v1116
      %v1118 = vrot.slane %v241, 1
      %v1119 = vsel %vm887, %v1116, %v1118
      %v1120 = vrot.slane %v242, 1
      %v1121 = vsel %vm887, %v1118, %v1120
      %v1122 = vrot.slane %v243, 1
      %v1123 = vrot.slane %v244, 1
      %v1124 = vsel %vm887, %v1122, %v1123
      %v1125 = vrot.slane %v245, 1
      %v1126 = vsel %vm887, %v1123, %v1125
      %v1127 = vrot.slane %v246, 1
      %v1128 = vsel %vm887, %v1125, %v1127
      %v1129 = vrot.slane %v247, 1
      %v1130 = vsel %vm887, %v1127, %v1129
      %v1131 = vrot.slane %v248, 1
      %v1132 = vsel %vm887, %v1129, %v1131
      %v1133 = vrot.slane %v249, 1
      %v1134 = vsel %vm887, %v1131, %v1133
      %v1135 = vrot.slane %v250, 1
      %v1136 = vrot.slane %v251, 1
      %v1137 = vsel %vm887, %v1135, %v1136
      %v1138 = vrot.slane %v252, 1
      %v1139 = vsel %vm887, %v1136, %v1138
      %v1140 = vrot.slane %v253, 1
      %v1141 = vsel %vm887, %v1138, %v1140
      %v1142 = vrot.slane %v254, 1
      %v1143 = vsel %vm887, %v1140, %v1142
      %v1144 = vrot.slane %v255, 1
      %v1145 = vsel %vm887, %v1142, %v1144
      %v1146 = vrot.slane %v256, 1
      %v1147 = vsel %vm887, %v1144, %v1146
      %v1148 = vrot.slane %v257, 1
      %v1149 = vrot.slane %v258, 1
      %v1150 = vsel %vm887, %v1148, %v1149
      %v1151 = vrot.slane %v259, 1
      %v1152 = vsel %vm887, %v1149, %v1151
      %v1153 = vrot.slane %v260, 1
      %v1154 = vsel %vm887, %v1151, %v1153
      %v1155 = vrot.slane %v261, 1
      %v1156 = vsel %vm887, %v1153, %v1155
      %v1157 = vrot.slane %v262, 1
      %v1158 = vsel %vm887, %v1155, %v1157
      %v1159 = vrot.slane %v263, 1
      %v1160 = vsel %vm887, %v1157, %v1159
      %v1161 = vrot.slane %v264, 1
      %v1162 = vrot.slane %v265, 1
      %v1163 = vsel %vm887, %v1161, %v1162
      %v1164 = vrot.slane %v266, 1
      %v1165 = vsel %vm887, %v1162, %v1164
      %v1166 = vrot.slane %v267, 1
      %v1167 = vsel %vm887, %v1164, %v1166
      %v1168 = vrot.slane %v268, 1
      %v1169 = vsel %vm887, %v1166, %v1168
      %v1170 = vrot.slane %v269, 1
      %v1171 = vsel %vm887, %v1168, %v1170
      %v1172 = vrot.slane %v270, 1
      %v1173 = vsel %vm887, %v1170, %v1172
      %v1174 = vrot.slane %v271, 1
      %v1175 = vrot.slane %v272, 1
      %v1176 = vsel %vm887, %v1174, %v1175
      %v1177 = vrot.slane %v273, 1
      %v1178 = vsel %vm887, %v1175, %v1177
      %v1179 = vrot.slane %v274, 1
      %v1180 = vsel %vm887, %v1177, %v1179
      %v1181 = vrot.slane %v275, 1
      %v1182 = vsel %vm887, %v1179, %v1181
      %v1183 = vrot.slane %v276, 1
      %v1184 = vsel %vm887, %v1181, %v1183
      %v1185 = vrot.slane %v277, 1
      %v1186 = vsel %vm887, %v1183, %v1185
      %v1187 = vrot.slane %v278, 1
      %v1188 = vrot.slane %v279, 1
      %v1189 = vsel %vm887, %v1187, %v1188
      %v1190 = vrot.slane %v280, 1
      %v1191 = vsel %vm887, %v1188, %v1190
      %v1192 = vrot.slane %v281, 1
      %v1193 = vsel %vm887, %v1190, %v1192
      %v1194 = vrot.slane %v282, 1
      %v1195 = vsel %vm887, %v1192, %v1194
      %v1196 = vrot.slane %v283, 1
      %v1197 = vsel %vm887, %v1194, %v1196
      %v1198 = vrot.slane %v284, 1
      %v1199 = vsel %vm887, %v1196, %v1198
      %v1200 = vrot.slane %v285, 1
      %v1201 = vrot.slane %v286, 1
      %v1202 = vsel %vm887, %v1200, %v1201
      %v1203 = vrot.slane %v287, 1
      %v1204 = vsel %vm887, %v1201, %v1203
      %v1205 = vrot.slane %v288, 1
      %v1206 = vsel %vm887, %v1203, %v1205
      %v1207 = vrot.slane %v289, 1
      %v1208 = vsel %vm887, %v1205, %v1207
      %v1209 = vrot.slane %v290, 1
      %v1210 = vsel %vm887, %v1207, %v1209
      %v1211 = vrot.slane %v291, 1
      %v1212 = vsel %vm887, %v1209, %v1211
      %v1213 = vrot.slane %v292, 1
      %v1214 = vrot.slane %v293, 1
      %v1215 = vsel %vm887, %v1213, %v1214
      %v1216 = vrot.slane %v294, 1
      %v1217 = vsel %vm887, %v1214, %v1216
      %v1218 = vrot.slane %v295, 1
      %v1219 = vsel %vm887, %v1216, %v1218
      %v1220 = vrot.slane %v296, 1
      %v1221 = vsel %vm887, %v1218, %v1220
      %v1222 = vrot.slane %v297, 1
      %v1223 = vsel %vm887, %v1220, %v1222
      %v1224 = vrot.slane %v298, 1
      %v1225 = vsel %vm887, %v1222, %v1224
      %v1226 = vrot.slane %v299, 1
      %v1227 = vrot.slane %v300, 1
      %v1228 = vsel %vm887, %v1226, %v1227
      %v1229 = vrot.slane %v301, 1
      %v1230 = vsel %vm887, %v1227, %v1229
      %v1231 = vrot.slane %v302, 1
      %v1232 = vsel %vm887, %v1229, %v1231
      %v1233 = vrot.slane %v303, 1
      %v1234 = vsel %vm887, %v1231, %v1233
      %v1235 = vrot.slane %v304, 1
      %v1236 = vsel %vm887, %v1233, %v1235
      %v1237 = vrot.slane %v305, 1
      %v1238 = vsel %vm887, %v1235, %v1237
      %v1239 = vrot.slane %v306, 1
      %v1240 = vrot.slane %v307, 1
      %v1241 = vsel %vm887, %v1239, %v1240
      %v1242 = vrot.slane %v308, 1
      %v1243 = vsel %vm887, %v1240, %v1242
      %v1244 = vrot.slane %v309, 1
      %v1245 = vsel %vm887, %v1242, %v1244
      %v1246 = vrot.slane %v310, 1
      %v1247 = vsel %vm887, %v1244, %v1246
      %v1248 = vrot.slane %v311, 1
      %v1249 = vsel %vm887, %v1246, %v1248
      %v1250 = vrot.slane %v312, 1
      %v1251 = vsel %vm887, %v1248, %v1250
      %v1252 = vrot.slane %v313, 1
      %v1253 = vrot.slane %v314, 1
      %v1254 = vsel %vm887, %v1252, %v1253
      %v1255 = vrot.slane %v315, 1
      %v1256 = vsel %vm887, %v1253, %v1255
      %v1257 = vrot.slane %v316, 1
      %v1258 = vsel %vm887, %v1255, %v1257
      %v1259 = vrot.slane %v317, 1
      %v1260 = vsel %vm887, %v1257, %v1259
      %v1261 = vrot.slane %v318, 1
      %v1262 = vsel %vm887, %v1259, %v1261
      %v1263 = vrot.slane %v319, 1
      %v1264 = vsel %vm887, %v1261, %v1263
      %v1265 = vrot.slane %v320, 1
      %v1266 = vrot.slane %v321, 1
      %v1267 = vsel %vm887, %v1265, %v1266
      %v1268 = vrot.slane %v322, 1
      %v1269 = vsel %vm887, %v1266, %v1268
      %v1270 = vrot.slane %v323, 1
      %v1271 = vsel %vm887, %v1268, %v1270
      %v1272 = vrot.slane %v324, 1
      %v1273 = vsel %vm887, %v1270, %v1272
      %v1274 = vrot.slane %v325, 1
      %v1275 = vsel %vm887, %v1272, %v1274
      %v1276 = vrot.slane %v326, 1
      %v1277 = vsel %vm887, %v1274, %v1276
      %v1278 = vrot.slane %v327, 1
      %v1279 = vrot.slane %v328, 1
      %v1280 = vsel %vm887, %v1278, %v1279
      %v1281 = vrot.slane %v329, 1
      %v1282 = vsel %vm887, %v1279, %v1281
      %v1283 = vrot.slane %v330, 1
      %v1284 = vsel %vm887, %v1281, %v1283
      %v1285 = vrot.slane %v331, 1
      %v1286 = vsel %vm887, %v1283, %v1285
      %v1287 = vrot.slane %v332, 1
      %v1288 = vsel %vm887, %v1285, %v1287
      %v1289 = vrot.slane %v333, 1
      %v1290 = vsel %vm887, %v1287, %v1289
      %v1291 = vrot.slane %v334, 1
      %v1292 = vrot.slane %v335, 1
      %v1293 = vsel %vm887, %v1291, %v1292
      %v1294 = vrot.slane %v336, 1
      %v1295 = vsel %vm887, %v1292, %v1294
      %v1296 = vrot.slane %v337, 1
      %v1297 = vsel %vm887, %v1294, %v1296
      %v1298 = vrot.slane %v338, 1
      %v1299 = vsel %vm887, %v1296, %v1298
      %v1300 = vrot.slane %v339, 1
      %v1301 = vsel %vm887, %v1298, %v1300
      %v1302 = vrot.slane %v340, 1
      %v1303 = vsel %vm887, %v1300, %v1302
      %v1304 = vrot.slane %v341, 1
      %v1305 = vrot.slane %v342, 1
      %v1306 = vsel %vm887, %v1304, %v1305
      %v1307 = vrot.slane %v343, 1
      %v1308 = vsel %vm887, %v1305, %v1307
      %v1309 = vrot.slane %v344, 1
      %v1310 = vsel %vm887, %v1307, %v1309
      %v1311 = vrot.slane %v345, 1
      %v1312 = vsel %vm887, %v1309, %v1311
      %v1313 = vrot.slane %v346, 1
      %v1314 = vsel %vm887, %v1311, %v1313
      %v1315 = vrot.slane %v347, 1
      %v1316 = vsel %vm887, %v1313, %v1315
      %v1317 = vrot.slane %v348, 1
      %v1318 = vrot.slane %v349, 1
      %v1319 = vsel %vm887, %v1317, %v1318
      %v1320 = vrot.slane %v350, 1
      %v1321 = vsel %vm887, %v1318, %v1320
      %v1322 = vrot.slane %v351, 1
      %v1323 = vsel %vm887, %v1320, %v1322
      %v1324 = vrot.slane %v352, 1
      %v1325 = vsel %vm887, %v1322, %v1324
      %v1326 = vrot.slane %v353, 1
      %v1327 = vsel %vm887, %v1324, %v1326
      %v1328 = vrot.slane %v354, 1
      %v1329 = vsel %vm887, %v1326, %v1328
      %v1330 = vrot.slane %v355, 1
      %v1331 = vrot.slane %v356, 1
      %v1332 = vsel %vm887, %v1330, %v1331
      %v1333 = vrot.slane %v357, 1
      %v1334 = vsel %vm887, %v1331, %v1333
      %v1335 = vrot.slane %v358, 1
      %v1336 = vsel %vm887, %v1333, %v1335
      %v1337 = vrot.slane %v359, 1
      %v1338 = vsel %vm887, %v1335, %v1337
      %v1339 = vrot.slane %v360, 1
      %v1340 = vsel %vm887, %v1337, %v1339
      %v1341 = vrot.slane %v361, 1
      %v1342 = vsel %vm887, %v1339, %v1341
      %v1343 = vrot.slane %v362, 1
      %v1344 = vrot.slane %v363, 1
      %v1345 = vsel %vm887, %v1343, %v1344
      %v1346 = vrot.slane %v364, 1
      %v1347 = vsel %vm887, %v1344, %v1346
      %v1348 = vrot.slane %v365, 1
      %v1349 = vsel %vm887, %v1346, %v1348
      %v1350 = vrot.slane %v366, 1
      %v1351 = vsel %vm887, %v1348, %v1350
      %v1352 = vrot.slane %v367, 1
      %v1353 = vsel %vm887, %v1350, %v1352
      %v1354 = vrot.slane %v368, 1
      %v1355 = vsel %vm887, %v1352, %v1354
      %v1356 = vrot.slane %v369, 1
      %v1357 = vrot.slane %v370, 1
      %v1358 = vsel %vm887, %v1356, %v1357
      %v1359 = vrot.slane %v371, 1
      %v1360 = vsel %vm887, %v1357, %v1359
      %v1361 = vrot.slane %v372, 1
      %v1362 = vsel %vm887, %v1359, %v1361
      %v1363 = vrot.slane %v373, 1
      %v1364 = vsel %vm887, %v1361, %v1363
      %v1365 = vrot.slane %v374, 1
      %v1366 = vsel %vm887, %v1363, %v1365
      %v1367 = vrot.slane %v375, 1
      %v1368 = vsel %vm887, %v1365, %v1367
      %v1369 = vrot.slane %v376, 1
      %v1370 = vrot.slane %v377, 1
      %v1371 = vsel %vm887, %v1369, %v1370
      %v1372 = vrot.slane %v378, 1
      %v1373 = vsel %vm887, %v1370, %v1372
      %v1374 = vrot.slane %v379, 1
      %v1375 = vsel %vm887, %v1372, %v1374
      %v1376 = vrot.slane %v380, 1
      %v1377 = vsel %vm887, %v1374, %v1376
      %v1378 = vrot.slane %v381, 1
      %v1379 = vsel %vm887, %v1376, %v1378
      %v1380 = vrot.slane %v382, 1
      %v1381 = vsel %vm887, %v1378, %v1380
      %v1382 = vrot.slane %v383, 1
      %v1383 = vrot.slane %v384, 1
      %v1384 = vsel %vm887, %v1382, %v1383
      %v1385 = vrot.slane %v385, 1
      %v1386 = vsel %vm887, %v1383, %v1385
      %v1387 = vrot.slane %v386, 1
      %v1388 = vsel %vm887, %v1385, %v1387
      %v1389 = vrot.slane %v387, 1
      %v1390 = vsel %vm887, %v1387, %v1389
      %v1391 = vrot.slane %v388, 1
      %v1392 = vsel %vm887, %v1389, %v1391
      %v1393 = vrot.slane %v389, 1
      %v1394 = vsel %vm887, %v1391, %v1393
      %v1395 = vrot.slane %v390, 1
      %v1396 = vrot.slane %v391, 1
      %v1397 = vsel %vm887, %v1395, %v1396
      %v1398 = vrot.slane %v392, 1
      %v1399 = vsel %vm887, %v1396, %v1398
      %v1400 = vrot.slane %v393, 1
      %v1401 = vsel %vm887, %v1398, %v1400
      %v1402 = vrot.slane %v394, 1
      %v1403 = vsel %vm887, %v1400, %v1402
      %v1404 = vrot.slane %v395, 1
      %v1405 = vsel %vm887, %v1402, %v1404
      %v1406 = vrot.slane %v396, 1
      %v1407 = vsel %vm887, %v1404, %v1406
      %v1408 = vrot.slane %v397, 1
      %v1409 = vrot.slane %v398, 1
      %v1410 = vsel %vm887, %v1408, %v1409
      %v1411 = vrot.slane %v399, 1
      %v1412 = vsel %vm887, %v1409, %v1411
      %v1413 = vrot.slane %v400, 1
      %v1414 = vsel %vm887, %v1411, %v1413
      %v1415 = vrot.slane %v401, 1
      %v1416 = vsel %vm887, %v1413, %v1415
      %v1417 = vrot.slane %v402, 1
      %v1418 = vsel %vm887, %v1415, %v1417
      %v1419 = vrot.slane %v403, 1
      %v1420 = vsel %vm887, %v1417, %v1419
      %v1421 = vrot.slane %v404, 1
      %v1422 = vrot.slane %v405, 1
      %v1423 = vsel %vm887, %v1421, %v1422
      %v1424 = vrot.slane %v406, 1
      %v1425 = vsel %vm887, %v1422, %v1424
      %v1426 = vrot.slane %v407, 1
      %v1427 = vsel %vm887, %v1424, %v1426
      %v1428 = vrot.slane %v408, 1
      %v1429 = vsel %vm887, %v1426, %v1428
      %v1430 = vrot.slane %v409, 1
      %v1431 = vsel %vm887, %v1428, %v1430
      %v1432 = vrot.slane %v410, 1
      %v1433 = vsel %vm887, %v1430, %v1432
      %v1434 = vrot.slane %v411, 1
      %v1435 = vrot.slane %v412, 1
      %v1436 = vsel %vm887, %v1434, %v1435
      %v1437 = vrot.slane %v413, 1
      %v1438 = vsel %vm887, %v1435, %v1437
      %v1439 = vrot.slane %v414, 1
      %v1440 = vsel %vm887, %v1437, %v1439
      %v1441 = vrot.slane %v415, 1
      %v1442 = vsel %vm887, %v1439, %v1441
      %v1443 = vrot.slane %v416, 1
      %v1444 = vsel %vm887, %v1441, %v1443
      %v1445 = vrot.slane %v417, 1
      %v1446 = vsel %vm887, %v1443, %v1445
      %v1447 = vrot.slane %v418, 1
      %v1448 = vrot.slane %v419, 1
      %v1449 = vsel %vm887, %v1447, %v1448
      %v1450 = vrot.slane %v420, 1
      %v1451 = vsel %vm887, %v1448, %v1450
      %v1452 = vrot.slane %v421, 1
      %v1453 = vsel %vm887, %v1450, %v1452
      %v1454 = vrot.slane %v422, 1
      %v1455 = vsel %vm887, %v1452, %v1454
      %v1456 = vrot.slane %v423, 1
      %v1457 = vsel %vm887, %v1454, %v1456
      %v1458 = vrot.slane %v424, 1
      %v1459 = vsel %vm887, %v1456, %v1458
      %v1460 = vrot.slane %v425, 1
      %v1461 = vrot.slane %v426, 1
      %v1462 = vsel %vm887, %v1460, %v1461
      %v1463 = vrot.slane %v427, 1
      %v1464 = vsel %vm887, %v1461, %v1463
      %v1465 = vrot.slane %v428, 1
      %v1466 = vsel %vm887, %v1463, %v1465
      %v1467 = vrot.slane %v429, 1
      %v1468 = vsel %vm887, %v1465, %v1467
      %v1469 = vrot.slane %v430, 1
      %v1470 = vsel %vm887, %v1467, %v1469
      %v1471 = vrot.slane %v431, 1
      %v1472 = vsel %vm887, %v1469, %v1471
      %v1473 = vrot.slane %v432, 1
      %v1474 = vrot.slane %v433, 1
      %v1475 = vsel %vm887, %v1473, %v1474
      %v1476 = vrot.slane %v434, 1
      %v1477 = vsel %vm887, %v1474, %v1476
      %v1478 = vrot.slane %v435, 1
      %v1479 = vsel %vm887, %v1476, %v1478
      %v1480 = vrot.slane %v436, 1
      %v1481 = vsel %vm887, %v1478, %v1480
      %v1482 = vrot.slane %v437, 1
      %v1483 = vsel %vm887, %v1480, %v1482
      %v1484 = vrot.slane %v438, 1
      %v1485 = vsel %vm887, %v1482, %v1484
      %v1486 = vrot.slane %v439, 1
      %v1487 = vrot.slane %v440, 1
      %v1488 = vsel %vm887, %v1486, %v1487
      %v1489 = vrot.slane %v441, 1
      %v1490 = vsel %vm887, %v1487, %v1489
      %v1491 = vrot.slane %v442, 1
      %v1492 = vsel %vm887, %v1489, %v1491
      %v1493 = vrot.slane %v443, 1
      %v1494 = vsel %vm887, %v1491, %v1493
      %v1495 = vrot.slane %v444, 1
      %v1496 = vsel %vm887, %v1493, %v1495
      %v1497 = vrot.slane %v445, 1
      %v1498 = vsel %vm887, %v1495, %v1497
      %v1499 = vrot.slane %v446, 1
      %v1500 = vrot.slane %v447, 1
      %v1501 = vsel %vm887, %v1499, %v1500
      %v1502 = vrot.slane %v448, 1
      %v1503 = vsel %vm887, %v1500, %v1502
      %v1504 = vrot.slane %v449, 1
      %v1505 = vsel %vm887, %v1502, %v1504
      %v1506 = vrot.slane %v450, 1
      %v1507 = vsel %vm887, %v1504, %v1506
      %v1508 = vrot.slane %v451, 1
      %v1509 = vsel %vm887, %v1506, %v1508
      %v1510 = vrot.slane %v452, 1
      %v1511 = vsel %vm887, %v1508, %v1510
      %v1512 = vrot.slane %v453, 1
      %v1513 = vrot.slane %v454, 1
      %v1514 = vsel %vm887, %v1512, %v1513
      %v1515 = vrot.slane %v455, 1
      %v1516 = vsel %vm887, %v1513, %v1515
      %v1517 = vrot.slane %v456, 1
      %v1518 = vsel %vm887, %v1515, %v1517
      %v1519 = vrot.slane %v457, 1
      %v1520 = vsel %vm887, %v1517, %v1519
      %v1521 = vrot.slane %v458, 1
      %v1522 = vsel %vm887, %v1519, %v1521
      %v1523 = vrot.slane %v459, 1
      %v1524 = vsel %vm887, %v1521, %v1523
      %v1525 = vrot.slane %v460, 1
      %v1526 = vrot.slane %v461, 1
      %v1527 = vsel %vm887, %v1525, %v1526
      %v1528 = vrot.slane %v462, 1
      %v1529 = vsel %vm887, %v1526, %v1528
      %v1530 = vrot.slane %v463, 1
      %v1531 = vsel %vm887, %v1528, %v1530
      %v1532 = vrot.slane %v464, 1
      %v1533 = vsel %vm887, %v1530, %v1532
      %v1534 = vrot.slane %v465, 1
      %v1535 = vsel %vm887, %v1532, %v1534
      %v1536 = vrot.slane %v466, 1
      %v1537 = vsel %vm887, %v1534, %v1536
      %v1538 = vrot.slane %v467, 1
      %v1539 = vrot.slane %v468, 1
      %v1540 = vsel %vm887, %v1538, %v1539
      %v1541 = vrot.slane %v469, 1
      %v1542 = vsel %vm887, %v1539, %v1541
      %v1543 = vrot.slane %v470, 1
      %v1544 = vsel %vm887, %v1541, %v1543
      %v1545 = vrot.slane %v471, 1
      %v1546 = vsel %vm887, %v1543, %v1545
      %v1547 = vrot.slane %v472, 1
      %v1548 = vsel %vm887, %v1545, %v1547
      %v1549 = vrot.slane %v473, 1
      %v1550 = vsel %vm887, %v1547, %v1549
      %v1551 = vrot.slane %v474, 1
      %v1552 = vrot.slane %v475, 1
      %v1553 = vsel %vm887, %v1551, %v1552
      %v1554 = vrot.slane %v476, 1
      %v1555 = vsel %vm887, %v1552, %v1554
      %v1556 = vrot.slane %v477, 1
      %v1557 = vsel %vm887, %v1554, %v1556
      %v1558 = vrot.slane %v478, 1
      %v1559 = vsel %vm887, %v1556, %v1558
      %v1560 = vrot.slane %v479, 1
      %v1561 = vsel %vm887, %v1558, %v1560
      %v1562 = vrot.slane %v480, 1
      %v1563 = vsel %vm887, %v1560, %v1562
      %v1564 = vrot.slane %v481, 1
      %v1565 = vrot.slane %v482, 1
      %v1566 = vsel %vm887, %v1564, %v1565
      %v1567 = vrot.slane %v483, 1
      %v1568 = vsel %vm887, %v1565, %v1567
      %v1569 = vrot.slane %v484, 1
      %v1570 = vsel %vm887, %v1567, %v1569
      %v1571 = vrot.slane %v485, 1
      %v1572 = vsel %vm887, %v1569, %v1571
      %v1573 = vrot.slane %v486, 1
      %v1574 = vsel %vm887, %v1571, %v1573
      %v1575 = vrot.slane %v487, 1
      %v1576 = vsel %vm887, %v1573, %v1575
      %v1577 = vrot.slane %v488, 1
      %v1578 = vrot.slane %v489, 1
      %v1579 = vsel %vm887, %v1577, %v1578
      %v1580 = vrot.slane %v490, 1
      %v1581 = vsel %vm887, %v1578, %v1580
      %v1582 = vrot.slane %v491, 1
      %v1583 = vsel %vm887, %v1580, %v1582
      %v1584 = vrot.slane %v492, 1
      %v1585 = vsel %vm887, %v1582, %v1584
      %v1586 = vrot.slane %v493, 1
      %v1587 = vsel %vm887, %v1584, %v1586
      %v1588 = vrot.slane %v494, 1
      %v1589 = vsel %vm887, %v1586, %v1588
      %v1590 = vrot.slane %v495, 1
      %v1591 = vrot.slane %v496, 1
      %v1592 = vsel %vm887, %v1590, %v1591
      %v1593 = vrot.slane %v497, 1
      %v1594 = vsel %vm887, %v1591, %v1593
      %v1595 = vrot.slane %v498, 1
      %v1596 = vsel %vm887, %v1593, %v1595
      %v1597 = vrot.slane %v499, 1
      %v1598 = vsel %vm887, %v1595, %v1597
      %v1599 = vrot.slane %v500, 1
      %v1600 = vsel %vm887, %v1597, %v1599
      %v1601 = vrot.slane %v501, 1
      %v1602 = vsel %vm887, %v1599, %v1601
      %v1988 = vmax.f32 %v117, %v890
      %v1989 = vmax.f32 %v118, %v892
      %v1990 = vmax.f32 %v119, %v894
      %v1991 = vmax.f32 %v120, %v896
      %v1992 = vmax.f32 %v121, %v898
      %v1993 = vmax.f32 %v122, %v900
      %v1994 = vmax.f32 %v123, %v899
      %v1995 = vmax.f32 %v124, %v903
      %v1996 = vmax.f32 %v125, %v905
      %v1997 = vmax.f32 %v126, %v907
      %v1998 = vmax.f32 %v127, %v909
      %v1999 = vmax.f32 %v128, %v911
      %v2000 = vmax.f32 %v129, %v913
      %v2001 = vmax.f32 %v130, %v912
      %v2002 = vmax.f32 %v131, %v916
      %v2003 = vmax.f32 %v132, %v918
      %v2004 = vmax.f32 %v133, %v920
      %v2005 = vmax.f32 %v134, %v922
      %v2006 = vmax.f32 %v135, %v924
      %v2007 = vmax.f32 %v136, %v926
      %v2008 = vmax.f32 %v137, %v925
      %v2009 = vmax.f32 %v138, %v929
      %v2010 = vmax.f32 %v139, %v931
      %v2011 = vmax.f32 %v140, %v933
      %v2012 = vmax.f32 %v141, %v935
      %v2013 = vmax.f32 %v142, %v937
      %v2014 = vmax.f32 %v143, %v939
      %v2015 = vmax.f32 %v144, %v938
      %v2016 = vmax.f32 %v145, %v942
      %v2017 = vmax.f32 %v146, %v944
      %v2018 = vmax.f32 %v147, %v946
      %v2019 = vmax.f32 %v148, %v948
      %v2020 = vmax.f32 %v149, %v950
      %v2021 = vmax.f32 %v150, %v952
      %v2022 = vmax.f32 %v151, %v951
      %v2023 = vmax.f32 %v152, %v955
      %v2024 = vmax.f32 %v153, %v957
      %v2025 = vmax.f32 %v154, %v959
      %v2026 = vmax.f32 %v155, %v961
      %v2027 = vmax.f32 %v156, %v963
      %v2028 = vmax.f32 %v157, %v965
      %v2029 = vmax.f32 %v158, %v964
      %v2030 = vmax.f32 %v159, %v968
      %v2031 = vmax.f32 %v160, %v970
      %v2032 = vmax.f32 %v161, %v972
      %v2033 = vmax.f32 %v162, %v974
      %v2034 = vmax.f32 %v163, %v976
      %v2035 = vmax.f32 %v164, %v978
      %v2036 = vmax.f32 %v165, %v977
      %v2037 = vmax.f32 %v166, %v981
      %v2038 = vmax.f32 %v167, %v983
      %v2039 = vmax.f32 %v168, %v985
      %v2040 = vmax.f32 %v169, %v987
      %v2041 = vmax.f32 %v170, %v989
      %v2042 = vmax.f32 %v171, %v991
      %v2043 = vmax.f32 %v172, %v990
      %v2044 = vmax.f32 %v173, %v994
      %v2045 = vmax.f32 %v174, %v996
      %v2046 = vmax.f32 %v175, %v998
      %v2047 = vmax.f32 %v176, %v1000
      %v2048 = vmax.f32 %v177, %v1002
      %v2049 = vmax.f32 %v178, %v1004
      %v2050 = vmax.f32 %v179, %v1003
      %v2051 = vmax.f32 %v180, %v1007
      %v2052 = vmax.f32 %v181, %v1009
      %v2053 = vmax.f32 %v182, %v1011
      %v2054 = vmax.f32 %v183, %v1013
      %v2055 = vmax.f32 %v184, %v1015
      %v2056 = vmax.f32 %v185, %v1017
      %v2057 = vmax.f32 %v186, %v1016
      %v2058 = vmax.f32 %v187, %v1020
      %v2059 = vmax.f32 %v188, %v1022
      %v2060 = vmax.f32 %v189, %v1024
      %v2061 = vmax.f32 %v190, %v1026
      %v2062 = vmax.f32 %v191, %v1028
      %v2063 = vmax.f32 %v192, %v1030
      %v2064 = vmax.f32 %v193, %v1029
      %v2065 = vmax.f32 %v194, %v1033
      %v2066 = vmax.f32 %v195, %v1035
      %v2067 = vmax.f32 %v196, %v1037
      %v2068 = vmax.f32 %v197, %v1039
      %v2069 = vmax.f32 %v198, %v1041
      %v2070 = vmax.f32 %v199, %v1043
      %v2071 = vmax.f32 %v200, %v1042
      %v2072 = vmax.f32 %v201, %v1046
      %v2073 = vmax.f32 %v202, %v1048
      %v2074 = vmax.f32 %v203, %v1050
      %v2075 = vmax.f32 %v204, %v1052
      %v2076 = vmax.f32 %v205, %v1054
      %v2077 = vmax.f32 %v206, %v1056
      %v2078 = vmax.f32 %v207, %v1055
      %v2079 = vmax.f32 %v208, %v1059
      %v2080 = vmax.f32 %v209, %v1061
      %v2081 = vmax.f32 %v210, %v1063
      %v2082 = vmax.f32 %v211, %v1065
      %v2083 = vmax.f32 %v212, %v1067
      %v2084 = vmax.f32 %v213, %v1069
      %v2085 = vmax.f32 %v214, %v1068
      %v2086 = vmax.f32 %v215, %v1072
      %v2087 = vmax.f32 %v216, %v1074
      %v2088 = vmax.f32 %v217, %v1076
      %v2089 = vmax.f32 %v218, %v1078
      %v2090 = vmax.f32 %v219, %v1080
      %v2091 = vmax.f32 %v220, %v1082
      %v2092 = vmax.f32 %v221, %v1081
      %v2093 = vmax.f32 %v222, %v1085
      %v2094 = vmax.f32 %v223, %v1087
      %v2095 = vmax.f32 %v224, %v1089
      %v2096 = vmax.f32 %v225, %v1091
      %v2097 = vmax.f32 %v226, %v1093
      %v2098 = vmax.f32 %v227, %v1095
      %v2099 = vmax.f32 %v228, %v1094
      %v2100 = vmax.f32 %v229, %v1098
      %v2101 = vmax.f32 %v230, %v1100
      %v2102 = vmax.f32 %v231, %v1102
      %v2103 = vmax.f32 %v232, %v1104
      %v2104 = vmax.f32 %v233, %v1106
      %v2105 = vmax.f32 %v234, %v1108
      %v2106 = vmax.f32 %v235, %v1107
      %v2107 = vmax.f32 %v236, %v1111
      %v2108 = vmax.f32 %v237, %v1113
      %v2109 = vmax.f32 %v238, %v1115
      %v2110 = vmax.f32 %v239, %v1117
      %v2111 = vmax.f32 %v240, %v1119
      %v2112 = vmax.f32 %v241, %v1121
      %v2113 = vmax.f32 %v242, %v1120
      %v2114 = vmax.f32 %v243, %v1124
      %v2115 = vmax.f32 %v244, %v1126
      %v2116 = vmax.f32 %v245, %v1128
      %v2117 = vmax.f32 %v246, %v1130
      %v2118 = vmax.f32 %v247, %v1132
      %v2119 = vmax.f32 %v248, %v1134
      %v2120 = vmax.f32 %v249, %v1133
      %v2121 = vmax.f32 %v250, %v1137
      %v2122 = vmax.f32 %v251, %v1139
      %v2123 = vmax.f32 %v252, %v1141
      %v2124 = vmax.f32 %v253, %v1143
      %v2125 = vmax.f32 %v254, %v1145
      %v2126 = vmax.f32 %v255, %v1147
      %v2127 = vmax.f32 %v256, %v1146
      %v2128 = vmax.f32 %v257, %v1150
      %v2129 = vmax.f32 %v258, %v1152
      %v2130 = vmax.f32 %v259, %v1154
      %v2131 = vmax.f32 %v260, %v1156
      %v2132 = vmax.f32 %v261, %v1158
      %v2133 = vmax.f32 %v262, %v1160
      %v2134 = vmax.f32 %v263, %v1159
      %v2135 = vmax.f32 %v264, %v1163
      %v2136 = vmax.f32 %v265, %v1165
      %v2137 = vmax.f32 %v266, %v1167
      %v2138 = vmax.f32 %v267, %v1169
      %v2139 = vmax.f32 %v268, %v1171
      %v2140 = vmax.f32 %v269, %v1173
      %v2141 = vmax.f32 %v270, %v1172
      %v2142 = vmax.f32 %v271, %v1176
      %v2143 = vmax.f32 %v272, %v1178
      %v2144 = vmax.f32 %v273, %v1180
      %v2145 = vmax.f32 %v274, %v1182
      %v2146 = vmax.f32 %v275, %v1184
      %v2147 = vmax.f32 %v276, %v1186
      %v2148 = vmax.f32 %v277, %v1185
      %v2149 = vmax.f32 %v278, %v1189
      %v2150 = vmax.f32 %v279, %v1191
      %v2151 = vmax.f32 %v280, %v1193
      %v2152 = vmax.f32 %v281, %v1195
      %v2153 = vmax.f32 %v282, %v1197
      %v2154 = vmax.f32 %v283, %v1199
      %v2155 = vmax.f32 %v284, %v1198
      %v2156 = vmax.f32 %v285, %v1202
      %v2157 = vmax.f32 %v286, %v1204
      %v2158 = vmax.f32 %v287, %v1206
      %v2159 = vmax.f32 %v288, %v1208
      %v2160 = vmax.f32 %v289, %v1210
      %v2161 = vmax.f32 %v290, %v1212
      %v2162 = vmax.f32 %v291, %v1211
      %v2163 = vmax.f32 %v292, %v1215
      %v2164 = vmax.f32 %v293, %v1217
      %v2165 = vmax.f32 %v294, %v1219
      %v2166 = vmax.f32 %v295, %v1221
      %v2167 = vmax.f32 %v296, %v1223
      %v2168 = vmax.f32 %v297, %v1225
      %v2169 = vmax.f32 %v298, %v1224
      %v2170 = vmax.f32 %v299, %v1228
      %v2171 = vmax.f32 %v300, %v1230
      %v2172 = vmax.f32 %v301, %v1232
      %v2173 = vmax.f32 %v302, %v1234
      %v2174 = vmax.f32 %v303, %v1236
      %v2175 = vmax.f32 %v304, %v1238
      %v2176 = vmax.f32 %v305, %v1237
      %v2177 = vmax.f32 %v306, %v1241
      %v2178 = vmax.f32 %v307, %v1243
      %v2179 = vmax.f32 %v308, %v1245
      %v2180 = vmax.f32 %v309, %v1247
      %v2181 = vmax.f32 %v310, %v1249
      %v2182 = vmax.f32 %v311, %v1251
      %v2183 = vmax.f32 %v312, %v1250
      %v2184 = vmax.f32 %v313, %v1254
      %v2185 = vmax.f32 %v314, %v1256
      %v2186 = vmax.f32 %v315, %v1258
      %v2187 = vmax.f32 %v316, %v1260
      %v2188 = vmax.f32 %v317, %v1262
      %v2189 = vmax.f32 %v318, %v1264
      %v2190 = vmax.f32 %v319, %v1263
      %v2191 = vmax.f32 %v320, %v1267
      %v2192 = vmax.f32 %v321, %v1269
      %v2193 = vmax.f32 %v322, %v1271
      %v2194 = vmax.f32 %v323, %v1273
      %v2195 = vmax.f32 %v324, %v1275
      %v2196 = vmax.f32 %v325, %v1277
      %v2197 = vmax.f32 %v326, %v1276
      %v2198 = vmax.f32 %v327, %v1280
      %v2199 = vmax.f32 %v328, %v1282
      %v2200 = vmax.f32 %v329, %v1284
      %v2201 = vmax.f32 %v330, %v1286
      %v2202 = vmax.f32 %v331, %v1288
      %v2203 = vmax.f32 %v332, %v1290
      %v2204 = vmax.f32 %v333, %v1289
      %v2205 = vmax.f32 %v334, %v1293
      %v2206 = vmax.f32 %v335, %v1295
      %v2207 = vmax.f32 %v336, %v1297
      %v2208 = vmax.f32 %v337, %v1299
      %v2209 = vmax.f32 %v338, %v1301
      %v2210 = vmax.f32 %v339, %v1303
      %v2211 = vmax.f32 %v340, %v1302
      %v2212 = vmax.f32 %v341, %v1306
      %v2213 = vmax.f32 %v342, %v1308
      %v2214 = vmax.f32 %v343, %v1310
      %v2215 = vmax.f32 %v344, %v1312
      %v2216 = vmax.f32 %v345, %v1314
      %v2217 = vmax.f32 %v346, %v1316
      %v2218 = vmax.f32 %v347, %v1315
      %v2219 = vmax.f32 %v348, %v1319
      %v2220 = vmax.f32 %v349, %v1321
      %v2221 = vmax.f32 %v350, %v1323
      %v2222 = vmax.f32 %v351, %v1325
      %v2223 = vmax.f32 %v352, %v1327
      %v2224 = vmax.f32 %v353, %v1329
      %v2225 = vmax.f32 %v354, %v1328
      %v2226 = vmax.f32 %v355, %v1332
      %v2227 = vmax.f32 %v356, %v1334
      %v2228 = vmax.f32 %v357, %v1336
      %v2229 = vmax.f32 %v358, %v1338
      %v2230 = vmax.f32 %v359, %v1340
      %v2231 = vmax.f32 %v360, %v1342
      %v2232 = vmax.f32 %v361, %v1341
      %v2233 = vmax.f32 %v362, %v1345
      %v2234 = vmax.f32 %v363, %v1347
      %v2235 = vmax.f32 %v364, %v1349
      %v2236 = vmax.f32 %v365, %v1351
      %v2237 = vmax.f32 %v366, %v1353
      %v2238 = vmax.f32 %v367, %v1355
      %v2239 = vmax.f32 %v368, %v1354
      %v2240 = vmax.f32 %v369, %v1358
      %v2241 = vmax.f32 %v370, %v1360
      %v2242 = vmax.f32 %v371, %v1362
      %v2243 = vmax.f32 %v372, %v1364
      %v2244 = vmax.f32 %v373, %v1366
      %v2245 = vmax.f32 %v374, %v1368
      %v2246 = vmax.f32 %v375, %v1367
      %v2247 = vmax.f32 %v376, %v1371
      %v2248 = vmax.f32 %v377, %v1373
      %v2249 = vmax.f32 %v378, %v1375
      %v2250 = vmax.f32 %v379, %v1377
      %v2251 = vmax.f32 %v380, %v1379
      %v2252 = vmax.f32 %v381, %v1381
      %v2253 = vmax.f32 %v382, %v1380
      %v2254 = vmax.f32 %v383, %v1384
      %v2255 = vmax.f32 %v384, %v1386
      %v2256 = vmax.f32 %v385, %v1388
      %v2257 = vmax.f32 %v386, %v1390
      %v2258 = vmax.f32 %v387, %v1392
      %v2259 = vmax.f32 %v388, %v1394
      %v2260 = vmax.f32 %v389, %v1393
      %v2261 = vmax.f32 %v390, %v1397
      %v2262 = vmax.f32 %v391, %v1399
      %v2263 = vmax.f32 %v392, %v1401
      %v2264 = vmax.f32 %v393, %v1403
      %v2265 = vmax.f32 %v394, %v1405
      %v2266 = vmax.f32 %v395, %v1407
      %v2267 = vmax.f32 %v396, %v1406
      %v2268 = vmax.f32 %v397, %v1410
      %v2269 = vmax.f32 %v398, %v1412
      %v2270 = vmax.f32 %v399, %v1414
      %v2271 = vmax.f32 %v400, %v1416
      %v2272 = vmax.f32 %v401, %v1418
      %v2273 = vmax.f32 %v402, %v1420
      %v2274 = vmax.f32 %v403, %v1419
      %v2275 = vmax.f32 %v404, %v1423
      %v2276 = vmax.f32 %v405, %v1425
      %v2277 = vmax.f32 %v406, %v1427
      %v2278 = vmax.f32 %v407, %v1429
      %v2279 = vmax.f32 %v408, %v1431
      %v2280 = vmax.f32 %v409, %v1433
      %v2281 = vmax.f32 %v410, %v1432
      %v2282 = vmax.f32 %v411, %v1436
      %v2283 = vmax.f32 %v412, %v1438
      %v2284 = vmax.f32 %v413, %v1440
      %v2285 = vmax.f32 %v414, %v1442
      %v2286 = vmax.f32 %v415, %v1444
      %v2287 = vmax.f32 %v416, %v1446
      %v2288 = vmax.f32 %v417, %v1445
      %v2289 = vmax.f32 %v418, %v1449
      %v2290 = vmax.f32 %v419, %v1451
      %v2291 = vmax.f32 %v420, %v1453
      %v2292 = vmax.f32 %v421, %v1455
      %v2293 = vmax.f32 %v422, %v1457
      %v2294 = vmax.f32 %v423, %v1459
      %v2295 = vmax.f32 %v424, %v1458
      %v2296 = vmax.f32 %v425, %v1462
      %v2297 = vmax.f32 %v426, %v1464
      %v2298 = vmax.f32 %v427, %v1466
      %v2299 = vmax.f32 %v428, %v1468
      %v2300 = vmax.f32 %v429, %v1470
      %v2301 = vmax.f32 %v430, %v1472
      %v2302 = vmax.f32 %v431, %v1471
      %v2303 = vmax.f32 %v432, %v1475
      %v2304 = vmax.f32 %v433, %v1477
      %v2305 = vmax.f32 %v434, %v1479
      %v2306 = vmax.f32 %v435, %v1481
      %v2307 = vmax.f32 %v436, %v1483
      %v2308 = vmax.f32 %v437, %v1485
      %v2309 = vmax.f32 %v438, %v1484
      %v2310 = vmax.f32 %v439, %v1488
      %v2311 = vmax.f32 %v440, %v1490
      %v2312 = vmax.f32 %v441, %v1492
      %v2313 = vmax.f32 %v442, %v1494
      %v2314 = vmax.f32 %v443, %v1496
      %v2315 = vmax.f32 %v444, %v1498
      %v2316 = vmax.f32 %v445, %v1497
      %v2317 = vmax.f32 %v446, %v1501
      %v2318 = vmax.f32 %v447, %v1503
      %v2319 = vmax.f32 %v448, %v1505
      %v2320 = vmax.f32 %v449, %v1507
      %v2321 = vmax.f32 %v450, %v1509
      %v2322 = vmax.f32 %v451, %v1511
      %v2323 = vmax.f32 %v452, %v1510
      %v2324 = vmax.f32 %v453, %v1514
      %v2325 = vmax.f32 %v454, %v1516
      %v2326 = vmax.f32 %v455, %v1518
      %v2327 = vmax.f32 %v456, %v1520
      %v2328 = vmax.f32 %v457, %v1522
      %v2329 = vmax.f32 %v458, %v1524
      %v2330 = vmax.f32 %v459, %v1523
      %v2331 = vmax.f32 %v460, %v1527
      %v2332 = vmax.f32 %v461, %v1529
      %v2333 = vmax.f32 %v462, %v1531
      %v2334 = vmax.f32 %v463, %v1533
      %v2335 = vmax.f32 %v464, %v1535
      %v2336 = vmax.f32 %v465, %v1537
      %v2337 = vmax.f32 %v466, %v1536
      %v2338 = vmax.f32 %v467, %v1540
      %v2339 = vmax.f32 %v468, %v1542
      %v2340 = vmax.f32 %v469, %v1544
      %v2341 = vmax.f32 %v470, %v1546
      %v2342 = vmax.f32 %v471, %v1548
      %v2343 = vmax.f32 %v472, %v1550
      %v2344 = vmax.f32 %v473, %v1549
      %v2345 = vmax.f32 %v474, %v1553
      %v2346 = vmax.f32 %v475, %v1555
      %v2347 = vmax.f32 %v476, %v1557
      %v2348 = vmax.f32 %v477, %v1559
      %v2349 = vmax.f32 %v478, %v1561
      %v2350 = vmax.f32 %v479, %v1563
      %v2351 = vmax.f32 %v480, %v1562
      %v2352 = vmax.f32 %v481, %v1566
      %v2353 = vmax.f32 %v482, %v1568
      %v2354 = vmax.f32 %v483, %v1570
      %v2355 = vmax.f32 %v484, %v1572
      %v2356 = vmax.f32 %v485, %v1574
      %v2357 = vmax.f32 %v486, %v1576
      %v2358 = vmax.f32 %v487, %v1575
      %v2359 = vmax.f32 %v488, %v1579
      %v2360 = vmax.f32 %v489, %v1581
      %v2361 = vmax.f32 %v490, %v1583
      %v2362 = vmax.f32 %v491, %v1585
      %v2363 = vmax.f32 %v492, %v1587
      %v2364 = vmax.f32 %v493, %v1589
      %v2365 = vmax.f32 %v494, %v1588
      %v2366 = vmax.f32 %v495, %v1592
      %v2367 = vmax.f32 %v496, %v1594
      %v2368 = vmax.f32 %v497, %v1596
      %v2369 = vmax.f32 %v498, %v1598
      %v2370 = vmax.f32 %v499, %v1600
      %v2371 = vmax.f32 %v500, %v1602
      %v2372 = vmax.f32 %v501, %v1601
      %vm2373 = vcmask 1045504
      %v2374 = vrot.slane %v117, 2
      %v2375 = vrot.slane %v118, 2
      %v2376 = vsel %vm2373, %v2374, %v2375
      %v2377 = vrot.slane %v119, 2
      %v2378 = vsel %vm2373, %v2375, %v2377
      %v2379 = vrot.slane %v120, 2
      %v2380 = vsel %vm2373, %v2377, %v2379
      %v2381 = vrot.slane %v121, 2
      %v2382 = vsel %vm2373, %v2379, %v2381
      %v2383 = vrot.slane %v122, 2
      %v2384 = vsel %vm2373, %v2381, %v2383
      %v2385 = vrot.slane %v123, 2
      %v2386 = vsel %vm2373, %v2383, %v2385
      %v2387 = vrot.slane %v124, 2
      %v2388 = vrot.slane %v125, 2
      %v2389 = vsel %vm2373, %v2387, %v2388
      %v2390 = vrot.slane %v126, 2
      %v2391 = vsel %vm2373, %v2388, %v2390
      %v2392 = vrot.slane %v127, 2
      %v2393 = vsel %vm2373, %v2390, %v2392
      %v2394 = vrot.slane %v128, 2
      %v2395 = vsel %vm2373, %v2392, %v2394
      %v2396 = vrot.slane %v129, 2
      %v2397 = vsel %vm2373, %v2394, %v2396
      %v2398 = vrot.slane %v130, 2
      %v2399 = vsel %vm2373, %v2396, %v2398
      %v2400 = vrot.slane %v131, 2
      %v2401 = vrot.slane %v132, 2
      %v2402 = vsel %vm2373, %v2400, %v2401
      %v2403 = vrot.slane %v133, 2
      %v2404 = vsel %vm2373, %v2401, %v2403
      %v2405 = vrot.slane %v134, 2
      %v2406 = vsel %vm2373, %v2403, %v2405
      %v2407 = vrot.slane %v135, 2
      %v2408 = vsel %vm2373, %v2405, %v2407
      %v2409 = vrot.slane %v136, 2
      %v2410 = vsel %vm2373, %v2407, %v2409
      %v2411 = vrot.slane %v137, 2
      %v2412 = vsel %vm2373, %v2409, %v2411
      %v2413 = vrot.slane %v138, 2
      %v2414 = vrot.slane %v139, 2
      %v2415 = vsel %vm2373, %v2413, %v2414
      %v2416 = vrot.slane %v140, 2
      %v2417 = vsel %vm2373, %v2414, %v2416
      %v2418 = vrot.slane %v141, 2
      %v2419 = vsel %vm2373, %v2416, %v2418
      %v2420 = vrot.slane %v142, 2
      %v2421 = vsel %vm2373, %v2418, %v2420
      %v2422 = vrot.slane %v143, 2
      %v2423 = vsel %vm2373, %v2420, %v2422
      %v2424 = vrot.slane %v144, 2
      %v2425 = vsel %vm2373, %v2422, %v2424
      %v2426 = vrot.slane %v145, 2
      %v2427 = vrot.slane %v146, 2
      %v2428 = vsel %vm2373, %v2426, %v2427
      %v2429 = vrot.slane %v147, 2
      %v2430 = vsel %vm2373, %v2427, %v2429
      %v2431 = vrot.slane %v148, 2
      %v2432 = vsel %vm2373, %v2429, %v2431
      %v2433 = vrot.slane %v149, 2
      %v2434 = vsel %vm2373, %v2431, %v2433
      %v2435 = vrot.slane %v150, 2
      %v2436 = vsel %vm2373, %v2433, %v2435
      %v2437 = vrot.slane %v151, 2
      %v2438 = vsel %vm2373, %v2435, %v2437
      %v2439 = vrot.slane %v152, 2
      %v2440 = vrot.slane %v153, 2
      %v2441 = vsel %vm2373, %v2439, %v2440
      %v2442 = vrot.slane %v154, 2
      %v2443 = vsel %vm2373, %v2440, %v2442
      %v2444 = vrot.slane %v155, 2
      %v2445 = vsel %vm2373, %v2442, %v2444
      %v2446 = vrot.slane %v156, 2
      %v2447 = vsel %vm2373, %v2444, %v2446
      %v2448 = vrot.slane %v157, 2
      %v2449 = vsel %vm2373, %v2446, %v2448
      %v2450 = vrot.slane %v158, 2
      %v2451 = vsel %vm2373, %v2448, %v2450
      %v2452 = vrot.slane %v159, 2
      %v2453 = vrot.slane %v160, 2
      %v2454 = vsel %vm2373, %v2452, %v2453
      %v2455 = vrot.slane %v161, 2
      %v2456 = vsel %vm2373, %v2453, %v2455
      %v2457 = vrot.slane %v162, 2
      %v2458 = vsel %vm2373, %v2455, %v2457
      %v2459 = vrot.slane %v163, 2
      %v2460 = vsel %vm2373, %v2457, %v2459
      %v2461 = vrot.slane %v164, 2
      %v2462 = vsel %vm2373, %v2459, %v2461
      %v2463 = vrot.slane %v165, 2
      %v2464 = vsel %vm2373, %v2461, %v2463
      %v2465 = vrot.slane %v166, 2
      %v2466 = vrot.slane %v167, 2
      %v2467 = vsel %vm2373, %v2465, %v2466
      %v2468 = vrot.slane %v168, 2
      %v2469 = vsel %vm2373, %v2466, %v2468
      %v2470 = vrot.slane %v169, 2
      %v2471 = vsel %vm2373, %v2468, %v2470
      %v2472 = vrot.slane %v170, 2
      %v2473 = vsel %vm2373, %v2470, %v2472
      %v2474 = vrot.slane %v171, 2
      %v2475 = vsel %vm2373, %v2472, %v2474
      %v2476 = vrot.slane %v172, 2
      %v2477 = vsel %vm2373, %v2474, %v2476
      %v2478 = vrot.slane %v173, 2
      %v2479 = vrot.slane %v174, 2
      %v2480 = vsel %vm2373, %v2478, %v2479
      %v2481 = vrot.slane %v175, 2
      %v2482 = vsel %vm2373, %v2479, %v2481
      %v2483 = vrot.slane %v176, 2
      %v2484 = vsel %vm2373, %v2481, %v2483
      %v2485 = vrot.slane %v177, 2
      %v2486 = vsel %vm2373, %v2483, %v2485
      %v2487 = vrot.slane %v178, 2
      %v2488 = vsel %vm2373, %v2485, %v2487
      %v2489 = vrot.slane %v179, 2
      %v2490 = vsel %vm2373, %v2487, %v2489
      %v2491 = vrot.slane %v180, 2
      %v2492 = vrot.slane %v181, 2
      %v2493 = vsel %vm2373, %v2491, %v2492
      %v2494 = vrot.slane %v182, 2
      %v2495 = vsel %vm2373, %v2492, %v2494
      %v2496 = vrot.slane %v183, 2
      %v2497 = vsel %vm2373, %v2494, %v2496
      %v2498 = vrot.slane %v184, 2
      %v2499 = vsel %vm2373, %v2496, %v2498
      %v2500 = vrot.slane %v185, 2
      %v2501 = vsel %vm2373, %v2498, %v2500
      %v2502 = vrot.slane %v186, 2
      %v2503 = vsel %vm2373, %v2500, %v2502
      %v2504 = vrot.slane %v187, 2
      %v2505 = vrot.slane %v188, 2
      %v2506 = vsel %vm2373, %v2504, %v2505
      %v2507 = vrot.slane %v189, 2
      %v2508 = vsel %vm2373, %v2505, %v2507
      %v2509 = vrot.slane %v190, 2
      %v2510 = vsel %vm2373, %v2507, %v2509
      %v2511 = vrot.slane %v191, 2
      %v2512 = vsel %vm2373, %v2509, %v2511
      %v2513 = vrot.slane %v192, 2
      %v2514 = vsel %vm2373, %v2511, %v2513
      %v2515 = vrot.slane %v193, 2
      %v2516 = vsel %vm2373, %v2513, %v2515
      %v2517 = vrot.slane %v194, 2
      %v2518 = vrot.slane %v195, 2
      %v2519 = vsel %vm2373, %v2517, %v2518
      %v2520 = vrot.slane %v196, 2
      %v2521 = vsel %vm2373, %v2518, %v2520
      %v2522 = vrot.slane %v197, 2
      %v2523 = vsel %vm2373, %v2520, %v2522
      %v2524 = vrot.slane %v198, 2
      %v2525 = vsel %vm2373, %v2522, %v2524
      %v2526 = vrot.slane %v199, 2
      %v2527 = vsel %vm2373, %v2524, %v2526
      %v2528 = vrot.slane %v200, 2
      %v2529 = vsel %vm2373, %v2526, %v2528
      %v2530 = vrot.slane %v201, 2
      %v2531 = vrot.slane %v202, 2
      %v2532 = vsel %vm2373, %v2530, %v2531
      %v2533 = vrot.slane %v203, 2
      %v2534 = vsel %vm2373, %v2531, %v2533
      %v2535 = vrot.slane %v204, 2
      %v2536 = vsel %vm2373, %v2533, %v2535
      %v2537 = vrot.slane %v205, 2
      %v2538 = vsel %vm2373, %v2535, %v2537
      %v2539 = vrot.slane %v206, 2
      %v2540 = vsel %vm2373, %v2537, %v2539
      %v2541 = vrot.slane %v207, 2
      %v2542 = vsel %vm2373, %v2539, %v2541
      %v2543 = vrot.slane %v208, 2
      %v2544 = vrot.slane %v209, 2
      %v2545 = vsel %vm2373, %v2543, %v2544
      %v2546 = vrot.slane %v210, 2
      %v2547 = vsel %vm2373, %v2544, %v2546
      %v2548 = vrot.slane %v211, 2
      %v2549 = vsel %vm2373, %v2546, %v2548
      %v2550 = vrot.slane %v212, 2
      %v2551 = vsel %vm2373, %v2548, %v2550
      %v2552 = vrot.slane %v213, 2
      %v2553 = vsel %vm2373, %v2550, %v2552
      %v2554 = vrot.slane %v214, 2
      %v2555 = vsel %vm2373, %v2552, %v2554
      %v2556 = vrot.slane %v215, 2
      %v2557 = vrot.slane %v216, 2
      %v2558 = vsel %vm2373, %v2556, %v2557
      %v2559 = vrot.slane %v217, 2
      %v2560 = vsel %vm2373, %v2557, %v2559
      %v2561 = vrot.slane %v218, 2
      %v2562 = vsel %vm2373, %v2559, %v2561
      %v2563 = vrot.slane %v219, 2
      %v2564 = vsel %vm2373, %v2561, %v2563
      %v2565 = vrot.slane %v220, 2
      %v2566 = vsel %vm2373, %v2563, %v2565
      %v2567 = vrot.slane %v221, 2
      %v2568 = vsel %vm2373, %v2565, %v2567
      %v2569 = vrot.slane %v222, 2
      %v2570 = vrot.slane %v223, 2
      %v2571 = vsel %vm2373, %v2569, %v2570
      %v2572 = vrot.slane %v224, 2
      %v2573 = vsel %vm2373, %v2570, %v2572
      %v2574 = vrot.slane %v225, 2
      %v2575 = vsel %vm2373, %v2572, %v2574
      %v2576 = vrot.slane %v226, 2
      %v2577 = vsel %vm2373, %v2574, %v2576
      %v2578 = vrot.slane %v227, 2
      %v2579 = vsel %vm2373, %v2576, %v2578
      %v2580 = vrot.slane %v228, 2
      %v2581 = vsel %vm2373, %v2578, %v2580
      %v2582 = vrot.slane %v229, 2
      %v2583 = vrot.slane %v230, 2
      %v2584 = vsel %vm2373, %v2582, %v2583
      %v2585 = vrot.slane %v231, 2
      %v2586 = vsel %vm2373, %v2583, %v2585
      %v2587 = vrot.slane %v232, 2
      %v2588 = vsel %vm2373, %v2585, %v2587
      %v2589 = vrot.slane %v233, 2
      %v2590 = vsel %vm2373, %v2587, %v2589
      %v2591 = vrot.slane %v234, 2
      %v2592 = vsel %vm2373, %v2589, %v2591
      %v2593 = vrot.slane %v235, 2
      %v2594 = vsel %vm2373, %v2591, %v2593
      %v2595 = vrot.slane %v236, 2
      %v2596 = vrot.slane %v237, 2
      %v2597 = vsel %vm2373, %v2595, %v2596
      %v2598 = vrot.slane %v238, 2
      %v2599 = vsel %vm2373, %v2596, %v2598
      %v2600 = vrot.slane %v239, 2
      %v2601 = vsel %vm2373, %v2598, %v2600
      %v2602 = vrot.slane %v240, 2
      %v2603 = vsel %vm2373, %v2600, %v2602
      %v2604 = vrot.slane %v241, 2
      %v2605 = vsel %vm2373, %v2602, %v2604
      %v2606 = vrot.slane %v242, 2
      %v2607 = vsel %vm2373, %v2604, %v2606
      %v2608 = vrot.slane %v243, 2
      %v2609 = vrot.slane %v244, 2
      %v2610 = vsel %vm2373, %v2608, %v2609
      %v2611 = vrot.slane %v245, 2
      %v2612 = vsel %vm2373, %v2609, %v2611
      %v2613 = vrot.slane %v246, 2
      %v2614 = vsel %vm2373, %v2611, %v2613
      %v2615 = vrot.slane %v247, 2
      %v2616 = vsel %vm2373, %v2613, %v2615
      %v2617 = vrot.slane %v248, 2
      %v2618 = vsel %vm2373, %v2615, %v2617
      %v2619 = vrot.slane %v249, 2
      %v2620 = vsel %vm2373, %v2617, %v2619
      %v2621 = vrot.slane %v250, 2
      %v2622 = vrot.slane %v251, 2
      %v2623 = vsel %vm2373, %v2621, %v2622
      %v2624 = vrot.slane %v252, 2
      %v2625 = vsel %vm2373, %v2622, %v2624
      %v2626 = vrot.slane %v253, 2
      %v2627 = vsel %vm2373, %v2624, %v2626
      %v2628 = vrot.slane %v254, 2
      %v2629 = vsel %vm2373, %v2626, %v2628
      %v2630 = vrot.slane %v255, 2
      %v2631 = vsel %vm2373, %v2628, %v2630
      %v2632 = vrot.slane %v256, 2
      %v2633 = vsel %vm2373, %v2630, %v2632
      %v2634 = vrot.slane %v257, 2
      %v2635 = vrot.slane %v258, 2
      %v2636 = vsel %vm2373, %v2634, %v2635
      %v2637 = vrot.slane %v259, 2
      %v2638 = vsel %vm2373, %v2635, %v2637
      %v2639 = vrot.slane %v260, 2
      %v2640 = vsel %vm2373, %v2637, %v2639
      %v2641 = vrot.slane %v261, 2
      %v2642 = vsel %vm2373, %v2639, %v2641
      %v2643 = vrot.slane %v262, 2
      %v2644 = vsel %vm2373, %v2641, %v2643
      %v2645 = vrot.slane %v263, 2
      %v2646 = vsel %vm2373, %v2643, %v2645
      %v2647 = vrot.slane %v264, 2
      %v2648 = vrot.slane %v265, 2
      %v2649 = vsel %vm2373, %v2647, %v2648
      %v2650 = vrot.slane %v266, 2
      %v2651 = vsel %vm2373, %v2648, %v2650
      %v2652 = vrot.slane %v267, 2
      %v2653 = vsel %vm2373, %v2650, %v2652
      %v2654 = vrot.slane %v268, 2
      %v2655 = vsel %vm2373, %v2652, %v2654
      %v2656 = vrot.slane %v269, 2
      %v2657 = vsel %vm2373, %v2654, %v2656
      %v2658 = vrot.slane %v270, 2
      %v2659 = vsel %vm2373, %v2656, %v2658
      %v2660 = vrot.slane %v271, 2
      %v2661 = vrot.slane %v272, 2
      %v2662 = vsel %vm2373, %v2660, %v2661
      %v2663 = vrot.slane %v273, 2
      %v2664 = vsel %vm2373, %v2661, %v2663
      %v2665 = vrot.slane %v274, 2
      %v2666 = vsel %vm2373, %v2663, %v2665
      %v2667 = vrot.slane %v275, 2
      %v2668 = vsel %vm2373, %v2665, %v2667
      %v2669 = vrot.slane %v276, 2
      %v2670 = vsel %vm2373, %v2667, %v2669
      %v2671 = vrot.slane %v277, 2
      %v2672 = vsel %vm2373, %v2669, %v2671
      %v2673 = vrot.slane %v278, 2
      %v2674 = vrot.slane %v279, 2
      %v2675 = vsel %vm2373, %v2673, %v2674
      %v2676 = vrot.slane %v280, 2
      %v2677 = vsel %vm2373, %v2674, %v2676
      %v2678 = vrot.slane %v281, 2
      %v2679 = vsel %vm2373, %v2676, %v2678
      %v2680 = vrot.slane %v282, 2
      %v2681 = vsel %vm2373, %v2678, %v2680
      %v2682 = vrot.slane %v283, 2
      %v2683 = vsel %vm2373, %v2680, %v2682
      %v2684 = vrot.slane %v284, 2
      %v2685 = vsel %vm2373, %v2682, %v2684
      %v2686 = vrot.slane %v285, 2
      %v2687 = vrot.slane %v286, 2
      %v2688 = vsel %vm2373, %v2686, %v2687
      %v2689 = vrot.slane %v287, 2
      %v2690 = vsel %vm2373, %v2687, %v2689
      %v2691 = vrot.slane %v288, 2
      %v2692 = vsel %vm2373, %v2689, %v2691
      %v2693 = vrot.slane %v289, 2
      %v2694 = vsel %vm2373, %v2691, %v2693
      %v2695 = vrot.slane %v290, 2
      %v2696 = vsel %vm2373, %v2693, %v2695
      %v2697 = vrot.slane %v291, 2
      %v2698 = vsel %vm2373, %v2695, %v2697
      %v2699 = vrot.slane %v292, 2
      %v2700 = vrot.slane %v293, 2
      %v2701 = vsel %vm2373, %v2699, %v2700
      %v2702 = vrot.slane %v294, 2
      %v2703 = vsel %vm2373, %v2700, %v2702
      %v2704 = vrot.slane %v295, 2
      %v2705 = vsel %vm2373, %v2702, %v2704
      %v2706 = vrot.slane %v296, 2
      %v2707 = vsel %vm2373, %v2704, %v2706
      %v2708 = vrot.slane %v297, 2
      %v2709 = vsel %vm2373, %v2706, %v2708
      %v2710 = vrot.slane %v298, 2
      %v2711 = vsel %vm2373, %v2708, %v2710
      %v2712 = vrot.slane %v299, 2
      %v2713 = vrot.slane %v300, 2
      %v2714 = vsel %vm2373, %v2712, %v2713
      %v2715 = vrot.slane %v301, 2
      %v2716 = vsel %vm2373, %v2713, %v2715
      %v2717 = vrot.slane %v302, 2
      %v2718 = vsel %vm2373, %v2715, %v2717
      %v2719 = vrot.slane %v303, 2
      %v2720 = vsel %vm2373, %v2717, %v2719
      %v2721 = vrot.slane %v304, 2
      %v2722 = vsel %vm2373, %v2719, %v2721
      %v2723 = vrot.slane %v305, 2
      %v2724 = vsel %vm2373, %v2721, %v2723
      %v2725 = vrot.slane %v306, 2
      %v2726 = vrot.slane %v307, 2
      %v2727 = vsel %vm2373, %v2725, %v2726
      %v2728 = vrot.slane %v308, 2
      %v2729 = vsel %vm2373, %v2726, %v2728
      %v2730 = vrot.slane %v309, 2
      %v2731 = vsel %vm2373, %v2728, %v2730
      %v2732 = vrot.slane %v310, 2
      %v2733 = vsel %vm2373, %v2730, %v2732
      %v2734 = vrot.slane %v311, 2
      %v2735 = vsel %vm2373, %v2732, %v2734
      %v2736 = vrot.slane %v312, 2
      %v2737 = vsel %vm2373, %v2734, %v2736
      %v2738 = vrot.slane %v313, 2
      %v2739 = vrot.slane %v314, 2
      %v2740 = vsel %vm2373, %v2738, %v2739
      %v2741 = vrot.slane %v315, 2
      %v2742 = vsel %vm2373, %v2739, %v2741
      %v2743 = vrot.slane %v316, 2
      %v2744 = vsel %vm2373, %v2741, %v2743
      %v2745 = vrot.slane %v317, 2
      %v2746 = vsel %vm2373, %v2743, %v2745
      %v2747 = vrot.slane %v318, 2
      %v2748 = vsel %vm2373, %v2745, %v2747
      %v2749 = vrot.slane %v319, 2
      %v2750 = vsel %vm2373, %v2747, %v2749
      %v2751 = vrot.slane %v320, 2
      %v2752 = vrot.slane %v321, 2
      %v2753 = vsel %vm2373, %v2751, %v2752
      %v2754 = vrot.slane %v322, 2
      %v2755 = vsel %vm2373, %v2752, %v2754
      %v2756 = vrot.slane %v323, 2
      %v2757 = vsel %vm2373, %v2754, %v2756
      %v2758 = vrot.slane %v324, 2
      %v2759 = vsel %vm2373, %v2756, %v2758
      %v2760 = vrot.slane %v325, 2
      %v2761 = vsel %vm2373, %v2758, %v2760
      %v2762 = vrot.slane %v326, 2
      %v2763 = vsel %vm2373, %v2760, %v2762
      %v2764 = vrot.slane %v327, 2
      %v2765 = vrot.slane %v328, 2
      %v2766 = vsel %vm2373, %v2764, %v2765
      %v2767 = vrot.slane %v329, 2
      %v2768 = vsel %vm2373, %v2765, %v2767
      %v2769 = vrot.slane %v330, 2
      %v2770 = vsel %vm2373, %v2767, %v2769
      %v2771 = vrot.slane %v331, 2
      %v2772 = vsel %vm2373, %v2769, %v2771
      %v2773 = vrot.slane %v332, 2
      %v2774 = vsel %vm2373, %v2771, %v2773
      %v2775 = vrot.slane %v333, 2
      %v2776 = vsel %vm2373, %v2773, %v2775
      %v2777 = vrot.slane %v334, 2
      %v2778 = vrot.slane %v335, 2
      %v2779 = vsel %vm2373, %v2777, %v2778
      %v2780 = vrot.slane %v336, 2
      %v2781 = vsel %vm2373, %v2778, %v2780
      %v2782 = vrot.slane %v337, 2
      %v2783 = vsel %vm2373, %v2780, %v2782
      %v2784 = vrot.slane %v338, 2
      %v2785 = vsel %vm2373, %v2782, %v2784
      %v2786 = vrot.slane %v339, 2
      %v2787 = vsel %vm2373, %v2784, %v2786
      %v2788 = vrot.slane %v340, 2
      %v2789 = vsel %vm2373, %v2786, %v2788
      %v2790 = vrot.slane %v341, 2
      %v2791 = vrot.slane %v342, 2
      %v2792 = vsel %vm2373, %v2790, %v2791
      %v2793 = vrot.slane %v343, 2
      %v2794 = vsel %vm2373, %v2791, %v2793
      %v2795 = vrot.slane %v344, 2
      %v2796 = vsel %vm2373, %v2793, %v2795
      %v2797 = vrot.slane %v345, 2
      %v2798 = vsel %vm2373, %v2795, %v2797
      %v2799 = vrot.slane %v346, 2
      %v2800 = vsel %vm2373, %v2797, %v2799
      %v2801 = vrot.slane %v347, 2
      %v2802 = vsel %vm2373, %v2799, %v2801
      %v2803 = vrot.slane %v348, 2
      %v2804 = vrot.slane %v349, 2
      %v2805 = vsel %vm2373, %v2803, %v2804
      %v2806 = vrot.slane %v350, 2
      %v2807 = vsel %vm2373, %v2804, %v2806
      %v2808 = vrot.slane %v351, 2
      %v2809 = vsel %vm2373, %v2806, %v2808
      %v2810 = vrot.slane %v352, 2
      %v2811 = vsel %vm2373, %v2808, %v2810
      %v2812 = vrot.slane %v353, 2
      %v2813 = vsel %vm2373, %v2810, %v2812
      %v2814 = vrot.slane %v354, 2
      %v2815 = vsel %vm2373, %v2812, %v2814
      %v2816 = vrot.slane %v355, 2
      %v2817 = vrot.slane %v356, 2
      %v2818 = vsel %vm2373, %v2816, %v2817
      %v2819 = vrot.slane %v357, 2
      %v2820 = vsel %vm2373, %v2817, %v2819
      %v2821 = vrot.slane %v358, 2
      %v2822 = vsel %vm2373, %v2819, %v2821
      %v2823 = vrot.slane %v359, 2
      %v2824 = vsel %vm2373, %v2821, %v2823
      %v2825 = vrot.slane %v360, 2
      %v2826 = vsel %vm2373, %v2823, %v2825
      %v2827 = vrot.slane %v361, 2
      %v2828 = vsel %vm2373, %v2825, %v2827
      %v2829 = vrot.slane %v362, 2
      %v2830 = vrot.slane %v363, 2
      %v2831 = vsel %vm2373, %v2829, %v2830
      %v2832 = vrot.slane %v364, 2
      %v2833 = vsel %vm2373, %v2830, %v2832
      %v2834 = vrot.slane %v365, 2
      %v2835 = vsel %vm2373, %v2832, %v2834
      %v2836 = vrot.slane %v366, 2
      %v2837 = vsel %vm2373, %v2834, %v2836
      %v2838 = vrot.slane %v367, 2
      %v2839 = vsel %vm2373, %v2836, %v2838
      %v2840 = vrot.slane %v368, 2
      %v2841 = vsel %vm2373, %v2838, %v2840
      %v2842 = vrot.slane %v369, 2
      %v2843 = vrot.slane %v370, 2
      %v2844 = vsel %vm2373, %v2842, %v2843
      %v2845 = vrot.slane %v371, 2
      %v2846 = vsel %vm2373, %v2843, %v2845
      %v2847 = vrot.slane %v372, 2
      %v2848 = vsel %vm2373, %v2845, %v2847
      %v2849 = vrot.slane %v373, 2
      %v2850 = vsel %vm2373, %v2847, %v2849
      %v2851 = vrot.slane %v374, 2
      %v2852 = vsel %vm2373, %v2849, %v2851
      %v2853 = vrot.slane %v375, 2
      %v2854 = vsel %vm2373, %v2851, %v2853
      %v2855 = vrot.slane %v376, 2
      %v2856 = vrot.slane %v377, 2
      %v2857 = vsel %vm2373, %v2855, %v2856
      %v2858 = vrot.slane %v378, 2
      %v2859 = vsel %vm2373, %v2856, %v2858
      %v2860 = vrot.slane %v379, 2
      %v2861 = vsel %vm2373, %v2858, %v2860
      %v2862 = vrot.slane %v380, 2
      %v2863 = vsel %vm2373, %v2860, %v2862
      %v2864 = vrot.slane %v381, 2
      %v2865 = vsel %vm2373, %v2862, %v2864
      %v2866 = vrot.slane %v382, 2
      %v2867 = vsel %vm2373, %v2864, %v2866
      %v2868 = vrot.slane %v383, 2
      %v2869 = vrot.slane %v384, 2
      %v2870 = vsel %vm2373, %v2868, %v2869
      %v2871 = vrot.slane %v385, 2
      %v2872 = vsel %vm2373, %v2869, %v2871
      %v2873 = vrot.slane %v386, 2
      %v2874 = vsel %vm2373, %v2871, %v2873
      %v2875 = vrot.slane %v387, 2
      %v2876 = vsel %vm2373, %v2873, %v2875
      %v2877 = vrot.slane %v388, 2
      %v2878 = vsel %vm2373, %v2875, %v2877
      %v2879 = vrot.slane %v389, 2
      %v2880 = vsel %vm2373, %v2877, %v2879
      %v2881 = vrot.slane %v390, 2
      %v2882 = vrot.slane %v391, 2
      %v2883 = vsel %vm2373, %v2881, %v2882
      %v2884 = vrot.slane %v392, 2
      %v2885 = vsel %vm2373, %v2882, %v2884
      %v2886 = vrot.slane %v393, 2
      %v2887 = vsel %vm2373, %v2884, %v2886
      %v2888 = vrot.slane %v394, 2
      %v2889 = vsel %vm2373, %v2886, %v2888
      %v2890 = vrot.slane %v395, 2
      %v2891 = vsel %vm2373, %v2888, %v2890
      %v2892 = vrot.slane %v396, 2
      %v2893 = vsel %vm2373, %v2890, %v2892
      %v2894 = vrot.slane %v397, 2
      %v2895 = vrot.slane %v398, 2
      %v2896 = vsel %vm2373, %v2894, %v2895
      %v2897 = vrot.slane %v399, 2
      %v2898 = vsel %vm2373, %v2895, %v2897
      %v2899 = vrot.slane %v400, 2
      %v2900 = vsel %vm2373, %v2897, %v2899
      %v2901 = vrot.slane %v401, 2
      %v2902 = vsel %vm2373, %v2899, %v2901
      %v2903 = vrot.slane %v402, 2
      %v2904 = vsel %vm2373, %v2901, %v2903
      %v2905 = vrot.slane %v403, 2
      %v2906 = vsel %vm2373, %v2903, %v2905
      %v2907 = vrot.slane %v404, 2
      %v2908 = vrot.slane %v405, 2
      %v2909 = vsel %vm2373, %v2907, %v2908
      %v2910 = vrot.slane %v406, 2
      %v2911 = vsel %vm2373, %v2908, %v2910
      %v2912 = vrot.slane %v407, 2
      %v2913 = vsel %vm2373, %v2910, %v2912
      %v2914 = vrot.slane %v408, 2
      %v2915 = vsel %vm2373, %v2912, %v2914
      %v2916 = vrot.slane %v409, 2
      %v2917 = vsel %vm2373, %v2914, %v2916
      %v2918 = vrot.slane %v410, 2
      %v2919 = vsel %vm2373, %v2916, %v2918
      %v2920 = vrot.slane %v411, 2
      %v2921 = vrot.slane %v412, 2
      %v2922 = vsel %vm2373, %v2920, %v2921
      %v2923 = vrot.slane %v413, 2
      %v2924 = vsel %vm2373, %v2921, %v2923
      %v2925 = vrot.slane %v414, 2
      %v2926 = vsel %vm2373, %v2923, %v2925
      %v2927 = vrot.slane %v415, 2
      %v2928 = vsel %vm2373, %v2925, %v2927
      %v2929 = vrot.slane %v416, 2
      %v2930 = vsel %vm2373, %v2927, %v2929
      %v2931 = vrot.slane %v417, 2
      %v2932 = vsel %vm2373, %v2929, %v2931
      %v2933 = vrot.slane %v418, 2
      %v2934 = vrot.slane %v419, 2
      %v2935 = vsel %vm2373, %v2933, %v2934
      %v2936 = vrot.slane %v420, 2
      %v2937 = vsel %vm2373, %v2934, %v2936
      %v2938 = vrot.slane %v421, 2
      %v2939 = vsel %vm2373, %v2936, %v2938
      %v2940 = vrot.slane %v422, 2
      %v2941 = vsel %vm2373, %v2938, %v2940
      %v2942 = vrot.slane %v423, 2
      %v2943 = vsel %vm2373, %v2940, %v2942
      %v2944 = vrot.slane %v424, 2
      %v2945 = vsel %vm2373, %v2942, %v2944
      %v2946 = vrot.slane %v425, 2
      %v2947 = vrot.slane %v426, 2
      %v2948 = vsel %vm2373, %v2946, %v2947
      %v2949 = vrot.slane %v427, 2
      %v2950 = vsel %vm2373, %v2947, %v2949
      %v2951 = vrot.slane %v428, 2
      %v2952 = vsel %vm2373, %v2949, %v2951
      %v2953 = vrot.slane %v429, 2
      %v2954 = vsel %vm2373, %v2951, %v2953
      %v2955 = vrot.slane %v430, 2
      %v2956 = vsel %vm2373, %v2953, %v2955
      %v2957 = vrot.slane %v431, 2
      %v2958 = vsel %vm2373, %v2955, %v2957
      %v2959 = vrot.slane %v432, 2
      %v2960 = vrot.slane %v433, 2
      %v2961 = vsel %vm2373, %v2959, %v2960
      %v2962 = vrot.slane %v434, 2
      %v2963 = vsel %vm2373, %v2960, %v2962
      %v2964 = vrot.slane %v435, 2
      %v2965 = vsel %vm2373, %v2962, %v2964
      %v2966 = vrot.slane %v436, 2
      %v2967 = vsel %vm2373, %v2964, %v2966
      %v2968 = vrot.slane %v437, 2
      %v2969 = vsel %vm2373, %v2966, %v2968
      %v2970 = vrot.slane %v438, 2
      %v2971 = vsel %vm2373, %v2968, %v2970
      %v2972 = vrot.slane %v439, 2
      %v2973 = vrot.slane %v440, 2
      %v2974 = vsel %vm2373, %v2972, %v2973
      %v2975 = vrot.slane %v441, 2
      %v2976 = vsel %vm2373, %v2973, %v2975
      %v2977 = vrot.slane %v442, 2
      %v2978 = vsel %vm2373, %v2975, %v2977
      %v2979 = vrot.slane %v443, 2
      %v2980 = vsel %vm2373, %v2977, %v2979
      %v2981 = vrot.slane %v444, 2
      %v2982 = vsel %vm2373, %v2979, %v2981
      %v2983 = vrot.slane %v445, 2
      %v2984 = vsel %vm2373, %v2981, %v2983
      %v2985 = vrot.slane %v446, 2
      %v2986 = vrot.slane %v447, 2
      %v2987 = vsel %vm2373, %v2985, %v2986
      %v2988 = vrot.slane %v448, 2
      %v2989 = vsel %vm2373, %v2986, %v2988
      %v2990 = vrot.slane %v449, 2
      %v2991 = vsel %vm2373, %v2988, %v2990
      %v2992 = vrot.slane %v450, 2
      %v2993 = vsel %vm2373, %v2990, %v2992
      %v2994 = vrot.slane %v451, 2
      %v2995 = vsel %vm2373, %v2992, %v2994
      %v2996 = vrot.slane %v452, 2
      %v2997 = vsel %vm2373, %v2994, %v2996
      %v2998 = vrot.slane %v453, 2
      %v2999 = vrot.slane %v454, 2
      %v3000 = vsel %vm2373, %v2998, %v2999
      %v3001 = vrot.slane %v455, 2
      %v3002 = vsel %vm2373, %v2999, %v3001
      %v3003 = vrot.slane %v456, 2
      %v3004 = vsel %vm2373, %v3001, %v3003
      %v3005 = vrot.slane %v457, 2
      %v3006 = vsel %vm2373, %v3003, %v3005
      %v3007 = vrot.slane %v458, 2
      %v3008 = vsel %vm2373, %v3005, %v3007
      %v3009 = vrot.slane %v459, 2
      %v3010 = vsel %vm2373, %v3007, %v3009
      %v3011 = vrot.slane %v460, 2
      %v3012 = vrot.slane %v461, 2
      %v3013 = vsel %vm2373, %v3011, %v3012
      %v3014 = vrot.slane %v462, 2
      %v3015 = vsel %vm2373, %v3012, %v3014
      %v3016 = vrot.slane %v463, 2
      %v3017 = vsel %vm2373, %v3014, %v3016
      %v3018 = vrot.slane %v464, 2
      %v3019 = vsel %vm2373, %v3016, %v3018
      %v3020 = vrot.slane %v465, 2
      %v3021 = vsel %vm2373, %v3018, %v3020
      %v3022 = vrot.slane %v466, 2
      %v3023 = vsel %vm2373, %v3020, %v3022
      %v3024 = vrot.slane %v467, 2
      %v3025 = vrot.slane %v468, 2
      %v3026 = vsel %vm2373, %v3024, %v3025
      %v3027 = vrot.slane %v469, 2
      %v3028 = vsel %vm2373, %v3025, %v3027
      %v3029 = vrot.slane %v470, 2
      %v3030 = vsel %vm2373, %v3027, %v3029
      %v3031 = vrot.slane %v471, 2
      %v3032 = vsel %vm2373, %v3029, %v3031
      %v3033 = vrot.slane %v472, 2
      %v3034 = vsel %vm2373, %v3031, %v3033
      %v3035 = vrot.slane %v473, 2
      %v3036 = vsel %vm2373, %v3033, %v3035
      %v3037 = vrot.slane %v474, 2
      %v3038 = vrot.slane %v475, 2
      %v3039 = vsel %vm2373, %v3037, %v3038
      %v3040 = vrot.slane %v476, 2
      %v3041 = vsel %vm2373, %v3038, %v3040
      %v3042 = vrot.slane %v477, 2
      %v3043 = vsel %vm2373, %v3040, %v3042
      %v3044 = vrot.slane %v478, 2
      %v3045 = vsel %vm2373, %v3042, %v3044
      %v3046 = vrot.slane %v479, 2
      %v3047 = vsel %vm2373, %v3044, %v3046
      %v3048 = vrot.slane %v480, 2
      %v3049 = vsel %vm2373, %v3046, %v3048
      %v3050 = vrot.slane %v481, 2
      %v3051 = vrot.slane %v482, 2
      %v3052 = vsel %vm2373, %v3050, %v3051
      %v3053 = vrot.slane %v483, 2
      %v3054 = vsel %vm2373, %v3051, %v3053
      %v3055 = vrot.slane %v484, 2
      %v3056 = vsel %vm2373, %v3053, %v3055
      %v3057 = vrot.slane %v485, 2
      %v3058 = vsel %vm2373, %v3055, %v3057
      %v3059 = vrot.slane %v486, 2
      %v3060 = vsel %vm2373, %v3057, %v3059
      %v3061 = vrot.slane %v487, 2
      %v3062 = vsel %vm2373, %v3059, %v3061
      %v3063 = vrot.slane %v488, 2
      %v3064 = vrot.slane %v489, 2
      %v3065 = vsel %vm2373, %v3063, %v3064
      %v3066 = vrot.slane %v490, 2
      %v3067 = vsel %vm2373, %v3064, %v3066
      %v3068 = vrot.slane %v491, 2
      %v3069 = vsel %vm2373, %v3066, %v3068
      %v3070 = vrot.slane %v492, 2
      %v3071 = vsel %vm2373, %v3068, %v3070
      %v3072 = vrot.slane %v493, 2
      %v3073 = vsel %vm2373, %v3070, %v3072
      %v3074 = vrot.slane %v494, 2
      %v3075 = vsel %vm2373, %v3072, %v3074
      %v3076 = vrot.slane %v495, 2
      %v3077 = vrot.slane %v496, 2
      %v3078 = vsel %vm2373, %v3076, %v3077
      %v3079 = vrot.slane %v497, 2
      %v3080 = vsel %vm2373, %v3077, %v3079
      %v3081 = vrot.slane %v498, 2
      %v3082 = vsel %vm2373, %v3079, %v3081
      %v3083 = vrot.slane %v499, 2
      %v3084 = vsel %vm2373, %v3081, %v3083
      %v3085 = vrot.slane %v500, 2
      %v3086 = vsel %vm2373, %v3083, %v3085
      %v3087 = vrot.slane %v501, 2
      %v3088 = vsel %vm2373, %v3085, %v3087
      %v3474 = vmax.f32 %v1988, %v2376
      %v3475 = vmax.f32 %v1989, %v2378
      %v3476 = vmax.f32 %v1990, %v2380
      %v3477 = vmax.f32 %v1991, %v2382
      %v3478 = vmax.f32 %v1992, %v2384
      %v3479 = vmax.f32 %v1993, %v2386
      %v3480 = vmax.f32 %v1994, %v2385
      %v3481 = vmax.f32 %v1995, %v2389
      %v3482 = vmax.f32 %v1996, %v2391
      %v3483 = vmax.f32 %v1997, %v2393
      %v3484 = vmax.f32 %v1998, %v2395
      %v3485 = vmax.f32 %v1999, %v2397
      %v3486 = vmax.f32 %v2000, %v2399
      %v3487 = vmax.f32 %v2001, %v2398
      %v3488 = vmax.f32 %v2002, %v2402
      %v3489 = vmax.f32 %v2003, %v2404
      %v3490 = vmax.f32 %v2004, %v2406
      %v3491 = vmax.f32 %v2005, %v2408
      %v3492 = vmax.f32 %v2006, %v2410
      %v3493 = vmax.f32 %v2007, %v2412
      %v3494 = vmax.f32 %v2008, %v2411
      %v3495 = vmax.f32 %v2009, %v2415
      %v3496 = vmax.f32 %v2010, %v2417
      %v3497 = vmax.f32 %v2011, %v2419
      %v3498 = vmax.f32 %v2012, %v2421
      %v3499 = vmax.f32 %v2013, %v2423
      %v3500 = vmax.f32 %v2014, %v2425
      %v3501 = vmax.f32 %v2015, %v2424
      %v3502 = vmax.f32 %v2016, %v2428
      %v3503 = vmax.f32 %v2017, %v2430
      %v3504 = vmax.f32 %v2018, %v2432
      %v3505 = vmax.f32 %v2019, %v2434
      %v3506 = vmax.f32 %v2020, %v2436
      %v3507 = vmax.f32 %v2021, %v2438
      %v3508 = vmax.f32 %v2022, %v2437
      %v3509 = vmax.f32 %v2023, %v2441
      %v3510 = vmax.f32 %v2024, %v2443
      %v3511 = vmax.f32 %v2025, %v2445
      %v3512 = vmax.f32 %v2026, %v2447
      %v3513 = vmax.f32 %v2027, %v2449
      %v3514 = vmax.f32 %v2028, %v2451
      %v3515 = vmax.f32 %v2029, %v2450
      %v3516 = vmax.f32 %v2030, %v2454
      %v3517 = vmax.f32 %v2031, %v2456
      %v3518 = vmax.f32 %v2032, %v2458
      %v3519 = vmax.f32 %v2033, %v2460
      %v3520 = vmax.f32 %v2034, %v2462
      %v3521 = vmax.f32 %v2035, %v2464
      %v3522 = vmax.f32 %v2036, %v2463
      %v3523 = vmax.f32 %v2037, %v2467
      %v3524 = vmax.f32 %v2038, %v2469
      %v3525 = vmax.f32 %v2039, %v2471
      %v3526 = vmax.f32 %v2040, %v2473
      %v3527 = vmax.f32 %v2041, %v2475
      %v3528 = vmax.f32 %v2042, %v2477
      %v3529 = vmax.f32 %v2043, %v2476
      %v3530 = vmax.f32 %v2044, %v2480
      %v3531 = vmax.f32 %v2045, %v2482
      %v3532 = vmax.f32 %v2046, %v2484
      %v3533 = vmax.f32 %v2047, %v2486
      %v3534 = vmax.f32 %v2048, %v2488
      %v3535 = vmax.f32 %v2049, %v2490
      %v3536 = vmax.f32 %v2050, %v2489
      %v3537 = vmax.f32 %v2051, %v2493
      %v3538 = vmax.f32 %v2052, %v2495
      %v3539 = vmax.f32 %v2053, %v2497
      %v3540 = vmax.f32 %v2054, %v2499
      %v3541 = vmax.f32 %v2055, %v2501
      %v3542 = vmax.f32 %v2056, %v2503
      %v3543 = vmax.f32 %v2057, %v2502
      %v3544 = vmax.f32 %v2058, %v2506
      %v3545 = vmax.f32 %v2059, %v2508
      %v3546 = vmax.f32 %v2060, %v2510
      %v3547 = vmax.f32 %v2061, %v2512
      %v3548 = vmax.f32 %v2062, %v2514
      %v3549 = vmax.f32 %v2063, %v2516
      %v3550 = vmax.f32 %v2064, %v2515
      %v3551 = vmax.f32 %v2065, %v2519
      %v3552 = vmax.f32 %v2066, %v2521
      %v3553 = vmax.f32 %v2067, %v2523
      %v3554 = vmax.f32 %v2068, %v2525
      %v3555 = vmax.f32 %v2069, %v2527
      %v3556 = vmax.f32 %v2070, %v2529
      %v3557 = vmax.f32 %v2071, %v2528
      %v3558 = vmax.f32 %v2072, %v2532
      %v3559 = vmax.f32 %v2073, %v2534
      %v3560 = vmax.f32 %v2074, %v2536
      %v3561 = vmax.f32 %v2075, %v2538
      %v3562 = vmax.f32 %v2076, %v2540
      %v3563 = vmax.f32 %v2077, %v2542
      %v3564 = vmax.f32 %v2078, %v2541
      %v3565 = vmax.f32 %v2079, %v2545
      %v3566 = vmax.f32 %v2080, %v2547
      %v3567 = vmax.f32 %v2081, %v2549
      %v3568 = vmax.f32 %v2082, %v2551
      %v3569 = vmax.f32 %v2083, %v2553
      %v3570 = vmax.f32 %v2084, %v2555
      %v3571 = vmax.f32 %v2085, %v2554
      %v3572 = vmax.f32 %v2086, %v2558
      %v3573 = vmax.f32 %v2087, %v2560
      %v3574 = vmax.f32 %v2088, %v2562
      %v3575 = vmax.f32 %v2089, %v2564
      %v3576 = vmax.f32 %v2090, %v2566
      %v3577 = vmax.f32 %v2091, %v2568
      %v3578 = vmax.f32 %v2092, %v2567
      %v3579 = vmax.f32 %v2093, %v2571
      %v3580 = vmax.f32 %v2094, %v2573
      %v3581 = vmax.f32 %v2095, %v2575
      %v3582 = vmax.f32 %v2096, %v2577
      %v3583 = vmax.f32 %v2097, %v2579
      %v3584 = vmax.f32 %v2098, %v2581
      %v3585 = vmax.f32 %v2099, %v2580
      %v3586 = vmax.f32 %v2100, %v2584
      %v3587 = vmax.f32 %v2101, %v2586
      %v3588 = vmax.f32 %v2102, %v2588
      %v3589 = vmax.f32 %v2103, %v2590
      %v3590 = vmax.f32 %v2104, %v2592
      %v3591 = vmax.f32 %v2105, %v2594
      %v3592 = vmax.f32 %v2106, %v2593
      %v3593 = vmax.f32 %v2107, %v2597
      %v3594 = vmax.f32 %v2108, %v2599
      %v3595 = vmax.f32 %v2109, %v2601
      %v3596 = vmax.f32 %v2110, %v2603
      %v3597 = vmax.f32 %v2111, %v2605
      %v3598 = vmax.f32 %v2112, %v2607
      %v3599 = vmax.f32 %v2113, %v2606
      %v3600 = vmax.f32 %v2114, %v2610
      %v3601 = vmax.f32 %v2115, %v2612
      %v3602 = vmax.f32 %v2116, %v2614
      %v3603 = vmax.f32 %v2117, %v2616
      %v3604 = vmax.f32 %v2118, %v2618
      %v3605 = vmax.f32 %v2119, %v2620
      %v3606 = vmax.f32 %v2120, %v2619
      %v3607 = vmax.f32 %v2121, %v2623
      %v3608 = vmax.f32 %v2122, %v2625
      %v3609 = vmax.f32 %v2123, %v2627
      %v3610 = vmax.f32 %v2124, %v2629
      %v3611 = vmax.f32 %v2125, %v2631
      %v3612 = vmax.f32 %v2126, %v2633
      %v3613 = vmax.f32 %v2127, %v2632
      %v3614 = vmax.f32 %v2128, %v2636
      %v3615 = vmax.f32 %v2129, %v2638
      %v3616 = vmax.f32 %v2130, %v2640
      %v3617 = vmax.f32 %v2131, %v2642
      %v3618 = vmax.f32 %v2132, %v2644
      %v3619 = vmax.f32 %v2133, %v2646
      %v3620 = vmax.f32 %v2134, %v2645
      %v3621 = vmax.f32 %v2135, %v2649
      %v3622 = vmax.f32 %v2136, %v2651
      %v3623 = vmax.f32 %v2137, %v2653
      %v3624 = vmax.f32 %v2138, %v2655
      %v3625 = vmax.f32 %v2139, %v2657
      %v3626 = vmax.f32 %v2140, %v2659
      %v3627 = vmax.f32 %v2141, %v2658
      %v3628 = vmax.f32 %v2142, %v2662
      %v3629 = vmax.f32 %v2143, %v2664
      %v3630 = vmax.f32 %v2144, %v2666
      %v3631 = vmax.f32 %v2145, %v2668
      %v3632 = vmax.f32 %v2146, %v2670
      %v3633 = vmax.f32 %v2147, %v2672
      %v3634 = vmax.f32 %v2148, %v2671
      %v3635 = vmax.f32 %v2149, %v2675
      %v3636 = vmax.f32 %v2150, %v2677
      %v3637 = vmax.f32 %v2151, %v2679
      %v3638 = vmax.f32 %v2152, %v2681
      %v3639 = vmax.f32 %v2153, %v2683
      %v3640 = vmax.f32 %v2154, %v2685
      %v3641 = vmax.f32 %v2155, %v2684
      %v3642 = vmax.f32 %v2156, %v2688
      %v3643 = vmax.f32 %v2157, %v2690
      %v3644 = vmax.f32 %v2158, %v2692
      %v3645 = vmax.f32 %v2159, %v2694
      %v3646 = vmax.f32 %v2160, %v2696
      %v3647 = vmax.f32 %v2161, %v2698
      %v3648 = vmax.f32 %v2162, %v2697
      %v3649 = vmax.f32 %v2163, %v2701
      %v3650 = vmax.f32 %v2164, %v2703
      %v3651 = vmax.f32 %v2165, %v2705
      %v3652 = vmax.f32 %v2166, %v2707
      %v3653 = vmax.f32 %v2167, %v2709
      %v3654 = vmax.f32 %v2168, %v2711
      %v3655 = vmax.f32 %v2169, %v2710
      %v3656 = vmax.f32 %v2170, %v2714
      %v3657 = vmax.f32 %v2171, %v2716
      %v3658 = vmax.f32 %v2172, %v2718
      %v3659 = vmax.f32 %v2173, %v2720
      %v3660 = vmax.f32 %v2174, %v2722
      %v3661 = vmax.f32 %v2175, %v2724
      %v3662 = vmax.f32 %v2176, %v2723
      %v3663 = vmax.f32 %v2177, %v2727
      %v3664 = vmax.f32 %v2178, %v2729
      %v3665 = vmax.f32 %v2179, %v2731
      %v3666 = vmax.f32 %v2180, %v2733
      %v3667 = vmax.f32 %v2181, %v2735
      %v3668 = vmax.f32 %v2182, %v2737
      %v3669 = vmax.f32 %v2183, %v2736
      %v3670 = vmax.f32 %v2184, %v2740
      %v3671 = vmax.f32 %v2185, %v2742
      %v3672 = vmax.f32 %v2186, %v2744
      %v3673 = vmax.f32 %v2187, %v2746
      %v3674 = vmax.f32 %v2188, %v2748
      %v3675 = vmax.f32 %v2189, %v2750
      %v3676 = vmax.f32 %v2190, %v2749
      %v3677 = vmax.f32 %v2191, %v2753
      %v3678 = vmax.f32 %v2192, %v2755
      %v3679 = vmax.f32 %v2193, %v2757
      %v3680 = vmax.f32 %v2194, %v2759
      %v3681 = vmax.f32 %v2195, %v2761
      %v3682 = vmax.f32 %v2196, %v2763
      %v3683 = vmax.f32 %v2197, %v2762
      %v3684 = vmax.f32 %v2198, %v2766
      %v3685 = vmax.f32 %v2199, %v2768
      %v3686 = vmax.f32 %v2200, %v2770
      %v3687 = vmax.f32 %v2201, %v2772
      %v3688 = vmax.f32 %v2202, %v2774
      %v3689 = vmax.f32 %v2203, %v2776
      %v3690 = vmax.f32 %v2204, %v2775
      %v3691 = vmax.f32 %v2205, %v2779
      %v3692 = vmax.f32 %v2206, %v2781
      %v3693 = vmax.f32 %v2207, %v2783
      %v3694 = vmax.f32 %v2208, %v2785
      %v3695 = vmax.f32 %v2209, %v2787
      %v3696 = vmax.f32 %v2210, %v2789
      %v3697 = vmax.f32 %v2211, %v2788
      %v3698 = vmax.f32 %v2212, %v2792
      %v3699 = vmax.f32 %v2213, %v2794
      %v3700 = vmax.f32 %v2214, %v2796
      %v3701 = vmax.f32 %v2215, %v2798
      %v3702 = vmax.f32 %v2216, %v2800
      %v3703 = vmax.f32 %v2217, %v2802
      %v3704 = vmax.f32 %v2218, %v2801
      %v3705 = vmax.f32 %v2219, %v2805
      %v3706 = vmax.f32 %v2220, %v2807
      %v3707 = vmax.f32 %v2221, %v2809
      %v3708 = vmax.f32 %v2222, %v2811
      %v3709 = vmax.f32 %v2223, %v2813
      %v3710 = vmax.f32 %v2224, %v2815
      %v3711 = vmax.f32 %v2225, %v2814
      %v3712 = vmax.f32 %v2226, %v2818
      %v3713 = vmax.f32 %v2227, %v2820
      %v3714 = vmax.f32 %v2228, %v2822
      %v3715 = vmax.f32 %v2229, %v2824
      %v3716 = vmax.f32 %v2230, %v2826
      %v3717 = vmax.f32 %v2231, %v2828
      %v3718 = vmax.f32 %v2232, %v2827
      %v3719 = vmax.f32 %v2233, %v2831
      %v3720 = vmax.f32 %v2234, %v2833
      %v3721 = vmax.f32 %v2235, %v2835
      %v3722 = vmax.f32 %v2236, %v2837
      %v3723 = vmax.f32 %v2237, %v2839
      %v3724 = vmax.f32 %v2238, %v2841
      %v3725 = vmax.f32 %v2239, %v2840
      %v3726 = vmax.f32 %v2240, %v2844
      %v3727 = vmax.f32 %v2241, %v2846
      %v3728 = vmax.f32 %v2242, %v2848
      %v3729 = vmax.f32 %v2243, %v2850
      %v3730 = vmax.f32 %v2244, %v2852
      %v3731 = vmax.f32 %v2245, %v2854
      %v3732 = vmax.f32 %v2246, %v2853
      %v3733 = vmax.f32 %v2247, %v2857
      %v3734 = vmax.f32 %v2248, %v2859
      %v3735 = vmax.f32 %v2249, %v2861
      %v3736 = vmax.f32 %v2250, %v2863
      %v3737 = vmax.f32 %v2251, %v2865
      %v3738 = vmax.f32 %v2252, %v2867
      %v3739 = vmax.f32 %v2253, %v2866
      %v3740 = vmax.f32 %v2254, %v2870
      %v3741 = vmax.f32 %v2255, %v2872
      %v3742 = vmax.f32 %v2256, %v2874
      %v3743 = vmax.f32 %v2257, %v2876
      %v3744 = vmax.f32 %v2258, %v2878
      %v3745 = vmax.f32 %v2259, %v2880
      %v3746 = vmax.f32 %v2260, %v2879
      %v3747 = vmax.f32 %v2261, %v2883
      %v3748 = vmax.f32 %v2262, %v2885
      %v3749 = vmax.f32 %v2263, %v2887
      %v3750 = vmax.f32 %v2264, %v2889
      %v3751 = vmax.f32 %v2265, %v2891
      %v3752 = vmax.f32 %v2266, %v2893
      %v3753 = vmax.f32 %v2267, %v2892
      %v3754 = vmax.f32 %v2268, %v2896
      %v3755 = vmax.f32 %v2269, %v2898
      %v3756 = vmax.f32 %v2270, %v2900
      %v3757 = vmax.f32 %v2271, %v2902
      %v3758 = vmax.f32 %v2272, %v2904
      %v3759 = vmax.f32 %v2273, %v2906
      %v3760 = vmax.f32 %v2274, %v2905
      %v3761 = vmax.f32 %v2275, %v2909
      %v3762 = vmax.f32 %v2276, %v2911
      %v3763 = vmax.f32 %v2277, %v2913
      %v3764 = vmax.f32 %v2278, %v2915
      %v3765 = vmax.f32 %v2279, %v2917
      %v3766 = vmax.f32 %v2280, %v2919
      %v3767 = vmax.f32 %v2281, %v2918
      %v3768 = vmax.f32 %v2282, %v2922
      %v3769 = vmax.f32 %v2283, %v2924
      %v3770 = vmax.f32 %v2284, %v2926
      %v3771 = vmax.f32 %v2285, %v2928
      %v3772 = vmax.f32 %v2286, %v2930
      %v3773 = vmax.f32 %v2287, %v2932
      %v3774 = vmax.f32 %v2288, %v2931
      %v3775 = vmax.f32 %v2289, %v2935
      %v3776 = vmax.f32 %v2290, %v2937
      %v3777 = vmax.f32 %v2291, %v2939
      %v3778 = vmax.f32 %v2292, %v2941
      %v3779 = vmax.f32 %v2293, %v2943
      %v3780 = vmax.f32 %v2294, %v2945
      %v3781 = vmax.f32 %v2295, %v2944
      %v3782 = vmax.f32 %v2296, %v2948
      %v3783 = vmax.f32 %v2297, %v2950
      %v3784 = vmax.f32 %v2298, %v2952
      %v3785 = vmax.f32 %v2299, %v2954
      %v3786 = vmax.f32 %v2300, %v2956
      %v3787 = vmax.f32 %v2301, %v2958
      %v3788 = vmax.f32 %v2302, %v2957
      %v3789 = vmax.f32 %v2303, %v2961
      %v3790 = vmax.f32 %v2304, %v2963
      %v3791 = vmax.f32 %v2305, %v2965
      %v3792 = vmax.f32 %v2306, %v2967
      %v3793 = vmax.f32 %v2307, %v2969
      %v3794 = vmax.f32 %v2308, %v2971
      %v3795 = vmax.f32 %v2309, %v2970
      %v3796 = vmax.f32 %v2310, %v2974
      %v3797 = vmax.f32 %v2311, %v2976
      %v3798 = vmax.f32 %v2312, %v2978
      %v3799 = vmax.f32 %v2313, %v2980
      %v3800 = vmax.f32 %v2314, %v2982
      %v3801 = vmax.f32 %v2315, %v2984
      %v3802 = vmax.f32 %v2316, %v2983
      %v3803 = vmax.f32 %v2317, %v2987
      %v3804 = vmax.f32 %v2318, %v2989
      %v3805 = vmax.f32 %v2319, %v2991
      %v3806 = vmax.f32 %v2320, %v2993
      %v3807 = vmax.f32 %v2321, %v2995
      %v3808 = vmax.f32 %v2322, %v2997
      %v3809 = vmax.f32 %v2323, %v2996
      %v3810 = vmax.f32 %v2324, %v3000
      %v3811 = vmax.f32 %v2325, %v3002
      %v3812 = vmax.f32 %v2326, %v3004
      %v3813 = vmax.f32 %v2327, %v3006
      %v3814 = vmax.f32 %v2328, %v3008
      %v3815 = vmax.f32 %v2329, %v3010
      %v3816 = vmax.f32 %v2330, %v3009
      %v3817 = vmax.f32 %v2331, %v3013
      %v3818 = vmax.f32 %v2332, %v3015
      %v3819 = vmax.f32 %v2333, %v3017
      %v3820 = vmax.f32 %v2334, %v3019
      %v3821 = vmax.f32 %v2335, %v3021
      %v3822 = vmax.f32 %v2336, %v3023
      %v3823 = vmax.f32 %v2337, %v3022
      %v3824 = vmax.f32 %v2338, %v3026
      %v3825 = vmax.f32 %v2339, %v3028
      %v3826 = vmax.f32 %v2340, %v3030
      %v3827 = vmax.f32 %v2341, %v3032
      %v3828 = vmax.f32 %v2342, %v3034
      %v3829 = vmax.f32 %v2343, %v3036
      %v3830 = vmax.f32 %v2344, %v3035
      %v3831 = vmax.f32 %v2345, %v3039
      %v3832 = vmax.f32 %v2346, %v3041
      %v3833 = vmax.f32 %v2347, %v3043
      %v3834 = vmax.f32 %v2348, %v3045
      %v3835 = vmax.f32 %v2349, %v3047
      %v3836 = vmax.f32 %v2350, %v3049
      %v3837 = vmax.f32 %v2351, %v3048
      %v3838 = vmax.f32 %v2352, %v3052
      %v3839 = vmax.f32 %v2353, %v3054
      %v3840 = vmax.f32 %v2354, %v3056
      %v3841 = vmax.f32 %v2355, %v3058
      %v3842 = vmax.f32 %v2356, %v3060
      %v3843 = vmax.f32 %v2357, %v3062
      %v3844 = vmax.f32 %v2358, %v3061
      %v3845 = vmax.f32 %v2359, %v3065
      %v3846 = vmax.f32 %v2360, %v3067
      %v3847 = vmax.f32 %v2361, %v3069
      %v3848 = vmax.f32 %v2362, %v3071
      %v3849 = vmax.f32 %v2363, %v3073
      %v3850 = vmax.f32 %v2364, %v3075
      %v3851 = vmax.f32 %v2365, %v3074
      %v3852 = vmax.f32 %v2366, %v3078
      %v3853 = vmax.f32 %v2367, %v3080
      %v3854 = vmax.f32 %v2368, %v3082
      %v3855 = vmax.f32 %v2369, %v3084
      %v3856 = vmax.f32 %v2370, %v3086
      %v3857 = vmax.f32 %v2371, %v3088
      %v3858 = vmax.f32 %v2372, %v3087
      %v3859 = vmax.f32 %v3474, %v3481
      %v3860 = vmax.f32 %v3475, %v3482
      %v3861 = vmax.f32 %v3476, %v3483
      %v3862 = vmax.f32 %v3477, %v3484
      %v3863 = vmax.f32 %v3478, %v3485
      %v3864 = vmax.f32 %v3479, %v3486
      %v3865 = vmax.f32 %v3480, %v3487
      %v3866 = vmax.f32 %v3488, %v3495
      %v3867 = vmax.f32 %v3489, %v3496
      %v3868 = vmax.f32 %v3490, %v3497
      %v3869 = vmax.f32 %v3491, %v3498
      %v3870 = vmax.f32 %v3492, %v3499
      %v3871 = vmax.f32 %v3493, %v3500
      %v3872 = vmax.f32 %v3494, %v3501
      %v3873 = vmax.f32 %v3502, %v3509
      %v3874 = vmax.f32 %v3503, %v3510
      %v3875 = vmax.f32 %v3504, %v3511
      %v3876 = vmax.f32 %v3505, %v3512
      %v3877 = vmax.f32 %v3506, %v3513
      %v3878 = vmax.f32 %v3507, %v3514
      %v3879 = vmax.f32 %v3508, %v3515
      %v3880 = vmax.f32 %v3516, %v3523
      %v3881 = vmax.f32 %v3517, %v3524
      %v3882 = vmax.f32 %v3518, %v3525
      %v3883 = vmax.f32 %v3519, %v3526
      %v3884 = vmax.f32 %v3520, %v3527
      %v3885 = vmax.f32 %v3521, %v3528
      %v3886 = vmax.f32 %v3522, %v3529
      %v3887 = vmax.f32 %v3530, %v3537
      %v3888 = vmax.f32 %v3531, %v3538
      %v3889 = vmax.f32 %v3532, %v3539
      %v3890 = vmax.f32 %v3533, %v3540
      %v3891 = vmax.f32 %v3534, %v3541
      %v3892 = vmax.f32 %v3535, %v3542
      %v3893 = vmax.f32 %v3536, %v3543
      %v3894 = vmax.f32 %v3544, %v3551
      %v3895 = vmax.f32 %v3545, %v3552
      %v3896 = vmax.f32 %v3546, %v3553
      %v3897 = vmax.f32 %v3547, %v3554
      %v3898 = vmax.f32 %v3548, %v3555
      %v3899 = vmax.f32 %v3549, %v3556
      %v3900 = vmax.f32 %v3550, %v3557
      %v3901 = vmax.f32 %v3558, %v3565
      %v3902 = vmax.f32 %v3559, %v3566
      %v3903 = vmax.f32 %v3560, %v3567
      %v3904 = vmax.f32 %v3561, %v3568
      %v3905 = vmax.f32 %v3562, %v3569
      %v3906 = vmax.f32 %v3563, %v3570
      %v3907 = vmax.f32 %v3564, %v3571
      %v3908 = vmax.f32 %v3572, %v3579
      %v3909 = vmax.f32 %v3573, %v3580
      %v3910 = vmax.f32 %v3574, %v3581
      %v3911 = vmax.f32 %v3575, %v3582
      %v3912 = vmax.f32 %v3576, %v3583
      %v3913 = vmax.f32 %v3577, %v3584
      %v3914 = vmax.f32 %v3578, %v3585
      %v3915 = vmax.f32 %v3586, %v3593
      %v3916 = vmax.f32 %v3587, %v3594
      %v3917 = vmax.f32 %v3588, %v3595
      %v3918 = vmax.f32 %v3589, %v3596
      %v3919 = vmax.f32 %v3590, %v3597
      %v3920 = vmax.f32 %v3591, %v3598
      %v3921 = vmax.f32 %v3592, %v3599
      %v3922 = vmax.f32 %v3600, %v3607
      %v3923 = vmax.f32 %v3601, %v3608
      %v3924 = vmax.f32 %v3602, %v3609
      %v3925 = vmax.f32 %v3603, %v3610
      %v3926 = vmax.f32 %v3604, %v3611
      %v3927 = vmax.f32 %v3605, %v3612
      %v3928 = vmax.f32 %v3606, %v3613
      %v3929 = vmax.f32 %v3614, %v3621
      %v3930 = vmax.f32 %v3615, %v3622
      %v3931 = vmax.f32 %v3616, %v3623
      %v3932 = vmax.f32 %v3617, %v3624
      %v3933 = vmax.f32 %v3618, %v3625
      %v3934 = vmax.f32 %v3619, %v3626
      %v3935 = vmax.f32 %v3620, %v3627
      %v3936 = vmax.f32 %v3628, %v3635
      %v3937 = vmax.f32 %v3629, %v3636
      %v3938 = vmax.f32 %v3630, %v3637
      %v3939 = vmax.f32 %v3631, %v3638
      %v3940 = vmax.f32 %v3632, %v3639
      %v3941 = vmax.f32 %v3633, %v3640
      %v3942 = vmax.f32 %v3634, %v3641
      %v3943 = vmax.f32 %v3642, %v3649
      %v3944 = vmax.f32 %v3643, %v3650
      %v3945 = vmax.f32 %v3644, %v3651
      %v3946 = vmax.f32 %v3645, %v3652
      %v3947 = vmax.f32 %v3646, %v3653
      %v3948 = vmax.f32 %v3647, %v3654
      %v3949 = vmax.f32 %v3648, %v3655
      %v3950 = vmax.f32 %v3656, %v3663
      %v3951 = vmax.f32 %v3657, %v3664
      %v3952 = vmax.f32 %v3658, %v3665
      %v3953 = vmax.f32 %v3659, %v3666
      %v3954 = vmax.f32 %v3660, %v3667
      %v3955 = vmax.f32 %v3661, %v3668
      %v3956 = vmax.f32 %v3662, %v3669
      %v3957 = vmax.f32 %v3670, %v3677
      %v3958 = vmax.f32 %v3671, %v3678
      %v3959 = vmax.f32 %v3672, %v3679
      %v3960 = vmax.f32 %v3673, %v3680
      %v3961 = vmax.f32 %v3674, %v3681
      %v3962 = vmax.f32 %v3675, %v3682
      %v3963 = vmax.f32 %v3676, %v3683
      %v3964 = vmax.f32 %v3684, %v3691
      %v3965 = vmax.f32 %v3685, %v3692
      %v3966 = vmax.f32 %v3686, %v3693
      %v3967 = vmax.f32 %v3687, %v3694
      %v3968 = vmax.f32 %v3688, %v3695
      %v3969 = vmax.f32 %v3689, %v3696
      %v3970 = vmax.f32 %v3690, %v3697
      %v3971 = vmax.f32 %v3698, %v3705
      %v3972 = vmax.f32 %v3699, %v3706
      %v3973 = vmax.f32 %v3700, %v3707
      %v3974 = vmax.f32 %v3701, %v3708
      %v3975 = vmax.f32 %v3702, %v3709
      %v3976 = vmax.f32 %v3703, %v3710
      %v3977 = vmax.f32 %v3704, %v3711
      %v3978 = vmax.f32 %v3712, %v3719
      %v3979 = vmax.f32 %v3713, %v3720
      %v3980 = vmax.f32 %v3714, %v3721
      %v3981 = vmax.f32 %v3715, %v3722
      %v3982 = vmax.f32 %v3716, %v3723
      %v3983 = vmax.f32 %v3717, %v3724
      %v3984 = vmax.f32 %v3718, %v3725
      %v3985 = vmax.f32 %v3726, %v3733
      %v3986 = vmax.f32 %v3727, %v3734
      %v3987 = vmax.f32 %v3728, %v3735
      %v3988 = vmax.f32 %v3729, %v3736
      %v3989 = vmax.f32 %v3730, %v3737
      %v3990 = vmax.f32 %v3731, %v3738
      %v3991 = vmax.f32 %v3732, %v3739
      %v3992 = vmax.f32 %v3740, %v3747
      %v3993 = vmax.f32 %v3741, %v3748
      %v3994 = vmax.f32 %v3742, %v3749
      %v3995 = vmax.f32 %v3743, %v3750
      %v3996 = vmax.f32 %v3744, %v3751
      %v3997 = vmax.f32 %v3745, %v3752
      %v3998 = vmax.f32 %v3746, %v3753
      %v3999 = vmax.f32 %v3754, %v3761
      %v4000 = vmax.f32 %v3755, %v3762
      %v4001 = vmax.f32 %v3756, %v3763
      %v4002 = vmax.f32 %v3757, %v3764
      %v4003 = vmax.f32 %v3758, %v3765
      %v4004 = vmax.f32 %v3759, %v3766
      %v4005 = vmax.f32 %v3760, %v3767
      %v4006 = vmax.f32 %v3768, %v3775
      %v4007 = vmax.f32 %v3769, %v3776
      %v4008 = vmax.f32 %v3770, %v3777
      %v4009 = vmax.f32 %v3771, %v3778
      %v4010 = vmax.f32 %v3772, %v3779
      %v4011 = vmax.f32 %v3773, %v3780
      %v4012 = vmax.f32 %v3774, %v3781
      %v4013 = vmax.f32 %v3782, %v3789
      %v4014 = vmax.f32 %v3783, %v3790
      %v4015 = vmax.f32 %v3784, %v3791
      %v4016 = vmax.f32 %v3785, %v3792
      %v4017 = vmax.f32 %v3786, %v3793
      %v4018 = vmax.f32 %v3787, %v3794
      %v4019 = vmax.f32 %v3788, %v3795
      %v4020 = vmax.f32 %v3796, %v3803
      %v4021 = vmax.f32 %v3797, %v3804
      %v4022 = vmax.f32 %v3798, %v3805
      %v4023 = vmax.f32 %v3799, %v3806
      %v4024 = vmax.f32 %v3800, %v3807
      %v4025 = vmax.f32 %v3801, %v3808
      %v4026 = vmax.f32 %v3802, %v3809
      %v4027 = vmax.f32 %v3810, %v3817
      %v4028 = vmax.f32 %v3811, %v3818
      %v4029 = vmax.f32 %v3812, %v3819
      %v4030 = vmax.f32 %v3813, %v3820
      %v4031 = vmax.f32 %v3814, %v3821
      %v4032 = vmax.f32 %v3815, %v3822
      %v4033 = vmax.f32 %v3816, %v3823
      %v4034 = vmax.f32 %v3824, %v3831
      %v4035 = vmax.f32 %v3825, %v3832
      %v4036 = vmax.f32 %v3826, %v3833
      %v4037 = vmax.f32 %v3827, %v3834
      %v4038 = vmax.f32 %v3828, %v3835
      %v4039 = vmax.f32 %v3829, %v3836
      %v4040 = vmax.f32 %v3830, %v3837
      %v4041 = vmax.f32 %v3859, %v3488
      %v4042 = vmax.f32 %v3860, %v3489
      %v4043 = vmax.f32 %v3861, %v3490
      %v4044 = vmax.f32 %v3862, %v3491
      %v4045 = vmax.f32 %v3863, %v3492
      %v4046 = vmax.f32 %v3864, %v3493
      %v4047 = vmax.f32 %v3865, %v3494
      %v4048 = vmax.f32 %v3866, %v3502
      %v4049 = vmax.f32 %v3867, %v3503
      %v4050 = vmax.f32 %v3868, %v3504
      %v4051 = vmax.f32 %v3869, %v3505
      %v4052 = vmax.f32 %v3870, %v3506
      %v4053 = vmax.f32 %v3871, %v3507
      %v4054 = vmax.f32 %v3872, %v3508
      %v4055 = vmax.f32 %v3873, %v3516
      %v4056 = vmax.f32 %v3874, %v3517
      %v4057 = vmax.f32 %v3875, %v3518
      %v4058 = vmax.f32 %v3876, %v3519
      %v4059 = vmax.f32 %v3877, %v3520
      %v4060 = vmax.f32 %v3878, %v3521
      %v4061 = vmax.f32 %v3879, %v3522
      %v4062 = vmax.f32 %v3880, %v3530
      %v4063 = vmax.f32 %v3881, %v3531
      %v4064 = vmax.f32 %v3882, %v3532
      %v4065 = vmax.f32 %v3883, %v3533
      %v4066 = vmax.f32 %v3884, %v3534
      %v4067 = vmax.f32 %v3885, %v3535
      %v4068 = vmax.f32 %v3886, %v3536
      %v4069 = vmax.f32 %v3887, %v3544
      %v4070 = vmax.f32 %v3888, %v3545
      %v4071 = vmax.f32 %v3889, %v3546
      %v4072 = vmax.f32 %v3890, %v3547
      %v4073 = vmax.f32 %v3891, %v3548
      %v4074 = vmax.f32 %v3892, %v3549
      %v4075 = vmax.f32 %v3893, %v3550
      %v4076 = vmax.f32 %v3894, %v3558
      %v4077 = vmax.f32 %v3895, %v3559
      %v4078 = vmax.f32 %v3896, %v3560
      %v4079 = vmax.f32 %v3897, %v3561
      %v4080 = vmax.f32 %v3898, %v3562
      %v4081 = vmax.f32 %v3899, %v3563
      %v4082 = vmax.f32 %v3900, %v3564
      %v4083 = vmax.f32 %v3901, %v3572
      %v4084 = vmax.f32 %v3902, %v3573
      %v4085 = vmax.f32 %v3903, %v3574
      %v4086 = vmax.f32 %v3904, %v3575
      %v4087 = vmax.f32 %v3905, %v3576
      %v4088 = vmax.f32 %v3906, %v3577
      %v4089 = vmax.f32 %v3907, %v3578
      %v4090 = vmax.f32 %v3908, %v3586
      %v4091 = vmax.f32 %v3909, %v3587
      %v4092 = vmax.f32 %v3910, %v3588
      %v4093 = vmax.f32 %v3911, %v3589
      %v4094 = vmax.f32 %v3912, %v3590
      %v4095 = vmax.f32 %v3913, %v3591
      %v4096 = vmax.f32 %v3914, %v3592
      %v4097 = vmax.f32 %v3915, %v3600
      %v4098 = vmax.f32 %v3916, %v3601
      %v4099 = vmax.f32 %v3917, %v3602
      %v4100 = vmax.f32 %v3918, %v3603
      %v4101 = vmax.f32 %v3919, %v3604
      %v4102 = vmax.f32 %v3920, %v3605
      %v4103 = vmax.f32 %v3921, %v3606
      %v4104 = vmax.f32 %v3922, %v3614
      %v4105 = vmax.f32 %v3923, %v3615
      %v4106 = vmax.f32 %v3924, %v3616
      %v4107 = vmax.f32 %v3925, %v3617
      %v4108 = vmax.f32 %v3926, %v3618
      %v4109 = vmax.f32 %v3927, %v3619
      %v4110 = vmax.f32 %v3928, %v3620
      %v4111 = vmax.f32 %v3929, %v3628
      %v4112 = vmax.f32 %v3930, %v3629
      %v4113 = vmax.f32 %v3931, %v3630
      %v4114 = vmax.f32 %v3932, %v3631
      %v4115 = vmax.f32 %v3933, %v3632
      %v4116 = vmax.f32 %v3934, %v3633
      %v4117 = vmax.f32 %v3935, %v3634
      %v4118 = vmax.f32 %v3936, %v3642
      %v4119 = vmax.f32 %v3937, %v3643
      %v4120 = vmax.f32 %v3938, %v3644
      %v4121 = vmax.f32 %v3939, %v3645
      %v4122 = vmax.f32 %v3940, %v3646
      %v4123 = vmax.f32 %v3941, %v3647
      %v4124 = vmax.f32 %v3942, %v3648
      %v4125 = vmax.f32 %v3943, %v3656
      %v4126 = vmax.f32 %v3944, %v3657
      %v4127 = vmax.f32 %v3945, %v3658
      %v4128 = vmax.f32 %v3946, %v3659
      %v4129 = vmax.f32 %v3947, %v3660
      %v4130 = vmax.f32 %v3948, %v3661
      %v4131 = vmax.f32 %v3949, %v3662
      %v4132 = vmax.f32 %v3950, %v3670
      %v4133 = vmax.f32 %v3951, %v3671
      %v4134 = vmax.f32 %v3952, %v3672
      %v4135 = vmax.f32 %v3953, %v3673
      %v4136 = vmax.f32 %v3954, %v3674
      %v4137 = vmax.f32 %v3955, %v3675
      %v4138 = vmax.f32 %v3956, %v3676
      %v4139 = vmax.f32 %v3957, %v3684
      %v4140 = vmax.f32 %v3958, %v3685
      %v4141 = vmax.f32 %v3959, %v3686
      %v4142 = vmax.f32 %v3960, %v3687
      %v4143 = vmax.f32 %v3961, %v3688
      %v4144 = vmax.f32 %v3962, %v3689
      %v4145 = vmax.f32 %v3963, %v3690
      %v4146 = vmax.f32 %v3964, %v3698
      %v4147 = vmax.f32 %v3965, %v3699
      %v4148 = vmax.f32 %v3966, %v3700
      %v4149 = vmax.f32 %v3967, %v3701
      %v4150 = vmax.f32 %v3968, %v3702
      %v4151 = vmax.f32 %v3969, %v3703
      %v4152 = vmax.f32 %v3970, %v3704
      %v4153 = vmax.f32 %v3971, %v3712
      %v4154 = vmax.f32 %v3972, %v3713
      %v4155 = vmax.f32 %v3973, %v3714
      %v4156 = vmax.f32 %v3974, %v3715
      %v4157 = vmax.f32 %v3975, %v3716
      %v4158 = vmax.f32 %v3976, %v3717
      %v4159 = vmax.f32 %v3977, %v3718
      %v4160 = vmax.f32 %v3978, %v3726
      %v4161 = vmax.f32 %v3979, %v3727
      %v4162 = vmax.f32 %v3980, %v3728
      %v4163 = vmax.f32 %v3981, %v3729
      %v4164 = vmax.f32 %v3982, %v3730
      %v4165 = vmax.f32 %v3983, %v3731
      %v4166 = vmax.f32 %v3984, %v3732
      %v4167 = vmax.f32 %v3985, %v3740
      %v4168 = vmax.f32 %v3986, %v3741
      %v4169 = vmax.f32 %v3987, %v3742
      %v4170 = vmax.f32 %v3988, %v3743
      %v4171 = vmax.f32 %v3989, %v3744
      %v4172 = vmax.f32 %v3990, %v3745
      %v4173 = vmax.f32 %v3991, %v3746
      %v4174 = vmax.f32 %v3992, %v3754
      %v4175 = vmax.f32 %v3993, %v3755
      %v4176 = vmax.f32 %v3994, %v3756
      %v4177 = vmax.f32 %v3995, %v3757
      %v4178 = vmax.f32 %v3996, %v3758
      %v4179 = vmax.f32 %v3997, %v3759
      %v4180 = vmax.f32 %v3998, %v3760
      %v4181 = vmax.f32 %v3999, %v3768
      %v4182 = vmax.f32 %v4000, %v3769
      %v4183 = vmax.f32 %v4001, %v3770
      %v4184 = vmax.f32 %v4002, %v3771
      %v4185 = vmax.f32 %v4003, %v3772
      %v4186 = vmax.f32 %v4004, %v3773
      %v4187 = vmax.f32 %v4005, %v3774
      %v4188 = vmax.f32 %v4006, %v3782
      %v4189 = vmax.f32 %v4007, %v3783
      %v4190 = vmax.f32 %v4008, %v3784
      %v4191 = vmax.f32 %v4009, %v3785
      %v4192 = vmax.f32 %v4010, %v3786
      %v4193 = vmax.f32 %v4011, %v3787
      %v4194 = vmax.f32 %v4012, %v3788
      %v4195 = vmax.f32 %v4013, %v3796
      %v4196 = vmax.f32 %v4014, %v3797
      %v4197 = vmax.f32 %v4015, %v3798
      %v4198 = vmax.f32 %v4016, %v3799
      %v4199 = vmax.f32 %v4017, %v3800
      %v4200 = vmax.f32 %v4018, %v3801
      %v4201 = vmax.f32 %v4019, %v3802
      %v4202 = vmax.f32 %v4020, %v3810
      %v4203 = vmax.f32 %v4021, %v3811
      %v4204 = vmax.f32 %v4022, %v3812
      %v4205 = vmax.f32 %v4023, %v3813
      %v4206 = vmax.f32 %v4024, %v3814
      %v4207 = vmax.f32 %v4025, %v3815
      %v4208 = vmax.f32 %v4026, %v3816
      %v4209 = vmax.f32 %v4027, %v3824
      %v4210 = vmax.f32 %v4028, %v3825
      %v4211 = vmax.f32 %v4029, %v3826
      %v4212 = vmax.f32 %v4030, %v3827
      %v4213 = vmax.f32 %v4031, %v3828
      %v4214 = vmax.f32 %v4032, %v3829
      %v4215 = vmax.f32 %v4033, %v3830
      %v4216 = vmax.f32 %v4034, %v3838
      %v4217 = vmax.f32 %v4035, %v3839
      %v4218 = vmax.f32 %v4036, %v3840
      %v4219 = vmax.f32 %v4037, %v3841
      %v4220 = vmax.f32 %v4038, %v3842
      %v4221 = vmax.f32 %v4039, %v3843
      %v4222 = vmax.f32 %v4040, %v3844
      %v4223 = vmax.f32 %v3838, %v3845
      %v4224 = vmax.f32 %v3839, %v3846
      %v4225 = vmax.f32 %v3840, %v3847
      %v4226 = vmax.f32 %v3841, %v3848
      %v4227 = vmax.f32 %v3842, %v3849
      %v4228 = vmax.f32 %v3843, %v3850
      %v4229 = vmax.f32 %v3844, %v3851
      %v4230 = vmax.f32 %v4223, %v3852
      %v4231 = vmax.f32 %v4224, %v3853
      %v4232 = vmax.f32 %v4225, %v3854
      %v4233 = vmax.f32 %v4226, %v3855
      %v4234 = vmax.f32 %v4227, %v3856
      %v4235 = vmax.f32 %v4228, %v3857
      %v4236 = vmax.f32 %v4229, %v3858
      %vm4237 = vcmask 785408
      %4238 = vst.msk [vmem:[%s116] sm:$0xff] %vm4237, %v4041
      %4239 = vst.msk [vmem:[%s116 + $0x8] sm:$0xff] %vm4237, %v4042
      %4240 = vst.msk [vmem:[%s116 + $0x10] sm:$0xff] %vm4237, %v4043
      %4241 = vst.msk [vmem:[%s116 + $0x18] sm:$0xff] %vm4237, %v4044
      %4242 = vst.msk [vmem:[%s116 + $0x20] sm:$0xff] %vm4237, %v4045
      %4243 = vst.msk [vmem:[%s116 + $0x28] sm:$0xff] %vm4237, %v4046
      %vm4244 = vcmask 782336
      %4245 = vst.msk [vmem:[%s116 + $0x30] sm:$0x1f] %vm4244, %v4047
      %4246 = vst.msk [vmem:[%s116 + $0x38] sm:$0xff] %vm4237, %v4048
      %4247 = vst.msk [vmem:[%s116 + $0x40] sm:$0xff] %vm4237, %v4049
      %4248 = vst.msk [vmem:[%s116 + $0x48] sm:$0xff] %vm4237, %v4050
      %4249 = vst.msk [vmem:[%s116 + $0x50] sm:$0xff] %vm4237, %v4051
      %4250 = vst.msk [vmem:[%s116 + $0x58] sm:$0xff] %vm4237, %v4052
      %4251 = vst.msk [vmem:[%s116 + $0x60] sm:$0xff] %vm4237, %v4053
      %4252 = vst.msk [vmem:[%s116 + $0x68] sm:$0x1f] %vm4244, %v4054
      %4253 = vst.msk [vmem:[%s116 + $0x70] sm:$0xff] %vm4237, %v4055
      %4254 = vst.msk [vmem:[%s116 + $0x78] sm:$0xff] %vm4237, %v4056
      %4255 = vst.msk [vmem:[%s116 + $0x80] sm:$0xff] %vm4237, %v4057
      %4256 = vst.msk [vmem:[%s116 + $0x88] sm:$0xff] %vm4237, %v4058
      %4257 = vst.msk [vmem:[%s116 + $0x90] sm:$0xff] %vm4237, %v4059
      %4258 = vst.msk [vmem:[%s116 + $0x98] sm:$0xff] %vm4237, %v4060
      %4259 = vst.msk [vmem:[%s116 + $0xa0] sm:$0x1f] %vm4244, %v4061
      %4260 = vst.msk [vmem:[%s116 + $0xa8] sm:$0xff] %vm4237, %v4062
      %4261 = vst.msk [vmem:[%s116 + $0xb0] sm:$0xff] %vm4237, %v4063
      %4262 = vst.msk [vmem:[%s116 + $0xb8] sm:$0xff] %vm4237, %v4064
      %4263 = vst.msk [vmem:[%s116 + $0xc0] sm:$0xff] %vm4237, %v4065
      %4264 = vst.msk [vmem:[%s116 + $0xc8] sm:$0xff] %vm4237, %v4066
      %4265 = vst.msk [vmem:[%s116 + $0xd0] sm:$0xff] %vm4237, %v4067
      %4266 = vst.msk [vmem:[%s116 + $0xd8] sm:$0x1f] %vm4244, %v4068
      %4267 = vst.msk [vmem:[%s116 + $0xe0] sm:$0xff] %vm4237, %v4069
      %4268 = vst.msk [vmem:[%s116 + $0xe8] sm:$0xff] %vm4237, %v4070
      %4269 = vst.msk [vmem:[%s116 + $0xf0] sm:$0xff] %vm4237, %v4071
      %4270 = vst.msk [vmem:[%s116 + $0xf8] sm:$0xff] %vm4237, %v4072
      %4271 = vst.msk [vmem:[%s116 + $0x100] sm:$0xff] %vm4237, %v4073
      %4272 = vst.msk [vmem:[%s116 + $0x108] sm:$0xff] %vm4237, %v4074
      %4273 = vst.msk [vmem:[%s116 + $0x110] sm:$0x1f] %vm4244, %v4075
      %4274 = vst.msk [vmem:[%s116 + $0x118] sm:$0xff] %vm4237, %v4076
      %4275 = vst.msk [vmem:[%s116 + $0x120] sm:$0xff] %vm4237, %v4077
      %4276 = vst.msk [vmem:[%s116 + $0x128] sm:$0xff] %vm4237, %v4078
      %4277 = vst.msk [vmem:[%s116 + $0x130] sm:$0xff] %vm4237, %v4079
      %4278 = vst.msk [vmem:[%s116 + $0x138] sm:$0xff] %vm4237, %v4080
      %4279 = vst.msk [vmem:[%s116 + $0x140] sm:$0xff] %vm4237, %v4081
      %4280 = vst.msk [vmem:[%s116 + $0x148] sm:$0x1f] %vm4244, %v4082
      %4281 = vst.msk [vmem:[%s116 + $0x150] sm:$0xff] %vm4237, %v4083
      %4282 = vst.msk [vmem:[%s116 + $0x158] sm:$0xff] %vm4237, %v4084
      %4283 = vst.msk [vmem:[%s116 + $0x160] sm:$0xff] %vm4237, %v4085
      %4284 = vst.msk [vmem:[%s116 + $0x168] sm:$0xff] %vm4237, %v4086
      %4285 = vst.msk [vmem:[%s116 + $0x170] sm:$0xff] %vm4237, %v4087
      %4286 = vst.msk [vmem:[%s116 + $0x178] sm:$0xff] %vm4237, %v4088
      %4287 = vst.msk [vmem:[%s116 + $0x180] sm:$0x1f] %vm4244, %v4089
      %4288 = vst.msk [vmem:[%s116 + $0x188] sm:$0xff] %vm4237, %v4090
      %4289 = vst.msk [vmem:[%s116 + $0x190] sm:$0xff] %vm4237, %v4091
      %4290 = vst.msk [vmem:[%s116 + $0x198] sm:$0xff] %vm4237, %v4092
      %4291 = vst.msk [vmem:[%s116 + $0x1a0] sm:$0xff] %vm4237, %v4093
      %4292 = vst.msk [vmem:[%s116 + $0x1a8] sm:$0xff] %vm4237, %v4094
      %4293 = vst.msk [vmem:[%s116 + $0x1b0] sm:$0xff] %vm4237, %v4095
      %4294 = vst.msk [vmem:[%s116 + $0x1b8] sm:$0x1f] %vm4244, %v4096
      %4295 = vst.msk [vmem:[%s116 + $0x1c0] sm:$0xff] %vm4237, %v4097
      %4296 = vst.msk [vmem:[%s116 + $0x1c8] sm:$0xff] %vm4237, %v4098
      %4297 = vst.msk [vmem:[%s116 + $0x1d0] sm:$0xff] %vm4237, %v4099
      %4298 = vst.msk [vmem:[%s116 + $0x1d8] sm:$0xff] %vm4237, %v4100
      %4299 = vst.msk [vmem:[%s116 + $0x1e0] sm:$0xff] %vm4237, %v4101
      %4300 = vst.msk [vmem:[%s116 + $0x1e8] sm:$0xff] %vm4237, %v4102
      %4301 = vst.msk [vmem:[%s116 + $0x1f0] sm:$0x1f] %vm4244, %v4103
      %4302 = vst.msk [vmem:[%s116 + $0x1f8] sm:$0xff] %vm4237, %v4104
      %4303 = vst.msk [vmem:[%s116 + $0x200] sm:$0xff] %vm4237, %v4105
      %4304 = vst.msk [vmem:[%s116 + $0x208] sm:$0xff] %vm4237, %v4106
      %4305 = vst.msk [vmem:[%s116 + $0x210] sm:$0xff] %vm4237, %v4107
      %4306 = vst.msk [vmem:[%s116 + $0x218] sm:$0xff] %vm4237, %v4108
      %4307 = vst.msk [vmem:[%s116 + $0x220] sm:$0xff] %vm4237, %v4109
      %4308 = vst.msk [vmem:[%s116 + $0x228] sm:$0x1f] %vm4244, %v4110
      %4309 = vst.msk [vmem:[%s116 + $0x230] sm:$0xff] %vm4237, %v4111
      %4310 = vst.msk [vmem:[%s116 + $0x238] sm:$0xff] %vm4237, %v4112
      %4311 = vst.msk [vmem:[%s116 + $0x240] sm:$0xff] %vm4237, %v4113
      %4312 = vst.msk [vmem:[%s116 + $0x248] sm:$0xff] %vm4237, %v4114
      %4313 = vst.msk [vmem:[%s116 + $0x250] sm:$0xff] %vm4237, %v4115
      %4314 = vst.msk [vmem:[%s116 + $0x258] sm:$0xff] %vm4237, %v4116
      %4315 = vst.msk [vmem:[%s116 + $0x260] sm:$0x1f] %vm4244, %v4117
      %4316 = vst.msk [vmem:[%s116 + $0x268] sm:$0xff] %vm4237, %v4118
      %4317 = vst.msk [vmem:[%s116 + $0x270] sm:$0xff] %vm4237, %v4119
      %4318 = vst.msk [vmem:[%s116 + $0x278] sm:$0xff] %vm4237, %v4120
      %4319 = vst.msk [vmem:[%s116 + $0x280] sm:$0xff] %vm4237, %v4121
      %4320 = vst.msk [vmem:[%s116 + $0x288] sm:$0xff] %vm4237, %v4122
      %4321 = vst.msk [vmem:[%s116 + $0x290] sm:$0xff] %vm4237, %v4123
      %4322 = vst.msk [vmem:[%s116 + $0x298] sm:$0x1f] %vm4244, %v4124
      %4323 = vst.msk [vmem:[%s116 + $0x2a0] sm:$0xff] %vm4237, %v4125
      %4324 = vst.msk [vmem:[%s116 + $0x2a8] sm:$0xff] %vm4237, %v4126
      %4325 = vst.msk [vmem:[%s116 + $0x2b0] sm:$0xff] %vm4237, %v4127
      %4326 = vst.msk [vmem:[%s116 + $0x2b8] sm:$0xff] %vm4237, %v4128
      %4327 = vst.msk [vmem:[%s116 + $0x2c0] sm:$0xff] %vm4237, %v4129
      %4328 = vst.msk [vmem:[%s116 + $0x2c8] sm:$0xff] %vm4237, %v4130
      %4329 = vst.msk [vmem:[%s116 + $0x2d0] sm:$0x1f] %vm4244, %v4131
      %4330 = vst.msk [vmem:[%s116 + $0x2d8] sm:$0xff] %vm4237, %v4132
      %4331 = vst.msk [vmem:[%s116 + $0x2e0] sm:$0xff] %vm4237, %v4133
      %4332 = vst.msk [vmem:[%s116 + $0x2e8] sm:$0xff] %vm4237, %v4134
      %4333 = vst.msk [vmem:[%s116 + $0x2f0] sm:$0xff] %vm4237, %v4135
      %4334 = vst.msk [vmem:[%s116 + $0x2f8] sm:$0xff] %vm4237, %v4136
      %4335 = vst.msk [vmem:[%s116 + $0x300] sm:$0xff] %vm4237, %v4137
      %4336 = vst.msk [vmem:[%s116 + $0x308] sm:$0x1f] %vm4244, %v4138
      %4337 = vst.msk [vmem:[%s116 + $0x310] sm:$0xff] %vm4237, %v4139
      %4338 = vst.msk [vmem:[%s116 + $0x318] sm:$0xff] %vm4237, %v4140
      %4339 = vst.msk [vmem:[%s116 + $0x320] sm:$0xff] %vm4237, %v4141
      %4340 = vst.msk [vmem:[%s116 + $0x328] sm:$0xff] %vm4237, %v4142
      %4341 = vst.msk [vmem:[%s116 + $0x330] sm:$0xff] %vm4237, %v4143
      %4342 = vst.msk [vmem:[%s116 + $0x338] sm:$0xff] %vm4237, %v4144
      %4343 = vst.msk [vmem:[%s116 + $0x340] sm:$0x1f] %vm4244, %v4145
      %4344 = vst.msk [vmem:[%s116 + $0x348] sm:$0xff] %vm4237, %v4146
      %4345 = vst.msk [vmem:[%s116 + $0x350] sm:$0xff] %vm4237, %v4147
      %4346 = vst.msk [vmem:[%s116 + $0x358] sm:$0xff] %vm4237, %v4148
      %4347 = vst.msk [vmem:[%s116 + $0x360] sm:$0xff] %vm4237, %v4149
      %4348 = vst.msk [vmem:[%s116 + $0x368] sm:$0xff] %vm4237, %v4150
      %4349 = vst.msk [vmem:[%s116 + $0x370] sm:$0xff] %vm4237, %v4151
      %4350 = vst.msk [vmem:[%s116 + $0x378] sm:$0x1f] %vm4244, %v4152
      %4351 = vst.msk [vmem:[%s116 + $0x380] sm:$0xff] %vm4237, %v4153
      %4352 = vst.msk [vmem:[%s116 + $0x388] sm:$0xff] %vm4237, %v4154
      %4353 = vst.msk [vmem:[%s116 + $0x390] sm:$0xff] %vm4237, %v4155
      %4354 = vst.msk [vmem:[%s116 + $0x398] sm:$0xff] %vm4237, %v4156
      %4355 = vst.msk [vmem:[%s116 + $0x3a0] sm:$0xff] %vm4237, %v4157
      %4356 = vst.msk [vmem:[%s116 + $0x3a8] sm:$0xff] %vm4237, %v4158
      %4357 = vst.msk [vmem:[%s116 + $0x3b0] sm:$0x1f] %vm4244, %v4159
      %4358 = vst.msk [vmem:[%s116 + $0x3b8] sm:$0xff] %vm4237, %v4160
      %4359 = vst.msk [vmem:[%s116 + $0x3c0] sm:$0xff] %vm4237, %v4161
      %4360 = vst.msk [vmem:[%s116 + $0x3c8] sm:$0xff] %vm4237, %v4162
      %4361 = vst.msk [vmem:[%s116 + $0x3d0] sm:$0xff] %vm4237, %v4163
      %4362 = vst.msk [vmem:[%s116 + $0x3d8] sm:$0xff] %vm4237, %v4164
      %4363 = vst.msk [vmem:[%s116 + $0x3e0] sm:$0xff] %vm4237, %v4165
      %4364 = vst.msk [vmem:[%s116 + $0x3e8] sm:$0x1f] %vm4244, %v4166
      %4365 = vst.msk [vmem:[%s116 + $0x3f0] sm:$0xff] %vm4237, %v4167
      %4366 = vst.msk [vmem:[%s116 + $0x3f8] sm:$0xff] %vm4237, %v4168
      %4367 = vst.msk [vmem:[%s116 + $0x400] sm:$0xff] %vm4237, %v4169
      %4368 = vst.msk [vmem:[%s116 + $0x408] sm:$0xff] %vm4237, %v4170
      %4369 = vst.msk [vmem:[%s116 + $0x410] sm:$0xff] %vm4237, %v4171
      %4370 = vst.msk [vmem:[%s116 + $0x418] sm:$0xff] %vm4237, %v4172
      %4371 = vst.msk [vmem:[%s116 + $0x420] sm:$0x1f] %vm4244, %v4173
      %4372 = vst.msk [vmem:[%s116 + $0x428] sm:$0xff] %vm4237, %v4174
      %4373 = vst.msk [vmem:[%s116 + $0x430] sm:$0xff] %vm4237, %v4175
      %4374 = vst.msk [vmem:[%s116 + $0x438] sm:$0xff] %vm4237, %v4176
      %4375 = vst.msk [vmem:[%s116 + $0x440] sm:$0xff] %vm4237, %v4177
      %4376 = vst.msk [vmem:[%s116 + $0x448] sm:$0xff] %vm4237, %v4178
      %4377 = vst.msk [vmem:[%s116 + $0x450] sm:$0xff] %vm4237, %v4179
      %4378 = vst.msk [vmem:[%s116 + $0x458] sm:$0x1f] %vm4244, %v4180
      %4379 = vst.msk [vmem:[%s116 + $0x460] sm:$0xff] %vm4237, %v4181
      %4380 = vst.msk [vmem:[%s116 + $0x468] sm:$0xff] %vm4237, %v4182
      %4381 = vst.msk [vmem:[%s116 + $0x470] sm:$0xff] %vm4237, %v4183
      %4382 = vst.msk [vmem:[%s116 + $0x478] sm:$0xff] %vm4237, %v4184
      %4383 = vst.msk [vmem:[%s116 + $0x480] sm:$0xff] %vm4237, %v4185
      %4384 = vst.msk [vmem:[%s116 + $0x488] sm:$0xff] %vm4237, %v4186
      %4385 = vst.msk [vmem:[%s116 + $0x490] sm:$0x1f] %vm4244, %v4187
      %4386 = vst.msk [vmem:[%s116 + $0x498] sm:$0xff] %vm4237, %v4188
      %4387 = vst.msk [vmem:[%s116 + $0x4a0] sm:$0xff] %vm4237, %v4189
      %4388 = vst.msk [vmem:[%s116 + $0x4a8] sm:$0xff] %vm4237, %v4190
      %4389 = vst.msk [vmem:[%s116 + $0x4b0] sm:$0xff] %vm4237, %v4191
      %4390 = vst.msk [vmem:[%s116 + $0x4b8] sm:$0xff] %vm4237, %v4192
      %4391 = vst.msk [vmem:[%s116 + $0x4c0] sm:$0xff] %vm4237, %v4193
      %4392 = vst.msk [vmem:[%s116 + $0x4c8] sm:$0x1f] %vm4244, %v4194
      %4393 = vst.msk [vmem:[%s116 + $0x4d0] sm:$0xff] %vm4237, %v4195
      %4394 = vst.msk [vmem:[%s116 + $0x4d8] sm:$0xff] %vm4237, %v4196
      %4395 = vst.msk [vmem:[%s116 + $0x4e0] sm:$0xff] %vm4237, %v4197
      %4396 = vst.msk [vmem:[%s116 + $0x4e8] sm:$0xff] %vm4237, %v4198
      %4397 = vst.msk [vmem:[%s116 + $0x4f0] sm:$0xff] %vm4237, %v4199
      %4398 = vst.msk [vmem:[%s116 + $0x4f8] sm:$0xff] %vm4237, %v4200
      %4399 = vst.msk [vmem:[%s116 + $0x500] sm:$0x1f] %vm4244, %v4201
      %4400 = vst.msk [vmem:[%s116 + $0x508] sm:$0xff] %vm4237, %v4202
      %4401 = vst.msk [vmem:[%s116 + $0x510] sm:$0xff] %vm4237, %v4203
      %4402 = vst.msk [vmem:[%s116 + $0x518] sm:$0xff] %vm4237, %v4204
      %4403 = vst.msk [vmem:[%s116 + $0x520] sm:$0xff] %vm4237, %v4205
      %4404 = vst.msk [vmem:[%s116 + $0x528] sm:$0xff] %vm4237, %v4206
      %4405 = vst.msk [vmem:[%s116 + $0x530] sm:$0xff] %vm4237, %v4207
      %4406 = vst.msk [vmem:[%s116 + $0x538] sm:$0x1f] %vm4244, %v4208
      %4407 = vst.msk [vmem:[%s116 + $0x540] sm:$0xff] %vm4237, %v4209
      %4408 = vst.msk [vmem:[%s116 + $0x548] sm:$0xff] %vm4237, %v4210
      %4409 = vst.msk [vmem:[%s116 + $0x550] sm:$0xff] %vm4237, %v4211
      %4410 = vst.msk [vmem:[%s116 + $0x558] sm:$0xff] %vm4237, %v4212
      %4411 = vst.msk [vmem:[%s116 + $0x560] sm:$0xff] %vm4237, %v4213
      %4412 = vst.msk [vmem:[%s116 + $0x568] sm:$0xff] %vm4237, %v4214
      %4413 = vst.msk [vmem:[%s116 + $0x570] sm:$0x1f] %vm4244, %v4215
      %4414 = vst.msk [vmem:[%s116 + $0x578] sm:$0xff] %vm4237, %v4216
      %4415 = vst.msk [vmem:[%s116 + $0x580] sm:$0xff] %vm4237, %v4217
      %4416 = vst.msk [vmem:[%s116 + $0x588] sm:$0xff] %vm4237, %v4218
      %4417 = vst.msk [vmem:[%s116 + $0x590] sm:$0xff] %vm4237, %v4219
      %4418 = vst.msk [vmem:[%s116 + $0x598] sm:$0xff] %vm4237, %v4220
      %4419 = vst.msk [vmem:[%s116 + $0x5a0] sm:$0xff] %vm4237, %v4221
      %4420 = vst.msk [vmem:[%s116 + $0x5a8] sm:$0x1f] %vm4244, %v4222
      %s4421 = scalar_lea.vmem %s116, 1456
      %4422 = vst.msk [vmem:[%s4421] sm:$0xff] %vm4237, %v4230
      %4423 = vst.msk [vmem:[%s4421 + $0x8] sm:$0xff] %vm4237, %v4231
      %4424 = vst.msk [vmem:[%s4421 + $0x10] sm:$0xff] %vm4237, %v4232
      %4425 = vst.msk [vmem:[%s4421 + $0x18] sm:$0xff] %vm4237, %v4233
      %4426 = vst.msk [vmem:[%s4421 + $0x20] sm:$0xff] %vm4237, %v4234
      %4427 = vst.msk [vmem:[%s4421 + $0x28] sm:$0xff] %vm4237, %v4235
      %4428 = vst.msk [vmem:[%s4421 + $0x30] sm:$0x1f] %vm4244, %v4236
      %p4429 = scmp.lt.s32.totalorder %s12, 1
      %s4430 = scalar_select %p4429, %s12, 1
      %s4431 = smul.addr %s4430, 189
      %s4432 = smul.addr %s4431, 8
      %s4433 = scalar_lea.vmem %s1, %s4432
      // Predicated region
      $region25: #{alexnet_extreme_forward.4} parent=23 // pred_check
        %p4434 = pneg %p56
      $region26: #{alexnet_extreme_forward.4} parent=23 // pred_check_branch
        %4436 = sbr.rel (%p4434) target = $region28
      $region27: #{alexnet_extreme_forward.4} parent=23 // pred_region
        _
      $region28: #{alexnet_extreme_forward.4} parent=23 // pred_fallthru
        _
    $region24: #{alexnet_extreme_forward.4} parent=5 // pred_fallthru
      _
    %p4437 = scmp.le.s32.totalorder 2, %s7
    // Predicated region
    $region29: #{alexnet_extreme_forward.4} parent=5 // pred_check
      %p4438 = pneg %p4437
    $region30: #{alexnet_extreme_forward.4} parent=5 // pred_check_branch
      %4440 = sbr.rel (%p4438) target = $region32
    $region31: #{alexnet_extreme_forward.4} parent=5 // pred_region
      %s4441 = ssub.s32 %s7, 2
      // Predicated region
      $region33: #{alexnet_extreme_forward.4} parent=31 // pred_check
        %p4442 = pneg %p62
      $region34: #{alexnet_extreme_forward.4} parent=31 // pred_check_branch
        %4444 = sbr.rel (%p4442) target = $region36
      $region35: #{alexnet_extreme_forward.4} parent=31 // pred_region
        %p4445 = scmp.lt.s32.totalorder %s13, 1
        %s4446 = scalar_select %p4445, %s13, 1
        %s4447 = smul.addr %s4446, 189
        %s4448 = smul.addr %s4447, 8
        %s4449 = scalar_lea.vmem %s1, %s4448
      $region36: #{alexnet_extreme_forward.4} parent=31 // pred_fallthru
        _
    $region32: #{alexnet_extreme_forward.4} parent=5 // pred_fallthru
      _
  $region6: #{alexnet_extreme_forward.4} parent=0 // loop_footer
    %s11 = sadd.s32 1, %s7
  $region7: #{alexnet_extreme_forward.4} parent=0 // loop_footer_branch
    %6 = sbr.rel target = $region3
  $region8: #{alexnet_extreme_forward.4} parent=0 // loop_exit
    _

// kernel: alexnet_extreme_forward.5
$region0: #{alexnet_extreme_forward.5}
  #allocation0 [shape = 'u32[]', space=smem, size = 0x4, offset = 0x4, fixed_abs, tag = 'smem constant byte address 0x4 - core index']
  #allocation1 [shape = 'u32[144,128]{1,0:T(1,128)}', space=vmem, size = 0x12000, scoped, tag = 'internal scratch']
  %s0 = inlined_call_operand.vmem [shape: f32[2,8,8748], index: 0, kind: input, shape index: {}]
  %s1 = inlined_call_operand.vmem [shape: f32[5,8,8748], index: 1, kind: input, shape index: {}]
  %s2 = inlined_call_operand.vmem [shape: f32[1,5], index: 2, kind: input, shape index: {}]
  %s3 = inlined_call_operand.hbm [shape: f32[2,5], index: 3, kind: output, shape index: {}]
  %s4 = sld [smem:[#allocation0]]
  $region22: #{alexnet_extreme_forward.5} parent=0
    _
  %s6 = ssub.s32 1, %s4
  %s7 = scalar_select 0, %s6, %s4
  $region1: #{alexnet_extreme_forward.5} parent=0
    #allocation2 [shape = 'u8[1024]{0}', space=vmem, size = 0x400, scoped, tag = 'output window, operand 0, single buffered']
    #allocation3 [shape = 's32[1]{0}', space=sflag, size = 0x4, scoped, tag = 'scoped memory for alexnet_extreme_forward.5']
    %8 = vsyncpa [#allocation3], 0
    // Predicated region
    $region2: #{alexnet_extreme_forward.5} parent=1 // pred_check
      _
    $region3: #{alexnet_extreme_forward.5} parent=1 // pred_check_branch
      %10 = sbr.rel (0) target = $region5
    $region4: #{alexnet_extreme_forward.5} parent=1 // pred_region
      _
    $region5: #{alexnet_extreme_forward.5} parent=1 // pred_fallthru
      _
    // Predicated region
    $region6: #{alexnet_extreme_forward.5} parent=1 // pred_check
      _
    $region7: #{alexnet_extreme_forward.5} parent=1 // pred_check_branch
      %12 = sbr.rel (0) target = $region9
    $region8: #{alexnet_extreme_forward.5} parent=1 // pred_region
      _
    $region9: #{alexnet_extreme_forward.5} parent=1 // pred_fallthru
      _
    // Predicated region
    $region10: #{alexnet_extreme_forward.5} parent=1 // pred_check
      _
    $region11: #{alexnet_extreme_forward.5} parent=1 // pred_check_branch
      %14 = sbr.rel (0) target = $region13
    $region12: #{alexnet_extreme_forward.5} parent=1 // pred_region
      _
    $region13: #{alexnet_extreme_forward.5} parent=1 // pred_fallthru
      _
    %v15 = vld [vmem:[%s0] sm:$0xff]
    %v16 = vld [vmem:[%s0 + $0x8] sm:$0xff]
    %v17 = vld [vmem:[%s0 + $0x10] sm:$0xff]
    %v18 = vld [vmem:[%s0 + $0x18] sm:$0xff]
    %v19 = vld [vmem:[%s0 + $0x20] sm:$0xff]
    %v20 = vld [vmem:[%s0 + $0x28] sm:$0xff]
    %v21 = vld [vmem:[%s0 + $0x30] sm:$0xff]
    %v22 = vld [vmem:[%s0 + $0x38] sm:$0xff]
    %v23 = vld [vmem:[%s0 + $0x40] sm:$0xff]
    %v24 = vld [vmem:[%s0 + $0x48] sm:$0xff]
    %v25 = vld [vmem:[%s0 + $0x50] sm:$0xff]
    %v26 = vld [vmem:[%s0 + $0x58] sm:$0xff]
    %v27 = vld [vmem:[%s0 + $0x60] sm:$0xff]
    %v28 = vld [vmem:[%s0 + $0x68] sm:$0xff]
    %v29 = vld [vmem:[%s0 + $0x70] sm:$0xff]
    %v30 = vld [vmem:[%s0 + $0x78] sm:$0xff]
    %v31 = vld [vmem:[%s0 + $0x80] sm:$0xff]
    %v32 = vld [vmem:[%s0 + $0x88] sm:$0xff]
    %v33 = vld [vmem:[%s0 + $0x90] sm:$0xff]
    %v34 = vld [vmem:[%s0 + $0x98] sm:$0xff]
    %v35 = vld [vmem:[%s0 + $0xa0] sm:$0xff]
    %v36 = vld [vmem:[%s0 + $0xa8] sm:$0xff]
    %v37 = vld [vmem:[%s0 + $0xb0] sm:$0xff]
    %v38 = vld [vmem:[%s0 + $0xb8] sm:$0xff]
    %v39 = vld [vmem:[%s0 + $0xc0] sm:$0xff]
    %v40 = vld [vmem:[%s0 + $0xc8] sm:$0xff]
    %v41 = vld [vmem:[%s0 + $0xd0] sm:$0xff]
    %v42 = vld [vmem:[%s0 + $0xd8] sm:$0xff]
    %v43 = vld [vmem:[%s0 + $0xe0] sm:$0xff]
    %v44 = vld [vmem:[%s0 + $0xe8] sm:$0xff]
    %v45 = vld [vmem:[%s0 + $0xf0] sm:$0xff]
    %v46 = vld [vmem:[%s0 + $0xf8] sm:$0xff]
    %v47 = vld [vmem:[%s0 + $0x100] sm:$0xff]
    %v48 = vld [vmem:[%s0 + $0x108] sm:$0xff]
    %v49 = vld [vmem:[%s0 + $0x110] sm:$0xff]
    %v50 = vld [vmem:[%s0 + $0x118] sm:$0xff]
    %v51 = vld [vmem:[%s0 + $0x120] sm:$0xff]
    %v52 = vld [vmem:[%s0 + $0x128] sm:$0xff]
    %v53 = vld [vmem:[%s0 + $0x130] sm:$0xff]
    %v54 = vld [vmem:[%s0 + $0x138] sm:$0xff]
    %v55 = vld [vmem:[%s0 + $0x140] sm:$0xff]
    %v56 = vld [vmem:[%s0 + $0x148] sm:$0xff]
    %v57 = vld [vmem:[%s0 + $0x150] sm:$0xff]
    %v58 = vld [vmem:[%s0 + $0x158] sm:$0xff]
    %v59 = vld [vmem:[%s0 + $0x160] sm:$0xff]
    %v60 = vld [vmem:[%s0 + $0x168] sm:$0xff]
    %v61 = vld [vmem:[%s0 + $0x170] sm:$0xff]
    %v62 = vld [vmem:[%s0 + $0x178] sm:$0xff]
    %v63 = vld [vmem:[%s0 + $0x180] sm:$0xff]
    %v64 = vld [vmem:[%s0 + $0x188] sm:$0xff]
    %v65 = vld [vmem:[%s0 + $0x190] sm:$0xff]
    %v66 = vld [vmem:[%s0 + $0x198] sm:$0xff]
    %v67 = vld [vmem:[%s0 + $0x1a0] sm:$0xff]
    %v68 = vld [vmem:[%s0 + $0x1a8] sm:$0xff]
    %v69 = vld [vmem:[%s0 + $0x1b0] sm:$0xff]
    %v70 = vld [vmem:[%s0 + $0x1b8] sm:$0xff]
    %v71 = vld [vmem:[%s0 + $0x1c0] sm:$0xff]
    %v72 = vld [vmem:[%s0 + $0x1c8] sm:$0xff]
    %v73 = vld [vmem:[%s0 + $0x1d0] sm:$0xff]
    %v74 = vld [vmem:[%s0 + $0x1d8] sm:$0xff]
    %v75 = vld [vmem:[%s0 + $0x1e0] sm:$0xff]
    %v76 = vld [vmem:[%s0 + $0x1e8] sm:$0xff]
    %v77 = vld [vmem:[%s0 + $0x1f0] sm:$0xff]
    %v78 = vld [vmem:[%s0 + $0x1f8] sm:$0xff]
    %v79 = vld [vmem:[%s0 + $0x200] sm:$0xff]
    %v80 = vld [vmem:[%s0 + $0x208] sm:$0xff]
    %v81 = vld [vmem:[%s0 + $0x210] sm:$0xff]
    %v82 = vld [vmem:[%s0 + $0x218] sm:$0xff]
    %v83 = vld [vmem:[%s0 + $0x220] sm:$0xff]
    %v84 = vld [vmem:[%s0 + $0x228] sm:$0xff]
    %v85 = vld [vmem:[%s0 + $0x230] sm:$0xff]
    %v86 = vld [vmem:[%s0 + $0x238] sm:$0xff]
    %v87 = vld [vmem:[%s0 + $0x240] sm:$0xff]
    %v88 = vld [vmem:[%s0 + $0x248] sm:$0xff]
    %v89 = vld [vmem:[%s0 + $0x250] sm:$0xff]
    %v90 = vld [vmem:[%s0 + $0x258] sm:$0xff]
    %v91 = vld [vmem:[%s0 + $0x260] sm:$0xff]
    %v92 = vld [vmem:[%s0 + $0x268] sm:$0xff]
    %v93 = vld [vmem:[%s0 + $0x270] sm:$0xff]
    %v94 = vld [vmem:[%s0 + $0x278] sm:$0xff]
    %v95 = vld [vmem:[%s0 + $0x280] sm:$0xff]
    %v96 = vld [vmem:[%s0 + $0x288] sm:$0xff]
    %v97 = vld [vmem:[%s0 + $0x290] sm:$0xff]
    %v98 = vld [vmem:[%s0 + $0x298] sm:$0xff]
    %v99 = vld [vmem:[%s0 + $0x2a0] sm:$0xff]
    %v100 = vld [vmem:[%s0 + $0x2a8] sm:$0xff]
    %v101 = vld [vmem:[%s0 + $0x2b0] sm:$0xff]
    %v102 = vld [vmem:[%s0 + $0x2b8] sm:$0xff]
    %v103 = vld [vmem:[%s0 + $0x2c0] sm:$0xff]
    %v104 = vld [vmem:[%s0 + $0x2c8] sm:$0xff]
    %v105 = vld [vmem:[%s0 + $0x2d0] sm:$0xff]
    %v106 = vld [vmem:[%s0 + $0x2d8] sm:$0xff]
    %v107 = vld [vmem:[%s0 + $0x2e0] sm:$0xff]
    %v108 = vld [vmem:[%s0 + $0x2e8] sm:$0xff]
    %v109 = vld [vmem:[%s0 + $0x2f0] sm:$0xff]
    %v110 = vld [vmem:[%s0 + $0x2f8] sm:$0xff]
    %v111 = vld [vmem:[%s0 + $0x300] sm:$0xff]
    %v112 = vld [vmem:[%s0 + $0x308] sm:$0xff]
    %v113 = vld [vmem:[%s0 + $0x310] sm:$0xff]
    %v114 = vld [vmem:[%s0 + $0x318] sm:$0xff]
    %v115 = vld [vmem:[%s0 + $0x320] sm:$0xff]
    %v116 = vld [vmem:[%s0 + $0x328] sm:$0xff]
    %v117 = vld [vmem:[%s0 + $0x330] sm:$0xff]
    %v118 = vld [vmem:[%s0 + $0x338] sm:$0xff]
    %v119 = vld [vmem:[%s0 + $0x340] sm:$0xff]
    %v120 = vld [vmem:[%s0 + $0x348] sm:$0xff]
    %v121 = vld [vmem:[%s0 + $0x350] sm:$0xff]
    %v122 = vld [vmem:[%s0 + $0x358] sm:$0xff]
    %v123 = vld [vmem:[%s0 + $0x360] sm:$0xff]
    %v124 = vld [vmem:[%s0 + $0x368] sm:$0xff]
    %v125 = vld [vmem:[%s0 + $0x370] sm:$0xff]
    %v126 = vld [vmem:[%s0 + $0x378] sm:$0xff]
    %v127 = vld [vmem:[%s0 + $0x380] sm:$0xff]
    %v128 = vld [vmem:[%s0 + $0x388] sm:$0xff]
    %v129 = vld [vmem:[%s0 + $0x390] sm:$0xff]
    %v130 = vld [vmem:[%s0 + $0x398] sm:$0xff]
    %v131 = vld [vmem:[%s0 + $0x3a0] sm:$0xff]
    %v132 = vld [vmem:[%s0 + $0x3a8] sm:$0xff]
    %v133 = vld [vmem:[%s0 + $0x3b0] sm:$0xff]
    %v134 = vld [vmem:[%s0 + $0x3b8] sm:$0xff]
    %v135 = vld [vmem:[%s0 + $0x3c0] sm:$0xff]
    %v136 = vld [vmem:[%s0 + $0x3c8] sm:$0xff]
    %v137 = vld [vmem:[%s0 + $0x3d0] sm:$0xff]
    %v138 = vld [vmem:[%s0 + $0x3d8] sm:$0xff]
    %v139 = vld [vmem:[%s0 + $0x3e0] sm:$0xff]
    %v140 = vld [vmem:[%s0 + $0x3e8] sm:$0xff]
    %v141 = vld [vmem:[%s0 + $0x3f0] sm:$0xff]
    %v142 = vld [vmem:[%s0 + $0x3f8] sm:$0xff]
    %v143 = vld [vmem:[%s0 + $0x400] sm:$0xff]
    %v144 = vld [vmem:[%s0 + $0x408] sm:$0xff]
    %v145 = vld [vmem:[%s0 + $0x410] sm:$0xff]
    %v146 = vld [vmem:[%s0 + $0x418] sm:$0xff]
    %v147 = vld [vmem:[%s0 + $0x420] sm:$0xff]
    %v148 = vld [vmem:[%s0 + $0x428] sm:$0xff]
    %v149 = vld [vmem:[%s0 + $0x430] sm:$0xff]
    %v150 = vld [vmem:[%s0 + $0x438] sm:$0xff]
    %v151 = vld [vmem:[%s0 + $0x440] sm:$0xff]
    %v152 = vld [vmem:[%s0 + $0x448] sm:$0xff]
    %v153 = vld [vmem:[%s1] sm:$0xff]
    %v154 = vld [vmem:[%s1 + $0x8] sm:$0xff]
    %v155 = vld [vmem:[%s1 + $0x10] sm:$0xff]
    %v156 = vld [vmem:[%s1 + $0x18] sm:$0xff]
    %v157 = vld [vmem:[%s1 + $0x20] sm:$0xff]
    %v158 = vld [vmem:[%s1 + $0x28] sm:$0xff]
    %v159 = vld [vmem:[%s1 + $0x30] sm:$0xff]
    %v160 = vld [vmem:[%s1 + $0x38] sm:$0xff]
    %v161 = vld [vmem:[%s1 + $0x40] sm:$0xff]
    %v162 = vld [vmem:[%s1 + $0x48] sm:$0xff]
    %v163 = vld [vmem:[%s1 + $0x50] sm:$0xff]
    %v164 = vld [vmem:[%s1 + $0x58] sm:$0xff]
    %v165 = vld [vmem:[%s1 + $0x60] sm:$0xff]
    %v166 = vld [vmem:[%s1 + $0x68] sm:$0xff]
    %v167 = vld [vmem:[%s1 + $0x70] sm:$0xff]
    %v168 = vld [vmem:[%s1 + $0x78] sm:$0xff]
    %v169 = vld [vmem:[%s1 + $0x80] sm:$0xff]
    %v170 = vld [vmem:[%s1 + $0x88] sm:$0xff]
    %v171 = vld [vmem:[%s1 + $0x90] sm:$0xff]
    %v172 = vld [vmem:[%s1 + $0x98] sm:$0xff]
    %v173 = vld [vmem:[%s1 + $0xa0] sm:$0xff]
    %v174 = vld [vmem:[%s1 + $0xa8] sm:$0xff]
    %v175 = vld [vmem:[%s1 + $0xb0] sm:$0xff]
    %v176 = vld [vmem:[%s1 + $0xb8] sm:$0xff]
    %v177 = vld [vmem:[%s1 + $0xc0] sm:$0xff]
    %v178 = vld [vmem:[%s1 + $0xc8] sm:$0xff]
    %v179 = vld [vmem:[%s1 + $0xd0] sm:$0xff]
    %v180 = vld [vmem:[%s1 + $0xd8] sm:$0xff]
    %v181 = vld [vmem:[%s1 + $0xe0] sm:$0xff]
    %v182 = vld [vmem:[%s1 + $0xe8] sm:$0xff]
    %v183 = vld [vmem:[%s1 + $0xf0] sm:$0xff]
    %v184 = vld [vmem:[%s1 + $0xf8] sm:$0xff]
    %v185 = vld [vmem:[%s1 + $0x100] sm:$0xff]
    %v186 = vld [vmem:[%s1 + $0x108] sm:$0xff]
    %v187 = vld [vmem:[%s1 + $0x110] sm:$0xff]
    %v188 = vld [vmem:[%s1 + $0x118] sm:$0xff]
    %v189 = vld [vmem:[%s1 + $0x120] sm:$0xff]
    %v190 = vld [vmem:[%s1 + $0x128] sm:$0xff]
    %v191 = vld [vmem:[%s1 + $0x130] sm:$0xff]
    %v192 = vld [vmem:[%s1 + $0x138] sm:$0xff]
    %v193 = vld [vmem:[%s1 + $0x140] sm:$0xff]
    %v194 = vld [vmem:[%s1 + $0x148] sm:$0xff]
    %v195 = vld [vmem:[%s1 + $0x150] sm:$0xff]
    %v196 = vld [vmem:[%s1 + $0x158] sm:$0xff]
    %v197 = vld [vmem:[%s1 + $0x160] sm:$0xff]
    %v198 = vld [vmem:[%s1 + $0x168] sm:$0xff]
    %v199 = vld [vmem:[%s1 + $0x170] sm:$0xff]
    %v200 = vld [vmem:[%s1 + $0x178] sm:$0xff]
    %v201 = vld [vmem:[%s1 + $0x180] sm:$0xff]
    %v202 = vld [vmem:[%s1 + $0x188] sm:$0xff]
    %v203 = vld [vmem:[%s1 + $0x190] sm:$0xff]
    %v204 = vld [vmem:[%s1 + $0x198] sm:$0xff]
    %v205 = vld [vmem:[%s1 + $0x1a0] sm:$0xff]
    %v206 = vld [vmem:[%s1 + $0x1a8] sm:$0xff]
    %v207 = vld [vmem:[%s1 + $0x1b0] sm:$0xff]
    %v208 = vld [vmem:[%s1 + $0x1b8] sm:$0xff]
    %v209 = vld [vmem:[%s1 + $0x1c0] sm:$0xff]
    %v210 = vld [vmem:[%s1 + $0x1c8] sm:$0xff]
    %v211 = vld [vmem:[%s1 + $0x1d0] sm:$0xff]
    %v212 = vld [vmem:[%s1 + $0x1d8] sm:$0xff]
    %v213 = vld [vmem:[%s1 + $0x1e0] sm:$0xff]
    %v214 = vld [vmem:[%s1 + $0x1e8] sm:$0xff]
    %v215 = vld [vmem:[%s1 + $0x1f0] sm:$0xff]
    %v216 = vld [vmem:[%s1 + $0x1f8] sm:$0xff]
    %v217 = vld [vmem:[%s1 + $0x200] sm:$0xff]
    %v218 = vld [vmem:[%s1 + $0x208] sm:$0xff]
    %v219 = vld [vmem:[%s1 + $0x210] sm:$0xff]
    %v220 = vld [vmem:[%s1 + $0x218] sm:$0xff]
    %v221 = vld [vmem:[%s1 + $0x220] sm:$0xff]
    %v222 = vmul.f32 %v15, %v153
    %v223 = vmul.f32 %v16, %v154
    %v224 = vmul.f32 %v17, %v155
    %v225 = vmul.f32 %v18, %v156
    %v226 = vmul.f32 %v19, %v157
    %v227 = vmul.f32 %v20, %v158
    %v228 = vmul.f32 %v21, %v159
    %v229 = vmul.f32 %v22, %v160
    %v230 = vmul.f32 %v23, %v161
    %v231 = vmul.f32 %v24, %v162
    %v232 = vmul.f32 %v25, %v163
    %v233 = vmul.f32 %v26, %v164
    %v234 = vmul.f32 %v27, %v165
    %v235 = vmul.f32 %v28, %v166
    %v236 = vmul.f32 %v29, %v167
    %v237 = vmul.f32 %v30, %v168
    %v238 = vmul.f32 %v31, %v169
    %v239 = vmul.f32 %v32, %v170
    %v240 = vmul.f32 %v33, %v171
    %v241 = vmul.f32 %v34, %v172
    %v242 = vmul.f32 %v35, %v173
    %v243 = vmul.f32 %v36, %v174
    %v244 = vmul.f32 %v37, %v175
    %v245 = vmul.f32 %v38, %v176
    %v246 = vmul.f32 %v39, %v177
    %v247 = vmul.f32 %v40, %v178
    %v248 = vmul.f32 %v41, %v179
    %v249 = vmul.f32 %v42, %v180
    %v250 = vmul.f32 %v43, %v181
    %v251 = vmul.f32 %v44, %v182
    %v252 = vmul.f32 %v45, %v183
    %v253 = vmul.f32 %v46, %v184
    %v254 = vmul.f32 %v47, %v185
    %v255 = vmul.f32 %v48, %v186
    %v256 = vmul.f32 %v49, %v187
    %v257 = vmul.f32 %v50, %v188
    %v258 = vmul.f32 %v51, %v189
    %v259 = vmul.f32 %v52, %v190
    %v260 = vmul.f32 %v53, %v191
    %v261 = vmul.f32 %v54, %v192
    %v262 = vmul.f32 %v55, %v193
    %v263 = vmul.f32 %v56, %v194
    %v264 = vmul.f32 %v57, %v195
    %v265 = vmul.f32 %v58, %v196
    %v266 = vmul.f32 %v59, %v197
    %v267 = vmul.f32 %v60, %v198
    %v268 = vmul.f32 %v61, %v199
    %v269 = vmul.f32 %v62, %v200
    %v270 = vmul.f32 %v63, %v201
    %v271 = vmul.f32 %v64, %v202
    %v272 = vmul.f32 %v65, %v203
    %v273 = vmul.f32 %v66, %v204
    %v274 = vmul.f32 %v67, %v205
    %v275 = vmul.f32 %v68, %v206
    %v276 = vmul.f32 %v69, %v207
    %v277 = vmul.f32 %v70, %v208
    %v278 = vmul.f32 %v71, %v209
    %v279 = vmul.f32 %v72, %v210
    %v280 = vmul.f32 %v73, %v211
    %v281 = vmul.f32 %v74, %v212
    %v282 = vmul.f32 %v75, %v213
    %v283 = vmul.f32 %v76, %v214
    %v284 = vmul.f32 %v77, %v215
    %v285 = vmul.f32 %v78, %v216
    %v286 = vmul.f32 %v79, %v217
    %v287 = vmul.f32 %v80, %v218
    %v288 = vmul.f32 %v81, %v219
    %v289 = vmul.f32 %v82, %v220
    %v290 = vmul.f32 %v83, %v221
    %v291 = vmul.f32 %v84, %v153
    %v292 = vmul.f32 %v85, %v154
    %v293 = vmul.f32 %v86, %v155
    %v294 = vmul.f32 %v87, %v156
    %v295 = vmul.f32 %v88, %v157
    %v296 = vmul.f32 %v89, %v158
    %v297 = vmul.f32 %v90, %v159
    %v298 = vmul.f32 %v91, %v160
    %v299 = vmul.f32 %v92, %v161
    %v300 = vmul.f32 %v93, %v162
    %v301 = vmul.f32 %v94, %v163
    %v302 = vmul.f32 %v95, %v164
    %v303 = vmul.f32 %v96, %v165
    %v304 = vmul.f32 %v97, %v166
    %v305 = vmul.f32 %v98, %v167
    %v306 = vmul.f32 %v99, %v168
    %v307 = vmul.f32 %v100, %v169
    %v308 = vmul.f32 %v101, %v170
    %v309 = vmul.f32 %v102, %v171
    %v310 = vmul.f32 %v103, %v172
    %v311 = vmul.f32 %v104, %v173
    %v312 = vmul.f32 %v105, %v174
    %v313 = vmul.f32 %v106, %v175
    %v314 = vmul.f32 %v107, %v176
    %v315 = vmul.f32 %v108, %v177
    %v316 = vmul.f32 %v109, %v178
    %v317 = vmul.f32 %v110, %v179
    %v318 = vmul.f32 %v111, %v180
    %v319 = vmul.f32 %v112, %v181
    %v320 = vmul.f32 %v113, %v182
    %v321 = vmul.f32 %v114, %v183
    %v322 = vmul.f32 %v115, %v184
    %v323 = vmul.f32 %v116, %v185
    %v324 = vmul.f32 %v117, %v186
    %v325 = vmul.f32 %v118, %v187
    %v326 = vmul.f32 %v119, %v188
    %v327 = vmul.f32 %v120, %v189
    %v328 = vmul.f32 %v121, %v190
    %v329 = vmul.f32 %v122, %v191
    %v330 = vmul.f32 %v123, %v192
    %v331 = vmul.f32 %v124, %v193
    %v332 = vmul.f32 %v125, %v194
    %v333 = vmul.f32 %v126, %v195
    %v334 = vmul.f32 %v127, %v196
    %v335 = vmul.f32 %v128, %v197
    %v336 = vmul.f32 %v129, %v198
    %v337 = vmul.f32 %v130, %v199
    %v338 = vmul.f32 %v131, %v200
    %v339 = vmul.f32 %v132, %v201
    %v340 = vmul.f32 %v133, %v202
    %v341 = vmul.f32 %v134, %v203
    %v342 = vmul.f32 %v135, %v204
    %v343 = vmul.f32 %v136, %v205
    %v344 = vmul.f32 %v137, %v206
    %v345 = vmul.f32 %v138, %v207
    %v346 = vmul.f32 %v139, %v208
    %v347 = vmul.f32 %v140, %v209
    %v348 = vmul.f32 %v141, %v210
    %v349 = vmul.f32 %v142, %v211
    %v350 = vmul.f32 %v143, %v212
    %v351 = vmul.f32 %v144, %v213
    %v352 = vmul.f32 %v145, %v214
    %v353 = vmul.f32 %v146, %v215
    %v354 = vmul.f32 %v147, %v216
    %v355 = vmul.f32 %v148, %v217
    %v356 = vmul.f32 %v149, %v218
    %v357 = vmul.f32 %v150, %v219
    %v358 = vmul.f32 %v151, %v220
    %v359 = vmul.f32 %v152, %v221
    %v360 = vadd.f32 %v222, %v223
    %v361 = vadd.f32 %v360, %v224
    %v362 = vadd.f32 %v361, %v225
    %v363 = vadd.f32 %v362, %v226
    %v364 = vadd.f32 %v363, %v227
    %v365 = vadd.f32 %v364, %v228
    %v366 = vadd.f32 %v365, %v229
    %v367 = vadd.f32 %v366, %v230
    %v368 = vadd.f32 %v367, %v231
    %v369 = vadd.f32 %v368, %v232
    %v370 = vadd.f32 %v369, %v233
    %v371 = vadd.f32 %v370, %v234
    %v372 = vadd.f32 %v371, %v235
    %v373 = vadd.f32 %v372, %v236
    %v374 = vadd.f32 %v373, %v237
    %v375 = vadd.f32 %v374, %v238
    %v376 = vadd.f32 %v375, %v239
    %v377 = vadd.f32 %v376, %v240
    %v378 = vadd.f32 %v377, %v241
    %v379 = vadd.f32 %v378, %v242
    %v380 = vadd.f32 %v379, %v243
    %v381 = vadd.f32 %v380, %v244
    %v382 = vadd.f32 %v381, %v245
    %v383 = vadd.f32 %v382, %v246
    %v384 = vadd.f32 %v383, %v247
    %v385 = vadd.f32 %v384, %v248
    %v386 = vadd.f32 %v385, %v249
    %v387 = vadd.f32 %v386, %v250
    %v388 = vadd.f32 %v387, %v251
    %v389 = vadd.f32 %v388, %v252
    %v390 = vadd.f32 %v389, %v253
    %v391 = vadd.f32 %v390, %v254
    %v392 = vadd.f32 %v391, %v255
    %v393 = vadd.f32 %v392, %v256
    %v394 = vadd.f32 %v393, %v257
    %v395 = vadd.f32 %v394, %v258
    %v396 = vadd.f32 %v395, %v259
    %v397 = vadd.f32 %v396, %v260
    %v398 = vadd.f32 %v397, %v261
    %v399 = vadd.f32 %v398, %v262
    %v400 = vadd.f32 %v399, %v263
    %v401 = vadd.f32 %v400, %v264
    %v402 = vadd.f32 %v401, %v265
    %v403 = vadd.f32 %v402, %v266
    %v404 = vadd.f32 %v403, %v267
    %v405 = vadd.f32 %v404, %v268
    %v406 = vadd.f32 %v405, %v269
    %v407 = vadd.f32 %v406, %v270
    %v408 = vadd.f32 %v407, %v271
    %v409 = vadd.f32 %v408, %v272
    %v410 = vadd.f32 %v409, %v273
    %v411 = vadd.f32 %v410, %v274
    %v412 = vadd.f32 %v411, %v275
    %v413 = vadd.f32 %v412, %v276
    %v414 = vadd.f32 %v413, %v277
    %v415 = vadd.f32 %v414, %v278
    %v416 = vadd.f32 %v415, %v279
    %v417 = vadd.f32 %v416, %v280
    %v418 = vadd.f32 %v417, %v281
    %v419 = vadd.f32 %v418, %v282
    %v420 = vadd.f32 %v419, %v283
    %v421 = vadd.f32 %v420, %v284
    %v422 = vadd.f32 %v421, %v285
    %v423 = vadd.f32 %v422, %v286
    %v424 = vadd.f32 %v423, %v287
    %v425 = vadd.f32 %v424, %v288
    %v426 = vadd.f32 %v425, %v289
    %vm427 = vcmask 359424
    %v428 = vsel %vm427, %v290, 0.0
    %v429 = vadd.f32 %v426, %v428
    %430 = vadd.xlane.f32.xlu0 %v429
    %v431 = vpop.xlane.xlu0 %430
    %v432 = vadd.f32 %v291, %v292
    %v433 = vadd.f32 %v432, %v293
    %v434 = vadd.f32 %v433, %v294
    %v435 = vadd.f32 %v434, %v295
    %v436 = vadd.f32 %v435, %v296
    %v437 = vadd.f32 %v436, %v297
    %v438 = vadd.f32 %v437, %v298
    %v439 = vadd.f32 %v438, %v299
    %v440 = vadd.f32 %v439, %v300
    %v441 = vadd.f32 %v440, %v301
    %v442 = vadd.f32 %v441, %v302
    %v443 = vadd.f32 %v442, %v303
    %v444 = vadd.f32 %v443, %v304
    %v445 = vadd.f32 %v444, %v305
    %v446 = vadd.f32 %v445, %v306
    %v447 = vadd.f32 %v446, %v307
    %v448 = vadd.f32 %v447, %v308
    %v449 = vadd.f32 %v448, %v309
    %v450 = vadd.f32 %v449, %v310
    %v451 = vadd.f32 %v450, %v311
    %v452 = vadd.f32 %v451, %v312
    %v453 = vadd.f32 %v452, %v313
    %v454 = vadd.f32 %v453, %v314
    %v455 = vadd.f32 %v454, %v315
    %v456 = vadd.f32 %v455, %v316
    %v457 = vadd.f32 %v456, %v317
    %v458 = vadd.f32 %v457, %v318
    %v459 = vadd.f32 %v458, %v319
    %v460 = vadd.f32 %v459, %v320
    %v461 = vadd.f32 %v460, %v321
    %v462 = vadd.f32 %v461, %v322
    %v463 = vadd.f32 %v462, %v323
    %v464 = vadd.f32 %v463, %v324
    %v465 = vadd.f32 %v464, %v325
    %v466 = vadd.f32 %v465, %v326
    %v467 = vadd.f32 %v466, %v327
    %v468 = vadd.f32 %v467, %v328
    %v469 = vadd.f32 %v468, %v329
    %v470 = vadd.f32 %v469, %v330
    %v471 = vadd.f32 %v470, %v331
    %v472 = vadd.f32 %v471, %v332
    %v473 = vadd.f32 %v472, %v333
    %v474 = vadd.f32 %v473, %v334
    %v475 = vadd.f32 %v474, %v335
    %v476 = vadd.f32 %v475, %v336
    %v477 = vadd.f32 %v476, %v337
    %v478 = vadd.f32 %v477, %v338
    %v479 = vadd.f32 %v478, %v339
    %v480 = vadd.f32 %v479, %v340
    %v481 = vadd.f32 %v480, %v341
    %v482 = vadd.f32 %v481, %v342
    %v483 = vadd.f32 %v482, %v343
    %v484 = vadd.f32 %v483, %v344
    %v485 = vadd.f32 %v484, %v345
    %v486 = vadd.f32 %v485, %v346
    %v487 = vadd.f32 %v486, %v347
    %v488 = vadd.f32 %v487, %v348
    %v489 = vadd.f32 %v488, %v349
    %v490 = vadd.f32 %v489, %v350
    %v491 = vadd.f32 %v490, %v351
    %v492 = vadd.f32 %v491, %v352
    %v493 = vadd.f32 %v492, %v353
    %v494 = vadd.f32 %v493, %v354
    %v495 = vadd.f32 %v494, %v355
    %v496 = vadd.f32 %v495, %v356
    %v497 = vadd.f32 %v496, %v357
    %v498 = vadd.f32 %v497, %v358
    %v499 = vsel %vm427, %v359, 0.0
    %v500 = vadd.f32 %v498, %v499
    %501 = vadd.xlane.f32.xlu0 %v500
    %v502 = vpop.xlane.xlu0 %501
    %v505 = vlaneseq
    %v506 = vand.u32 %v505, 127
    %v507 = vlaneseq
    %v508 = vshrl.u32 %v507, 7
    %v509 = vsub.s32 %v506, %v508
    %v510 = vrot.slane %v431, %v509
    %v511 = vlaneseq
    %v512 = vshrl.u32 %v511, 7
    %v513 = vsub.s32 %v506, %v512
    %v514 = vrot.slane %v502, %v513
    %vm515 = vcmask 1041409
    %v516 = vsel %vm515, %v514, %v510
    %vm518 = vcmask 58368
    %v519 = vsel %vm518, %v516, 0.0
    %520 = vadd.xlane.f32.xlu0 %v519
    %v521 = vpop.xlane.xlu0 %520
    %v522 = vld [vmem:[%s2] sm:$0x1]
    %v524 = vlaneseq
    %v525 = vshrl.u32 %v524, 7
    %v526 = vsub.s32 0, %v525
    %v527 = vrot.slane %v522, %v526
    %v529 = vadd.f32 %v521, %v527
    %vm530 = vcmask 1024
    %531 = vst.msk [vmem:[#allocation2] sm:$0x3] %vm530, %v529
    %s532 = scalar_lea.vmem %s1, 552
    %v533 = vld [vmem:[%s532] sm:$0xff]
    %v534 = vld [vmem:[%s532 + $0x8] sm:$0xff]
    %v535 = vld [vmem:[%s532 + $0x10] sm:$0xff]
    %v536 = vld [vmem:[%s532 + $0x18] sm:$0xff]
    %v537 = vld [vmem:[%s532 + $0x20] sm:$0xff]
    %v538 = vld [vmem:[%s532 + $0x28] sm:$0xff]
    %v539 = vld [vmem:[%s532 + $0x30] sm:$0xff]
    %v540 = vld [vmem:[%s532 + $0x38] sm:$0xff]
    %v541 = vld [vmem:[%s532 + $0x40] sm:$0xff]
    %v542 = vld [vmem:[%s532 + $0x48] sm:$0xff]
    %v543 = vld [vmem:[%s532 + $0x50] sm:$0xff]
    %v544 = vld [vmem:[%s532 + $0x58] sm:$0xff]
    %v545 = vld [vmem:[%s532 + $0x60] sm:$0xff]
    %v546 = vld [vmem:[%s532 + $0x68] sm:$0xff]
    %v547 = vld [vmem:[%s532 + $0x70] sm:$0xff]
    %v548 = vld [vmem:[%s532 + $0x78] sm:$0xff]
    %v549 = vld [vmem:[%s532 + $0x80] sm:$0xff]
    %v550 = vld [vmem:[%s532 + $0x88] sm:$0xff]
    %v551 = vld [vmem:[%s532 + $0x90] sm:$0xff]
    %v552 = vld [vmem:[%s532 + $0x98] sm:$0xff]
    %v553 = vld [vmem:[%s532 + $0xa0] sm:$0xff]
    %v554 = vld [vmem:[%s532 + $0xa8] sm:$0xff]
    %v555 = vld [vmem:[%s532 + $0xb0] sm:$0xff]
    %v556 = vld [vmem:[%s532 + $0xb8] sm:$0xff]
    %v557 = vld [vmem:[%s532 + $0xc0] sm:$0xff]
    %v558 = vld [vmem:[%s532 + $0xc8] sm:$0xff]
    %v559 = vld [vmem:[%s532 + $0xd0] sm:$0xff]
    %v560 = vld [vmem:[%s532 + $0xd8] sm:$0xff]
    %v561 = vld [vmem:[%s532 + $0xe0] sm:$0xff]
    %v562 = vld [vmem:[%s532 + $0xe8] sm:$0xff]
    %v563 = vld [vmem:[%s532 + $0xf0] sm:$0xff]
    %v564 = vld [vmem:[%s532 + $0xf8] sm:$0xff]
    %v565 = vld [vmem:[%s532 + $0x100] sm:$0xff]
    %v566 = vld [vmem:[%s532 + $0x108] sm:$0xff]
    %v567 = vld [vmem:[%s532 + $0x110] sm:$0xff]
    %v568 = vld [vmem:[%s532 + $0x118] sm:$0xff]
    %v569 = vld [vmem:[%s532 + $0x120] sm:$0xff]
    %v570 = vld [vmem:[%s532 + $0x128] sm:$0xff]
    %v571 = vld [vmem:[%s532 + $0x130] sm:$0xff]
    %v572 = vld [vmem:[%s532 + $0x138] sm:$0xff]
    %v573 = vld [vmem:[%s532 + $0x140] sm:$0xff]
    %v574 = vld [vmem:[%s532 + $0x148] sm:$0xff]
    %v575 = vld [vmem:[%s532 + $0x150] sm:$0xff]
    %v576 = vld [vmem:[%s532 + $0x158] sm:$0xff]
    %v577 = vld [vmem:[%s532 + $0x160] sm:$0xff]
    %v578 = vld [vmem:[%s532 + $0x168] sm:$0xff]
    %v579 = vld [vmem:[%s532 + $0x170] sm:$0xff]
    %v580 = vld [vmem:[%s532 + $0x178] sm:$0xff]
    %v581 = vld [vmem:[%s532 + $0x180] sm:$0xff]
    %v582 = vld [vmem:[%s532 + $0x188] sm:$0xff]
    %v583 = vld [vmem:[%s532 + $0x190] sm:$0xff]
    %v584 = vld [vmem:[%s532 + $0x198] sm:$0xff]
    %v585 = vld [vmem:[%s532 + $0x1a0] sm:$0xff]
    %v586 = vld [vmem:[%s532 + $0x1a8] sm:$0xff]
    %v587 = vld [vmem:[%s532 + $0x1b0] sm:$0xff]
    %v588 = vld [vmem:[%s532 + $0x1b8] sm:$0xff]
    %v589 = vld [vmem:[%s532 + $0x1c0] sm:$0xff]
    %v590 = vld [vmem:[%s532 + $0x1c8] sm:$0xff]
    %v591 = vld [vmem:[%s532 + $0x1d0] sm:$0xff]
    %v592 = vld [vmem:[%s532 + $0x1d8] sm:$0xff]
    %v593 = vld [vmem:[%s532 + $0x1e0] sm:$0xff]
    %v594 = vld [vmem:[%s532 + $0x1e8] sm:$0xff]
    %v595 = vld [vmem:[%s532 + $0x1f0] sm:$0xff]
    %v596 = vld [vmem:[%s532 + $0x1f8] sm:$0xff]
    %v597 = vld [vmem:[%s532 + $0x200] sm:$0xff]
    %v598 = vld [vmem:[%s532 + $0x208] sm:$0xff]
    %v599 = vld [vmem:[%s532 + $0x210] sm:$0xff]
    %v600 = vld [vmem:[%s532 + $0x218] sm:$0xff]
    %v601 = vld [vmem:[%s532 + $0x220] sm:$0xff]
    %v602 = vmul.f32 %v15, %v533
    %v603 = vmul.f32 %v16, %v534
    %v604 = vmul.f32 %v17, %v535
    %v605 = vmul.f32 %v18, %v536
    %v606 = vmul.f32 %v19, %v537
    %v607 = vmul.f32 %v20, %v538
    %v608 = vmul.f32 %v21, %v539
    %v609 = vmul.f32 %v22, %v540
    %v610 = vmul.f32 %v23, %v541
    %v611 = vmul.f32 %v24, %v542
    %v612 = vmul.f32 %v25, %v543
    %v613 = vmul.f32 %v26, %v544
    %v614 = vmul.f32 %v27, %v545
    %v615 = vmul.f32 %v28, %v546
    %v616 = vmul.f32 %v29, %v547
    %v617 = vmul.f32 %v30, %v548
    %v618 = vmul.f32 %v31, %v549
    %v619 = vmul.f32 %v32, %v550
    %v620 = vmul.f32 %v33, %v551
    %v621 = vmul.f32 %v34, %v552
    %v622 = vmul.f32 %v35, %v553
    %v623 = vmul.f32 %v36, %v554
    %v624 = vmul.f32 %v37, %v555
    %v625 = vmul.f32 %v38, %v556
    %v626 = vmul.f32 %v39, %v557
    %v627 = vmul.f32 %v40, %v558
    %v628 = vmul.f32 %v41, %v559
    %v629 = vmul.f32 %v42, %v560
    %v630 = vmul.f32 %v43, %v561
    %v631 = vmul.f32 %v44, %v562
    %v632 = vmul.f32 %v45, %v563
    %v633 = vmul.f32 %v46, %v564
    %v634 = vmul.f32 %v47, %v565
    %v635 = vmul.f32 %v48, %v566
    %v636 = vmul.f32 %v49, %v567
    %v637 = vmul.f32 %v50, %v568
    %v638 = vmul.f32 %v51, %v569
    %v639 = vmul.f32 %v52, %v570
    %v640 = vmul.f32 %v53, %v571
    %v641 = vmul.f32 %v54, %v572
    %v642 = vmul.f32 %v55, %v573
    %v643 = vmul.f32 %v56, %v574
    %v644 = vmul.f32 %v57, %v575
    %v645 = vmul.f32 %v58, %v576
    %v646 = vmul.f32 %v59, %v577
    %v647 = vmul.f32 %v60, %v578
    %v648 = vmul.f32 %v61, %v579
    %v649 = vmul.f32 %v62, %v580
    %v650 = vmul.f32 %v63, %v581
    %v651 = vmul.f32 %v64, %v582
    %v652 = vmul.f32 %v65, %v583
    %v653 = vmul.f32 %v66, %v584
    %v654 = vmul.f32 %v67, %v585
    %v655 = vmul.f32 %v68, %v586
    %v656 = vmul.f32 %v69, %v587
    %v657 = vmul.f32 %v70, %v588
    %v658 = vmul.f32 %v71, %v589
    %v659 = vmul.f32 %v72, %v590
    %v660 = vmul.f32 %v73, %v591
    %v661 = vmul.f32 %v74, %v592
    %v662 = vmul.f32 %v75, %v593
    %v663 = vmul.f32 %v76, %v594
    %v664 = vmul.f32 %v77, %v595
    %v665 = vmul.f32 %v78, %v596
    %v666 = vmul.f32 %v79, %v597
    %v667 = vmul.f32 %v80, %v598
    %v668 = vmul.f32 %v81, %v599
    %v669 = vmul.f32 %v82, %v600
    %v670 = vmul.f32 %v83, %v601
    %v671 = vmul.f32 %v84, %v533
    %v672 = vmul.f32 %v85, %v534
    %v673 = vmul.f32 %v86, %v535
    %v674 = vmul.f32 %v87, %v536
    %v675 = vmul.f32 %v88, %v537
    %v676 = vmul.f32 %v89, %v538
    %v677 = vmul.f32 %v90, %v539
    %v678 = vmul.f32 %v91, %v540
    %v679 = vmul.f32 %v92, %v541
    %v680 = vmul.f32 %v93, %v542
    %v681 = vmul.f32 %v94, %v543
    %v682 = vmul.f32 %v95, %v544
    %v683 = vmul.f32 %v96, %v545
    %v684 = vmul.f32 %v97, %v546
    %v685 = vmul.f32 %v98, %v547
    %v686 = vmul.f32 %v99, %v548
    %v687 = vmul.f32 %v100, %v549
    %v688 = vmul.f32 %v101, %v550
    %v689 = vmul.f32 %v102, %v551
    %v690 = vmul.f32 %v103, %v552
    %v691 = vmul.f32 %v104, %v553
    %v692 = vmul.f32 %v105, %v554
    %v693 = vmul.f32 %v106, %v555
    %v694 = vmul.f32 %v107, %v556
    %v695 = vmul.f32 %v108, %v557
    %v696 = vmul.f32 %v109, %v558
    %v697 = vmul.f32 %v110, %v559
    %v698 = vmul.f32 %v111, %v560
    %v699 = vmul.f32 %v112, %v561
    %v700 = vmul.f32 %v113, %v562
    %v701 = vmul.f32 %v114, %v563
    %v702 = vmul.f32 %v115, %v564
    %v703 = vmul.f32 %v116, %v565
    %v704 = vmul.f32 %v117, %v566
    %v705 = vmul.f32 %v118, %v567
    %v706 = vmul.f32 %v119, %v568
    %v707 = vmul.f32 %v120, %v569
    %v708 = vmul.f32 %v121, %v570
    %v709 = vmul.f32 %v122, %v571
    %v710 = vmul.f32 %v123, %v572
    %v711 = vmul.f32 %v124, %v573
    %v712 = vmul.f32 %v125, %v574
    %v713 = vmul.f32 %v126, %v575
    %v714 = vmul.f32 %v127, %v576
    %v715 = vmul.f32 %v128, %v577
    %v716 = vmul.f32 %v129, %v578
    %v717 = vmul.f32 %v130, %v579
    %v718 = vmul.f32 %v131, %v580
    %v719 = vmul.f32 %v132, %v581
    %v720 = vmul.f32 %v133, %v582
    %v721 = vmul.f32 %v134, %v583
    %v722 = vmul.f32 %v135, %v584
    %v723 = vmul.f32 %v136, %v585
    %v724 = vmul.f32 %v137, %v586
    %v725 = vmul.f32 %v138, %v587
    %v726 = vmul.f32 %v139, %v588
    %v727 = vmul.f32 %v140, %v589
    %v728 = vmul.f32 %v141, %v590
    %v729 = vmul.f32 %v142, %v591
    %v730 = vmul.f32 %v143, %v592
    %v731 = vmul.f32 %v144, %v593
    %v732 = vmul.f32 %v145, %v594
    %v733 = vmul.f32 %v146, %v595
    %v734 = vmul.f32 %v147, %v596
    %v735 = vmul.f32 %v148, %v597
    %v736 = vmul.f32 %v149, %v598
    %v737 = vmul.f32 %v150, %v599
    %v738 = vmul.f32 %v151, %v600
    %v739 = vmul.f32 %v152, %v601
    %v740 = vadd.f32 %v602, %v603
    %v741 = vadd.f32 %v740, %v604
    %v742 = vadd.f32 %v741, %v605
    %v743 = vadd.f32 %v742, %v606
    %v744 = vadd.f32 %v743, %v607
    %v745 = vadd.f32 %v744, %v608
    %v746 = vadd.f32 %v745, %v609
    %v747 = vadd.f32 %v746, %v610
    %v748 = vadd.f32 %v747, %v611
    %v749 = vadd.f32 %v748, %v612
    %v750 = vadd.f32 %v749, %v613
    %v751 = vadd.f32 %v750, %v614
    %v752 = vadd.f32 %v751, %v615
    %v753 = vadd.f32 %v752, %v616
    %v754 = vadd.f32 %v753, %v617
    %v755 = vadd.f32 %v754, %v618
    %v756 = vadd.f32 %v755, %v619
    %v757 = vadd.f32 %v756, %v620
    %v758 = vadd.f32 %v757, %v621
    %v759 = vadd.f32 %v758, %v622
    %v760 = vadd.f32 %v759, %v623
    %v761 = vadd.f32 %v760, %v624
    %v762 = vadd.f32 %v761, %v625
    %v763 = vadd.f32 %v762, %v626
    %v764 = vadd.f32 %v763, %v627
    %v765 = vadd.f32 %v764, %v628
    %v766 = vadd.f32 %v765, %v629
    %v767 = vadd.f32 %v766, %v630
    %v768 = vadd.f32 %v767, %v631
    %v769 = vadd.f32 %v768, %v632
    %v770 = vadd.f32 %v769, %v633
    %v771 = vadd.f32 %v770, %v634
    %v772 = vadd.f32 %v771, %v635
    %v773 = vadd.f32 %v772, %v636
    %v774 = vadd.f32 %v773, %v637
    %v775 = vadd.f32 %v774, %v638
    %v776 = vadd.f32 %v775, %v639
    %v777 = vadd.f32 %v776, %v640
    %v778 = vadd.f32 %v777, %v641
    %v779 = vadd.f32 %v778, %v642
    %v780 = vadd.f32 %v779, %v643
    %v781 = vadd.f32 %v780, %v644
    %v782 = vadd.f32 %v781, %v645
    %v783 = vadd.f32 %v782, %v646
    %v784 = vadd.f32 %v783, %v647
    %v785 = vadd.f32 %v784, %v648
    %v786 = vadd.f32 %v785, %v649
    %v787 = vadd.f32 %v786, %v650
    %v788 = vadd.f32 %v787, %v651
    %v789 = vadd.f32 %v788, %v652
    %v790 = vadd.f32 %v789, %v653
    %v791 = vadd.f32 %v790, %v654
    %v792 = vadd.f32 %v791, %v655
    %v793 = vadd.f32 %v792, %v656
    %v794 = vadd.f32 %v793, %v657
    %v795 = vadd.f32 %v794, %v658
    %v796 = vadd.f32 %v795, %v659
    %v797 = vadd.f32 %v796, %v660
    %v798 = vadd.f32 %v797, %v661
    %v799 = vadd.f32 %v798, %v662
    %v800 = vadd.f32 %v799, %v663
    %v801 = vadd.f32 %v800, %v664
    %v802 = vadd.f32 %v801, %v665
    %v803 = vadd.f32 %v802, %v666
    %v804 = vadd.f32 %v803, %v667
    %v805 = vadd.f32 %v804, %v668
    %v806 = vadd.f32 %v805, %v669
    %v807 = vsel %vm427, %v670, 0.0
    %v808 = vadd.f32 %v806, %v807
    %809 = vadd.xlane.f32.xlu0 %v808
    %v810 = vpop.xlane.xlu0 %809
    %v811 = vadd.f32 %v671, %v672
    %v812 = vadd.f32 %v811, %v673
    %v813 = vadd.f32 %v812, %v674
    %v814 = vadd.f32 %v813, %v675
    %v815 = vadd.f32 %v814, %v676
    %v816 = vadd.f32 %v815, %v677
    %v817 = vadd.f32 %v816, %v678
    %v818 = vadd.f32 %v817, %v679
    %v819 = vadd.f32 %v818, %v680
    %v820 = vadd.f32 %v819, %v681
    %v821 = vadd.f32 %v820, %v682
    %v822 = vadd.f32 %v821, %v683
    %v823 = vadd.f32 %v822, %v684
    %v824 = vadd.f32 %v823, %v685
    %v825 = vadd.f32 %v824, %v686
    %v826 = vadd.f32 %v825, %v687
    %v827 = vadd.f32 %v826, %v688
    %v828 = vadd.f32 %v827, %v689
    %v829 = vadd.f32 %v828, %v690
    %v830 = vadd.f32 %v829, %v691
    %v831 = vadd.f32 %v830, %v692
    %v832 = vadd.f32 %v831, %v693
    %v833 = vadd.f32 %v832, %v694
    %v834 = vadd.f32 %v833, %v695
    %v835 = vadd.f32 %v834, %v696
    %v836 = vadd.f32 %v835, %v697
    %v837 = vadd.f32 %v836, %v698
    %v838 = vadd.f32 %v837, %v699
    %v839 = vadd.f32 %v838, %v700
    %v840 = vadd.f32 %v839, %v701
    %v841 = vadd.f32 %v840, %v702
    %v842 = vadd.f32 %v841, %v703
    %v843 = vadd.f32 %v842, %v704
    %v844 = vadd.f32 %v843, %v705
    %v845 = vadd.f32 %v844, %v706
    %v846 = vadd.f32 %v845, %v707
    %v847 = vadd.f32 %v846, %v708
    %v848 = vadd.f32 %v847, %v709
    %v849 = vadd.f32 %v848, %v710
    %v850 = vadd.f32 %v849, %v711
    %v851 = vadd.f32 %v850, %v712
    %v852 = vadd.f32 %v851, %v713
    %v853 = vadd.f32 %v852, %v714
    %v854 = vadd.f32 %v853, %v715
    %v855 = vadd.f32 %v854, %v716
    %v856 = vadd.f32 %v855, %v717
    %v857 = vadd.f32 %v856, %v718
    %v858 = vadd.f32 %v857, %v719
    %v859 = vadd.f32 %v858, %v720
    %v860 = vadd.f32 %v859, %v721
    %v861 = vadd.f32 %v860, %v722
    %v862 = vadd.f32 %v861, %v723
    %v863 = vadd.f32 %v862, %v724
    %v864 = vadd.f32 %v863, %v725
    %v865 = vadd.f32 %v864, %v726
    %v866 = vadd.f32 %v865, %v727
    %v867 = vadd.f32 %v866, %v728
    %v868 = vadd.f32 %v867, %v729
    %v869 = vadd.f32 %v868, %v730
    %v870 = vadd.f32 %v869, %v731
    %v871 = vadd.f32 %v870, %v732
    %v872 = vadd.f32 %v871, %v733
    %v873 = vadd.f32 %v872, %v734
    %v874 = vadd.f32 %v873, %v735
    %v875 = vadd.f32 %v874, %v736
    %v876 = vadd.f32 %v875, %v737
    %v877 = vadd.f32 %v876, %v738
    %v878 = vsel %vm427, %v739, 0.0
    %v879 = vadd.f32 %v877, %v878
    %880 = vadd.xlane.f32.xlu0 %v879
    %v881 = vpop.xlane.xlu0 %880
    %v884 = vlaneseq
    %v885 = vshrl.u32 %v884, 7
    %v886 = vsub.s32 %v506, %v885
    %v887 = vrot.slane %v810, %v886
    %v888 = vlaneseq
    %v889 = vshrl.u32 %v888, 7
    %v890 = vsub.s32 %v506, %v889
    %v891 = vrot.slane %v881, %v890
    %v892 = vsel %vm515, %v891, %v887
    %v894 = vsel %vm518, %v892, 0.0
    %895 = vadd.xlane.f32.xlu0 %v894
    %v896 = vpop.xlane.xlu0 %895
    %v897 = vld [vmem:[%s2] sm:$0x1]
    %v899 = vlaneseq
    %v900 = vshrl.u32 %v899, 7
    %v901 = vsub.s32 0, %v900
    %v902 = vrot.slane %v897, %v901
    %v904 = vadd.f32 %v896, %v902
    %vm905 = vcmask 9224
    %906 = vst.msk [vmem:[#allocation2] sm:$0x3] %vm905, %v904
    %s907 = scalar_lea.vmem %s1, 1104
    %v908 = vld [vmem:[%s907] sm:$0xff]
    %v909 = vld [vmem:[%s907 + $0x8] sm:$0xff]
    %v910 = vld [vmem:[%s907 + $0x10] sm:$0xff]
    %v911 = vld [vmem:[%s907 + $0x18] sm:$0xff]
    %v912 = vld [vmem:[%s907 + $0x20] sm:$0xff]
    %v913 = vld [vmem:[%s907 + $0x28] sm:$0xff]
    %v914 = vld [vmem:[%s907 + $0x30] sm:$0xff]
    %v915 = vld [vmem:[%s907 + $0x38] sm:$0xff]
    %v916 = vld [vmem:[%s907 + $0x40] sm:$0xff]
    %v917 = vld [vmem:[%s907 + $0x48] sm:$0xff]
    %v918 = vld [vmem:[%s907 + $0x50] sm:$0xff]
    %v919 = vld [vmem:[%s907 + $0x58] sm:$0xff]
    %v920 = vld [vmem:[%s907 + $0x60] sm:$0xff]
    %v921 = vld [vmem:[%s907 + $0x68] sm:$0xff]
    %v922 = vld [vmem:[%s907 + $0x70] sm:$0xff]
    %v923 = vld [vmem:[%s907 + $0x78] sm:$0xff]
    %v924 = vld [vmem:[%s907 + $0x80] sm:$0xff]
    %v925 = vld [vmem:[%s907 + $0x88] sm:$0xff]
    %v926 = vld [vmem:[%s907 + $0x90] sm:$0xff]
    %v927 = vld [vmem:[%s907 + $0x98] sm:$0xff]
    %v928 = vld [vmem:[%s907 + $0xa0] sm:$0xff]
    %v929 = vld [vmem:[%s907 + $0xa8] sm:$0xff]
    %v930 = vld [vmem:[%s907 + $0xb0] sm:$0xff]
    %v931 = vld [vmem:[%s907 + $0xb8] sm:$0xff]
    %v932 = vld [vmem:[%s907 + $0xc0] sm:$0xff]
    %v933 = vld [vmem:[%s907 + $0xc8] sm:$0xff]
    %v934 = vld [vmem:[%s907 + $0xd0] sm:$0xff]
    %v935 = vld [vmem:[%s907 + $0xd8] sm:$0xff]
    %v936 = vld [vmem:[%s907 + $0xe0] sm:$0xff]
    %v937 = vld [vmem:[%s907 + $0xe8] sm:$0xff]
    %v938 = vld [vmem:[%s907 + $0xf0] sm:$0xff]
    %v939 = vld [vmem:[%s907 + $0xf8] sm:$0xff]
    %v940 = vld [vmem:[%s907 + $0x100] sm:$0xff]
    %v941 = vld [vmem:[%s907 + $0x108] sm:$0xff]
    %v942 = vld [vmem:[%s907 + $0x110] sm:$0xff]
    %v943 = vld [vmem:[%s907 + $0x118] sm:$0xff]
    %v944 = vld [vmem:[%s907 + $0x120] sm:$0xff]
    %v945 = vld [vmem:[%s907 + $0x128] sm:$0xff]
    %v946 = vld [vmem:[%s907 + $0x130] sm:$0xff]
    %v947 = vld [vmem:[%s907 + $0x138] sm:$0xff]
    %v948 = vld [vmem:[%s907 + $0x140] sm:$0xff]
    %v949 = vld [vmem:[%s907 + $0x148] sm:$0xff]
    %v950 = vld [vmem:[%s907 + $0x150] sm:$0xff]
    %v951 = vld [vmem:[%s907 + $0x158] sm:$0xff]
    %v952 = vld [vmem:[%s907 + $0x160] sm:$0xff]
    %v953 = vld [vmem:[%s907 + $0x168] sm:$0xff]
    %v954 = vld [vmem:[%s907 + $0x170] sm:$0xff]
    %v955 = vld [vmem:[%s907 + $0x178] sm:$0xff]
    %v956 = vld [vmem:[%s907 + $0x180] sm:$0xff]
    %v957 = vld [vmem:[%s907 + $0x188] sm:$0xff]
    %v958 = vld [vmem:[%s907 + $0x190] sm:$0xff]
    %v959 = vld [vmem:[%s907 + $0x198] sm:$0xff]
    %v960 = vld [vmem:[%s907 + $0x1a0] sm:$0xff]
    %v961 = vld [vmem:[%s907 + $0x1a8] sm:$0xff]
    %v962 = vld [vmem:[%s907 + $0x1b0] sm:$0xff]
    %v963 = vld [vmem:[%s907 + $0x1b8] sm:$0xff]
    %v964 = vld [vmem:[%s907 + $0x1c0] sm:$0xff]
    %v965 = vld [vmem:[%s907 + $0x1c8] sm:$0xff]
    %v966 = vld [vmem:[%s907 + $0x1d0] sm:$0xff]
    %v967 = vld [vmem:[%s907 + $0x1d8] sm:$0xff]
    %v968 = vld [vmem:[%s907 + $0x1e0] sm:$0xff]
    %v969 = vld [vmem:[%s907 + $0x1e8] sm:$0xff]
    %v970 = vld [vmem:[%s907 + $0x1f0] sm:$0xff]
    %v971 = vld [vmem:[%s907 + $0x1f8] sm:$0xff]
    %v972 = vld [vmem:[%s907 + $0x200] sm:$0xff]
    %v973 = vld [vmem:[%s907 + $0x208] sm:$0xff]
    %v974 = vld [vmem:[%s907 + $0x210] sm:$0xff]
    %v975 = vld [vmem:[%s907 + $0x218] sm:$0xff]
    %v976 = vld [vmem:[%s907 + $0x220] sm:$0xff]
    %v977 = vmul.f32 %v15, %v908
    %v978 = vmul.f32 %v16, %v909
    %v979 = vmul.f32 %v17, %v910
    %v980 = vmul.f32 %v18, %v911
    %v981 = vmul.f32 %v19, %v912
    %v982 = vmul.f32 %v20, %v913
    %v983 = vmul.f32 %v21, %v914
    %v984 = vmul.f32 %v22, %v915
    %v985 = vmul.f32 %v23, %v916
    %v986 = vmul.f32 %v24, %v917
    %v987 = vmul.f32 %v25, %v918
    %v988 = vmul.f32 %v26, %v919
    %v989 = vmul.f32 %v27, %v920
    %v990 = vmul.f32 %v28, %v921
    %v991 = vmul.f32 %v29, %v922
    %v992 = vmul.f32 %v30, %v923
    %v993 = vmul.f32 %v31, %v924
    %v994 = vmul.f32 %v32, %v925
    %v995 = vmul.f32 %v33, %v926
    %v996 = vmul.f32 %v34, %v927
    %v997 = vmul.f32 %v35, %v928
    %v998 = vmul.f32 %v36, %v929
    %v999 = vmul.f32 %v37, %v930
    %v1000 = vmul.f32 %v38, %v931
    %v1001 = vmul.f32 %v39, %v932
    %v1002 = vmul.f32 %v40, %v933
    %v1003 = vmul.f32 %v41, %v934
    %v1004 = vmul.f32 %v42, %v935
    %v1005 = vmul.f32 %v43, %v936
    %v1006 = vmul.f32 %v44, %v937
    %v1007 = vmul.f32 %v45, %v938
    %v1008 = vmul.f32 %v46, %v939
    %v1009 = vmul.f32 %v47, %v940
    %v1010 = vmul.f32 %v48, %v941
    %v1011 = vmul.f32 %v49, %v942
    %v1012 = vmul.f32 %v50, %v943
    %v1013 = vmul.f32 %v51, %v944
    %v1014 = vmul.f32 %v52, %v945
    %v1015 = vmul.f32 %v53, %v946
    %v1016 = vmul.f32 %v54, %v947
    %v1017 = vmul.f32 %v55, %v948
    %v1018 = vmul.f32 %v56, %v949
    %v1019 = vmul.f32 %v57, %v950
    %v1020 = vmul.f32 %v58, %v951
    %v1021 = vmul.f32 %v59, %v952
    %v1022 = vmul.f32 %v60, %v953
    %v1023 = vmul.f32 %v61, %v954
    %v1024 = vmul.f32 %v62, %v955
    %v1025 = vmul.f32 %v63, %v956
    %v1026 = vmul.f32 %v64, %v957
    %v1027 = vmul.f32 %v65, %v958
    %v1028 = vmul.f32 %v66, %v959
    %v1029 = vmul.f32 %v67, %v960
    %v1030 = vmul.f32 %v68, %v961
    %v1031 = vmul.f32 %v69, %v962
    %v1032 = vmul.f32 %v70, %v963
    %v1033 = vmul.f32 %v71, %v964
    %v1034 = vmul.f32 %v72, %v965
    %v1035 = vmul.f32 %v73, %v966
    %v1036 = vmul.f32 %v74, %v967
    %v1037 = vmul.f32 %v75, %v968
    %v1038 = vmul.f32 %v76, %v969
    %v1039 = vmul.f32 %v77, %v970
    %v1040 = vmul.f32 %v78, %v971
    %v1041 = vmul.f32 %v79, %v972
    %v1042 = vmul.f32 %v80, %v973
    %v1043 = vmul.f32 %v81, %v974
    %v1044 = vmul.f32 %v82, %v975
    %v1045 = vmul.f32 %v83, %v976
    %v1046 = vmul.f32 %v84, %v908
    %v1047 = vmul.f32 %v85, %v909
    %v1048 = vmul.f32 %v86, %v910
    %v1049 = vmul.f32 %v87, %v911
    %v1050 = vmul.f32 %v88, %v912
    %v1051 = vmul.f32 %v89, %v913
    %v1052 = vmul.f32 %v90, %v914
    %v1053 = vmul.f32 %v91, %v915
    %v1054 = vmul.f32 %v92, %v916
    %v1055 = vmul.f32 %v93, %v917
    %v1056 = vmul.f32 %v94, %v918
    %v1057 = vmul.f32 %v95, %v919
    %v1058 = vmul.f32 %v96, %v920
    %v1059 = vmul.f32 %v97, %v921
    %v1060 = vmul.f32 %v98, %v922
    %v1061 = vmul.f32 %v99, %v923
    %v1062 = vmul.f32 %v100, %v924
    %v1063 = vmul.f32 %v101, %v925
    %v1064 = vmul.f32 %v102, %v926
    %v1065 = vmul.f32 %v103, %v927
    %v1066 = vmul.f32 %v104, %v928
    %v1067 = vmul.f32 %v105, %v929
    %v1068 = vmul.f32 %v106, %v930
    %v1069 = vmul.f32 %v107, %v931
    %v1070 = vmul.f32 %v108, %v932
    %v1071 = vmul.f32 %v109, %v933
    %v1072 = vmul.f32 %v110, %v934
    %v1073 = vmul.f32 %v111, %v935
    %v1074 = vmul.f32 %v112, %v936
    %v1075 = vmul.f32 %v113, %v937
    %v1076 = vmul.f32 %v114, %v938
    %v1077 = vmul.f32 %v115, %v939
    %v1078 = vmul.f32 %v116, %v940
    %v1079 = vmul.f32 %v117, %v941
    %v1080 = vmul.f32 %v118, %v942
    %v1081 = vmul.f32 %v119, %v943
    %v1082 = vmul.f32 %v120, %v944
    %v1083 = vmul.f32 %v121, %v945
    %v1084 = vmul.f32 %v122, %v946
    %v1085 = vmul.f32 %v123, %v947
    %v1086 = vmul.f32 %v124, %v948
    %v1087 = vmul.f32 %v125, %v949
    %v1088 = vmul.f32 %v126, %v950
    %v1089 = vmul.f32 %v127, %v951
    %v1090 = vmul.f32 %v128, %v952
    %v1091 = vmul.f32 %v129, %v953
    %v1092 = vmul.f32 %v130, %v954
    %v1093 = vmul.f32 %v131, %v955
    %v1094 = vmul.f32 %v132, %v956
    %v1095 = vmul.f32 %v133, %v957
    %v1096 = vmul.f32 %v134, %v958
    %v1097 = vmul.f32 %v135, %v959
    %v1098 = vmul.f32 %v136, %v960
    %v1099 = vmul.f32 %v137, %v961
    %v1100 = vmul.f32 %v138, %v962
    %v1101 = vmul.f32 %v139, %v963
    %v1102 = vmul.f32 %v140, %v964
    %v1103 = vmul.f32 %v141, %v965
    %v1104 = vmul.f32 %v142, %v966
    %v1105 = vmul.f32 %v143, %v967
    %v1106 = vmul.f32 %v144, %v968
    %v1107 = vmul.f32 %v145, %v969
    %v1108 = vmul.f32 %v146, %v970
    %v1109 = vmul.f32 %v147, %v971
    %v1110 = vmul.f32 %v148, %v972
    %v1111 = vmul.f32 %v149, %v973
    %v1112 = vmul.f32 %v150, %v974
    %v1113 = vmul.f32 %v151, %v975
    %v1114 = vmul.f32 %v152, %v976
    %v1115 = vadd.f32 %v977, %v978
    %v1116 = vadd.f32 %v1115, %v979
    %v1117 = vadd.f32 %v1116, %v980
    %v1118 = vadd.f32 %v1117, %v981
    %v1119 = vadd.f32 %v1118, %v982
    %v1120 = vadd.f32 %v1119, %v983
    %v1121 = vadd.f32 %v1120, %v984
    %v1122 = vadd.f32 %v1121, %v985
    %v1123 = vadd.f32 %v1122, %v986
    %v1124 = vadd.f32 %v1123, %v987
    %v1125 = vadd.f32 %v1124, %v988
    %v1126 = vadd.f32 %v1125, %v989
    %v1127 = vadd.f32 %v1126, %v990
    %v1128 = vadd.f32 %v1127, %v991
    %v1129 = vadd.f32 %v1128, %v992
    %v1130 = vadd.f32 %v1129, %v993
    %v1131 = vadd.f32 %v1130, %v994
    %v1132 = vadd.f32 %v1131, %v995
    %v1133 = vadd.f32 %v1132, %v996
    %v1134 = vadd.f32 %v1133, %v997
    %v1135 = vadd.f32 %v1134, %v998
    %v1136 = vadd.f32 %v1135, %v999
    %v1137 = vadd.f32 %v1136, %v1000
    %v1138 = vadd.f32 %v1137, %v1001
    %v1139 = vadd.f32 %v1138, %v1002
    %v1140 = vadd.f32 %v1139, %v1003
    %v1141 = vadd.f32 %v1140, %v1004
    %v1142 = vadd.f32 %v1141, %v1005
    %v1143 = vadd.f32 %v1142, %v1006
    %v1144 = vadd.f32 %v1143, %v1007
    %v1145 = vadd.f32 %v1144, %v1008
    %v1146 = vadd.f32 %v1145, %v1009
    %v1147 = vadd.f32 %v1146, %v1010
    %v1148 = vadd.f32 %v1147, %v1011
    %v1149 = vadd.f32 %v1148, %v1012
    %v1150 = vadd.f32 %v1149, %v1013
    %v1151 = vadd.f32 %v1150, %v1014
    %v1152 = vadd.f32 %v1151, %v1015
    %v1153 = vadd.f32 %v1152, %v1016
    %v1154 = vadd.f32 %v1153, %v1017
    %v1155 = vadd.f32 %v1154, %v1018
    %v1156 = vadd.f32 %v1155, %v1019
    %v1157 = vadd.f32 %v1156, %v1020
    %v1158 = vadd.f32 %v1157, %v1021
    %v1159 = vadd.f32 %v1158, %v1022
    %v1160 = vadd.f32 %v1159, %v1023
    %v1161 = vadd.f32 %v1160, %v1024
    %v1162 = vadd.f32 %v1161, %v1025
    %v1163 = vadd.f32 %v1162, %v1026
    %v1164 = vadd.f32 %v1163, %v1027
    %v1165 = vadd.f32 %v1164, %v1028
    %v1166 = vadd.f32 %v1165, %v1029
    %v1167 = vadd.f32 %v1166, %v1030
    %v1168 = vadd.f32 %v1167, %v1031
    %v1169 = vadd.f32 %v1168, %v1032
    %v1170 = vadd.f32 %v1169, %v1033
    %v1171 = vadd.f32 %v1170, %v1034
    %v1172 = vadd.f32 %v1171, %v1035
    %v1173 = vadd.f32 %v1172, %v1036
    %v1174 = vadd.f32 %v1173, %v1037
    %v1175 = vadd.f32 %v1174, %v1038
    %v1176 = vadd.f32 %v1175, %v1039
    %v1177 = vadd.f32 %v1176, %v1040
    %v1178 = vadd.f32 %v1177, %v1041
    %v1179 = vadd.f32 %v1178, %v1042
    %v1180 = vadd.f32 %v1179, %v1043
    %v1181 = vadd.f32 %v1180, %v1044
    %v1182 = vsel %vm427, %v1045, 0.0
    %v1183 = vadd.f32 %v1181, %v1182
    %1184 = vadd.xlane.f32.xlu0 %v1183
    %v1185 = vpop.xlane.xlu0 %1184
    %v1186 = vadd.f32 %v1046, %v1047
    %v1187 = vadd.f32 %v1186, %v1048
    %v1188 = vadd.f32 %v1187, %v1049
    %v1189 = vadd.f32 %v1188, %v1050
    %v1190 = vadd.f32 %v1189, %v1051
    %v1191 = vadd.f32 %v1190, %v1052
    %v1192 = vadd.f32 %v1191, %v1053
    %v1193 = vadd.f32 %v1192, %v1054
    %v1194 = vadd.f32 %v1193, %v1055
    %v1195 = vadd.f32 %v1194, %v1056
    %v1196 = vadd.f32 %v1195, %v1057
    %v1197 = vadd.f32 %v1196, %v1058
    %v1198 = vadd.f32 %v1197, %v1059
    %v1199 = vadd.f32 %v1198, %v1060
    %v1200 = vadd.f32 %v1199, %v1061
    %v1201 = vadd.f32 %v1200, %v1062
    %v1202 = vadd.f32 %v1201, %v1063
    %v1203 = vadd.f32 %v1202, %v1064
    %v1204 = vadd.f32 %v1203, %v1065
    %v1205 = vadd.f32 %v1204, %v1066
    %v1206 = vadd.f32 %v1205, %v1067
    %v1207 = vadd.f32 %v1206, %v1068
    %v1208 = vadd.f32 %v1207, %v1069
    %v1209 = vadd.f32 %v1208, %v1070
    %v1210 = vadd.f32 %v1209, %v1071
    %v1211 = vadd.f32 %v1210, %v1072
    %v1212 = vadd.f32 %v1211, %v1073
    %v1213 = vadd.f32 %v1212, %v1074
    %v1214 = vadd.f32 %v1213, %v1075
    %v1215 = vadd.f32 %v1214, %v1076
    %v1216 = vadd.f32 %v1215, %v1077
    %v1217 = vadd.f32 %v1216, %v1078
    %v1218 = vadd.f32 %v1217, %v1079
    %v1219 = vadd.f32 %v1218, %v1080
    %v1220 = vadd.f32 %v1219, %v1081
    %v1221 = vadd.f32 %v1220, %v1082
    %v1222 = vadd.f32 %v1221, %v1083
    %v1223 = vadd.f32 %v1222, %v1084
    %v1224 = vadd.f32 %v1223, %v1085
    %v1225 = vadd.f32 %v1224, %v1086
    %v1226 = vadd.f32 %v1225, %v1087
    %v1227 = vadd.f32 %v1226, %v1088
    %v1228 = vadd.f32 %v1227, %v1089
    %v1229 = vadd.f32 %v1228, %v1090
    %v1230 = vadd.f32 %v1229, %v1091
    %v1231 = vadd.f32 %v1230, %v1092
    %v1232 = vadd.f32 %v1231, %v1093
    %v1233 = vadd.f32 %v1232, %v1094
    %v1234 = vadd.f32 %v1233, %v1095
    %v1235 = vadd.f32 %v1234, %v1096
    %v1236 = vadd.f32 %v1235, %v1097
    %v1237 = vadd.f32 %v1236, %v1098
    %v1238 = vadd.f32 %v1237, %v1099
    %v1239 = vadd.f32 %v1238, %v1100
    %v1240 = vadd.f32 %v1239, %v1101
    %v1241 = vadd.f32 %v1240, %v1102
    %v1242 = vadd.f32 %v1241, %v1103
    %v1243 = vadd.f32 %v1242, %v1104
    %v1244 = vadd.f32 %v1243, %v1105
    %v1245 = vadd.f32 %v1244, %v1106
    %v1246 = vadd.f32 %v1245, %v1107
    %v1247 = vadd.f32 %v1246, %v1108
    %v1248 = vadd.f32 %v1247, %v1109
    %v1249 = vadd.f32 %v1248, %v1110
    %v1250 = vadd.f32 %v1249, %v1111
    %v1251 = vadd.f32 %v1250, %v1112
    %v1252 = vadd.f32 %v1251, %v1113
    %v1253 = vsel %vm427, %v1114, 0.0
    %v1254 = vadd.f32 %v1252, %v1253
    %1255 = vadd.xlane.f32.xlu0 %v1254
    %v1256 = vpop.xlane.xlu0 %1255
    %v1259 = vlaneseq
    %v1260 = vshrl.u32 %v1259, 7
    %v1261 = vsub.s32 %v506, %v1260
    %v1262 = vrot.slane %v1185, %v1261
    %v1263 = vlaneseq
    %v1264 = vshrl.u32 %v1263, 7
    %v1265 = vsub.s32 %v506, %v1264
    %v1266 = vrot.slane %v1256, %v1265
    %v1267 = vsel %vm515, %v1266, %v1262
    %v1269 = vsel %vm518, %v1267, 0.0
    %1270 = vadd.xlane.f32.xlu0 %v1269
    %v1271 = vpop.xlane.xlu0 %1270
    %v1272 = vld [vmem:[%s2] sm:$0x1]
    %v1274 = vlaneseq
    %v1275 = vshrl.u32 %v1274, 7
    %v1276 = vsub.s32 0, %v1275
    %v1277 = vrot.slane %v1272, %v1276
    %v1279 = vadd.f32 %v1271, %v1277
    %vm1280 = vcmask 17424
    %1281 = vst.msk [vmem:[#allocation2] sm:$0x3] %vm1280, %v1279
    %s1282 = scalar_lea.vmem %s1, 1656
    %v1283 = vld [vmem:[%s1282] sm:$0xff]
    %v1284 = vld [vmem:[%s1282 + $0x8] sm:$0xff]
    %v1285 = vld [vmem:[%s1282 + $0x10] sm:$0xff]
    %v1286 = vld [vmem:[%s1282 + $0x18] sm:$0xff]
    %v1287 = vld [vmem:[%s1282 + $0x20] sm:$0xff]
    %v1288 = vld [vmem:[%s1282 + $0x28] sm:$0xff]
    %v1289 = vld [vmem:[%s1282 + $0x30] sm:$0xff]
    %v1290 = vld [vmem:[%s1282 + $0x38] sm:$0xff]
    %v1291 = vld [vmem:[%s1282 + $0x40] sm:$0xff]
    %v1292 = vld [vmem:[%s1282 + $0x48] sm:$0xff]
    %v1293 = vld [vmem:[%s1282 + $0x50] sm:$0xff]
    %v1294 = vld [vmem:[%s1282 + $0x58] sm:$0xff]
    %v1295 = vld [vmem:[%s1282 + $0x60] sm:$0xff]
    %v1296 = vld [vmem:[%s1282 + $0x68] sm:$0xff]
    %v1297 = vld [vmem:[%s1282 + $0x70] sm:$0xff]
    %v1298 = vld [vmem:[%s1282 + $0x78] sm:$0xff]
    %v1299 = vld [vmem:[%s1282 + $0x80] sm:$0xff]
    %v1300 = vld [vmem:[%s1282 + $0x88] sm:$0xff]
    %v1301 = vld [vmem:[%s1282 + $0x90] sm:$0xff]
    %v1302 = vld [vmem:[%s1282 + $0x98] sm:$0xff]
    %v1303 = vld [vmem:[%s1282 + $0xa0] sm:$0xff]
    %v1304 = vld [vmem:[%s1282 + $0xa8] sm:$0xff]
    %v1305 = vld [vmem:[%s1282 + $0xb0] sm:$0xff]
    %v1306 = vld [vmem:[%s1282 + $0xb8] sm:$0xff]
    %v1307 = vld [vmem:[%s1282 + $0xc0] sm:$0xff]
    %v1308 = vld [vmem:[%s1282 + $0xc8] sm:$0xff]
    %v1309 = vld [vmem:[%s1282 + $0xd0] sm:$0xff]
    %v1310 = vld [vmem:[%s1282 + $0xd8] sm:$0xff]
    %v1311 = vld [vmem:[%s1282 + $0xe0] sm:$0xff]
    %v1312 = vld [vmem:[%s1282 + $0xe8] sm:$0xff]
    %v1313 = vld [vmem:[%s1282 + $0xf0] sm:$0xff]
    %v1314 = vld [vmem:[%s1282 + $0xf8] sm:$0xff]
    %v1315 = vld [vmem:[%s1282 + $0x100] sm:$0xff]
    %v1316 = vld [vmem:[%s1282 + $0x108] sm:$0xff]
    %v1317 = vld [vmem:[%s1282 + $0x110] sm:$0xff]
    %v1318 = vld [vmem:[%s1282 + $0x118] sm:$0xff]
    %v1319 = vld [vmem:[%s1282 + $0x120] sm:$0xff]
    %v1320 = vld [vmem:[%s1282 + $0x128] sm:$0xff]
    %v1321 = vld [vmem:[%s1282 + $0x130] sm:$0xff]
    %v1322 = vld [vmem:[%s1282 + $0x138] sm:$0xff]
    %v1323 = vld [vmem:[%s1282 + $0x140] sm:$0xff]
    %v1324 = vld [vmem:[%s1282 + $0x148] sm:$0xff]
    %v1325 = vld [vmem:[%s1282 + $0x150] sm:$0xff]
    %v1326 = vld [vmem:[%s1282 + $0x158] sm:$0xff]
    %v1327 = vld [vmem:[%s1282 + $0x160] sm:$0xff]
    %v1328 = vld [vmem:[%s1282 + $0x168] sm:$0xff]
    %v1329 = vld [vmem:[%s1282 + $0x170] sm:$0xff]
    %v1330 = vld [vmem:[%s1282 + $0x178] sm:$0xff]
    %v1331 = vld [vmem:[%s1282 + $0x180] sm:$0xff]
    %v1332 = vld [vmem:[%s1282 + $0x188] sm:$0xff]
    %v1333 = vld [vmem:[%s1282 + $0x190] sm:$0xff]
    %v1334 = vld [vmem:[%s1282 + $0x198] sm:$0xff]
    %v1335 = vld [vmem:[%s1282 + $0x1a0] sm:$0xff]
    %v1336 = vld [vmem:[%s1282 + $0x1a8] sm:$0xff]
    %v1337 = vld [vmem:[%s1282 + $0x1b0] sm:$0xff]
    %v1338 = vld [vmem:[%s1282 + $0x1b8] sm:$0xff]
    %v1339 = vld [vmem:[%s1282 + $0x1c0] sm:$0xff]
    %v1340 = vld [vmem:[%s1282 + $0x1c8] sm:$0xff]
    %v1341 = vld [vmem:[%s1282 + $0x1d0] sm:$0xff]
    %v1342 = vld [vmem:[%s1282 + $0x1d8] sm:$0xff]
    %v1343 = vld [vmem:[%s1282 + $0x1e0] sm:$0xff]
    %v1344 = vld [vmem:[%s1282 + $0x1e8] sm:$0xff]
    %v1345 = vld [vmem:[%s1282 + $0x1f0] sm:$0xff]
    %v1346 = vld [vmem:[%s1282 + $0x1f8] sm:$0xff]
    %v1347 = vld [vmem:[%s1282 + $0x200] sm:$0xff]
    %v1348 = vld [vmem:[%s1282 + $0x208] sm:$0xff]
    %v1349 = vld [vmem:[%s1282 + $0x210] sm:$0xff]
    %v1350 = vld [vmem:[%s1282 + $0x218] sm:$0xff]
    %v1351 = vld [vmem:[%s1282 + $0x220] sm:$0xff]
    %v1352 = vmul.f32 %v15, %v1283
    %v1353 = vmul.f32 %v16, %v1284
    %v1354 = vmul.f32 %v17, %v1285
    %v1355 = vmul.f32 %v18, %v1286
    %v1356 = vmul.f32 %v19, %v1287
    %v1357 = vmul.f32 %v20, %v1288
    %v1358 = vmul.f32 %v21, %v1289
    %v1359 = vmul.f32 %v22, %v1290
    %v1360 = vmul.f32 %v23, %v1291
    %v1361 = vmul.f32 %v24, %v1292
    %v1362 = vmul.f32 %v25, %v1293
    %v1363 = vmul.f32 %v26, %v1294
    %v1364 = vmul.f32 %v27, %v1295
    %v1365 = vmul.f32 %v28, %v1296
    %v1366 = vmul.f32 %v29, %v1297
    %v1367 = vmul.f32 %v30, %v1298
    %v1368 = vmul.f32 %v31, %v1299
    %v1369 = vmul.f32 %v32, %v1300
    %v1370 = vmul.f32 %v33, %v1301
    %v1371 = vmul.f32 %v34, %v1302
    %v1372 = vmul.f32 %v35, %v1303
    %v1373 = vmul.f32 %v36, %v1304
    %v1374 = vmul.f32 %v37, %v1305
    %v1375 = vmul.f32 %v38, %v1306
    %v1376 = vmul.f32 %v39, %v1307
    %v1377 = vmul.f32 %v40, %v1308
    %v1378 = vmul.f32 %v41, %v1309
    %v1379 = vmul.f32 %v42, %v1310
    %v1380 = vmul.f32 %v43, %v1311
    %v1381 = vmul.f32 %v44, %v1312
    %v1382 = vmul.f32 %v45, %v1313
    %v1383 = vmul.f32 %v46, %v1314
    %v1384 = vmul.f32 %v47, %v1315
    %v1385 = vmul.f32 %v48, %v1316
    %v1386 = vmul.f32 %v49, %v1317
    %v1387 = vmul.f32 %v50, %v1318
    %v1388 = vmul.f32 %v51, %v1319
    %v1389 = vmul.f32 %v52, %v1320
    %v1390 = vmul.f32 %v53, %v1321
    %v1391 = vmul.f32 %v54, %v1322
    %v1392 = vmul.f32 %v55, %v1323
    %v1393 = vmul.f32 %v56, %v1324
    %v1394 = vmul.f32 %v57, %v1325
    %v1395 = vmul.f32 %v58, %v1326
    %v1396 = vmul.f32 %v59, %v1327
    %v1397 = vmul.f32 %v60, %v1328
    %v1398 = vmul.f32 %v61, %v1329
    %v1399 = vmul.f32 %v62, %v1330
    %v1400 = vmul.f32 %v63, %v1331
    %v1401 = vmul.f32 %v64, %v1332
    %v1402 = vmul.f32 %v65, %v1333
    %v1403 = vmul.f32 %v66, %v1334
    %v1404 = vmul.f32 %v67, %v1335
    %v1405 = vmul.f32 %v68, %v1336
    %v1406 = vmul.f32 %v69, %v1337
    %v1407 = vmul.f32 %v70, %v1338
    %v1408 = vmul.f32 %v71, %v1339
    %v1409 = vmul.f32 %v72, %v1340
    %v1410 = vmul.f32 %v73, %v1341
    %v1411 = vmul.f32 %v74, %v1342
    %v1412 = vmul.f32 %v75, %v1343
    %v1413 = vmul.f32 %v76, %v1344
    %v1414 = vmul.f32 %v77, %v1345
    %v1415 = vmul.f32 %v78, %v1346
    %v1416 = vmul.f32 %v79, %v1347
    %v1417 = vmul.f32 %v80, %v1348
    %v1418 = vmul.f32 %v81, %v1349
    %v1419 = vmul.f32 %v82, %v1350
    %v1420 = vmul.f32 %v83, %v1351
    %v1421 = vmul.f32 %v84, %v1283
    %v1422 = vmul.f32 %v85, %v1284
    %v1423 = vmul.f32 %v86, %v1285
    %v1424 = vmul.f32 %v87, %v1286
    %v1425 = vmul.f32 %v88, %v1287
    %v1426 = vmul.f32 %v89, %v1288
    %v1427 = vmul.f32 %v90, %v1289
    %v1428 = vmul.f32 %v91, %v1290
    %v1429 = vmul.f32 %v92, %v1291
    %v1430 = vmul.f32 %v93, %v1292
    %v1431 = vmul.f32 %v94, %v1293
    %v1432 = vmul.f32 %v95, %v1294
    %v1433 = vmul.f32 %v96, %v1295
    %v1434 = vmul.f32 %v97, %v1296
    %v1435 = vmul.f32 %v98, %v1297
    %v1436 = vmul.f32 %v99, %v1298
    %v1437 = vmul.f32 %v100, %v1299
    %v1438 = vmul.f32 %v101, %v1300
    %v1439 = vmul.f32 %v102, %v1301
    %v1440 = vmul.f32 %v103, %v1302
    %v1441 = vmul.f32 %v104, %v1303
    %v1442 = vmul.f32 %v105, %v1304
    %v1443 = vmul.f32 %v106, %v1305
    %v1444 = vmul.f32 %v107, %v1306
    %v1445 = vmul.f32 %v108, %v1307
    %v1446 = vmul.f32 %v109, %v1308
    %v1447 = vmul.f32 %v110, %v1309
    %v1448 = vmul.f32 %v111, %v1310
    %v1449 = vmul.f32 %v112, %v1311
    %v1450 = vmul.f32 %v113, %v1312
    %v1451 = vmul.f32 %v114, %v1313
    %v1452 = vmul.f32 %v115, %v1314
    %v1453 = vmul.f32 %v116, %v1315
    %v1454 = vmul.f32 %v117, %v1316
    %v1455 = vmul.f32 %v118, %v1317
    %v1456 = vmul.f32 %v119, %v1318
    %v1457 = vmul.f32 %v120, %v1319
    %v1458 = vmul.f32 %v121, %v1320
    %v1459 = vmul.f32 %v122, %v1321
    %v1460 = vmul.f32 %v123, %v1322
    %v1461 = vmul.f32 %v124, %v1323
    %v1462 = vmul.f32 %v125, %v1324
    %v1463 = vmul.f32 %v126, %v1325
    %v1464 = vmul.f32 %v127, %v1326
    %v1465 = vmul.f32 %v128, %v1327
    %v1466 = vmul.f32 %v129, %v1328
    %v1467 = vmul.f32 %v130, %v1329
    %v1468 = vmul.f32 %v131, %v1330
    %v1469 = vmul.f32 %v132, %v1331
    %v1470 = vmul.f32 %v133, %v1332
    %v1471 = vmul.f32 %v134, %v1333
    %v1472 = vmul.f32 %v135, %v1334
    %v1473 = vmul.f32 %v136, %v1335
    %v1474 = vmul.f32 %v137, %v1336
    %v1475 = vmul.f32 %v138, %v1337
    %v1476 = vmul.f32 %v139, %v1338
    %v1477 = vmul.f32 %v140, %v1339
    %v1478 = vmul.f32 %v141, %v1340
    %v1479 = vmul.f32 %v142, %v1341
    %v1480 = vmul.f32 %v143, %v1342
    %v1481 = vmul.f32 %v144, %v1343
    %v1482 = vmul.f32 %v145, %v1344
    %v1483 = vmul.f32 %v146, %v1345
    %v1484 = vmul.f32 %v147, %v1346
    %v1485 = vmul.f32 %v148, %v1347
    %v1486 = vmul.f32 %v149, %v1348
    %v1487 = vmul.f32 %v150, %v1349
    %v1488 = vmul.f32 %v151, %v1350
    %v1489 = vmul.f32 %v152, %v1351
    %v1490 = vadd.f32 %v1352, %v1353
    %v1491 = vadd.f32 %v1490, %v1354
    %v1492 = vadd.f32 %v1491, %v1355
    %v1493 = vadd.f32 %v1492, %v1356
    %v1494 = vadd.f32 %v1493, %v1357
    %v1495 = vadd.f32 %v1494, %v1358
    %v1496 = vadd.f32 %v1495, %v1359
    %v1497 = vadd.f32 %v1496, %v1360
    %v1498 = vadd.f32 %v1497, %v1361
    %v1499 = vadd.f32 %v1498, %v1362
    %v1500 = vadd.f32 %v1499, %v1363
    %v1501 = vadd.f32 %v1500, %v1364
    %v1502 = vadd.f32 %v1501, %v1365
    %v1503 = vadd.f32 %v1502, %v1366
    %v1504 = vadd.f32 %v1503, %v1367
    %v1505 = vadd.f32 %v1504, %v1368
    %v1506 = vadd.f32 %v1505, %v1369
    %v1507 = vadd.f32 %v1506, %v1370
    %v1508 = vadd.f32 %v1507, %v1371
    %v1509 = vadd.f32 %v1508, %v1372
    %v1510 = vadd.f32 %v1509, %v1373
    %v1511 = vadd.f32 %v1510, %v1374
    %v1512 = vadd.f32 %v1511, %v1375
    %v1513 = vadd.f32 %v1512, %v1376
    %v1514 = vadd.f32 %v1513, %v1377
    %v1515 = vadd.f32 %v1514, %v1378
    %v1516 = vadd.f32 %v1515, %v1379
    %v1517 = vadd.f32 %v1516, %v1380
    %v1518 = vadd.f32 %v1517, %v1381
    %v1519 = vadd.f32 %v1518, %v1382
    %v1520 = vadd.f32 %v1519, %v1383
    %v1521 = vadd.f32 %v1520, %v1384
    %v1522 = vadd.f32 %v1521, %v1385
    %v1523 = vadd.f32 %v1522, %v1386
    %v1524 = vadd.f32 %v1523, %v1387
    %v1525 = vadd.f32 %v1524, %v1388
    %v1526 = vadd.f32 %v1525, %v1389
    %v1527 = vadd.f32 %v1526, %v1390
    %v1528 = vadd.f32 %v1527, %v1391
    %v1529 = vadd.f32 %v1528, %v1392
    %v1530 = vadd.f32 %v1529, %v1393
    %v1531 = vadd.f32 %v1530, %v1394
    %v1532 = vadd.f32 %v1531, %v1395
    %v1533 = vadd.f32 %v1532, %v1396
    %v1534 = vadd.f32 %v1533, %v1397
    %v1535 = vadd.f32 %v1534, %v1398
    %v1536 = vadd.f32 %v1535, %v1399
    %v1537 = vadd.f32 %v1536, %v1400
    %v1538 = vadd.f32 %v1537, %v1401
    %v1539 = vadd.f32 %v1538, %v1402
    %v1540 = vadd.f32 %v1539, %v1403
    %v1541 = vadd.f32 %v1540, %v1404
    %v1542 = vadd.f32 %v1541, %v1405
    %v1543 = vadd.f32 %v1542, %v1406
    %v1544 = vadd.f32 %v1543, %v1407
    %v1545 = vadd.f32 %v1544, %v1408
    %v1546 = vadd.f32 %v1545, %v1409
    %v1547 = vadd.f32 %v1546, %v1410
    %v1548 = vadd.f32 %v1547, %v1411
    %v1549 = vadd.f32 %v1548, %v1412
    %v1550 = vadd.f32 %v1549, %v1413
    %v1551 = vadd.f32 %v1550, %v1414
    %v1552 = vadd.f32 %v1551, %v1415
    %v1553 = vadd.f32 %v1552, %v1416
    %v1554 = vadd.f32 %v1553, %v1417
    %v1555 = vadd.f32 %v1554, %v1418
    %v1556 = vadd.f32 %v1555, %v1419
    %v1557 = vsel %vm427, %v1420, 0.0
    %v1558 = vadd.f32 %v1556, %v1557
    %1559 = vadd.xlane.f32.xlu0 %v1558
    %v1560 = vpop.xlane.xlu0 %1559
    %v1561 = vadd.f32 %v1421, %v1422
    %v1562 = vadd.f32 %v1561, %v1423
    %v1563 = vadd.f32 %v1562, %v1424
    %v1564 = vadd.f32 %v1563, %v1425
    %v1565 = vadd.f32 %v1564, %v1426
    %v1566 = vadd.f32 %v1565, %v1427
    %v1567 = vadd.f32 %v1566, %v1428
    %v1568 = vadd.f32 %v1567, %v1429
    %v1569 = vadd.f32 %v1568, %v1430
    %v1570 = vadd.f32 %v1569, %v1431
    %v1571 = vadd.f32 %v1570, %v1432
    %v1572 = vadd.f32 %v1571, %v1433
    %v1573 = vadd.f32 %v1572, %v1434
    %v1574 = vadd.f32 %v1573, %v1435
    %v1575 = vadd.f32 %v1574, %v1436
    %v1576 = vadd.f32 %v1575, %v1437
    %v1577 = vadd.f32 %v1576, %v1438
    %v1578 = vadd.f32 %v1577, %v1439
    %v1579 = vadd.f32 %v1578, %v1440
    %v1580 = vadd.f32 %v1579, %v1441
    %v1581 = vadd.f32 %v1580, %v1442
    %v1582 = vadd.f32 %v1581, %v1443
    %v1583 = vadd.f32 %v1582, %v1444
    %v1584 = vadd.f32 %v1583, %v1445
    %v1585 = vadd.f32 %v1584, %v1446
    %v1586 = vadd.f32 %v1585, %v1447
    %v1587 = vadd.f32 %v1586, %v1448
    %v1588 = vadd.f32 %v1587, %v1449
    %v1589 = vadd.f32 %v1588, %v1450
    %v1590 = vadd.f32 %v1589, %v1451
    %v1591 = vadd.f32 %v1590, %v1452
    %v1592 = vadd.f32 %v1591, %v1453
    %v1593 = vadd.f32 %v1592, %v1454
    %v1594 = vadd.f32 %v1593, %v1455
    %v1595 = vadd.f32 %v1594, %v1456
    %v1596 = vadd.f32 %v1595, %v1457
    %v1597 = vadd.f32 %v1596, %v1458
    %v1598 = vadd.f32 %v1597, %v1459
    %v1599 = vadd.f32 %v1598, %v1460
    %v1600 = vadd.f32 %v1599, %v1461
    %v1601 = vadd.f32 %v1600, %v1462
    %v1602 = vadd.f32 %v1601, %v1463
    %v1603 = vadd.f32 %v1602, %v1464
    %v1604 = vadd.f32 %v1603, %v1465
    %v1605 = vadd.f32 %v1604, %v1466
    %v1606 = vadd.f32 %v1605, %v1467
    %v1607 = vadd.f32 %v1606, %v1468
    %v1608 = vadd.f32 %v1607, %v1469
    %v1609 = vadd.f32 %v1608, %v1470
    %v1610 = vadd.f32 %v1609, %v1471
    %v1611 = vadd.f32 %v1610, %v1472
    %v1612 = vadd.f32 %v1611, %v1473
    %v1613 = vadd.f32 %v1612, %v1474
    %v1614 = vadd.f32 %v1613, %v1475
    %v1615 = vadd.f32 %v1614, %v1476
    %v1616 = vadd.f32 %v1615, %v1477
    %v1617 = vadd.f32 %v1616, %v1478
    %v1618 = vadd.f32 %v1617, %v1479
    %v1619 = vadd.f32 %v1618, %v1480
    %v1620 = vadd.f32 %v1619, %v1481
    %v1621 = vadd.f32 %v1620, %v1482
    %v1622 = vadd.f32 %v1621, %v1483
    %v1623 = vadd.f32 %v1622, %v1484
    %v1624 = vadd.f32 %v1623, %v1485
    %v1625 = vadd.f32 %v1624, %v1486
    %v1626 = vadd.f32 %v1625, %v1487
    %v1627 = vadd.f32 %v1626, %v1488
    %v1628 = vsel %vm427, %v1489, 0.0
    %v1629 = vadd.f32 %v1627, %v1628
    %1630 = vadd.xlane.f32.xlu0 %v1629
    %v1631 = vpop.xlane.xlu0 %1630
    %v1634 = vlaneseq
    %v1635 = vshrl.u32 %v1634, 7
    %v1636 = vsub.s32 %v506, %v1635
    %v1637 = vrot.slane %v1560, %v1636
    %v1638 = vlaneseq
    %v1639 = vshrl.u32 %v1638, 7
    %v1640 = vsub.s32 %v506, %v1639
    %v1641 = vrot.slane %v1631, %v1640
    %v1642 = vsel %vm515, %v1641, %v1637
    %v1644 = vsel %vm518, %v1642, 0.0
    %1645 = vadd.xlane.f32.xlu0 %v1644
    %v1646 = vpop.xlane.xlu0 %1645
    %v1647 = vld [vmem:[%s2] sm:$0x1]
    %v1649 = vlaneseq
    %v1650 = vshrl.u32 %v1649, 7
    %v1651 = vsub.s32 0, %v1650
    %v1652 = vrot.slane %v1647, %v1651
    %v1654 = vadd.f32 %v1646, %v1652
    %vm1655 = vcmask 25624
    %1656 = vst.msk [vmem:[#allocation2] sm:$0x3] %vm1655, %v1654
    %s1657 = scalar_lea.vmem %s1, 2208
    %v1658 = vld [vmem:[%s1657] sm:$0xff]
    %v1659 = vld [vmem:[%s1657 + $0x8] sm:$0xff]
    %v1660 = vld [vmem:[%s1657 + $0x10] sm:$0xff]
    %v1661 = vld [vmem:[%s1657 + $0x18] sm:$0xff]
    %v1662 = vld [vmem:[%s1657 + $0x20] sm:$0xff]
    %v1663 = vld [vmem:[%s1657 + $0x28] sm:$0xff]
    %v1664 = vld [vmem:[%s1657 + $0x30] sm:$0xff]
    %v1665 = vld [vmem:[%s1657 + $0x38] sm:$0xff]
    %v1666 = vld [vmem:[%s1657 + $0x40] sm:$0xff]
    %v1667 = vld [vmem:[%s1657 + $0x48] sm:$0xff]
    %v1668 = vld [vmem:[%s1657 + $0x50] sm:$0xff]
    %v1669 = vld [vmem:[%s1657 + $0x58] sm:$0xff]
    %v1670 = vld [vmem:[%s1657 + $0x60] sm:$0xff]
    %v1671 = vld [vmem:[%s1657 + $0x68] sm:$0xff]
    %v1672 = vld [vmem:[%s1657 + $0x70] sm:$0xff]
    %v1673 = vld [vmem:[%s1657 + $0x78] sm:$0xff]
    %v1674 = vld [vmem:[%s1657 + $0x80] sm:$0xff]
    %v1675 = vld [vmem:[%s1657 + $0x88] sm:$0xff]
    %v1676 = vld [vmem:[%s1657 + $0x90] sm:$0xff]
    %v1677 = vld [vmem:[%s1657 + $0x98] sm:$0xff]
    %v1678 = vld [vmem:[%s1657 + $0xa0] sm:$0xff]
    %v1679 = vld [vmem:[%s1657 + $0xa8] sm:$0xff]
    %v1680 = vld [vmem:[%s1657 + $0xb0] sm:$0xff]
    %v1681 = vld [vmem:[%s1657 + $0xb8] sm:$0xff]
    %v1682 = vld [vmem:[%s1657 + $0xc0] sm:$0xff]
    %v1683 = vld [vmem:[%s1657 + $0xc8] sm:$0xff]
    %v1684 = vld [vmem:[%s1657 + $0xd0] sm:$0xff]
    %v1685 = vld [vmem:[%s1657 + $0xd8] sm:$0xff]
    %v1686 = vld [vmem:[%s1657 + $0xe0] sm:$0xff]
    %v1687 = vld [vmem:[%s1657 + $0xe8] sm:$0xff]
    %v1688 = vld [vmem:[%s1657 + $0xf0] sm:$0xff]
    %v1689 = vld [vmem:[%s1657 + $0xf8] sm:$0xff]
    %v1690 = vld [vmem:[%s1657 + $0x100] sm:$0xff]
    %v1691 = vld [vmem:[%s1657 + $0x108] sm:$0xff]
    %v1692 = vld [vmem:[%s1657 + $0x110] sm:$0xff]
    %v1693 = vld [vmem:[%s1657 + $0x118] sm:$0xff]
    %v1694 = vld [vmem:[%s1657 + $0x120] sm:$0xff]
    %v1695 = vld [vmem:[%s1657 + $0x128] sm:$0xff]
    %v1696 = vld [vmem:[%s1657 + $0x130] sm:$0xff]
    %v1697 = vld [vmem:[%s1657 + $0x138] sm:$0xff]
    %v1698 = vld [vmem:[%s1657 + $0x140] sm:$0xff]
    %v1699 = vld [vmem:[%s1657 + $0x148] sm:$0xff]
    %v1700 = vld [vmem:[%s1657 + $0x150] sm:$0xff]
    %v1701 = vld [vmem:[%s1657 + $0x158] sm:$0xff]
    %v1702 = vld [vmem:[%s1657 + $0x160] sm:$0xff]
    %v1703 = vld [vmem:[%s1657 + $0x168] sm:$0xff]
    %v1704 = vld [vmem:[%s1657 + $0x170] sm:$0xff]
    %v1705 = vld [vmem:[%s1657 + $0x178] sm:$0xff]
    %v1706 = vld [vmem:[%s1657 + $0x180] sm:$0xff]
    %v1707 = vld [vmem:[%s1657 + $0x188] sm:$0xff]
    %v1708 = vld [vmem:[%s1657 + $0x190] sm:$0xff]
    %v1709 = vld [vmem:[%s1657 + $0x198] sm:$0xff]
    %v1710 = vld [vmem:[%s1657 + $0x1a0] sm:$0xff]
    %v1711 = vld [vmem:[%s1657 + $0x1a8] sm:$0xff]
    %v1712 = vld [vmem:[%s1657 + $0x1b0] sm:$0xff]
    %v1713 = vld [vmem:[%s1657 + $0x1b8] sm:$0xff]
    %v1714 = vld [vmem:[%s1657 + $0x1c0] sm:$0xff]
    %v1715 = vld [vmem:[%s1657 + $0x1c8] sm:$0xff]
    %v1716 = vld [vmem:[%s1657 + $0x1d0] sm:$0xff]
    %v1717 = vld [vmem:[%s1657 + $0x1d8] sm:$0xff]
    %v1718 = vld [vmem:[%s1657 + $0x1e0] sm:$0xff]
    %v1719 = vld [vmem:[%s1657 + $0x1e8] sm:$0xff]
    %v1720 = vld [vmem:[%s1657 + $0x1f0] sm:$0xff]
    %v1721 = vld [vmem:[%s1657 + $0x1f8] sm:$0xff]
    %v1722 = vld [vmem:[%s1657 + $0x200] sm:$0xff]
    %v1723 = vld [vmem:[%s1657 + $0x208] sm:$0xff]
    %v1724 = vld [vmem:[%s1657 + $0x210] sm:$0xff]
    %v1725 = vld [vmem:[%s1657 + $0x218] sm:$0xff]
    %v1726 = vld [vmem:[%s1657 + $0x220] sm:$0xff]
    %v1727 = vmul.f32 %v15, %v1658
    %v1728 = vmul.f32 %v16, %v1659
    %v1729 = vmul.f32 %v17, %v1660
    %v1730 = vmul.f32 %v18, %v1661
    %v1731 = vmul.f32 %v19, %v1662
    %v1732 = vmul.f32 %v20, %v1663
    %v1733 = vmul.f32 %v21, %v1664
    %v1734 = vmul.f32 %v22, %v1665
    %v1735 = vmul.f32 %v23, %v1666
    %v1736 = vmul.f32 %v24, %v1667
    %v1737 = vmul.f32 %v25, %v1668
    %v1738 = vmul.f32 %v26, %v1669
    %v1739 = vmul.f32 %v27, %v1670
    %v1740 = vmul.f32 %v28, %v1671
    %v1741 = vmul.f32 %v29, %v1672
    %v1742 = vmul.f32 %v30, %v1673
    %v1743 = vmul.f32 %v31, %v1674
    %v1744 = vmul.f32 %v32, %v1675
    %v1745 = vmul.f32 %v33, %v1676
    %v1746 = vmul.f32 %v34, %v1677
    %v1747 = vmul.f32 %v35, %v1678
    %v1748 = vmul.f32 %v36, %v1679
    %v1749 = vmul.f32 %v37, %v1680
    %v1750 = vmul.f32 %v38, %v1681
    %v1751 = vmul.f32 %v39, %v1682
    %v1752 = vmul.f32 %v40, %v1683
    %v1753 = vmul.f32 %v41, %v1684
    %v1754 = vmul.f32 %v42, %v1685
    %v1755 = vmul.f32 %v43, %v1686
    %v1756 = vmul.f32 %v44, %v1687
    %v1757 = vmul.f32 %v45, %v1688
    %v1758 = vmul.f32 %v46, %v1689
    %v1759 = vmul.f32 %v47, %v1690
    %v1760 = vmul.f32 %v48, %v1691
    %v1761 = vmul.f32 %v49, %v1692
    %v1762 = vmul.f32 %v50, %v1693
    %v1763 = vmul.f32 %v51, %v1694
    %v1764 = vmul.f32 %v52, %v1695
    %v1765 = vmul.f32 %v53, %v1696
    %v1766 = vmul.f32 %v54, %v1697
    %v1767 = vmul.f32 %v55, %v1698
    %v1768 = vmul.f32 %v56, %v1699
    %v1769 = vmul.f32 %v57, %v1700
    %v1770 = vmul.f32 %v58, %v1701
    %v1771 = vmul.f32 %v59, %v1702
    %v1772 = vmul.f32 %v60, %v1703
    %v1773 = vmul.f32 %v61, %v1704
    %v1774 = vmul.f32 %v62, %v1705
    %v1775 = vmul.f32 %v63, %v1706
    %v1776 = vmul.f32 %v64, %v1707
    %v1777 = vmul.f32 %v65, %v1708
    %v1778 = vmul.f32 %v66, %v1709
    %v1779 = vmul.f32 %v67, %v1710
    %v1780 = vmul.f32 %v68, %v1711
    %v1781 = vmul.f32 %v69, %v1712
    %v1782 = vmul.f32 %v70, %v1713
    %v1783 = vmul.f32 %v71, %v1714
    %v1784 = vmul.f32 %v72, %v1715
    %v1785 = vmul.f32 %v73, %v1716
    %v1786 = vmul.f32 %v74, %v1717
    %v1787 = vmul.f32 %v75, %v1718
    %v1788 = vmul.f32 %v76, %v1719
    %v1789 = vmul.f32 %v77, %v1720
    %v1790 = vmul.f32 %v78, %v1721
    %v1791 = vmul.f32 %v79, %v1722
    %v1792 = vmul.f32 %v80, %v1723
    %v1793 = vmul.f32 %v81, %v1724
    %v1794 = vmul.f32 %v82, %v1725
    %v1795 = vmul.f32 %v83, %v1726
    %v1796 = vmul.f32 %v84, %v1658
    %v1797 = vmul.f32 %v85, %v1659
    %v1798 = vmul.f32 %v86, %v1660
    %v1799 = vmul.f32 %v87, %v1661
    %v1800 = vmul.f32 %v88, %v1662
    %v1801 = vmul.f32 %v89, %v1663
    %v1802 = vmul.f32 %v90, %v1664
    %v1803 = vmul.f32 %v91, %v1665
    %v1804 = vmul.f32 %v92, %v1666
    %v1805 = vmul.f32 %v93, %v1667
    %v1806 = vmul.f32 %v94, %v1668
    %v1807 = vmul.f32 %v95, %v1669
    %v1808 = vmul.f32 %v96, %v1670
    %v1809 = vmul.f32 %v97, %v1671
    %v1810 = vmul.f32 %v98, %v1672
    %v1811 = vmul.f32 %v99, %v1673
    %v1812 = vmul.f32 %v100, %v1674
    %v1813 = vmul.f32 %v101, %v1675
    %v1814 = vmul.f32 %v102, %v1676
    %v1815 = vmul.f32 %v103, %v1677
    %v1816 = vmul.f32 %v104, %v1678
    %v1817 = vmul.f32 %v105, %v1679
    %v1818 = vmul.f32 %v106, %v1680
    %v1819 = vmul.f32 %v107, %v1681
    %v1820 = vmul.f32 %v108, %v1682
    %v1821 = vmul.f32 %v109, %v1683
    %v1822 = vmul.f32 %v110, %v1684
    %v1823 = vmul.f32 %v111, %v1685
    %v1824 = vmul.f32 %v112, %v1686
    %v1825 = vmul.f32 %v113, %v1687
    %v1826 = vmul.f32 %v114, %v1688
    %v1827 = vmul.f32 %v115, %v1689
    %v1828 = vmul.f32 %v116, %v1690
    %v1829 = vmul.f32 %v117, %v1691
    %v1830 = vmul.f32 %v118, %v1692
    %v1831 = vmul.f32 %v119, %v1693
    %v1832 = vmul.f32 %v120, %v1694
    %v1833 = vmul.f32 %v121, %v1695
    %v1834 = vmul.f32 %v122, %v1696
    %v1835 = vmul.f32 %v123, %v1697
    %v1836 = vmul.f32 %v124, %v1698
    %v1837 = vmul.f32 %v125, %v1699
    %v1838 = vmul.f32 %v126, %v1700
    %v1839 = vmul.f32 %v127, %v1701
    %v1840 = vmul.f32 %v128, %v1702
    %v1841 = vmul.f32 %v129, %v1703
    %v1842 = vmul.f32 %v130, %v1704
    %v1843 = vmul.f32 %v131, %v1705
    %v1844 = vmul.f32 %v132, %v1706
    %v1845 = vmul.f32 %v133, %v1707
    %v1846 = vmul.f32 %v134, %v1708
    %v1847 = vmul.f32 %v135, %v1709
    %v1848 = vmul.f32 %v136, %v1710
    %v1849 = vmul.f32 %v137, %v1711
    %v1850 = vmul.f32 %v138, %v1712
    %v1851 = vmul.f32 %v139, %v1713
    %v1852 = vmul.f32 %v140, %v1714
    %v1853 = vmul.f32 %v141, %v1715
    %v1854 = vmul.f32 %v142, %v1716
    %v1855 = vmul.f32 %v143, %v1717
    %v1856 = vmul.f32 %v144, %v1718
    %v1857 = vmul.f32 %v145, %v1719
    %v1858 = vmul.f32 %v146, %v1720
    %v1859 = vmul.f32 %v147, %v1721
    %v1860 = vmul.f32 %v148, %v1722
    %v1861 = vmul.f32 %v149, %v1723
    %v1862 = vmul.f32 %v150, %v1724
    %v1863 = vmul.f32 %v151, %v1725
    %v1864 = vmul.f32 %v152, %v1726
    %v1865 = vadd.f32 %v1727, %v1728
    %v1866 = vadd.f32 %v1865, %v1729
    %v1867 = vadd.f32 %v1866, %v1730
    %v1868 = vadd.f32 %v1867, %v1731
    %v1869 = vadd.f32 %v1868, %v1732
    %v1870 = vadd.f32 %v1869, %v1733
    %v1871 = vadd.f32 %v1870, %v1734
    %v1872 = vadd.f32 %v1871, %v1735
    %v1873 = vadd.f32 %v1872, %v1736
    %v1874 = vadd.f32 %v1873, %v1737
    %v1875 = vadd.f32 %v1874, %v1738
    %v1876 = vadd.f32 %v1875, %v1739
    %v1877 = vadd.f32 %v1876, %v1740
    %v1878 = vadd.f32 %v1877, %v1741
    %v1879 = vadd.f32 %v1878, %v1742
    %v1880 = vadd.f32 %v1879, %v1743
    %v1881 = vadd.f32 %v1880, %v1744
    %v1882 = vadd.f32 %v1881, %v1745
    %v1883 = vadd.f32 %v1882, %v1746
    %v1884 = vadd.f32 %v1883, %v1747
    %v1885 = vadd.f32 %v1884, %v1748
    %v1886 = vadd.f32 %v1885, %v1749
    %v1887 = vadd.f32 %v1886, %v1750
    %v1888 = vadd.f32 %v1887, %v1751
    %v1889 = vadd.f32 %v1888, %v1752
    %v1890 = vadd.f32 %v1889, %v1753
    %v1891 = vadd.f32 %v1890, %v1754
    %v1892 = vadd.f32 %v1891, %v1755
    %v1893 = vadd.f32 %v1892, %v1756
    %v1894 = vadd.f32 %v1893, %v1757
    %v1895 = vadd.f32 %v1894, %v1758
    %v1896 = vadd.f32 %v1895, %v1759
    %v1897 = vadd.f32 %v1896, %v1760
    %v1898 = vadd.f32 %v1897, %v1761
    %v1899 = vadd.f32 %v1898, %v1762
    %v1900 = vadd.f32 %v1899, %v1763
    %v1901 = vadd.f32 %v1900, %v1764
    %v1902 = vadd.f32 %v1901, %v1765
    %v1903 = vadd.f32 %v1902, %v1766
    %v1904 = vadd.f32 %v1903, %v1767
    %v1905 = vadd.f32 %v1904, %v1768
    %v1906 = vadd.f32 %v1905, %v1769
    %v1907 = vadd.f32 %v1906, %v1770
    %v1908 = vadd.f32 %v1907, %v1771
    %v1909 = vadd.f32 %v1908, %v1772
    %v1910 = vadd.f32 %v1909, %v1773
    %v1911 = vadd.f32 %v1910, %v1774
    %v1912 = vadd.f32 %v1911, %v1775
    %v1913 = vadd.f32 %v1912, %v1776
    %v1914 = vadd.f32 %v1913, %v1777
    %v1915 = vadd.f32 %v1914, %v1778
    %v1916 = vadd.f32 %v1915, %v1779
    %v1917 = vadd.f32 %v1916, %v1780
    %v1918 = vadd.f32 %v1917, %v1781
    %v1919 = vadd.f32 %v1918, %v1782
    %v1920 = vadd.f32 %v1919, %v1783
    %v1921 = vadd.f32 %v1920, %v1784
    %v1922 = vadd.f32 %v1921, %v1785
    %v1923 = vadd.f32 %v1922, %v1786
    %v1924 = vadd.f32 %v1923, %v1787
    %v1925 = vadd.f32 %v1924, %v1788
    %v1926 = vadd.f32 %v1925, %v1789
    %v1927 = vadd.f32 %v1926, %v1790
    %v1928 = vadd.f32 %v1927, %v1791
    %v1929 = vadd.f32 %v1928, %v1792
    %v1930 = vadd.f32 %v1929, %v1793
    %v1931 = vadd.f32 %v1930, %v1794
    %v1932 = vsel %vm427, %v1795, 0.0
    %v1933 = vadd.f32 %v1931, %v1932
    %1934 = vadd.xlane.f32.xlu0 %v1933
    %v1935 = vpop.xlane.xlu0 %1934
    %v1936 = vadd.f32 %v1796, %v1797
    %v1937 = vadd.f32 %v1936, %v1798
    %v1938 = vadd.f32 %v1937, %v1799
    %v1939 = vadd.f32 %v1938, %v1800
    %v1940 = vadd.f32 %v1939, %v1801
    %v1941 = vadd.f32 %v1940, %v1802
    %v1942 = vadd.f32 %v1941, %v1803
    %v1943 = vadd.f32 %v1942, %v1804
    %v1944 = vadd.f32 %v1943, %v1805
    %v1945 = vadd.f32 %v1944, %v1806
    %v1946 = vadd.f32 %v1945, %v1807
    %v1947 = vadd.f32 %v1946, %v1808
    %v1948 = vadd.f32 %v1947, %v1809
    %v1949 = vadd.f32 %v1948, %v1810
    %v1950 = vadd.f32 %v1949, %v1811
    %v1951 = vadd.f32 %v1950, %v1812
    %v1952 = vadd.f32 %v1951, %v1813
    %v1953 = vadd.f32 %v1952, %v1814
    %v1954 = vadd.f32 %v1953, %v1815
    %v1955 = vadd.f32 %v1954, %v1816
    %v1956 = vadd.f32 %v1955, %v1817
    %v1957 = vadd.f32 %v1956, %v1818
    %v1958 = vadd.f32 %v1957, %v1819
    %v1959 = vadd.f32 %v1958, %v1820
    %v1960 = vadd.f32 %v1959, %v1821
    %v1961 = vadd.f32 %v1960, %v1822
    %v1962 = vadd.f32 %v1961, %v1823
    %v1963 = vadd.f32 %v1962, %v1824
    %v1964 = vadd.f32 %v1963, %v1825
    %v1965 = vadd.f32 %v1964, %v1826
    %v1966 = vadd.f32 %v1965, %v1827
    %v1967 = vadd.f32 %v1966, %v1828
    %v1968 = vadd.f32 %v1967, %v1829
    %v1969 = vadd.f32 %v1968, %v1830
    %v1970 = vadd.f32 %v1969, %v1831
    %v1971 = vadd.f32 %v1970, %v1832
    %v1972 = vadd.f32 %v1971, %v1833
    %v1973 = vadd.f32 %v1972, %v1834
    %v1974 = vadd.f32 %v1973, %v1835
    %v1975 = vadd.f32 %v1974, %v1836
    %v1976 = vadd.f32 %v1975, %v1837
    %v1977 = vadd.f32 %v1976, %v1838
    %v1978 = vadd.f32 %v1977, %v1839
    %v1979 = vadd.f32 %v1978, %v1840
    %v1980 = vadd.f32 %v1979, %v1841
    %v1981 = vadd.f32 %v1980, %v1842
    %v1982 = vadd.f32 %v1981, %v1843
    %v1983 = vadd.f32 %v1982, %v1844
    %v1984 = vadd.f32 %v1983, %v1845
    %v1985 = vadd.f32 %v1984, %v1846
    %v1986 = vadd.f32 %v1985, %v1847
    %v1987 = vadd.f32 %v1986, %v1848
    %v1988 = vadd.f32 %v1987, %v1849
    %v1989 = vadd.f32 %v1988, %v1850
    %v1990 = vadd.f32 %v1989, %v1851
    %v1991 = vadd.f32 %v1990, %v1852
    %v1992 = vadd.f32 %v1991, %v1853
    %v1993 = vadd.f32 %v1992, %v1854
    %v1994 = vadd.f32 %v1993, %v1855
    %v1995 = vadd.f32 %v1994, %v1856
    %v1996 = vadd.f32 %v1995, %v1857
    %v1997 = vadd.f32 %v1996, %v1858
    %v1998 = vadd.f32 %v1997, %v1859
    %v1999 = vadd.f32 %v1998, %v1860
    %v2000 = vadd.f32 %v1999, %v1861
    %v2001 = vadd.f32 %v2000, %v1862
    %v2002 = vadd.f32 %v2001, %v1863
    %v2003 = vsel %vm427, %v1864, 0.0
    %v2004 = vadd.f32 %v2002, %v2003
    %2005 = vadd.xlane.f32.xlu0 %v2004
    %v2006 = vpop.xlane.xlu0 %2005
    %v2009 = vlaneseq
    %v2010 = vshrl.u32 %v2009, 7
    %v2011 = vsub.s32 %v506, %v2010
    %v2012 = vrot.slane %v1935, %v2011
    %v2013 = vlaneseq
    %v2014 = vshrl.u32 %v2013, 7
    %v2015 = vsub.s32 %v506, %v2014
    %v2016 = vrot.slane %v2006, %v2015
    %v2017 = vsel %vm515, %v2016, %v2012
    %v2019 = vsel %vm518, %v2017, 0.0
    %2020 = vadd.xlane.f32.xlu0 %v2019
    %v2021 = vpop.xlane.xlu0 %2020
    %v2022 = vld [vmem:[%s2] sm:$0x1]
    %v2024 = vlaneseq
    %v2025 = vshrl.u32 %v2024, 7
    %v2026 = vsub.s32 0, %v2025
    %v2027 = vrot.slane %v2022, %v2026
    %v2029 = vadd.f32 %v2021, %v2027
    %vm2030 = vcmask 33824
    %2031 = vst.msk [vmem:[#allocation2] sm:$0x3] %vm2030, %v2029
    // Predicated region
    $region14: #{alexnet_extreme_forward.5} parent=1 // pred_check
      _
    $region15: #{alexnet_extreme_forward.5} parent=1 // pred_check_branch
      %2033 = sbr.rel (0) target = $region17
    $region16: #{alexnet_extreme_forward.5} parent=1 // pred_region
      %s2035 = ssub.s32 32, 32
      %2036 = vsyncadd [#allocation3], %s2035
      %s2038 = sshll.u32 [#allocation2], 4
      %s2039 = int_to_ptr.vmem [resolvable:$true] %s2038
      %2041 = dma.vmem_to_hbm [thread:$0]  %s2039, 32, %s3, [#allocation3]
    $region17: #{alexnet_extreme_forward.5} parent=1 // pred_fallthru
      _
    // Predicated region
    $region18: #{alexnet_extreme_forward.5} parent=1 // pred_check
      _
    $region19: #{alexnet_extreme_forward.5} parent=1 // pred_check_branch
      %2043 = sbr.rel (0) target = $region21
    $region20: #{alexnet_extreme_forward.5} parent=1 // pred_region
      %2044 = dma.done [#allocation3], 32
    $region21: #{alexnet_extreme_forward.5} parent=1 // pred_fallthru
      _
    %2045 = vsyncpa [#allocation3], 1

</llo_original>
